<compile_context>
chip_gen: v7x
topology: tpu7x:2x2x1
jax: 0.10.0
libtpu: 0.0.40
codegen_flags: <defaults>
</compile_context>

<pallas_src>
import jax
import jax.numpy as jnp
from jax.experimental import pallas as pl
from jax.experimental.pallas import tpu as pltpu


# ---------------------------------------------------------------------------
# Fused Pallas kernel: BT images per grid step, whole forward pass
# ---------------------------------------------------------------------------
def _net_kernel(xf_ref, wb1_ref, b1_ref, wb2_ref, b2_ref, f1_ref, fb1_ref,
                fw2_ref, fb2_ref, fw3_ref, fb3_ref, out_ref):
    bt = xf_ref.shape[0]
    x = xf_ref[...]                                                    # (BT,52,128) bf16

    # ---- conv1: ONE MXU matmul vs block-Toeplitz weights, M = BT*48 ------
    a1 = jnp.concatenate([x[:, kh:kh + 48, :] for kh in range(5)], axis=2)       # (BT,48,640)
    y1 = jnp.dot(a1.reshape(bt * 48, 640), wb1_ref[...],
                 preferred_element_type=jnp.float32).reshape(bt, 48, 384)
    # fused 2x2 max-pool + bias + ReLU (bias/ReLU commute with max)
    hp1 = jnp.maximum(y1[:, 0:40, :], y1[:, 1:41, :])                            # pool rows
    wp1 = jnp.maximum(hp1[:, :, 0:256], hp1[:, :, 8:264])                        # pool cols
    yp1 = jnp.maximum(wp1 + b1_ref[...], 0.0).astype(jnp.bfloat16)               # (BT,40,256)

    # ---- conv2: ONE MXU matmul, M = BT*32 --------------------------------
    a2 = jnp.concatenate([yp1[:, 2 * k:2 * k + 32, :] for k in range(5)], axis=2)  # (BT,32,1280)
    y2 = jnp.dot(a2.reshape(bt * 32, 1280), wb2_ref[...],
                 preferred_element_type=jnp.float32).reshape(bt, 32, 256)
    hp2 = jnp.maximum(y2[:, 0:30, :], y2[:, 2:32, :])                            # pool rows
    sh2 = jnp.concatenate([hp2[:, :, 16:256], hp2[:, :, 0:16]], axis=2)          # lanes shifted +16
    wp2 = jnp.maximum(hp2, sh2)                                                  # pool cols, 256 lanes
    h2 = jnp.maximum(wp2 + b2_ref[...], 0.0).astype(jnp.bfloat16)                # (BT,30,256)

    # ---- flatten as 256-lane-aligned slabs (8 sublanes / image) + fc1/2/3 --
    # Row b*8 of z is image b's flatten (torch view(-1,400) order baked into f1);
    # the 7 extra rows per image are finite garbage that the wrapper drops.
    z8 = jnp.concatenate([h2[:, 4 * t:4 * t + 8, :] for t in range(5)], axis=2)  # (BT,8,1280)
    z = z8.reshape(bt * 8, 1280)
    h = jnp.dot(z, f1_ref[...], preferred_element_type=jnp.float32) + fb1_ref[...]
    h = jnp.maximum(h, 0.0).astype(jnp.bfloat16)
    h = jnp.dot(h, fw2_ref[...], preferred_element_type=jnp.float32) + fb2_ref[...]
    h = jnp.maximum(h, 0.0).astype(jnp.bfloat16)
    res = jnp.dot(h, fw3_ref[...], preferred_element_type=jnp.float32) + fb3_ref[...]
    out_ref[...] = res                                                           # (BT*8,128) dense


# ---------------------------------------------------------------------------
# Parameter init (shapes match Net.__init__) and kernel-side packing
# ---------------------------------------------------------------------------
def init_params(key):
    ks = jax.random.split(key, 10)

    def u(k, shape, fan_in):
        bound = 1.0 / (fan_in ** 0.5)
        return jax.random.uniform(k, shape, jnp.float32, -bound, bound)

    return dict(
        w1=u(ks[0], (5, 5, 3, 6), 3 * 25), b1=u(ks[1], (6,), 3 * 25),      # conv1 (HWIO)
        w2=u(ks[2], (5, 5, 6, 16), 6 * 25), b2=u(ks[3], (16,), 6 * 25),    # conv2 (HWIO)
        fw1=u(ks[4], (400, 120), 400), fb1=u(ks[5], (120,), 400),
        fw2=u(ks[6], (120, 84), 120), fb2=u(ks[7], (84,), 120),
        fw3=u(ks[8], (84, 10), 84), fb3=u(ks[9], (10,), 84),
    )


def pack_params(p):
    """Build block-Toeplitz conv matrices + 128-padded FC weights (one-time).

    Matmul operands are stored as bf16 (MXU-native); biases stay f32.
    """
    f32, bf16 = jnp.float32, jnp.bfloat16

    # conv1: Wb1[kh*128 + (w+kw)*3 + ci, w*8 + co] = w1[kh,kw,ci,co]
    wr1 = p["w1"].reshape(5, 15, 6)                       # (kh, kw*3+ci, co)
    wb1 = jnp.zeros((5, 128, 384), f32)
    for w in range(28):
        wb1 = wb1.at[:, w * 3:w * 3 + 15, w * 8:w * 8 + 6].set(wr1)
    wb1 = wb1.reshape(640, 384).astype(bf16)
    b1pat = jnp.tile(jnp.pad(p["b1"], (0, 2)).reshape(1, 1, 8), (1, 32, 1)).reshape(1, 256)

    # conv2: Wb2[kh*256 + (2*(j2+kw2))*8 + c, j2*16 + c2] = w2[kh,kw2,c,c2]
    wb2 = jnp.zeros((5, 256, 256), f32)
    for j2 in range(10):
        for kw2 in range(5):
            g = 2 * (j2 + kw2)
            wb2 = wb2.at[:, g * 8:g * 8 + 6, j2 * 16:j2 * 16 + 16].set(p["w2"][:, kw2, :, :])
    wb2 = wb2.reshape(1280, 256).astype(bf16)
    b2pat = jnp.tile(p["b2"].reshape(1, 1, 16), (1, 16, 1)).reshape(1, 256)

    # fc1 with torch view(-1, 400) order (c2*25 + t*5 + u) baked in and the
    # flatten laid out as five 256-lane slabs: F1[t*256 + 32u + c2, n].
    f1r = p["fw1"].reshape(16, 5, 5, 120)                 # (c2, t, u, n)
    f1 = jnp.zeros((5, 256, 128), f32)
    for u in range(5):
        blk = jnp.transpose(f1r[:, :, u, :], (1, 0, 2))   # (t, c2, n)
        f1 = f1.at[:, 32 * u:32 * u + 16, :120].set(blk)
    f1 = f1.reshape(1280, 128).astype(bf16)

    fb1p = jnp.zeros((1, 128), f32).at[0, :120].set(p["fb1"])
    fw2p = jnp.zeros((128, 128), f32).at[:120, :84].set(p["fw2"]).astype(bf16)
    fb2p = jnp.zeros((1, 128), f32).at[0, :84].set(p["fb2"])
    fw3p = jnp.zeros((128, 128), f32).at[:84, :10].set(p["fw3"]).astype(bf16)
    fb3p = jnp.zeros((1, 128), f32).at[0, :10].set(p["fb3"])

    return (wb1, b1pat.astype(f32), wb2, b2pat.astype(f32), f1,
            fb1p, fw2p, fb2p, fw3p, fb3p)


# ---------------------------------------------------------------------------
# Forward pass (matches Net.forward)
# ---------------------------------------------------------------------------
def _round_up(x, m):
    return (x + m - 1) // m * m


def net_forward(x_nchw, packed, block_b=16):
    # BT=16: conv M dims 768/512 (x256 for v6e/v7x MXU, x128 for v5e);
    # ~7 MiB peak VMEM -> fits the scoped defaults on v5e/v6e/v7x.
    x = jnp.transpose(x_nchw, (0, 2, 3, 1)).astype(jnp.float32)        # NHWC
    B = x.shape[0]
    bt = min(block_b, _round_up(B, 8))                                 # multiple of 8
    Bp = _round_up(B, bt)
    nsteps = Bp // bt

    # (B,32,32,3) -> (Bp,52,128): lane = w*3 + ci; zero-pad batch/rows/lanes.
    xf = jnp.pad(x.reshape(B, 32, 96), ((0, Bp - B), (0, 20), (0, 32)))
    xf = xf.astype(jnp.bfloat16)                                       # bf16 MXU operand

    const_specs = [pl.BlockSpec(c.shape, lambda b: (0, 0)) for c in packed]
    flops = 2 * Bp * (48 * 640 * 384 + 32 * 1280 * 256
                      + 8 * (1280 * 128 + 128 * 128 + 128 * 128))
    bytes_accessed = (int(xf.size) * 2 + Bp * 8 * 128 * 4
                      + sum(int(c.size) * c.dtype.itemsize for c in packed))

    out = pl.pallas_call(
        _net_kernel,
        out_shape=jax.ShapeDtypeStruct((Bp * 8, 128), jnp.float32),
        grid=(nsteps,),
        in_specs=[pl.BlockSpec((bt, 52, 128), lambda b: (b, 0, 0))] + const_specs,
        out_specs=pl.BlockSpec((bt * 8, 128), lambda b: (b, 0)),
        compiler_params=pltpu.CompilerParams(dimension_semantics=("parallel",)),
        cost_estimate=pl.CostEstimate(flops=flops, transcendentals=0,
                                      bytes_accessed=bytes_accessed),
    )(xf, *packed)
    # image b's logits live in row b*8, lanes 0..9
    return out[0:B * 8:8, :10]


# ---------------------------------------------------------------------------
# Pure-JAX reference (sanity check)
# ---------------------------------------------------------------------------
def reference_forward(x_nchw, p):
    w1 = jnp.transpose(p["w1"], (3, 2, 0, 1))   # HWIO -> OIHW
    w2 = jnp.transpose(p["w2"], (3, 2, 0, 1))

    def conv(x, w, b):
        y = jax.lax.conv_general_dilated(
            x, w, (1, 1), "VALID", dimension_numbers=("NCHW", "OIHW", "NCHW"))
        return y + b.reshape(1, -1, 1, 1)

    def pool(x):
        return jax.lax.reduce_window(x, -jnp.inf, jax.lax.max,
                                     (1, 1, 2, 2), (1, 1, 2, 2), "VALID")

    h = pool(jax.nn.relu(conv(x_nchw, w1, p["b1"])))
    h = pool(jax.nn.relu(conv(h, w2, p["b2"])))
    h = h.reshape(h.shape[0], -1)
    h = jax.nn.relu(h @ p["fw1"] + p["fb1"])
    h = jax.nn.relu(h @ p["fw2"] + p["fb2"])
    return h @ p["fw3"] + p["fb3"]


if __name__ == "__main__":
    key = jax.random.PRNGKey(0)
    kx, kp = jax.random.split(key)
    # 32x32 spatial is required by the module (16*5*5 flatten); batch = 2.
    x = jax.random.normal(kx, (2, 3, 32, 32), jnp.float32)             # NCHW like PyTorch
    params = init_params(kp)
    packed = pack_params(params)                                       # one-time weight prep

    out = jax.block_until_ready(jax.jit(net_forward)(x, packed))
    ref = reference_forward(x, params)

    assert out.shape == (2, 10), out.shape
    # bf16 matmuls w/ f32 accumulation; any packing/index bug shows up as O(1) error.
    assert jnp.allclose(out, ref, rtol=1e-1, atol=1e-1), float(jnp.max(jnp.abs(out - ref)))
    print("KERNEL_OK")
</pallas_src>

<mosaic_0001>
module attributes {stable_mosaic.version = 11 : i64} {
  func.func @_net_kernel(%arg0: i32, %arg1: memref<8x52x128xbf16, #tpu.memory_space<vmem>>, %arg2: memref<640x384xbf16, #tpu.memory_space<vmem>>, %arg3: memref<1x256xf32, #tpu.memory_space<vmem>>, %arg4: memref<1280x256xbf16, #tpu.memory_space<vmem>>, %arg5: memref<1x256xf32, #tpu.memory_space<vmem>>, %arg6: memref<1280x128xbf16, #tpu.memory_space<vmem>>, %arg7: memref<1x128xf32, #tpu.memory_space<vmem>>, %arg8: memref<128x128xbf16, #tpu.memory_space<vmem>>, %arg9: memref<1x128xf32, #tpu.memory_space<vmem>>, %arg10: memref<128x128xbf16, #tpu.memory_space<vmem>>, %arg11: memref<1x128xf32, #tpu.memory_space<vmem>>, %arg12: memref<64x128xf32, #tpu.memory_space<vmem>>) attributes {dimension_semantics = [#tpu.dimension_semantics<parallel>], iteration_bounds = array<i64: 1>, scalar_prefetch = 0 : i64, scratch_operands = 0 : i64, tpu.core_type = #tpu.core_type<tc>, window_params = [{transform_indices = @transform_0, window_bounds = array<i64: 8, 52, 128>}, {pipeline_mode = #tpu.pipeline_mode<synchronous>, transform_indices = @transform_1, window_bounds = array<i64: 640, 384>}, {pipeline_mode = #tpu.pipeline_mode<synchronous>, transform_indices = @transform_2, window_bounds = array<i64: 1, 256>}, {pipeline_mode = #tpu.pipeline_mode<synchronous>, transform_indices = @transform_3, window_bounds = array<i64: 1280, 256>}, {pipeline_mode = #tpu.pipeline_mode<synchronous>, transform_indices = @transform_4, window_bounds = array<i64: 1, 256>}, {pipeline_mode = #tpu.pipeline_mode<synchronous>, transform_indices = @transform_5, window_bounds = array<i64: 1280, 128>}, {pipeline_mode = #tpu.pipeline_mode<synchronous>, transform_indices = @transform_6, window_bounds = array<i64: 1, 128>}, {pipeline_mode = #tpu.pipeline_mode<synchronous>, transform_indices = @transform_7, window_bounds = array<i64: 128, 128>}, {pipeline_mode = #tpu.pipeline_mode<synchronous>, transform_indices = @transform_8, window_bounds = array<i64: 1, 128>}, {pipeline_mode = #tpu.pipeline_mode<synchronous>, transform_indices = @transform_9, window_bounds = array<i64: 128, 128>}, {pipeline_mode = #tpu.pipeline_mode<synchronous>, transform_indices = @transform_10, window_bounds = array<i64: 1, 128>}, {transform_indices = @transform_11, window_bounds = array<i64: 64, 128>}]} {
    %c0 = arith.constant 0 : index
    %c0_0 = arith.constant 0 : index
    %c0_1 = arith.constant 0 : index
    %0 = vector.load %arg1[%c0, %c0_0, %c0_1] : memref<8x52x128xbf16, #tpu.memory_space<vmem>>, vector<8x52x128xbf16>
    %1 = vector.extract_strided_slice %0 {offsets = [0, 0, 0], sizes = [8, 48, 128], strides = [1, 1, 1]} : vector<8x52x128xbf16> to vector<8x48x128xbf16>
    %2 = vector.extract_strided_slice %0 {offsets = [0, 1, 0], sizes = [8, 48, 128], strides = [1, 1, 1]} : vector<8x52x128xbf16> to vector<8x48x128xbf16>
    %3 = vector.extract_strided_slice %0 {offsets = [0, 2, 0], sizes = [8, 48, 128], strides = [1, 1, 1]} : vector<8x52x128xbf16> to vector<8x48x128xbf16>
    %4 = vector.extract_strided_slice %0 {offsets = [0, 3, 0], sizes = [8, 48, 128], strides = [1, 1, 1]} : vector<8x52x128xbf16> to vector<8x48x128xbf16>
    %5 = vector.extract_strided_slice %0 {offsets = [0, 4, 0], sizes = [8, 48, 128], strides = [1, 1, 1]} : vector<8x52x128xbf16> to vector<8x48x128xbf16>
    %6 = tpu.concatenate %1, %2, %3, %4, %5 in 2 : vector<8x48x128xbf16>, vector<8x48x128xbf16>, vector<8x48x128xbf16>, vector<8x48x128xbf16>, vector<8x48x128xbf16> -> vector<8x48x640xbf16>
    %7 = vector.shape_cast %6 : vector<8x48x640xbf16> to vector<384x640xbf16>
    %c0_2 = arith.constant 0 : index
    %c0_3 = arith.constant 0 : index
    %8 = vector.load %arg2[%c0_2, %c0_3] : memref<640x384xbf16, #tpu.memory_space<vmem>>, vector<640x384xbf16>
    %cst = arith.constant dense<0.000000e+00> : vector<384x384xf32>
    %9 = tpu.matmul %7, %8, %cst {dimension_numbers = #tpu.dot_dimension_numbers<[1], [0], [0], [1], [0, 0, 1, 1], [], []>} : vector<384x640xbf16>, vector<640x384xbf16>, vector<384x384xf32> -> vector<384x384xf32>
    %10 = vector.shape_cast %9 : vector<384x384xf32> to vector<8x48x384xf32>
    %11 = vector.extract_strided_slice %10 {offsets = [0, 0, 0], sizes = [8, 40, 384], strides = [1, 1, 1]} : vector<8x48x384xf32> to vector<8x40x384xf32>
    %12 = vector.extract_strided_slice %10 {offsets = [0, 1, 0], sizes = [8, 40, 384], strides = [1, 1, 1]} : vector<8x48x384xf32> to vector<8x40x384xf32>
    %13 = arith.maximumf %11, %12 : vector<8x40x384xf32>
    %14 = vector.extract_strided_slice %13 {offsets = [0, 0, 0], sizes = [8, 40, 256], strides = [1, 1, 1]} : vector<8x40x384xf32> to vector<8x40x256xf32>
    %15 = vector.extract_strided_slice %13 {offsets = [0, 0, 8], sizes = [8, 40, 256], strides = [1, 1, 1]} : vector<8x40x384xf32> to vector<8x40x256xf32>
    %16 = arith.maximumf %14, %15 : vector<8x40x256xf32>
    %c0_4 = arith.constant 0 : index
    %c0_5 = arith.constant 0 : index
    %17 = vector.load %arg3[%c0_4, %c0_5] : memref<1x256xf32, #tpu.memory_space<vmem>>, vector<1x256xf32>
    %18 = vector.shape_cast %17 : vector<1x256xf32> to vector<1x1x256xf32>
    %19 = vector.broadcast %18 : vector<1x1x256xf32> to vector<8x40x256xf32>
    %20 = arith.addf %16, %19 : vector<8x40x256xf32>
    %cst_6 = arith.constant 0.000000e+00 : f32
    %21 = vector.broadcast %cst_6 : f32 to vector<8x40x256xf32>
    %22 = arith.maximumf %20, %21 : vector<8x40x256xf32>
    %23 = arith.truncf %22 : vector<8x40x256xf32> to vector<8x40x256xbf16>
    %24 = vector.extract_strided_slice %23 {offsets = [0, 0, 0], sizes = [8, 32, 256], strides = [1, 1, 1]} : vector<8x40x256xbf16> to vector<8x32x256xbf16>
    %25 = vector.extract_strided_slice %23 {offsets = [0, 2, 0], sizes = [8, 32, 256], strides = [1, 1, 1]} : vector<8x40x256xbf16> to vector<8x32x256xbf16>
    %26 = vector.extract_strided_slice %23 {offsets = [0, 4, 0], sizes = [8, 32, 256], strides = [1, 1, 1]} : vector<8x40x256xbf16> to vector<8x32x256xbf16>
    %27 = vector.extract_strided_slice %23 {offsets = [0, 6, 0], sizes = [8, 32, 256], strides = [1, 1, 1]} : vector<8x40x256xbf16> to vector<8x32x256xbf16>
    %28 = vector.extract_strided_slice %23 {offsets = [0, 8, 0], sizes = [8, 32, 256], strides = [1, 1, 1]} : vector<8x40x256xbf16> to vector<8x32x256xbf16>
    %29 = tpu.concatenate %24, %25, %26, %27, %28 in 2 : vector<8x32x256xbf16>, vector<8x32x256xbf16>, vector<8x32x256xbf16>, vector<8x32x256xbf16>, vector<8x32x256xbf16> -> vector<8x32x1280xbf16>
    %30 = vector.shape_cast %29 : vector<8x32x1280xbf16> to vector<256x1280xbf16>
    %c0_7 = arith.constant 0 : index
    %c0_8 = arith.constant 0 : index
    %31 = vector.load %arg4[%c0_7, %c0_8] : memref<1280x256xbf16, #tpu.memory_space<vmem>>, vector<1280x256xbf16>
    %cst_9 = arith.constant dense<0.000000e+00> : vector<256x256xf32>
    %32 = tpu.matmul %30, %31, %cst_9 {dimension_numbers = #tpu.dot_dimension_numbers<[1], [0], [0], [1], [0, 0, 1, 1], [], []>} : vector<256x1280xbf16>, vector<1280x256xbf16>, vector<256x256xf32> -> vector<256x256xf32>
    %33 = vector.shape_cast %32 : vector<256x256xf32> to vector<8x32x256xf32>
    %34 = vector.extract_strided_slice %33 {offsets = [0, 0, 0], sizes = [8, 30, 256], strides = [1, 1, 1]} : vector<8x32x256xf32> to vector<8x30x256xf32>
    %35 = vector.extract_strided_slice %33 {offsets = [0, 2, 0], sizes = [8, 30, 256], strides = [1, 1, 1]} : vector<8x32x256xf32> to vector<8x30x256xf32>
    %36 = arith.maximumf %34, %35 : vector<8x30x256xf32>
    %37 = vector.extract_strided_slice %36 {offsets = [0, 0, 16], sizes = [8, 30, 240], strides = [1, 1, 1]} : vector<8x30x256xf32> to vector<8x30x240xf32>
    %38 = vector.extract_strided_slice %36 {offsets = [0, 0, 0], sizes = [8, 30, 16], strides = [1, 1, 1]} : vector<8x30x256xf32> to vector<8x30x16xf32>
    %39 = tpu.concatenate %37, %38 in 2 : vector<8x30x240xf32>, vector<8x30x16xf32> -> vector<8x30x256xf32>
    %40 = arith.maximumf %36, %39 : vector<8x30x256xf32>
    %c0_10 = arith.constant 0 : index
    %c0_11 = arith.constant 0 : index
    %41 = vector.load %arg5[%c0_10, %c0_11] : memref<1x256xf32, #tpu.memory_space<vmem>>, vector<1x256xf32>
    %42 = vector.shape_cast %41 : vector<1x256xf32> to vector<1x1x256xf32>
    %43 = vector.broadcast %42 : vector<1x1x256xf32> to vector<8x30x256xf32>
    %44 = arith.addf %40, %43 : vector<8x30x256xf32>
    %cst_12 = arith.constant 0.000000e+00 : f32
    %45 = vector.broadcast %cst_12 : f32 to vector<8x30x256xf32>
    %46 = arith.maximumf %44, %45 : vector<8x30x256xf32>
    %47 = arith.truncf %46 : vector<8x30x256xf32> to vector<8x30x256xbf16>
    %48 = vector.extract_strided_slice %47 {offsets = [0, 0, 0], sizes = [8, 8, 256], strides = [1, 1, 1]} : vector<8x30x256xbf16> to vector<8x8x256xbf16>
    %49 = vector.extract_strided_slice %47 {offsets = [0, 4, 0], sizes = [8, 8, 256], strides = [1, 1, 1]} : vector<8x30x256xbf16> to vector<8x8x256xbf16>
    %50 = vector.extract_strided_slice %47 {offsets = [0, 8, 0], sizes = [8, 8, 256], strides = [1, 1, 1]} : vector<8x30x256xbf16> to vector<8x8x256xbf16>
    %51 = vector.extract_strided_slice %47 {offsets = [0, 12, 0], sizes = [8, 8, 256], strides = [1, 1, 1]} : vector<8x30x256xbf16> to vector<8x8x256xbf16>
    %52 = vector.extract_strided_slice %47 {offsets = [0, 16, 0], sizes = [8, 8, 256], strides = [1, 1, 1]} : vector<8x30x256xbf16> to vector<8x8x256xbf16>
    %53 = tpu.concatenate %48, %49, %50, %51, %52 in 2 : vector<8x8x256xbf16>, vector<8x8x256xbf16>, vector<8x8x256xbf16>, vector<8x8x256xbf16>, vector<8x8x256xbf16> -> vector<8x8x1280xbf16>
    %54 = vector.shape_cast %53 : vector<8x8x1280xbf16> to vector<64x1280xbf16>
    %c0_13 = arith.constant 0 : index
    %c0_14 = arith.constant 0 : index
    %55 = vector.load %arg6[%c0_13, %c0_14] : memref<1280x128xbf16, #tpu.memory_space<vmem>>, vector<1280x128xbf16>
    %cst_15 = arith.constant dense<0.000000e+00> : vector<64x128xf32>
    %56 = tpu.matmul %54, %55, %cst_15 {dimension_numbers = #tpu.dot_dimension_numbers<[1], [0], [0], [1], [0, 0, 1, 1], [], []>} : vector<64x1280xbf16>, vector<1280x128xbf16>, vector<64x128xf32> -> vector<64x128xf32>
    %c0_16 = arith.constant 0 : index
    %c0_17 = arith.constant 0 : index
    %57 = vector.load %arg7[%c0_16, %c0_17] : memref<1x128xf32, #tpu.memory_space<vmem>>, vector<1x128xf32>
    %58 = vector.broadcast %57 : vector<1x128xf32> to vector<64x128xf32>
    %59 = arith.addf %56, %58 : vector<64x128xf32>
    %cst_18 = arith.constant 0.000000e+00 : f32
    %60 = vector.broadcast %cst_18 : f32 to vector<64x128xf32>
    %61 = arith.maximumf %59, %60 : vector<64x128xf32>
    %62 = arith.truncf %61 : vector<64x128xf32> to vector<64x128xbf16>
    %c0_19 = arith.constant 0 : index
    %c0_20 = arith.constant 0 : index
    %63 = vector.load %arg8[%c0_19, %c0_20] : memref<128x128xbf16, #tpu.memory_space<vmem>>, vector<128x128xbf16>
    %cst_21 = arith.constant dense<0.000000e+00> : vector<64x128xf32>
    %64 = tpu.matmul %62, %63, %cst_21 {dimension_numbers = #tpu.dot_dimension_numbers<[1], [0], [0], [1], [0, 0, 1, 1], [], []>} : vector<64x128xbf16>, vector<128x128xbf16>, vector<64x128xf32> -> vector<64x128xf32>
    %c0_22 = arith.constant 0 : index
    %c0_23 = arith.constant 0 : index
    %65 = vector.load %arg9[%c0_22, %c0_23] : memref<1x128xf32, #tpu.memory_space<vmem>>, vector<1x128xf32>
    %66 = vector.broadcast %65 : vector<1x128xf32> to vector<64x128xf32>
    %67 = arith.addf %64, %66 : vector<64x128xf32>
    %cst_24 = arith.constant 0.000000e+00 : f32
    %68 = vector.broadcast %cst_24 : f32 to vector<64x128xf32>
    %69 = arith.maximumf %67, %68 : vector<64x128xf32>
    %70 = arith.truncf %69 : vector<64x128xf32> to vector<64x128xbf16>
    %c0_25 = arith.constant 0 : index
    %c0_26 = arith.constant 0 : index
    %71 = vector.load %arg10[%c0_25, %c0_26] : memref<128x128xbf16, #tpu.memory_space<vmem>>, vector<128x128xbf16>
    %cst_27 = arith.constant dense<0.000000e+00> : vector<64x128xf32>
    %72 = tpu.matmul %70, %71, %cst_27 {dimension_numbers = #tpu.dot_dimension_numbers<[1], [0], [0], [1], [0, 0, 1, 1], [], []>} : vector<64x128xbf16>, vector<128x128xbf16>, vector<64x128xf32> -> vector<64x128xf32>
    %c0_28 = arith.constant 0 : index
    %c0_29 = arith.constant 0 : index
    %73 = vector.load %arg11[%c0_28, %c0_29] : memref<1x128xf32, #tpu.memory_space<vmem>>, vector<1x128xf32>
    %74 = vector.broadcast %73 : vector<1x128xf32> to vector<64x128xf32>
    %75 = arith.addf %72, %74 : vector<64x128xf32>
    %c0_30 = arith.constant 0 : index
    %c0_31 = arith.constant 0 : index
    %76 = vector.load %arg12[%c0_30, %c0_31] : memref<64x128xf32, #tpu.memory_space<vmem>>, vector<64x128xf32>
    tpu.vector_store %arg12[%c0_30, %c0_31], %75 {strides = array<i32>} : memref<64x128xf32, #tpu.memory_space<vmem>>, vector<64x128xf32>,
    return
  }
  func.func @transform_0(%arg0: i32) -> (i32, i32, i32) {
    %c0_i32 = arith.constant 0 : i32
    %c0_i32_0 = arith.constant 0 : i32
    %c0_i32_1 = arith.constant 0 : i32
    return %arg0, %c0_i32, %c0_i32_0 : i32, i32, i32
  }
  func.func @transform_1(%arg0: i32) -> (i32, i32) {
    %c0_i32 = arith.constant 0 : i32
    %c0_i32_0 = arith.constant 0 : i32
    %c0_i32_1 = arith.constant 0 : i32
    return %c0_i32, %c0_i32_0 : i32, i32
  }
  func.func @transform_2(%arg0: i32) -> (i32, i32) {
    %c0_i32 = arith.constant 0 : i32
    %c0_i32_0 = arith.constant 0 : i32
    %c0_i32_1 = arith.constant 0 : i32
    return %c0_i32, %c0_i32_0 : i32, i32
  }
  func.func @transform_3(%arg0: i32) -> (i32, i32) {
    %c0_i32 = arith.constant 0 : i32
    %c0_i32_0 = arith.constant 0 : i32
    %c0_i32_1 = arith.constant 0 : i32
    return %c0_i32, %c0_i32_0 : i32, i32
  }
  func.func @transform_4(%arg0: i32) -> (i32, i32) {
    %c0_i32 = arith.constant 0 : i32
    %c0_i32_0 = arith.constant 0 : i32
    %c0_i32_1 = arith.constant 0 : i32
    return %c0_i32, %c0_i32_0 : i32, i32
  }
  func.func @transform_5(%arg0: i32) -> (i32, i32) {
    %c0_i32 = arith.constant 0 : i32
    %c0_i32_0 = arith.constant 0 : i32
    %c0_i32_1 = arith.constant 0 : i32
    return %c0_i32, %c0_i32_0 : i32, i32
  }
  func.func @transform_6(%arg0: i32) -> (i32, i32) {
    %c0_i32 = arith.constant 0 : i32
    %c0_i32_0 = arith.constant 0 : i32
    %c0_i32_1 = arith.constant 0 : i32
    return %c0_i32, %c0_i32_0 : i32, i32
  }
  func.func @transform_7(%arg0: i32) -> (i32, i32) {
    %c0_i32 = arith.constant 0 : i32
    %c0_i32_0 = arith.constant 0 : i32
    %c0_i32_1 = arith.constant 0 : i32
    return %c0_i32, %c0_i32_0 : i32, i32
  }
  func.func @transform_8(%arg0: i32) -> (i32, i32) {
    %c0_i32 = arith.constant 0 : i32
    %c0_i32_0 = arith.constant 0 : i32
    %c0_i32_1 = arith.constant 0 : i32
    return %c0_i32, %c0_i32_0 : i32, i32
  }
  func.func @transform_9(%arg0: i32) -> (i32, i32) {
    %c0_i32 = arith.constant 0 : i32
    %c0_i32_0 = arith.constant 0 : i32
    %c0_i32_1 = arith.constant 0 : i32
    return %c0_i32, %c0_i32_0 : i32, i32
  }
  func.func @transform_10(%arg0: i32) -> (i32, i32) {
    %c0_i32 = arith.constant 0 : i32
    %c0_i32_0 = arith.constant 0 : i32
    %c0_i32_1 = arith.constant 0 : i32
    return %c0_i32, %c0_i32_0 : i32, i32
  }
  func.func @transform_11(%arg0: i32) -> (i32, i32) {
    %c0_i32 = arith.constant 0 : i32
    %c0_i32_0 = arith.constant 0 : i32
    return %arg0, %c0_i32 : i32, i32
  }
}

</mosaic_0001>

<llo_original>
// kernel: net_forward.1
$region0: #{net_forward.1}
  #allocation0 [shape = 'u32[]', space=smem, size = 0x4, offset = 0x4, fixed_abs, tag = 'smem constant byte address 0x4 - core index']
  #allocation1 [shape = 'u32[144,128]{1,0:T(1,128)}', space=vmem, size = 0x12000, scoped, tag = 'internal scratch']
  %s0 = inlined_call_operand.vmem [shape: bf16[8,52,128], index: 0, kind: input, shape index: {}]
  %s1 = inlined_call_operand.hbm [shape: bf16[640,384], index: 1, kind: input, shape index: {}]
  %s2 = inlined_call_operand.vmem [shape: f32[1,256], index: 2, kind: input, shape index: {}]
  %s3 = inlined_call_operand.hbm [shape: bf16[1280,256], index: 3, kind: input, shape index: {}]
  %s4 = inlined_call_operand.vmem [shape: f32[1,256], index: 4, kind: input, shape index: {}]
  %s5 = inlined_call_operand.vmem [shape: bf16[1280,128], index: 5, kind: input, shape index: {}]
  %s6 = inlined_call_operand.vmem [shape: f32[1,128], index: 6, kind: input, shape index: {}]
  %s7 = inlined_call_operand.vmem [shape: bf16[128,128], index: 7, kind: input, shape index: {}]
  %s8 = inlined_call_operand.vmem [shape: f32[1,128], index: 8, kind: input, shape index: {}]
  %s9 = inlined_call_operand.vmem [shape: bf16[128,128], index: 9, kind: input, shape index: {}]
  %s10 = inlined_call_operand.vmem [shape: f32[1,128], index: 10, kind: input, shape index: {}]
  %s11 = inlined_call_operand.vmem [shape: f32[64,128], index: 11, kind: output, shape index: {}]
  %s12 = sld [smem:[#allocation0]]
  $region62: #{net_forward.1} parent=0
    _
  %s14 = ssub.s32 1, %s12
  %s15 = scalar_select 0, %s14, %s12
  $region1: #{net_forward.1} parent=0
    #allocation2 [shape = 'u8[491520]{0}', space=vmem, size = 0x78000, scoped, tag = 'input window, operand 1, single buffered']
    #allocation3 [shape = 's32[1]{0}', space=sflag, size = 0x4, scoped, tag = 'scoped memory for net_forward.1']
    #allocation4 [shape = 'u8[655360]{0}', space=vmem, size = 0xa0000, scoped, tag = 'input window, operand 3, single buffered']
    #allocation5 [shape = 's32[1]{0}', space=sflag, size = 0x4, scoped, tag = 'scoped memory for net_forward.1']
    %16 = vsyncpa [#allocation3], 0
    %17 = vsyncpa [#allocation5], 0
    // Predicated region
    $region2: #{net_forward.1} parent=1 // pred_check
      _
    $region3: #{net_forward.1} parent=1 // pred_check_branch
      %19 = sbr.rel (0) target = $region5
    $region4: #{net_forward.1} parent=1 // pred_region
      _
    $region5: #{net_forward.1} parent=1 // pred_fallthru
      _
    // Predicated region
    $region6: #{net_forward.1} parent=1 // pred_check
      _
    $region7: #{net_forward.1} parent=1 // pred_check_branch
      %21 = sbr.rel (0) target = $region9
    $region8: #{net_forward.1} parent=1 // pred_region
      %s23 = ssub.s32 15360, 15360
      %24 = vsyncadd [#allocation3], %s23
      %s25 = sshll.u32 [#allocation2], 4
      %s26 = int_to_ptr.vmem [resolvable:$true] %s25
      %31 = dma.hbm_to_vmem [thread:$0]  %s1, 15360, %s26, [#allocation3], 192, 192, 12
    $region9: #{net_forward.1} parent=1 // pred_fallthru
      _
    // Predicated region
    $region10: #{net_forward.1} parent=1 // pred_check
      _
    $region11: #{net_forward.1} parent=1 // pred_check_branch
      %33 = sbr.rel (0) target = $region13
    $region12: #{net_forward.1} parent=1 // pred_region
      _
    $region13: #{net_forward.1} parent=1 // pred_fallthru
      _
    // Predicated region
    $region14: #{net_forward.1} parent=1 // pred_check
      _
    $region15: #{net_forward.1} parent=1 // pred_check_branch
      %35 = sbr.rel (0) target = $region17
    $region16: #{net_forward.1} parent=1 // pred_region
      %s37 = ssub.s32 20480, 20480
      %38 = vsyncadd [#allocation5], %s37
      %s39 = sshll.u32 [#allocation4], 4
      %s40 = int_to_ptr.vmem [resolvable:$true] %s39
      %45 = dma.hbm_to_vmem [thread:$0]  %s3, 20480, %s40, [#allocation5], 128, 128, 8
    $region17: #{net_forward.1} parent=1 // pred_fallthru
      _
    // Predicated region
    $region18: #{net_forward.1} parent=1 // pred_check
      _
    $region19: #{net_forward.1} parent=1 // pred_check_branch
      %47 = sbr.rel (0) target = $region21
    $region20: #{net_forward.1} parent=1 // pred_region
      _
    $region21: #{net_forward.1} parent=1 // pred_fallthru
      _
    // Predicated region
    $region22: #{net_forward.1} parent=1 // pred_check
      _
    $region23: #{net_forward.1} parent=1 // pred_check_branch
      %49 = sbr.rel (0) target = $region25
    $region24: #{net_forward.1} parent=1 // pred_region
      _
    $region25: #{net_forward.1} parent=1 // pred_fallthru
      _
    // Predicated region
    $region26: #{net_forward.1} parent=1 // pred_check
      _
    $region27: #{net_forward.1} parent=1 // pred_check_branch
      %51 = sbr.rel (0) target = $region29
    $region28: #{net_forward.1} parent=1 // pred_region
      _
    $region29: #{net_forward.1} parent=1 // pred_fallthru
      _
    // Predicated region
    $region30: #{net_forward.1} parent=1 // pred_check
      _
    $region31: #{net_forward.1} parent=1 // pred_check_branch
      %53 = sbr.rel (0) target = $region33
    $region32: #{net_forward.1} parent=1 // pred_region
      _
    $region33: #{net_forward.1} parent=1 // pred_fallthru
      _
    // Predicated region
    $region34: #{net_forward.1} parent=1 // pred_check
      _
    $region35: #{net_forward.1} parent=1 // pred_check_branch
      %55 = sbr.rel (0) target = $region37
    $region36: #{net_forward.1} parent=1 // pred_region
      _
    $region37: #{net_forward.1} parent=1 // pred_fallthru
      _
    // Predicated region
    $region38: #{net_forward.1} parent=1 // pred_check
      _
    $region39: #{net_forward.1} parent=1 // pred_check_branch
      %57 = sbr.rel (0) target = $region41
    $region40: #{net_forward.1} parent=1 // pred_region
      _
    $region41: #{net_forward.1} parent=1 // pred_fallthru
      _
    // Predicated region
    $region42: #{net_forward.1} parent=1 // pred_check
      _
    $region43: #{net_forward.1} parent=1 // pred_check_branch
      %59 = sbr.rel (0) target = $region45
    $region44: #{net_forward.1} parent=1 // pred_region
      _
    $region45: #{net_forward.1} parent=1 // pred_fallthru
      _
    // Predicated region
    $region46: #{net_forward.1} parent=1 // pred_check
      _
    $region47: #{net_forward.1} parent=1 // pred_check_branch
      %61 = sbr.rel (0) target = $region49
    $region48: #{net_forward.1} parent=1 // pred_region
      %62 = dma.done [#allocation3], 15360
    $region49: #{net_forward.1} parent=1 // pred_fallthru
      _
    // Predicated region
    $region50: #{net_forward.1} parent=1 // pred_check
      _
    $region51: #{net_forward.1} parent=1 // pred_check_branch
      %64 = sbr.rel (0) target = $region53
    $region52: #{net_forward.1} parent=1 // pred_region
      %65 = dma.done [#allocation5], 20480
    $region53: #{net_forward.1} parent=1 // pred_fallthru
      _
    %v67 = vld [vmem:[%s0] sm:$0xf]
    %v68 = vld [vmem:[%s0 + $0x4] sm:$0xf]
    %v69 = vld [vmem:[%s0 + $0x8] sm:$0xf]
    %v70 = vld [vmem:[%s0 + $0xc] sm:$0xf]
    %v71 = vld [vmem:[%s0 + $0x10] sm:$0xf]
    %v72 = vld [vmem:[%s0 + $0x14] sm:$0xf]
    %v73 = vld [vmem:[%s0 + $0x18] sm:$0x3]
    %v74 = vld [vmem:[%s0 + $0x1c] sm:$0xf]
    %v75 = vld [vmem:[%s0 + $0x20] sm:$0xf]
    %v76 = vld [vmem:[%s0 + $0x24] sm:$0xf]
    %v77 = vld [vmem:[%s0 + $0x28] sm:$0xf]
    %v78 = vld [vmem:[%s0 + $0x2c] sm:$0xf]
    %v79 = vld [vmem:[%s0 + $0x30] sm:$0xf]
    %v80 = vld [vmem:[%s0 + $0x34] sm:$0x3]
    %v81 = vld [vmem:[%s0 + $0x38] sm:$0xf]
    %v82 = vld [vmem:[%s0 + $0x3c] sm:$0xf]
    %v83 = vld [vmem:[%s0 + $0x40] sm:$0xf]
    %v84 = vld [vmem:[%s0 + $0x44] sm:$0xf]
    %v85 = vld [vmem:[%s0 + $0x48] sm:$0xf]
    %v86 = vld [vmem:[%s0 + $0x4c] sm:$0xf]
    %v87 = vld [vmem:[%s0 + $0x50] sm:$0x3]
    %v88 = vld [vmem:[%s0 + $0x54] sm:$0xf]
    %v89 = vld [vmem:[%s0 + $0x58] sm:$0xf]
    %v90 = vld [vmem:[%s0 + $0x5c] sm:$0xf]
    %v91 = vld [vmem:[%s0 + $0x60] sm:$0xf]
    %v92 = vld [vmem:[%s0 + $0x64] sm:$0xf]
    %v93 = vld [vmem:[%s0 + $0x68] sm:$0xf]
    %v94 = vld [vmem:[%s0 + $0x6c] sm:$0x3]
    %v95 = vld [vmem:[%s0 + $0x70] sm:$0xf]
    %v96 = vld [vmem:[%s0 + $0x74] sm:$0xf]
    %v97 = vld [vmem:[%s0 + $0x78] sm:$0xf]
    %v98 = vld [vmem:[%s0 + $0x7c] sm:$0xf]
    %v99 = vld [vmem:[%s0 + $0x80] sm:$0xf]
    %v100 = vld [vmem:[%s0 + $0x84] sm:$0xf]
    %v101 = vld [vmem:[%s0 + $0x88] sm:$0x3]
    %v102 = vld [vmem:[%s0 + $0x8c] sm:$0xf]
    %v103 = vld [vmem:[%s0 + $0x90] sm:$0xf]
    %v104 = vld [vmem:[%s0 + $0x94] sm:$0xf]
    %v105 = vld [vmem:[%s0 + $0x98] sm:$0xf]
    %v106 = vld [vmem:[%s0 + $0x9c] sm:$0xf]
    %v107 = vld [vmem:[%s0 + $0xa0] sm:$0xf]
    %v108 = vld [vmem:[%s0 + $0xa4] sm:$0x3]
    %v109 = vld [vmem:[%s0 + $0xa8] sm:$0xf]
    %v110 = vld [vmem:[%s0 + $0xac] sm:$0xf]
    %v111 = vld [vmem:[%s0 + $0xb0] sm:$0xf]
    %v112 = vld [vmem:[%s0 + $0xb4] sm:$0xf]
    %v113 = vld [vmem:[%s0 + $0xb8] sm:$0xf]
    %v114 = vld [vmem:[%s0 + $0xbc] sm:$0xf]
    %v115 = vld [vmem:[%s0 + $0xc0] sm:$0x3]
    %v116 = vld [vmem:[%s0 + $0xc4] sm:$0xf]
    %v117 = vld [vmem:[%s0 + $0xc8] sm:$0xf]
    %v118 = vld [vmem:[%s0 + $0xcc] sm:$0xf]
    %v119 = vld [vmem:[%s0 + $0xd0] sm:$0xf]
    %v120 = vld [vmem:[%s0 + $0xd4] sm:$0xf]
    %v121 = vld [vmem:[%s0 + $0xd8] sm:$0xf]
    %v122 = vld [vmem:[%s0 + $0xdc] sm:$0x3]
    %v171 = vunpack.c.l.b16 %v67
    %v172 = vunpack.c.l.b16 %v68
    %v173 = vunpack.c.l.b16 %v69
    %v174 = vunpack.c.l.b16 %v70
    %v175 = vunpack.c.l.b16 %v71
    %v176 = vunpack.c.l.b16 %v72
    %v177 = vunpack.c.l.b16 %v74
    %v178 = vunpack.c.l.b16 %v75
    %v179 = vunpack.c.l.b16 %v76
    %v180 = vunpack.c.l.b16 %v77
    %v181 = vunpack.c.l.b16 %v78
    %v182 = vunpack.c.l.b16 %v79
    %v183 = vunpack.c.l.b16 %v81
    %v184 = vunpack.c.l.b16 %v82
    %v185 = vunpack.c.l.b16 %v83
    %v186 = vunpack.c.l.b16 %v84
    %v187 = vunpack.c.l.b16 %v85
    %v188 = vunpack.c.l.b16 %v86
    %v189 = vunpack.c.l.b16 %v88
    %v190 = vunpack.c.l.b16 %v89
    %v191 = vunpack.c.l.b16 %v90
    %v192 = vunpack.c.l.b16 %v91
    %v193 = vunpack.c.l.b16 %v92
    %v194 = vunpack.c.l.b16 %v93
    %v195 = vunpack.c.l.b16 %v95
    %v196 = vunpack.c.l.b16 %v96
    %v197 = vunpack.c.l.b16 %v97
    %v198 = vunpack.c.l.b16 %v98
    %v199 = vunpack.c.l.b16 %v99
    %v200 = vunpack.c.l.b16 %v100
    %v201 = vunpack.c.l.b16 %v102
    %v202 = vunpack.c.l.b16 %v103
    %v203 = vunpack.c.l.b16 %v104
    %v204 = vunpack.c.l.b16 %v105
    %v205 = vunpack.c.l.b16 %v106
    %v206 = vunpack.c.l.b16 %v107
    %v207 = vunpack.c.l.b16 %v109
    %v208 = vunpack.c.l.b16 %v110
    %v209 = vunpack.c.l.b16 %v111
    %v210 = vunpack.c.l.b16 %v112
    %v211 = vunpack.c.l.b16 %v113
    %v212 = vunpack.c.l.b16 %v114
    %v213 = vunpack.c.l.b16 %v116
    %v214 = vunpack.c.l.b16 %v117
    %v215 = vunpack.c.l.b16 %v118
    %v216 = vunpack.c.l.b16 %v119
    %v217 = vunpack.c.l.b16 %v120
    %v218 = vunpack.c.l.b16 %v121
    %v219 = vpack.c.b16 %v172, %v171
    %v220 = vpack.c.b16 %v174, %v173
    %v221 = vpack.c.b16 %v176, %v175
    %v222 = vpack.c.b16 %v178, %v177
    %v223 = vpack.c.b16 %v180, %v179
    %v224 = vpack.c.b16 %v182, %v181
    %v225 = vpack.c.b16 %v184, %v183
    %v226 = vpack.c.b16 %v186, %v185
    %v227 = vpack.c.b16 %v188, %v187
    %v228 = vpack.c.b16 %v190, %v189
    %v229 = vpack.c.b16 %v192, %v191
    %v230 = vpack.c.b16 %v194, %v193
    %v231 = vpack.c.b16 %v196, %v195
    %v232 = vpack.c.b16 %v198, %v197
    %v233 = vpack.c.b16 %v200, %v199
    %v234 = vpack.c.b16 %v202, %v201
    %v235 = vpack.c.b16 %v204, %v203
    %v236 = vpack.c.b16 %v206, %v205
    %v237 = vpack.c.b16 %v208, %v207
    %v238 = vpack.c.b16 %v210, %v209
    %v239 = vpack.c.b16 %v212, %v211
    %v240 = vpack.c.b16 %v214, %v213
    %v241 = vpack.c.b16 %v216, %v215
    %v242 = vpack.c.b16 %v218, %v217
    %v275 = vunpack.c.l.b16 %v73
    %v276 = vunpack.c.l.b16 %v80
    %v277 = vunpack.c.l.b16 %v87
    %v278 = vunpack.c.l.b16 %v94
    %v279 = vunpack.c.l.b16 %v101
    %v280 = vunpack.c.l.b16 %v108
    %v281 = vunpack.c.l.b16 %v115
    %v282 = vunpack.c.l.b16 %v122
    %v283 = vpack.c.b16 %v275, %v275
    %v284 = vpack.c.b16 %v276, %v276
    %v285 = vpack.c.b16 %v277, %v277
    %v286 = vpack.c.b16 %v278, %v278
    %v287 = vpack.c.b16 %v279, %v279
    %v288 = vpack.c.b16 %v280, %v280
    %v289 = vpack.c.b16 %v281, %v281
    %v290 = vpack.c.b16 %v282, %v282
    %vm291 = vsmask.f32 7424
    %v293 = vshrl.u32 %v219, 16
    %v295 = vshll.u32 %v219, 16
    %v297 = vrot.slane %v295, 1
    %v298 = vor.u32 %v293, %v297
    %v300 = vshll.u32 %v220, 16
    %v302 = vrot.slane %v300, 1
    %v303 = vsel %vm291, %v298, %v302
    %v304 = vshrl.u32 %v220, 16
    %v306 = vor.u32 %v304, %v302
    %v308 = vshll.u32 %v221, 16
    %v310 = vrot.slane %v308, 1
    %v311 = vsel %vm291, %v306, %v310
    %v312 = vshrl.u32 %v221, 16
    %v314 = vor.u32 %v312, %v310
    %v316 = vshll.u32 %v283, 16
    %v318 = vrot.slane %v316, 1
    %v319 = vsel %vm291, %v314, %v318
    %v321 = vshrl.u32 %v222, 16
    %v323 = vshll.u32 %v222, 16
    %v325 = vrot.slane %v323, 1
    %v326 = vor.u32 %v321, %v325
    %v328 = vshll.u32 %v223, 16
    %v330 = vrot.slane %v328, 1
    %v331 = vsel %vm291, %v326, %v330
    %v332 = vshrl.u32 %v223, 16
    %v334 = vor.u32 %v332, %v330
    %v336 = vshll.u32 %v224, 16
    %v338 = vrot.slane %v336, 1
    %v339 = vsel %vm291, %v334, %v338
    %v340 = vshrl.u32 %v224, 16
    %v342 = vor.u32 %v340, %v338
    %v344 = vshll.u32 %v284, 16
    %v346 = vrot.slane %v344, 1
    %v347 = vsel %vm291, %v342, %v346
    %v349 = vshrl.u32 %v225, 16
    %v351 = vshll.u32 %v225, 16
    %v353 = vrot.slane %v351, 1
    %v354 = vor.u32 %v349, %v353
    %v356 = vshll.u32 %v226, 16
    %v358 = vrot.slane %v356, 1
    %v359 = vsel %vm291, %v354, %v358
    %v360 = vshrl.u32 %v226, 16
    %v362 = vor.u32 %v360, %v358
    %v364 = vshll.u32 %v227, 16
    %v366 = vrot.slane %v364, 1
    %v367 = vsel %vm291, %v362, %v366
    %v368 = vshrl.u32 %v227, 16
    %v370 = vor.u32 %v368, %v366
    %v372 = vshll.u32 %v285, 16
    %v374 = vrot.slane %v372, 1
    %v375 = vsel %vm291, %v370, %v374
    %v377 = vshrl.u32 %v228, 16
    %v379 = vshll.u32 %v228, 16
    %v381 = vrot.slane %v379, 1
    %v382 = vor.u32 %v377, %v381
    %v384 = vshll.u32 %v229, 16
    %v386 = vrot.slane %v384, 1
    %v387 = vsel %vm291, %v382, %v386
    %v388 = vshrl.u32 %v229, 16
    %v390 = vor.u32 %v388, %v386
    %v392 = vshll.u32 %v230, 16
    %v394 = vrot.slane %v392, 1
    %v395 = vsel %vm291, %v390, %v394
    %v396 = vshrl.u32 %v230, 16
    %v398 = vor.u32 %v396, %v394
    %v400 = vshll.u32 %v286, 16
    %v402 = vrot.slane %v400, 1
    %v403 = vsel %vm291, %v398, %v402
    %v405 = vshrl.u32 %v231, 16
    %v407 = vshll.u32 %v231, 16
    %v409 = vrot.slane %v407, 1
    %v410 = vor.u32 %v405, %v409
    %v412 = vshll.u32 %v232, 16
    %v414 = vrot.slane %v412, 1
    %v415 = vsel %vm291, %v410, %v414
    %v416 = vshrl.u32 %v232, 16
    %v418 = vor.u32 %v416, %v414
    %v420 = vshll.u32 %v233, 16
    %v422 = vrot.slane %v420, 1
    %v423 = vsel %vm291, %v418, %v422
    %v424 = vshrl.u32 %v233, 16
    %v426 = vor.u32 %v424, %v422
    %v428 = vshll.u32 %v287, 16
    %v430 = vrot.slane %v428, 1
    %v431 = vsel %vm291, %v426, %v430
    %v433 = vshrl.u32 %v234, 16
    %v435 = vshll.u32 %v234, 16
    %v437 = vrot.slane %v435, 1
    %v438 = vor.u32 %v433, %v437
    %v440 = vshll.u32 %v235, 16
    %v442 = vrot.slane %v440, 1
    %v443 = vsel %vm291, %v438, %v442
    %v444 = vshrl.u32 %v235, 16
    %v446 = vor.u32 %v444, %v442
    %v448 = vshll.u32 %v236, 16
    %v450 = vrot.slane %v448, 1
    %v451 = vsel %vm291, %v446, %v450
    %v452 = vshrl.u32 %v236, 16
    %v454 = vor.u32 %v452, %v450
    %v456 = vshll.u32 %v288, 16
    %v458 = vrot.slane %v456, 1
    %v459 = vsel %vm291, %v454, %v458
    %v461 = vshrl.u32 %v237, 16
    %v463 = vshll.u32 %v237, 16
    %v465 = vrot.slane %v463, 1
    %v466 = vor.u32 %v461, %v465
    %v468 = vshll.u32 %v238, 16
    %v470 = vrot.slane %v468, 1
    %v471 = vsel %vm291, %v466, %v470
    %v472 = vshrl.u32 %v238, 16
    %v474 = vor.u32 %v472, %v470
    %v476 = vshll.u32 %v239, 16
    %v478 = vrot.slane %v476, 1
    %v479 = vsel %vm291, %v474, %v478
    %v480 = vshrl.u32 %v239, 16
    %v482 = vor.u32 %v480, %v478
    %v484 = vshll.u32 %v289, 16
    %v486 = vrot.slane %v484, 1
    %v487 = vsel %vm291, %v482, %v486
    %v489 = vshrl.u32 %v240, 16
    %v491 = vshll.u32 %v240, 16
    %v493 = vrot.slane %v491, 1
    %v494 = vor.u32 %v489, %v493
    %v496 = vshll.u32 %v241, 16
    %v498 = vrot.slane %v496, 1
    %v499 = vsel %vm291, %v494, %v498
    %v500 = vshrl.u32 %v241, 16
    %v502 = vor.u32 %v500, %v498
    %v504 = vshll.u32 %v242, 16
    %v506 = vrot.slane %v504, 1
    %v507 = vsel %vm291, %v502, %v506
    %v508 = vshrl.u32 %v242, 16
    %v510 = vor.u32 %v508, %v506
    %v512 = vshll.u32 %v290, 16
    %v514 = vrot.slane %v512, 1
    %v515 = vsel %vm291, %v510, %v514
    %vm540 = vcmask 1046528
    %v541 = vrot.slane %v219, 1
    %v542 = vrot.slane %v220, 1
    %v543 = vsel %vm540, %v541, %v542
    %v544 = vrot.slane %v221, 1
    %v545 = vsel %vm540, %v542, %v544
    %v546 = vrot.slane %v283, 1
    %v547 = vsel %vm540, %v544, %v546
    %v548 = vrot.slane %v222, 1
    %v549 = vrot.slane %v223, 1
    %v550 = vsel %vm540, %v548, %v549
    %v551 = vrot.slane %v224, 1
    %v552 = vsel %vm540, %v549, %v551
    %v553 = vrot.slane %v284, 1
    %v554 = vsel %vm540, %v551, %v553
    %v555 = vrot.slane %v225, 1
    %v556 = vrot.slane %v226, 1
    %v557 = vsel %vm540, %v555, %v556
    %v558 = vrot.slane %v227, 1
    %v559 = vsel %vm540, %v556, %v558
    %v560 = vrot.slane %v285, 1
    %v561 = vsel %vm540, %v558, %v560
    %v562 = vrot.slane %v228, 1
    %v563 = vrot.slane %v229, 1
    %v564 = vsel %vm540, %v562, %v563
    %v565 = vrot.slane %v230, 1
    %v566 = vsel %vm540, %v563, %v565
    %v567 = vrot.slane %v286, 1
    %v568 = vsel %vm540, %v565, %v567
    %v569 = vrot.slane %v231, 1
    %v570 = vrot.slane %v232, 1
    %v571 = vsel %vm540, %v569, %v570
    %v572 = vrot.slane %v233, 1
    %v573 = vsel %vm540, %v570, %v572
    %v574 = vrot.slane %v287, 1
    %v575 = vsel %vm540, %v572, %v574
    %v576 = vrot.slane %v234, 1
    %v577 = vrot.slane %v235, 1
    %v578 = vsel %vm540, %v576, %v577
    %v579 = vrot.slane %v236, 1
    %v580 = vsel %vm540, %v577, %v579
    %v581 = vrot.slane %v288, 1
    %v582 = vsel %vm540, %v579, %v581
    %v583 = vrot.slane %v237, 1
    %v584 = vrot.slane %v238, 1
    %v585 = vsel %vm540, %v583, %v584
    %v586 = vrot.slane %v239, 1
    %v587 = vsel %vm540, %v584, %v586
    %v588 = vrot.slane %v289, 1
    %v589 = vsel %vm540, %v586, %v588
    %v590 = vrot.slane %v240, 1
    %v591 = vrot.slane %v241, 1
    %v592 = vsel %vm540, %v590, %v591
    %v593 = vrot.slane %v242, 1
    %v594 = vsel %vm540, %v591, %v593
    %v595 = vrot.slane %v290, 1
    %v596 = vsel %vm540, %v593, %v595
    %vm621 = vsmask.f32 6400
    %v622 = vrot.slane %v293, 1
    %v623 = vrot.slane %v295, 2
    %v624 = vor.u32 %v622, %v623
    %v625 = vrot.slane %v304, 1
    %v626 = vrot.slane %v300, 2
    %v627 = vor.u32 %v625, %v626
    %v628 = vsel %vm621, %v624, %v627
    %v629 = vrot.slane %v312, 1
    %v630 = vrot.slane %v308, 2
    %v631 = vor.u32 %v629, %v630
    %v632 = vsel %vm621, %v627, %v631
    %v633 = vshrl.u32 %v283, 16
    %v635 = vrot.slane %v633, 1
    %v636 = vrot.slane %v316, 2
    %v637 = vor.u32 %v635, %v636
    %v638 = vsel %vm621, %v631, %v637
    %v639 = vrot.slane %v321, 1
    %v640 = vrot.slane %v323, 2
    %v641 = vor.u32 %v639, %v640
    %v642 = vrot.slane %v332, 1
    %v643 = vrot.slane %v328, 2
    %v644 = vor.u32 %v642, %v643
    %v645 = vsel %vm621, %v641, %v644
    %v646 = vrot.slane %v340, 1
    %v647 = vrot.slane %v336, 2
    %v648 = vor.u32 %v646, %v647
    %v649 = vsel %vm621, %v644, %v648
    %v650 = vshrl.u32 %v284, 16
    %v652 = vrot.slane %v650, 1
    %v653 = vrot.slane %v344, 2
    %v654 = vor.u32 %v652, %v653
    %v655 = vsel %vm621, %v648, %v654
    %v656 = vrot.slane %v349, 1
    %v657 = vrot.slane %v351, 2
    %v658 = vor.u32 %v656, %v657
    %v659 = vrot.slane %v360, 1
    %v660 = vrot.slane %v356, 2
    %v661 = vor.u32 %v659, %v660
    %v662 = vsel %vm621, %v658, %v661
    %v663 = vrot.slane %v368, 1
    %v664 = vrot.slane %v364, 2
    %v665 = vor.u32 %v663, %v664
    %v666 = vsel %vm621, %v661, %v665
    %v667 = vshrl.u32 %v285, 16
    %v669 = vrot.slane %v667, 1
    %v670 = vrot.slane %v372, 2
    %v671 = vor.u32 %v669, %v670
    %v672 = vsel %vm621, %v665, %v671
    %v673 = vrot.slane %v377, 1
    %v674 = vrot.slane %v379, 2
    %v675 = vor.u32 %v673, %v674
    %v676 = vrot.slane %v388, 1
    %v677 = vrot.slane %v384, 2
    %v678 = vor.u32 %v676, %v677
    %v679 = vsel %vm621, %v675, %v678
    %v680 = vrot.slane %v396, 1
    %v681 = vrot.slane %v392, 2
    %v682 = vor.u32 %v680, %v681
    %v683 = vsel %vm621, %v678, %v682
    %v684 = vshrl.u32 %v286, 16
    %v686 = vrot.slane %v684, 1
    %v687 = vrot.slane %v400, 2
    %v688 = vor.u32 %v686, %v687
    %v689 = vsel %vm621, %v682, %v688
    %v690 = vrot.slane %v405, 1
    %v691 = vrot.slane %v407, 2
    %v692 = vor.u32 %v690, %v691
    %v693 = vrot.slane %v416, 1
    %v694 = vrot.slane %v412, 2
    %v695 = vor.u32 %v693, %v694
    %v696 = vsel %vm621, %v692, %v695
    %v697 = vrot.slane %v424, 1
    %v698 = vrot.slane %v420, 2
    %v699 = vor.u32 %v697, %v698
    %v700 = vsel %vm621, %v695, %v699
    %v701 = vshrl.u32 %v287, 16
    %v703 = vrot.slane %v701, 1
    %v704 = vrot.slane %v428, 2
    %v705 = vor.u32 %v703, %v704
    %v706 = vsel %vm621, %v699, %v705
    %v707 = vrot.slane %v433, 1
    %v708 = vrot.slane %v435, 2
    %v709 = vor.u32 %v707, %v708
    %v710 = vrot.slane %v444, 1
    %v711 = vrot.slane %v440, 2
    %v712 = vor.u32 %v710, %v711
    %v713 = vsel %vm621, %v709, %v712
    %v714 = vrot.slane %v452, 1
    %v715 = vrot.slane %v448, 2
    %v716 = vor.u32 %v714, %v715
    %v717 = vsel %vm621, %v712, %v716
    %v718 = vshrl.u32 %v288, 16
    %v720 = vrot.slane %v718, 1
    %v721 = vrot.slane %v456, 2
    %v722 = vor.u32 %v720, %v721
    %v723 = vsel %vm621, %v716, %v722
    %v724 = vrot.slane %v461, 1
    %v725 = vrot.slane %v463, 2
    %v726 = vor.u32 %v724, %v725
    %v727 = vrot.slane %v472, 1
    %v728 = vrot.slane %v468, 2
    %v729 = vor.u32 %v727, %v728
    %v730 = vsel %vm621, %v726, %v729
    %v731 = vrot.slane %v480, 1
    %v732 = vrot.slane %v476, 2
    %v733 = vor.u32 %v731, %v732
    %v734 = vsel %vm621, %v729, %v733
    %v735 = vshrl.u32 %v289, 16
    %v737 = vrot.slane %v735, 1
    %v738 = vrot.slane %v484, 2
    %v739 = vor.u32 %v737, %v738
    %v740 = vsel %vm621, %v733, %v739
    %v741 = vrot.slane %v489, 1
    %v742 = vrot.slane %v491, 2
    %v743 = vor.u32 %v741, %v742
    %v744 = vrot.slane %v500, 1
    %v745 = vrot.slane %v496, 2
    %v746 = vor.u32 %v744, %v745
    %v747 = vsel %vm621, %v743, %v746
    %v748 = vrot.slane %v508, 1
    %v749 = vrot.slane %v504, 2
    %v750 = vor.u32 %v748, %v749
    %v751 = vsel %vm621, %v746, %v750
    %v752 = vshrl.u32 %v290, 16
    %v754 = vrot.slane %v752, 1
    %v755 = vrot.slane %v512, 2
    %v756 = vor.u32 %v754, %v755
    %v757 = vsel %vm621, %v750, %v756
    %vm782 = vcmask 1045504
    %v783 = vrot.slane %v219, 2
    %v784 = vrot.slane %v220, 2
    %v785 = vsel %vm782, %v783, %v784
    %v786 = vrot.slane %v221, 2
    %v787 = vsel %vm782, %v784, %v786
    %v788 = vrot.slane %v283, 2
    %v789 = vsel %vm782, %v786, %v788
    %v790 = vrot.slane %v222, 2
    %v791 = vrot.slane %v223, 2
    %v792 = vsel %vm782, %v790, %v791
    %v793 = vrot.slane %v224, 2
    %v794 = vsel %vm782, %v791, %v793
    %v795 = vrot.slane %v284, 2
    %v796 = vsel %vm782, %v793, %v795
    %v797 = vrot.slane %v225, 2
    %v798 = vrot.slane %v226, 2
    %v799 = vsel %vm782, %v797, %v798
    %v800 = vrot.slane %v227, 2
    %v801 = vsel %vm782, %v798, %v800
    %v802 = vrot.slane %v285, 2
    %v803 = vsel %vm782, %v800, %v802
    %v804 = vrot.slane %v228, 2
    %v805 = vrot.slane %v229, 2
    %v806 = vsel %vm782, %v804, %v805
    %v807 = vrot.slane %v230, 2
    %v808 = vsel %vm782, %v805, %v807
    %v809 = vrot.slane %v286, 2
    %v810 = vsel %vm782, %v807, %v809
    %v811 = vrot.slane %v231, 2
    %v812 = vrot.slane %v232, 2
    %v813 = vsel %vm782, %v811, %v812
    %v814 = vrot.slane %v233, 2
    %v815 = vsel %vm782, %v812, %v814
    %v816 = vrot.slane %v287, 2
    %v817 = vsel %vm782, %v814, %v816
    %v818 = vrot.slane %v234, 2
    %v819 = vrot.slane %v235, 2
    %v820 = vsel %vm782, %v818, %v819
    %v821 = vrot.slane %v236, 2
    %v822 = vsel %vm782, %v819, %v821
    %v823 = vrot.slane %v288, 2
    %v824 = vsel %vm782, %v821, %v823
    %v825 = vrot.slane %v237, 2
    %v826 = vrot.slane %v238, 2
    %v827 = vsel %vm782, %v825, %v826
    %v828 = vrot.slane %v239, 2
    %v829 = vsel %vm782, %v826, %v828
    %v830 = vrot.slane %v289, 2
    %v831 = vsel %vm782, %v828, %v830
    %v832 = vrot.slane %v240, 2
    %v833 = vrot.slane %v241, 2
    %v834 = vsel %vm782, %v832, %v833
    %v835 = vrot.slane %v242, 2
    %v836 = vsel %vm782, %v833, %v835
    %v837 = vrot.slane %v290, 2
    %v838 = vsel %vm782, %v835, %v837
    %v863 = vld [vmem:[#allocation2] sm:$0xff]
    %v864 = vld [vmem:[#allocation2 + $0x8] sm:$0xf]
    %v865 = vld [vmem:[#allocation2 + $0xc] sm:$0xff]
    %v866 = vld [vmem:[#allocation2 + $0x14] sm:$0xf]
    %v867 = vld [vmem:[#allocation2 + $0x18] sm:$0xff]
    %v868 = vld [vmem:[#allocation2 + $0x20] sm:$0xf]
    %v869 = vld [vmem:[#allocation2 + $0x24] sm:$0xff]
    %v870 = vld [vmem:[#allocation2 + $0x2c] sm:$0xf]
    %v871 = vld [vmem:[#allocation2 + $0x30] sm:$0xff]
    %v872 = vld [vmem:[#allocation2 + $0x38] sm:$0xf]
    %v873 = vld [vmem:[#allocation2 + $0x3c] sm:$0xff]
    %v874 = vld [vmem:[#allocation2 + $0x44] sm:$0xf]
    %v875 = vld [vmem:[#allocation2 + $0x48] sm:$0xff]
    %v876 = vld [vmem:[#allocation2 + $0x50] sm:$0xf]
    %v877 = vld [vmem:[#allocation2 + $0x54] sm:$0xff]
    %v878 = vld [vmem:[#allocation2 + $0x5c] sm:$0xf]
    %v879 = vld [vmem:[#allocation2 + $0x60] sm:$0xff]
    %v880 = vld [vmem:[#allocation2 + $0x68] sm:$0xf]
    %v881 = vld [vmem:[#allocation2 + $0x6c] sm:$0xff]
    %v882 = vld [vmem:[#allocation2 + $0x74] sm:$0xf]
    %v883 = vld [vmem:[#allocation2 + $0x78] sm:$0xff]
    %v884 = vld [vmem:[#allocation2 + $0x80] sm:$0xf]
    %v885 = vld [vmem:[#allocation2 + $0x84] sm:$0xff]
    %v886 = vld [vmem:[#allocation2 + $0x8c] sm:$0xf]
    %v887 = vld [vmem:[#allocation2 + $0x90] sm:$0xff]
    %v888 = vld [vmem:[#allocation2 + $0x98] sm:$0xf]
    %v889 = vld [vmem:[#allocation2 + $0x9c] sm:$0xff]
    %v890 = vld [vmem:[#allocation2 + $0xa4] sm:$0xf]
    %v891 = vld [vmem:[#allocation2 + $0xa8] sm:$0xff]
    %v892 = vld [vmem:[#allocation2 + $0xb0] sm:$0xf]
    %v893 = vld [vmem:[#allocation2 + $0xb4] sm:$0xff]
    %v894 = vld [vmem:[#allocation2 + $0xbc] sm:$0xf]
    %v895 = vld [vmem:[#allocation2 + $0xc0] sm:$0xff]
    %v896 = vld [vmem:[#allocation2 + $0xc8] sm:$0xf]
    %v897 = vld [vmem:[#allocation2 + $0xcc] sm:$0xff]
    %v898 = vld [vmem:[#allocation2 + $0xd4] sm:$0xf]
    %v899 = vld [vmem:[#allocation2 + $0xd8] sm:$0xff]
    %v900 = vld [vmem:[#allocation2 + $0xe0] sm:$0xf]
    %v901 = vld [vmem:[#allocation2 + $0xe4] sm:$0xff]
    %v902 = vld [vmem:[#allocation2 + $0xec] sm:$0xf]
    %v903 = vld [vmem:[#allocation2 + $0xf0] sm:$0xff]
    %v904 = vld [vmem:[#allocation2 + $0xf8] sm:$0xf]
    %v905 = vld [vmem:[#allocation2 + $0xfc] sm:$0xff]
    %v906 = vld [vmem:[#allocation2 + $0x104] sm:$0xf]
    %v907 = vld [vmem:[#allocation2 + $0x108] sm:$0xff]
    %v908 = vld [vmem:[#allocation2 + $0x110] sm:$0xf]
    %v909 = vld [vmem:[#allocation2 + $0x114] sm:$0xff]
    %v910 = vld [vmem:[#allocation2 + $0x11c] sm:$0xf]
    %v911 = vld [vmem:[#allocation2 + $0x120] sm:$0xff]
    %v912 = vld [vmem:[#allocation2 + $0x128] sm:$0xf]
    %v913 = vld [vmem:[#allocation2 + $0x12c] sm:$0xff]
    %v914 = vld [vmem:[#allocation2 + $0x134] sm:$0xf]
    %v915 = vld [vmem:[#allocation2 + $0x138] sm:$0xff]
    %v916 = vld [vmem:[#allocation2 + $0x140] sm:$0xf]
    %v917 = vld [vmem:[#allocation2 + $0x144] sm:$0xff]
    %v918 = vld [vmem:[#allocation2 + $0x14c] sm:$0xf]
    %v919 = vld [vmem:[#allocation2 + $0x150] sm:$0xff]
    %v920 = vld [vmem:[#allocation2 + $0x158] sm:$0xf]
    %v921 = vld [vmem:[#allocation2 + $0x15c] sm:$0xff]
    %v922 = vld [vmem:[#allocation2 + $0x164] sm:$0xf]
    %v923 = vld [vmem:[#allocation2 + $0x168] sm:$0xff]
    %v924 = vld [vmem:[#allocation2 + $0x170] sm:$0xf]
    %v925 = vld [vmem:[#allocation2 + $0x174] sm:$0xff]
    %v926 = vld [vmem:[#allocation2 + $0x17c] sm:$0xf]
    %v927 = vld [vmem:[#allocation2 + $0x180] sm:$0xff]
    %v928 = vld [vmem:[#allocation2 + $0x188] sm:$0xf]
    %v929 = vld [vmem:[#allocation2 + $0x18c] sm:$0xff]
    %v930 = vld [vmem:[#allocation2 + $0x194] sm:$0xf]
    %v931 = vld [vmem:[#allocation2 + $0x198] sm:$0xff]
    %v932 = vld [vmem:[#allocation2 + $0x1a0] sm:$0xf]
    %v933 = vld [vmem:[#allocation2 + $0x1a4] sm:$0xff]
    %v934 = vld [vmem:[#allocation2 + $0x1ac] sm:$0xf]
    %v935 = vld [vmem:[#allocation2 + $0x1b0] sm:$0xff]
    %v936 = vld [vmem:[#allocation2 + $0x1b8] sm:$0xf]
    %v937 = vld [vmem:[#allocation2 + $0x1bc] sm:$0xff]
    %v938 = vld [vmem:[#allocation2 + $0x1c4] sm:$0xf]
    %v939 = vld [vmem:[#allocation2 + $0x1c8] sm:$0xff]
    %v940 = vld [vmem:[#allocation2 + $0x1d0] sm:$0xf]
    %v941 = vld [vmem:[#allocation2 + $0x1d4] sm:$0xff]
    %v942 = vld [vmem:[#allocation2 + $0x1dc] sm:$0xf]
    %v943 = vld [vmem:[#allocation2 + $0x1e0] sm:$0xff]
    %v944 = vld [vmem:[#allocation2 + $0x1e8] sm:$0xf]
    %v945 = vld [vmem:[#allocation2 + $0x1ec] sm:$0xff]
    %v946 = vld [vmem:[#allocation2 + $0x1f4] sm:$0xf]
    %v947 = vld [vmem:[#allocation2 + $0x1f8] sm:$0xff]
    %v948 = vld [vmem:[#allocation2 + $0x200] sm:$0xf]
    %v949 = vld [vmem:[#allocation2 + $0x204] sm:$0xff]
    %v950 = vld [vmem:[#allocation2 + $0x20c] sm:$0xf]
    %v951 = vld [vmem:[#allocation2 + $0x210] sm:$0xff]
    %v952 = vld [vmem:[#allocation2 + $0x218] sm:$0xf]
    %v953 = vld [vmem:[#allocation2 + $0x21c] sm:$0xff]
    %v954 = vld [vmem:[#allocation2 + $0x224] sm:$0xf]
    %v955 = vld [vmem:[#allocation2 + $0x228] sm:$0xff]
    %v956 = vld [vmem:[#allocation2 + $0x230] sm:$0xf]
    %v957 = vld [vmem:[#allocation2 + $0x234] sm:$0xff]
    %v958 = vld [vmem:[#allocation2 + $0x23c] sm:$0xf]
    %v959 = vld [vmem:[#allocation2 + $0x240] sm:$0xff]
    %v960 = vld [vmem:[#allocation2 + $0x248] sm:$0xf]
    %v961 = vld [vmem:[#allocation2 + $0x24c] sm:$0xff]
    %v962 = vld [vmem:[#allocation2 + $0x254] sm:$0xf]
    %v963 = vld [vmem:[#allocation2 + $0x258] sm:$0xff]
    %v964 = vld [vmem:[#allocation2 + $0x260] sm:$0xf]
    %v965 = vld [vmem:[#allocation2 + $0x264] sm:$0xff]
    %v966 = vld [vmem:[#allocation2 + $0x26c] sm:$0xf]
    %v967 = vld [vmem:[#allocation2 + $0x270] sm:$0xff]
    %v968 = vld [vmem:[#allocation2 + $0x278] sm:$0xf]
    %v969 = vld [vmem:[#allocation2 + $0x27c] sm:$0xff]
    %v970 = vld [vmem:[#allocation2 + $0x284] sm:$0xf]
    %v971 = vld [vmem:[#allocation2 + $0x288] sm:$0xff]
    %v972 = vld [vmem:[#allocation2 + $0x290] sm:$0xf]
    %v973 = vld [vmem:[#allocation2 + $0x294] sm:$0xff]
    %v974 = vld [vmem:[#allocation2 + $0x29c] sm:$0xf]
    %v975 = vld [vmem:[#allocation2 + $0x2a0] sm:$0xff]
    %v976 = vld [vmem:[#allocation2 + $0x2a8] sm:$0xf]
    %v977 = vld [vmem:[#allocation2 + $0x2ac] sm:$0xff]
    %v978 = vld [vmem:[#allocation2 + $0x2b4] sm:$0xf]
    %v979 = vld [vmem:[#allocation2 + $0x2b8] sm:$0xff]
    %v980 = vld [vmem:[#allocation2 + $0x2c0] sm:$0xf]
    %v981 = vld [vmem:[#allocation2 + $0x2c4] sm:$0xff]
    %v982 = vld [vmem:[#allocation2 + $0x2cc] sm:$0xf]
    %v983 = vld [vmem:[#allocation2 + $0x2d0] sm:$0xff]
    %v984 = vld [vmem:[#allocation2 + $0x2d8] sm:$0xf]
    %v985 = vld [vmem:[#allocation2 + $0x2dc] sm:$0xff]
    %v986 = vld [vmem:[#allocation2 + $0x2e4] sm:$0xf]
    %v987 = vld [vmem:[#allocation2 + $0x2e8] sm:$0xff]
    %v988 = vld [vmem:[#allocation2 + $0x2f0] sm:$0xf]
    %v989 = vld [vmem:[#allocation2 + $0x2f4] sm:$0xff]
    %v990 = vld [vmem:[#allocation2 + $0x2fc] sm:$0xf]
    %v991 = vld [vmem:[#allocation2 + $0x300] sm:$0xff]
    %v992 = vld [vmem:[#allocation2 + $0x308] sm:$0xf]
    %v993 = vld [vmem:[#allocation2 + $0x30c] sm:$0xff]
    %v994 = vld [vmem:[#allocation2 + $0x314] sm:$0xf]
    %v995 = vld [vmem:[#allocation2 + $0x318] sm:$0xff]
    %v996 = vld [vmem:[#allocation2 + $0x320] sm:$0xf]
    %v997 = vld [vmem:[#allocation2 + $0x324] sm:$0xff]
    %v998 = vld [vmem:[#allocation2 + $0x32c] sm:$0xf]
    %v999 = vld [vmem:[#allocation2 + $0x330] sm:$0xff]
    %v1000 = vld [vmem:[#allocation2 + $0x338] sm:$0xf]
    %v1001 = vld [vmem:[#allocation2 + $0x33c] sm:$0xff]
    %v1002 = vld [vmem:[#allocation2 + $0x344] sm:$0xf]
    %v1003 = vld [vmem:[#allocation2 + $0x348] sm:$0xff]
    %v1004 = vld [vmem:[#allocation2 + $0x350] sm:$0xf]
    %v1005 = vld [vmem:[#allocation2 + $0x354] sm:$0xff]
    %v1006 = vld [vmem:[#allocation2 + $0x35c] sm:$0xf]
    %v1007 = vld [vmem:[#allocation2 + $0x360] sm:$0xff]
    %v1008 = vld [vmem:[#allocation2 + $0x368] sm:$0xf]
    %v1009 = vld [vmem:[#allocation2 + $0x36c] sm:$0xff]
    %v1010 = vld [vmem:[#allocation2 + $0x374] sm:$0xf]
    %v1011 = vld [vmem:[#allocation2 + $0x378] sm:$0xff]
    %v1012 = vld [vmem:[#allocation2 + $0x380] sm:$0xf]
    %v1013 = vld [vmem:[#allocation2 + $0x384] sm:$0xff]
    %v1014 = vld [vmem:[#allocation2 + $0x38c] sm:$0xf]
    %v1015 = vld [vmem:[#allocation2 + $0x390] sm:$0xff]
    %v1016 = vld [vmem:[#allocation2 + $0x398] sm:$0xf]
    %v1017 = vld [vmem:[#allocation2 + $0x39c] sm:$0xff]
    %v1018 = vld [vmem:[#allocation2 + $0x3a4] sm:$0xf]
    %v1019 = vld [vmem:[#allocation2 + $0x3a8] sm:$0xff]
    %v1020 = vld [vmem:[#allocation2 + $0x3b0] sm:$0xf]
    %v1021 = vld [vmem:[#allocation2 + $0x3b4] sm:$0xff]
    %v1022 = vld [vmem:[#allocation2 + $0x3bc] sm:$0xf]
    %v1183 = vunpack.c.l.b16 %v863
    %v1184 = vunpack.c.h.b16 %v863
    %v1185 = vunpack.c.l.b16 %v864
    %v1186 = vunpack.c.l.b16 %v865
    %v1187 = vunpack.c.h.b16 %v865
    %v1188 = vunpack.c.l.b16 %v866
    %v1189 = vunpack.c.l.b16 %v867
    %v1190 = vunpack.c.h.b16 %v867
    %v1191 = vunpack.c.l.b16 %v868
    %v1192 = vunpack.c.l.b16 %v869
    %v1193 = vunpack.c.h.b16 %v869
    %v1194 = vunpack.c.l.b16 %v870
    %v1195 = vunpack.c.l.b16 %v871
    %v1196 = vunpack.c.h.b16 %v871
    %v1197 = vunpack.c.l.b16 %v872
    %v1198 = vunpack.c.l.b16 %v873
    %v1199 = vunpack.c.h.b16 %v873
    %v1200 = vunpack.c.l.b16 %v874
    %v1201 = vunpack.c.l.b16 %v875
    %v1202 = vunpack.c.h.b16 %v875
    %v1203 = vunpack.c.l.b16 %v876
    %v1204 = vunpack.c.l.b16 %v877
    %v1205 = vunpack.c.h.b16 %v877
    %v1206 = vunpack.c.l.b16 %v878
    %v1207 = vunpack.c.l.b16 %v879
    %v1208 = vunpack.c.h.b16 %v879
    %v1209 = vunpack.c.l.b16 %v880
    %v1210 = vunpack.c.l.b16 %v881
    %v1211 = vunpack.c.h.b16 %v881
    %v1212 = vunpack.c.l.b16 %v882
    %v1213 = vunpack.c.l.b16 %v883
    %v1214 = vunpack.c.h.b16 %v883
    %v1215 = vunpack.c.l.b16 %v884
    %v1216 = vunpack.c.l.b16 %v885
    %v1217 = vunpack.c.h.b16 %v885
    %v1218 = vunpack.c.l.b16 %v886
    %v1219 = vunpack.c.l.b16 %v887
    %v1220 = vunpack.c.h.b16 %v887
    %v1221 = vunpack.c.l.b16 %v888
    %v1222 = vunpack.c.l.b16 %v889
    %v1223 = vunpack.c.h.b16 %v889
    %v1224 = vunpack.c.l.b16 %v890
    %v1225 = vunpack.c.l.b16 %v891
    %v1226 = vunpack.c.h.b16 %v891
    %v1227 = vunpack.c.l.b16 %v892
    %v1228 = vunpack.c.l.b16 %v893
    %v1229 = vunpack.c.h.b16 %v893
    %v1230 = vunpack.c.l.b16 %v894
    %v1231 = vunpack.c.l.b16 %v895
    %v1232 = vunpack.c.h.b16 %v895
    %v1233 = vunpack.c.l.b16 %v896
    %v1234 = vunpack.c.l.b16 %v897
    %v1235 = vunpack.c.h.b16 %v897
    %v1236 = vunpack.c.l.b16 %v898
    %v1237 = vunpack.c.l.b16 %v899
    %v1238 = vunpack.c.h.b16 %v899
    %v1239 = vunpack.c.l.b16 %v900
    %v1240 = vunpack.c.l.b16 %v901
    %v1241 = vunpack.c.h.b16 %v901
    %v1242 = vunpack.c.l.b16 %v902
    %v1243 = vunpack.c.l.b16 %v903
    %v1244 = vunpack.c.h.b16 %v903
    %v1245 = vunpack.c.l.b16 %v904
    %v1246 = vunpack.c.l.b16 %v905
    %v1247 = vunpack.c.h.b16 %v905
    %v1248 = vunpack.c.l.b16 %v906
    %v1249 = vunpack.c.l.b16 %v907
    %v1250 = vunpack.c.h.b16 %v907
    %v1251 = vunpack.c.l.b16 %v908
    %v1252 = vunpack.c.l.b16 %v909
    %v1253 = vunpack.c.h.b16 %v909
    %v1254 = vunpack.c.l.b16 %v910
    %v1255 = vunpack.c.l.b16 %v911
    %v1256 = vunpack.c.h.b16 %v911
    %v1257 = vunpack.c.l.b16 %v912
    %v1258 = vunpack.c.l.b16 %v913
    %v1259 = vunpack.c.h.b16 %v913
    %v1260 = vunpack.c.l.b16 %v914
    %v1261 = vunpack.c.l.b16 %v915
    %v1262 = vunpack.c.h.b16 %v915
    %v1263 = vunpack.c.l.b16 %v916
    %v1264 = vunpack.c.l.b16 %v917
    %v1265 = vunpack.c.h.b16 %v917
    %v1266 = vunpack.c.l.b16 %v918
    %v1267 = vunpack.c.l.b16 %v919
    %v1268 = vunpack.c.h.b16 %v919
    %v1269 = vunpack.c.l.b16 %v920
    %v1270 = vunpack.c.l.b16 %v921
    %v1271 = vunpack.c.h.b16 %v921
    %v1272 = vunpack.c.l.b16 %v922
    %v1273 = vunpack.c.l.b16 %v923
    %v1274 = vunpack.c.h.b16 %v923
    %v1275 = vunpack.c.l.b16 %v924
    %v1276 = vunpack.c.l.b16 %v925
    %v1277 = vunpack.c.h.b16 %v925
    %v1278 = vunpack.c.l.b16 %v926
    %v1279 = vunpack.c.l.b16 %v927
    %v1280 = vunpack.c.h.b16 %v927
    %v1281 = vunpack.c.l.b16 %v928
    %v1282 = vunpack.c.l.b16 %v929
    %v1283 = vunpack.c.h.b16 %v929
    %v1284 = vunpack.c.l.b16 %v930
    %v1285 = vunpack.c.l.b16 %v931
    %v1286 = vunpack.c.h.b16 %v931
    %v1287 = vunpack.c.l.b16 %v932
    %v1288 = vunpack.c.l.b16 %v933
    %v1289 = vunpack.c.h.b16 %v933
    %v1290 = vunpack.c.l.b16 %v934
    %v1291 = vunpack.c.l.b16 %v935
    %v1292 = vunpack.c.h.b16 %v935
    %v1293 = vunpack.c.l.b16 %v936
    %v1294 = vunpack.c.l.b16 %v937
    %v1295 = vunpack.c.h.b16 %v937
    %v1296 = vunpack.c.l.b16 %v938
    %v1297 = vunpack.c.l.b16 %v939
    %v1298 = vunpack.c.h.b16 %v939
    %v1299 = vunpack.c.l.b16 %v940
    %v1300 = vunpack.c.l.b16 %v941
    %v1301 = vunpack.c.h.b16 %v941
    %v1302 = vunpack.c.l.b16 %v942
    %v1303 = vunpack.c.l.b16 %v943
    %v1304 = vunpack.c.h.b16 %v943
    %v1305 = vunpack.c.l.b16 %v944
    %v1306 = vunpack.c.l.b16 %v945
    %v1307 = vunpack.c.h.b16 %v945
    %v1308 = vunpack.c.l.b16 %v946
    %v1309 = vunpack.c.l.b16 %v947
    %v1310 = vunpack.c.h.b16 %v947
    %v1311 = vunpack.c.l.b16 %v948
    %v1312 = vunpack.c.l.b16 %v949
    %v1313 = vunpack.c.h.b16 %v949
    %v1314 = vunpack.c.l.b16 %v950
    %v1315 = vunpack.c.l.b16 %v951
    %v1316 = vunpack.c.h.b16 %v951
    %v1317 = vunpack.c.l.b16 %v952
    %v1318 = vunpack.c.l.b16 %v953
    %v1319 = vunpack.c.h.b16 %v953
    %v1320 = vunpack.c.l.b16 %v954
    %v1321 = vunpack.c.l.b16 %v955
    %v1322 = vunpack.c.h.b16 %v955
    %v1323 = vunpack.c.l.b16 %v956
    %v1324 = vunpack.c.l.b16 %v957
    %v1325 = vunpack.c.h.b16 %v957
    %v1326 = vunpack.c.l.b16 %v958
    %v1327 = vunpack.c.l.b16 %v959
    %v1328 = vunpack.c.h.b16 %v959
    %v1329 = vunpack.c.l.b16 %v960
    %v1330 = vunpack.c.l.b16 %v961
    %v1331 = vunpack.c.h.b16 %v961
    %v1332 = vunpack.c.l.b16 %v962
    %v1333 = vunpack.c.l.b16 %v963
    %v1334 = vunpack.c.h.b16 %v963
    %v1335 = vunpack.c.l.b16 %v964
    %v1336 = vunpack.c.l.b16 %v965
    %v1337 = vunpack.c.h.b16 %v965
    %v1338 = vunpack.c.l.b16 %v966
    %v1339 = vunpack.c.l.b16 %v967
    %v1340 = vunpack.c.h.b16 %v967
    %v1341 = vunpack.c.l.b16 %v968
    %v1342 = vunpack.c.l.b16 %v969
    %v1343 = vunpack.c.h.b16 %v969
    %v1344 = vunpack.c.l.b16 %v970
    %v1345 = vunpack.c.l.b16 %v971
    %v1346 = vunpack.c.h.b16 %v971
    %v1347 = vunpack.c.l.b16 %v972
    %v1348 = vunpack.c.l.b16 %v973
    %v1349 = vunpack.c.h.b16 %v973
    %v1350 = vunpack.c.l.b16 %v974
    %v1351 = vunpack.c.l.b16 %v975
    %v1352 = vunpack.c.h.b16 %v975
    %v1353 = vunpack.c.l.b16 %v976
    %v1354 = vunpack.c.l.b16 %v977
    %v1355 = vunpack.c.h.b16 %v977
    %v1356 = vunpack.c.l.b16 %v978
    %v1357 = vunpack.c.l.b16 %v979
    %v1358 = vunpack.c.h.b16 %v979
    %v1359 = vunpack.c.l.b16 %v980
    %v1360 = vunpack.c.l.b16 %v981
    %v1361 = vunpack.c.h.b16 %v981
    %v1362 = vunpack.c.l.b16 %v982
    %v1363 = vunpack.c.l.b16 %v983
    %v1364 = vunpack.c.h.b16 %v983
    %v1365 = vunpack.c.l.b16 %v984
    %v1366 = vunpack.c.l.b16 %v985
    %v1367 = vunpack.c.h.b16 %v985
    %v1368 = vunpack.c.l.b16 %v986
    %v1369 = vunpack.c.l.b16 %v987
    %v1370 = vunpack.c.h.b16 %v987
    %v1371 = vunpack.c.l.b16 %v988
    %v1372 = vunpack.c.l.b16 %v989
    %v1373 = vunpack.c.h.b16 %v989
    %v1374 = vunpack.c.l.b16 %v990
    %v1375 = vunpack.c.l.b16 %v991
    %v1376 = vunpack.c.h.b16 %v991
    %v1377 = vunpack.c.l.b16 %v992
    %v1378 = vunpack.c.l.b16 %v993
    %v1379 = vunpack.c.h.b16 %v993
    %v1380 = vunpack.c.l.b16 %v994
    %v1381 = vunpack.c.l.b16 %v995
    %v1382 = vunpack.c.h.b16 %v995
    %v1383 = vunpack.c.l.b16 %v996
    %v1384 = vunpack.c.l.b16 %v997
    %v1385 = vunpack.c.h.b16 %v997
    %v1386 = vunpack.c.l.b16 %v998
    %v1387 = vunpack.c.l.b16 %v999
    %v1388 = vunpack.c.h.b16 %v999
    %v1389 = vunpack.c.l.b16 %v1000
    %v1390 = vunpack.c.l.b16 %v1001
    %v1391 = vunpack.c.h.b16 %v1001
    %v1392 = vunpack.c.l.b16 %v1002
    %v1393 = vunpack.c.l.b16 %v1003
    %v1394 = vunpack.c.h.b16 %v1003
    %v1395 = vunpack.c.l.b16 %v1004
    %v1396 = vunpack.c.l.b16 %v1005
    %v1397 = vunpack.c.h.b16 %v1005
    %v1398 = vunpack.c.l.b16 %v1006
    %v1399 = vunpack.c.l.b16 %v1007
    %v1400 = vunpack.c.h.b16 %v1007
    %v1401 = vunpack.c.l.b16 %v1008
    %v1402 = vunpack.c.l.b16 %v1009
    %v1403 = vunpack.c.h.b16 %v1009
    %v1404 = vunpack.c.l.b16 %v1010
    %v1405 = vunpack.c.l.b16 %v1011
    %v1406 = vunpack.c.h.b16 %v1011
    %v1407 = vunpack.c.l.b16 %v1012
    %v1408 = vunpack.c.l.b16 %v1013
    %v1409 = vunpack.c.h.b16 %v1013
    %v1410 = vunpack.c.l.b16 %v1014
    %v1411 = vunpack.c.l.b16 %v1015
    %v1412 = vunpack.c.h.b16 %v1015
    %v1413 = vunpack.c.l.b16 %v1016
    %v1414 = vunpack.c.l.b16 %v1017
    %v1415 = vunpack.c.h.b16 %v1017
    %v1416 = vunpack.c.l.b16 %v1018
    %v1417 = vunpack.c.l.b16 %v1019
    %v1418 = vunpack.c.h.b16 %v1019
    %v1419 = vunpack.c.l.b16 %v1020
    %v1420 = vunpack.c.l.b16 %v1021
    %v1421 = vunpack.c.h.b16 %v1021
    %v1422 = vunpack.c.l.b16 %v1022
    %v1423 = vpack.c.b16 %v1186, %v1183
    %v1424 = vpack.c.b16 %v1187, %v1184
    %v1425 = vpack.c.b16 %v1188, %v1185
    %v1426 = vpack.c.b16 %v1192, %v1189
    %v1427 = vpack.c.b16 %v1193, %v1190
    %v1428 = vpack.c.b16 %v1194, %v1191
    %v1429 = vpack.c.b16 %v1198, %v1195
    %v1430 = vpack.c.b16 %v1199, %v1196
    %v1431 = vpack.c.b16 %v1200, %v1197
    %v1432 = vpack.c.b16 %v1204, %v1201
    %v1433 = vpack.c.b16 %v1205, %v1202
    %v1434 = vpack.c.b16 %v1206, %v1203
    %v1435 = vpack.c.b16 %v1210, %v1207
    %v1436 = vpack.c.b16 %v1211, %v1208
    %v1437 = vpack.c.b16 %v1212, %v1209
    %v1438 = vpack.c.b16 %v1216, %v1213
    %v1439 = vpack.c.b16 %v1217, %v1214
    %v1440 = vpack.c.b16 %v1218, %v1215
    %v1441 = vpack.c.b16 %v1222, %v1219
    %v1442 = vpack.c.b16 %v1223, %v1220
    %v1443 = vpack.c.b16 %v1224, %v1221
    %v1444 = vpack.c.b16 %v1228, %v1225
    %v1445 = vpack.c.b16 %v1229, %v1226
    %v1446 = vpack.c.b16 %v1230, %v1227
    %v1447 = vpack.c.b16 %v1234, %v1231
    %v1448 = vpack.c.b16 %v1235, %v1232
    %v1449 = vpack.c.b16 %v1236, %v1233
    %v1450 = vpack.c.b16 %v1240, %v1237
    %v1451 = vpack.c.b16 %v1241, %v1238
    %v1452 = vpack.c.b16 %v1242, %v1239
    %v1453 = vpack.c.b16 %v1246, %v1243
    %v1454 = vpack.c.b16 %v1247, %v1244
    %v1455 = vpack.c.b16 %v1248, %v1245
    %v1456 = vpack.c.b16 %v1252, %v1249
    %v1457 = vpack.c.b16 %v1253, %v1250
    %v1458 = vpack.c.b16 %v1254, %v1251
    %v1459 = vpack.c.b16 %v1258, %v1255
    %v1460 = vpack.c.b16 %v1259, %v1256
    %v1461 = vpack.c.b16 %v1260, %v1257
    %v1462 = vpack.c.b16 %v1264, %v1261
    %v1463 = vpack.c.b16 %v1265, %v1262
    %v1464 = vpack.c.b16 %v1266, %v1263
    %v1465 = vpack.c.b16 %v1270, %v1267
    %v1466 = vpack.c.b16 %v1271, %v1268
    %v1467 = vpack.c.b16 %v1272, %v1269
    %v1468 = vpack.c.b16 %v1276, %v1273
    %v1469 = vpack.c.b16 %v1277, %v1274
    %v1470 = vpack.c.b16 %v1278, %v1275
    %v1471 = vpack.c.b16 %v1282, %v1279
    %v1472 = vpack.c.b16 %v1283, %v1280
    %v1473 = vpack.c.b16 %v1284, %v1281
    %v1474 = vpack.c.b16 %v1288, %v1285
    %v1475 = vpack.c.b16 %v1289, %v1286
    %v1476 = vpack.c.b16 %v1290, %v1287
    %v1477 = vpack.c.b16 %v1294, %v1291
    %v1478 = vpack.c.b16 %v1295, %v1292
    %v1479 = vpack.c.b16 %v1296, %v1293
    %v1480 = vpack.c.b16 %v1300, %v1297
    %v1481 = vpack.c.b16 %v1301, %v1298
    %v1482 = vpack.c.b16 %v1302, %v1299
    %v1483 = vpack.c.b16 %v1306, %v1303
    %v1484 = vpack.c.b16 %v1307, %v1304
    %v1485 = vpack.c.b16 %v1308, %v1305
    %v1486 = vpack.c.b16 %v1312, %v1309
    %v1487 = vpack.c.b16 %v1313, %v1310
    %v1488 = vpack.c.b16 %v1314, %v1311
    %v1489 = vpack.c.b16 %v1318, %v1315
    %v1490 = vpack.c.b16 %v1319, %v1316
    %v1491 = vpack.c.b16 %v1320, %v1317
    %v1492 = vpack.c.b16 %v1324, %v1321
    %v1493 = vpack.c.b16 %v1325, %v1322
    %v1494 = vpack.c.b16 %v1326, %v1323
    %v1495 = vpack.c.b16 %v1330, %v1327
    %v1496 = vpack.c.b16 %v1331, %v1328
    %v1497 = vpack.c.b16 %v1332, %v1329
    %v1498 = vpack.c.b16 %v1336, %v1333
    %v1499 = vpack.c.b16 %v1337, %v1334
    %v1500 = vpack.c.b16 %v1338, %v1335
    %v1501 = vpack.c.b16 %v1342, %v1339
    %v1502 = vpack.c.b16 %v1343, %v1340
    %v1503 = vpack.c.b16 %v1344, %v1341
    %v1504 = vpack.c.b16 %v1348, %v1345
    %v1505 = vpack.c.b16 %v1349, %v1346
    %v1506 = vpack.c.b16 %v1350, %v1347
    %v1507 = vpack.c.b16 %v1354, %v1351
    %v1508 = vpack.c.b16 %v1355, %v1352
    %v1509 = vpack.c.b16 %v1356, %v1353
    %v1510 = vpack.c.b16 %v1360, %v1357
    %v1511 = vpack.c.b16 %v1361, %v1358
    %v1512 = vpack.c.b16 %v1362, %v1359
    %v1513 = vpack.c.b16 %v1366, %v1363
    %v1514 = vpack.c.b16 %v1367, %v1364
    %v1515 = vpack.c.b16 %v1368, %v1365
    %v1516 = vpack.c.b16 %v1372, %v1369
    %v1517 = vpack.c.b16 %v1373, %v1370
    %v1518 = vpack.c.b16 %v1374, %v1371
    %v1519 = vpack.c.b16 %v1378, %v1375
    %v1520 = vpack.c.b16 %v1379, %v1376
    %v1521 = vpack.c.b16 %v1380, %v1377
    %v1522 = vpack.c.b16 %v1384, %v1381
    %v1523 = vpack.c.b16 %v1385, %v1382
    %v1524 = vpack.c.b16 %v1386, %v1383
    %v1525 = vpack.c.b16 %v1390, %v1387
    %v1526 = vpack.c.b16 %v1391, %v1388
    %v1527 = vpack.c.b16 %v1392, %v1389
    %v1528 = vpack.c.b16 %v1396, %v1393
    %v1529 = vpack.c.b16 %v1397, %v1394
    %v1530 = vpack.c.b16 %v1398, %v1395
    %v1531 = vpack.c.b16 %v1402, %v1399
    %v1532 = vpack.c.b16 %v1403, %v1400
    %v1533 = vpack.c.b16 %v1404, %v1401
    %v1534 = vpack.c.b16 %v1408, %v1405
    %v1535 = vpack.c.b16 %v1409, %v1406
    %v1536 = vpack.c.b16 %v1410, %v1407
    %v1537 = vpack.c.b16 %v1414, %v1411
    %v1538 = vpack.c.b16 %v1415, %v1412
    %v1539 = vpack.c.b16 %v1416, %v1413
    %v1540 = vpack.c.b16 %v1420, %v1417
    %v1541 = vpack.c.b16 %v1421, %v1418
    %v1542 = vpack.c.b16 %v1422, %v1419
    %1663 = vmatprep.subr.bf16.mxu0 %v1424
    %1664 = vmatpush1.bf16.msra.mxu0 %v1423
    %1665 = vmatprep.subr.bf16.mxu0 %v1427
    %1666 = vmatpush1.bf16.msra.mxu0 %v1426
    %1667 = vmatprep.subr.bf16.mxu0 %v1430
    %1668 = vmatpush1.bf16.msra.mxu0 %v1429
    %1669 = vmatprep.subr.bf16.mxu0 %v1433
    %1670 = vmatpush1.bf16.msra.mxu0 %v1432
    %1671 = vmatprep.subr.bf16.mxu0 %v1436
    %1672 = vmatpush1.bf16.msra.mxu0 %v1435
    %1673 = vmatprep.subr.bf16.mxu0 %v1439
    %1674 = vmatpush1.bf16.msra.mxu0 %v1438
    %1675 = vmatprep.subr.bf16.mxu0 %v1442
    %1676 = vmatpush1.bf16.msra.mxu0 %v1441
    %1677 = vmatprep.subr.bf16.mxu0 %v1445
    %1678 = vmatpush1.bf16.msra.mxu0 %v1444
    %1679 = vmatprep.subr.bf16.mxu0 %v1448
    %1680 = vmatpush1.bf16.msra.mxu0 %v1447
    %1681 = vmatprep.subr.bf16.mxu0 %v1451
    %1682 = vmatpush1.bf16.msra.mxu0 %v1450
    %1683 = vmatprep.subr.bf16.mxu0 %v1454
    %1684 = vmatpush1.bf16.msra.mxu0 %v1453
    %1685 = vmatprep.subr.bf16.mxu0 %v1457
    %1686 = vmatpush1.bf16.msra.mxu0 %v1456
    %1687 = vmatprep.subr.bf16.mxu0 %v1460
    %1688 = vmatpush1.bf16.msra.mxu0 %v1459
    %1689 = vmatprep.subr.bf16.mxu0 %v1463
    %1690 = vmatpush1.bf16.msra.mxu0 %v1462
    %1691 = vmatprep.subr.bf16.mxu0 %v1466
    %1692 = vmatpush1.bf16.msra.mxu0 %v1465
    %1693 = vmatprep.subr.bf16.mxu0 %v1469
    %1694 = vmatpush1.bf16.msra.mxu0 %v1468
    %1695 = vmatprep.mubr.bf16.mxu0 %v303
    %1696 = vmatmul.mubr.bf16.gmra.mrb[0].mxu0 %v219
    %v1697 = vpop.f32.mrb[0].mxu0
    %v1698 = vadd.f32 0.0, %v1697
    %v1699 = vpop.f32.mrb[0].mxu0
    %v1700 = vadd.f32 0.0, %v1699
    %v1701 = vpop.f32.mrb[0].mxu0
    %v1702 = vadd.f32 0.0, %v1701
    %v1703 = vpop.f32.mrb[0].mxu0
    %v1704 = vadd.f32 0.0, %v1703
    %1705 = vmatprep.mubr.bf16.mxu0 %v311
    %1706 = vmatmul.mubr.bf16.gmra.mrb[0].mxu0 %v220
    %v1707 = vpop.f32.mrb[0].mxu0
    %v1708 = vadd.f32 0.0, %v1707
    %v1709 = vpop.f32.mrb[0].mxu0
    %v1710 = vadd.f32 0.0, %v1709
    %v1711 = vpop.f32.mrb[0].mxu0
    %v1712 = vadd.f32 0.0, %v1711
    %v1713 = vpop.f32.mrb[0].mxu0
    %v1714 = vadd.f32 0.0, %v1713
    %1715 = vmatprep.mubr.bf16.mxu0 %v319
    %1716 = vmatmul.mubr.bf16.gmra.mrb[0].mxu0 %v221
    %v1717 = vpop.f32.mrb[0].mxu0
    %v1718 = vadd.f32 0.0, %v1717
    %v1719 = vpop.f32.mrb[0].mxu0
    %v1720 = vadd.f32 0.0, %v1719
    %v1721 = vpop.f32.mrb[0].mxu0
    %v1722 = vadd.f32 0.0, %v1721
    %v1723 = vpop.f32.mrb[0].mxu0
    %v1724 = vadd.f32 0.0, %v1723
    %1725 = vmatprep.mubr.bf16.mxu0 %v331
    %1726 = vmatmul.mubr.bf16.gmra.mrb[0].mxu0 %v222
    %v1727 = vpop.f32.mrb[0].mxu0
    %v1728 = vadd.f32 0.0, %v1727
    %v1729 = vpop.f32.mrb[0].mxu0
    %v1730 = vadd.f32 0.0, %v1729
    %v1731 = vpop.f32.mrb[0].mxu0
    %v1732 = vadd.f32 0.0, %v1731
    %v1733 = vpop.f32.mrb[0].mxu0
    %v1734 = vadd.f32 0.0, %v1733
    %1735 = vmatprep.mubr.bf16.mxu0 %v339
    %1736 = vmatmul.mubr.bf16.gmra.mrb[0].mxu0 %v223
    %v1737 = vpop.f32.mrb[0].mxu0
    %v1738 = vadd.f32 0.0, %v1737
    %v1739 = vpop.f32.mrb[0].mxu0
    %v1740 = vadd.f32 0.0, %v1739
    %v1741 = vpop.f32.mrb[0].mxu0
    %v1742 = vadd.f32 0.0, %v1741
    %v1743 = vpop.f32.mrb[0].mxu0
    %v1744 = vadd.f32 0.0, %v1743
    %1745 = vmatprep.mubr.bf16.mxu0 %v347
    %1746 = vmatmul.mubr.bf16.gmra.mrb[0].mxu0 %v224
    %v1747 = vpop.f32.mrb[0].mxu0
    %v1748 = vadd.f32 0.0, %v1747
    %v1749 = vpop.f32.mrb[0].mxu0
    %v1750 = vadd.f32 0.0, %v1749
    %v1751 = vpop.f32.mrb[0].mxu0
    %v1752 = vadd.f32 0.0, %v1751
    %v1753 = vpop.f32.mrb[0].mxu0
    %v1754 = vadd.f32 0.0, %v1753
    %1755 = vmatprep.mubr.bf16.mxu0 %v359
    %1756 = vmatmul.mubr.bf16.gmra.mrb[0].mxu0 %v225
    %v1757 = vpop.f32.mrb[0].mxu0
    %v1758 = vadd.f32 0.0, %v1757
    %v1759 = vpop.f32.mrb[0].mxu0
    %v1760 = vadd.f32 0.0, %v1759
    %v1761 = vpop.f32.mrb[0].mxu0
    %v1762 = vadd.f32 0.0, %v1761
    %v1763 = vpop.f32.mrb[0].mxu0
    %v1764 = vadd.f32 0.0, %v1763
    %1765 = vmatprep.mubr.bf16.mxu0 %v367
    %1766 = vmatmul.mubr.bf16.gmra.mrb[0].mxu0 %v226
    %v1767 = vpop.f32.mrb[0].mxu0
    %v1768 = vadd.f32 0.0, %v1767
    %v1769 = vpop.f32.mrb[0].mxu0
    %v1770 = vadd.f32 0.0, %v1769
    %v1771 = vpop.f32.mrb[0].mxu0
    %v1772 = vadd.f32 0.0, %v1771
    %v1773 = vpop.f32.mrb[0].mxu0
    %v1774 = vadd.f32 0.0, %v1773
    %1775 = vmatprep.mubr.bf16.mxu0 %v375
    %1776 = vmatmul.mubr.bf16.gmra.mrb[0].mxu0 %v227
    %v1777 = vpop.f32.mrb[0].mxu0
    %v1778 = vadd.f32 0.0, %v1777
    %v1779 = vpop.f32.mrb[0].mxu0
    %v1780 = vadd.f32 0.0, %v1779
    %v1781 = vpop.f32.mrb[0].mxu0
    %v1782 = vadd.f32 0.0, %v1781
    %v1783 = vpop.f32.mrb[0].mxu0
    %v1784 = vadd.f32 0.0, %v1783
    %1785 = vmatprep.mubr.bf16.mxu0 %v387
    %1786 = vmatmul.mubr.bf16.gmra.mrb[0].mxu0 %v228
    %v1787 = vpop.f32.mrb[0].mxu0
    %v1788 = vadd.f32 0.0, %v1787
    %v1789 = vpop.f32.mrb[0].mxu0
    %v1790 = vadd.f32 0.0, %v1789
    %v1791 = vpop.f32.mrb[0].mxu0
    %v1792 = vadd.f32 0.0, %v1791
    %v1793 = vpop.f32.mrb[0].mxu0
    %v1794 = vadd.f32 0.0, %v1793
    %1795 = vmatprep.mubr.bf16.mxu0 %v395
    %1796 = vmatmul.mubr.bf16.gmra.mrb[0].mxu0 %v229
    %v1797 = vpop.f32.mrb[0].mxu0
    %v1798 = vadd.f32 0.0, %v1797
    %v1799 = vpop.f32.mrb[0].mxu0
    %v1800 = vadd.f32 0.0, %v1799
    %v1801 = vpop.f32.mrb[0].mxu0
    %v1802 = vadd.f32 0.0, %v1801
    %v1803 = vpop.f32.mrb[0].mxu0
    %v1804 = vadd.f32 0.0, %v1803
    %1805 = vmatprep.mubr.bf16.mxu0 %v403
    %1806 = vmatmul.mubr.bf16.gmra.mrb[0].mxu0 %v230
    %v1807 = vpop.f32.mrb[0].mxu0
    %v1808 = vadd.f32 0.0, %v1807
    %v1809 = vpop.f32.mrb[0].mxu0
    %v1810 = vadd.f32 0.0, %v1809
    %v1811 = vpop.f32.mrb[0].mxu0
    %v1812 = vadd.f32 0.0, %v1811
    %v1813 = vpop.f32.mrb[0].mxu0
    %v1814 = vadd.f32 0.0, %v1813
    %1815 = vmatprep.mubr.bf16.mxu0 %v415
    %1816 = vmatmul.mubr.bf16.gmra.mrb[0].mxu0 %v231
    %v1817 = vpop.f32.mrb[0].mxu0
    %v1818 = vadd.f32 0.0, %v1817
    %v1819 = vpop.f32.mrb[0].mxu0
    %v1820 = vadd.f32 0.0, %v1819
    %v1821 = vpop.f32.mrb[0].mxu0
    %v1822 = vadd.f32 0.0, %v1821
    %v1823 = vpop.f32.mrb[0].mxu0
    %v1824 = vadd.f32 0.0, %v1823
    %1825 = vmatprep.mubr.bf16.mxu0 %v423
    %1826 = vmatmul.mubr.bf16.gmra.mrb[0].mxu0 %v232
    %v1827 = vpop.f32.mrb[0].mxu0
    %v1828 = vadd.f32 0.0, %v1827
    %v1829 = vpop.f32.mrb[0].mxu0
    %v1830 = vadd.f32 0.0, %v1829
    %v1831 = vpop.f32.mrb[0].mxu0
    %v1832 = vadd.f32 0.0, %v1831
    %v1833 = vpop.f32.mrb[0].mxu0
    %v1834 = vadd.f32 0.0, %v1833
    %1835 = vmatprep.mubr.bf16.mxu0 %v431
    %1836 = vmatmul.mubr.bf16.gmra.mrb[0].mxu0 %v233
    %v1837 = vpop.f32.mrb[0].mxu0
    %v1838 = vadd.f32 0.0, %v1837
    %v1839 = vpop.f32.mrb[0].mxu0
    %v1840 = vadd.f32 0.0, %v1839
    %v1841 = vpop.f32.mrb[0].mxu0
    %v1842 = vadd.f32 0.0, %v1841
    %v1843 = vpop.f32.mrb[0].mxu0
    %v1844 = vadd.f32 0.0, %v1843
    %1845 = vmatprep.mubr.bf16.mxu0 %v443
    %1846 = vmatmul.mubr.bf16.gmra.mrb[0].mxu0 %v234
    %v1847 = vpop.f32.mrb[0].mxu0
    %v1848 = vadd.f32 0.0, %v1847
    %v1849 = vpop.f32.mrb[0].mxu0
    %v1850 = vadd.f32 0.0, %v1849
    %v1851 = vpop.f32.mrb[0].mxu0
    %v1852 = vadd.f32 0.0, %v1851
    %v1853 = vpop.f32.mrb[0].mxu0
    %v1854 = vadd.f32 0.0, %v1853
    %1855 = vmatprep.mubr.bf16.mxu0 %v451
    %1856 = vmatmul.mubr.bf16.gmra.mrb[0].mxu0 %v235
    %v1857 = vpop.f32.mrb[0].mxu0
    %v1858 = vadd.f32 0.0, %v1857
    %v1859 = vpop.f32.mrb[0].mxu0
    %v1860 = vadd.f32 0.0, %v1859
    %v1861 = vpop.f32.mrb[0].mxu0
    %v1862 = vadd.f32 0.0, %v1861
    %v1863 = vpop.f32.mrb[0].mxu0
    %v1864 = vadd.f32 0.0, %v1863
    %1865 = vmatprep.mubr.bf16.mxu0 %v459
    %1866 = vmatmul.mubr.bf16.gmra.mrb[0].mxu0 %v236
    %v1867 = vpop.f32.mrb[0].mxu0
    %v1868 = vadd.f32 0.0, %v1867
    %v1869 = vpop.f32.mrb[0].mxu0
    %v1870 = vadd.f32 0.0, %v1869
    %v1871 = vpop.f32.mrb[0].mxu0
    %v1872 = vadd.f32 0.0, %v1871
    %v1873 = vpop.f32.mrb[0].mxu0
    %v1874 = vadd.f32 0.0, %v1873
    %1875 = vmatprep.mubr.bf16.mxu0 %v471
    %1876 = vmatmul.mubr.bf16.gmra.mrb[0].mxu0 %v237
    %v1877 = vpop.f32.mrb[0].mxu0
    %v1878 = vadd.f32 0.0, %v1877
    %v1879 = vpop.f32.mrb[0].mxu0
    %v1880 = vadd.f32 0.0, %v1879
    %v1881 = vpop.f32.mrb[0].mxu0
    %v1882 = vadd.f32 0.0, %v1881
    %v1883 = vpop.f32.mrb[0].mxu0
    %v1884 = vadd.f32 0.0, %v1883
    %1885 = vmatprep.mubr.bf16.mxu0 %v479
    %1886 = vmatmul.mubr.bf16.gmra.mrb[0].mxu0 %v238
    %v1887 = vpop.f32.mrb[0].mxu0
    %v1888 = vadd.f32 0.0, %v1887
    %v1889 = vpop.f32.mrb[0].mxu0
    %v1890 = vadd.f32 0.0, %v1889
    %v1891 = vpop.f32.mrb[0].mxu0
    %v1892 = vadd.f32 0.0, %v1891
    %v1893 = vpop.f32.mrb[0].mxu0
    %v1894 = vadd.f32 0.0, %v1893
    %1895 = vmatprep.mubr.bf16.mxu0 %v487
    %1896 = vmatmul.mubr.bf16.gmra.mrb[0].mxu0 %v239
    %v1897 = vpop.f32.mrb[0].mxu0
    %v1898 = vadd.f32 0.0, %v1897
    %v1899 = vpop.f32.mrb[0].mxu0
    %v1900 = vadd.f32 0.0, %v1899
    %v1901 = vpop.f32.mrb[0].mxu0
    %v1902 = vadd.f32 0.0, %v1901
    %v1903 = vpop.f32.mrb[0].mxu0
    %v1904 = vadd.f32 0.0, %v1903
    %1905 = vmatprep.mubr.bf16.mxu0 %v499
    %1906 = vmatmul.mubr.bf16.gmra.mrb[0].mxu0 %v240
    %v1907 = vpop.f32.mrb[0].mxu0
    %v1908 = vadd.f32 0.0, %v1907
    %v1909 = vpop.f32.mrb[0].mxu0
    %v1910 = vadd.f32 0.0, %v1909
    %v1911 = vpop.f32.mrb[0].mxu0
    %v1912 = vadd.f32 0.0, %v1911
    %v1913 = vpop.f32.mrb[0].mxu0
    %v1914 = vadd.f32 0.0, %v1913
    %1915 = vmatprep.mubr.bf16.mxu0 %v507
    %1916 = vmatmul.mubr.bf16.gmra.mrb[0].mxu0 %v241
    %v1917 = vpop.f32.mrb[0].mxu0
    %v1918 = vadd.f32 0.0, %v1917
    %v1919 = vpop.f32.mrb[0].mxu0
    %v1920 = vadd.f32 0.0, %v1919
    %v1921 = vpop.f32.mrb[0].mxu0
    %v1922 = vadd.f32 0.0, %v1921
    %v1923 = vpop.f32.mrb[0].mxu0
    %v1924 = vadd.f32 0.0, %v1923
    %1925 = vmatprep.mubr.bf16.mxu0 %v515
    %1926 = vmatmul.mubr.bf16.gmra.mrb[0].mxu0 %v242
    %v1927 = vpop.f32.mrb[0].mxu0
    %v1928 = vadd.f32 0.0, %v1927
    %v1929 = vpop.f32.mrb[0].mxu0
    %v1930 = vadd.f32 0.0, %v1929
    %v1931 = vpop.f32.mrb[0].mxu0
    %v1932 = vadd.f32 0.0, %v1931
    %v1933 = vpop.f32.mrb[0].mxu0
    %v1934 = vadd.f32 0.0, %v1933
    %1935 = vdwg.mxu0
    %1936 = vmatprep.subr.bf16.mxu0 %v1472
    %1937 = vmatpush1.bf16.msra.mxu0 %v1471
    %1938 = vmatprep.subr.bf16.mxu0 %v1475
    %1939 = vmatpush1.bf16.msra.mxu0 %v1474
    %1940 = vmatprep.subr.bf16.mxu0 %v1478
    %1941 = vmatpush1.bf16.msra.mxu0 %v1477
    %1942 = vmatprep.subr.bf16.mxu0 %v1481
    %1943 = vmatpush1.bf16.msra.mxu0 %v1480
    %1944 = vmatprep.subr.bf16.mxu0 %v1484
    %1945 = vmatpush1.bf16.msra.mxu0 %v1483
    %1946 = vmatprep.subr.bf16.mxu0 %v1487
    %1947 = vmatpush1.bf16.msra.mxu0 %v1486
    %1948 = vmatprep.subr.bf16.mxu0 %v1490
    %1949 = vmatpush1.bf16.msra.mxu0 %v1489
    %1950 = vmatprep.subr.bf16.mxu0 %v1493
    %1951 = vmatpush1.bf16.msra.mxu0 %v1492
    %1952 = vmatprep.subr.bf16.mxu0 %v1496
    %1953 = vmatpush1.bf16.msra.mxu0 %v1495
    %1954 = vmatprep.subr.bf16.mxu0 %v1499
    %1955 = vmatpush1.bf16.msra.mxu0 %v1498
    %1956 = vmatprep.subr.bf16.mxu0 %v1502
    %1957 = vmatpush1.bf16.msra.mxu0 %v1501
    %1958 = vmatprep.subr.bf16.mxu0 %v1505
    %1959 = vmatpush1.bf16.msra.mxu0 %v1504
    %1960 = vmatprep.subr.bf16.mxu0 %v1508
    %1961 = vmatpush1.bf16.msra.mxu0 %v1507
    %1962 = vmatprep.subr.bf16.mxu0 %v1511
    %1963 = vmatpush1.bf16.msra.mxu0 %v1510
    %1964 = vmatprep.subr.bf16.mxu0 %v1514
    %1965 = vmatpush1.bf16.msra.mxu0 %v1513
    %1966 = vmatprep.subr.bf16.mxu0 %v1517
    %1967 = vmatpush1.bf16.msra.mxu0 %v1516
    %1968 = vmatprep.mubr.bf16.mxu0 %v628
    %1969 = vmatmul.mubr.bf16.gmra.mrb[0].mxu0 %v543
    %v1970 = vpop.f32.mrb[0].mxu0
    %v1971 = vadd.f32 %v1698, %v1970
    %v1972 = vpop.f32.mrb[0].mxu0
    %v1973 = vadd.f32 %v1700, %v1972
    %v1974 = vpop.f32.mrb[0].mxu0
    %v1975 = vadd.f32 %v1702, %v1974
    %v1976 = vpop.f32.mrb[0].mxu0
    %v1977 = vadd.f32 %v1704, %v1976
    %1978 = vmatprep.mubr.bf16.mxu0 %v632
    %1979 = vmatmul.mubr.bf16.gmra.mrb[0].mxu0 %v545
    %v1980 = vpop.f32.mrb[0].mxu0
    %v1981 = vadd.f32 %v1708, %v1980
    %v1982 = vpop.f32.mrb[0].mxu0
    %v1983 = vadd.f32 %v1710, %v1982
    %v1984 = vpop.f32.mrb[0].mxu0
    %v1985 = vadd.f32 %v1712, %v1984
    %v1986 = vpop.f32.mrb[0].mxu0
    %v1987 = vadd.f32 %v1714, %v1986
    %1988 = vmatprep.mubr.bf16.mxu0 %v638
    %1989 = vmatmul.mubr.bf16.gmra.mrb[0].mxu0 %v547
    %v1990 = vpop.f32.mrb[0].mxu0
    %v1991 = vadd.f32 %v1718, %v1990
    %v1992 = vpop.f32.mrb[0].mxu0
    %v1993 = vadd.f32 %v1720, %v1992
    %v1994 = vpop.f32.mrb[0].mxu0
    %v1995 = vadd.f32 %v1722, %v1994
    %v1996 = vpop.f32.mrb[0].mxu0
    %v1997 = vadd.f32 %v1724, %v1996
    %1998 = vmatprep.mubr.bf16.mxu0 %v645
    %1999 = vmatmul.mubr.bf16.gmra.mrb[0].mxu0 %v550
    %v2000 = vpop.f32.mrb[0].mxu0
    %v2001 = vadd.f32 %v1728, %v2000
    %v2002 = vpop.f32.mrb[0].mxu0
    %v2003 = vadd.f32 %v1730, %v2002
    %v2004 = vpop.f32.mrb[0].mxu0
    %v2005 = vadd.f32 %v1732, %v2004
    %v2006 = vpop.f32.mrb[0].mxu0
    %v2007 = vadd.f32 %v1734, %v2006
    %2008 = vmatprep.mubr.bf16.mxu0 %v649
    %2009 = vmatmul.mubr.bf16.gmra.mrb[0].mxu0 %v552
    %v2010 = vpop.f32.mrb[0].mxu0
    %v2011 = vadd.f32 %v1738, %v2010
    %v2012 = vpop.f32.mrb[0].mxu0
    %v2013 = vadd.f32 %v1740, %v2012
    %v2014 = vpop.f32.mrb[0].mxu0
    %v2015 = vadd.f32 %v1742, %v2014
    %v2016 = vpop.f32.mrb[0].mxu0
    %v2017 = vadd.f32 %v1744, %v2016
    %2018 = vmatprep.mubr.bf16.mxu0 %v655
    %2019 = vmatmul.mubr.bf16.gmra.mrb[0].mxu0 %v554
    %v2020 = vpop.f32.mrb[0].mxu0
    %v2021 = vadd.f32 %v1748, %v2020
    %v2022 = vpop.f32.mrb[0].mxu0
    %v2023 = vadd.f32 %v1750, %v2022
    %v2024 = vpop.f32.mrb[0].mxu0
    %v2025 = vadd.f32 %v1752, %v2024
    %v2026 = vpop.f32.mrb[0].mxu0
    %v2027 = vadd.f32 %v1754, %v2026
    %2028 = vmatprep.mubr.bf16.mxu0 %v662
    %2029 = vmatmul.mubr.bf16.gmra.mrb[0].mxu0 %v557
    %v2030 = vpop.f32.mrb[0].mxu0
    %v2031 = vadd.f32 %v1758, %v2030
    %v2032 = vpop.f32.mrb[0].mxu0
    %v2033 = vadd.f32 %v1760, %v2032
    %v2034 = vpop.f32.mrb[0].mxu0
    %v2035 = vadd.f32 %v1762, %v2034
    %v2036 = vpop.f32.mrb[0].mxu0
    %v2037 = vadd.f32 %v1764, %v2036
    %2038 = vmatprep.mubr.bf16.mxu0 %v666
    %2039 = vmatmul.mubr.bf16.gmra.mrb[0].mxu0 %v559
    %v2040 = vpop.f32.mrb[0].mxu0
    %v2041 = vadd.f32 %v1768, %v2040
    %v2042 = vpop.f32.mrb[0].mxu0
    %v2043 = vadd.f32 %v1770, %v2042
    %v2044 = vpop.f32.mrb[0].mxu0
    %v2045 = vadd.f32 %v1772, %v2044
    %v2046 = vpop.f32.mrb[0].mxu0
    %v2047 = vadd.f32 %v1774, %v2046
    %2048 = vmatprep.mubr.bf16.mxu0 %v672
    %2049 = vmatmul.mubr.bf16.gmra.mrb[0].mxu0 %v561
    %v2050 = vpop.f32.mrb[0].mxu0
    %v2051 = vadd.f32 %v1778, %v2050
    %v2052 = vpop.f32.mrb[0].mxu0
    %v2053 = vadd.f32 %v1780, %v2052
    %v2054 = vpop.f32.mrb[0].mxu0
    %v2055 = vadd.f32 %v1782, %v2054
    %v2056 = vpop.f32.mrb[0].mxu0
    %v2057 = vadd.f32 %v1784, %v2056
    %2058 = vmatprep.mubr.bf16.mxu0 %v679
    %2059 = vmatmul.mubr.bf16.gmra.mrb[0].mxu0 %v564
    %v2060 = vpop.f32.mrb[0].mxu0
    %v2061 = vadd.f32 %v1788, %v2060
    %v2062 = vpop.f32.mrb[0].mxu0
    %v2063 = vadd.f32 %v1790, %v2062
    %v2064 = vpop.f32.mrb[0].mxu0
    %v2065 = vadd.f32 %v1792, %v2064
    %v2066 = vpop.f32.mrb[0].mxu0
    %v2067 = vadd.f32 %v1794, %v2066
    %2068 = vmatprep.mubr.bf16.mxu0 %v683
    %2069 = vmatmul.mubr.bf16.gmra.mrb[0].mxu0 %v566
    %v2070 = vpop.f32.mrb[0].mxu0
    %v2071 = vadd.f32 %v1798, %v2070
    %v2072 = vpop.f32.mrb[0].mxu0
    %v2073 = vadd.f32 %v1800, %v2072
    %v2074 = vpop.f32.mrb[0].mxu0
    %v2075 = vadd.f32 %v1802, %v2074
    %v2076 = vpop.f32.mrb[0].mxu0
    %v2077 = vadd.f32 %v1804, %v2076
    %2078 = vmatprep.mubr.bf16.mxu0 %v689
    %2079 = vmatmul.mubr.bf16.gmra.mrb[0].mxu0 %v568
    %v2080 = vpop.f32.mrb[0].mxu0
    %v2081 = vadd.f32 %v1808, %v2080
    %v2082 = vpop.f32.mrb[0].mxu0
    %v2083 = vadd.f32 %v1810, %v2082
    %v2084 = vpop.f32.mrb[0].mxu0
    %v2085 = vadd.f32 %v1812, %v2084
    %v2086 = vpop.f32.mrb[0].mxu0
    %v2087 = vadd.f32 %v1814, %v2086
    %2088 = vmatprep.mubr.bf16.mxu0 %v696
    %2089 = vmatmul.mubr.bf16.gmra.mrb[0].mxu0 %v571
    %v2090 = vpop.f32.mrb[0].mxu0
    %v2091 = vadd.f32 %v1818, %v2090
    %v2092 = vpop.f32.mrb[0].mxu0
    %v2093 = vadd.f32 %v1820, %v2092
    %v2094 = vpop.f32.mrb[0].mxu0
    %v2095 = vadd.f32 %v1822, %v2094
    %v2096 = vpop.f32.mrb[0].mxu0
    %v2097 = vadd.f32 %v1824, %v2096
    %2098 = vmatprep.mubr.bf16.mxu0 %v700
    %2099 = vmatmul.mubr.bf16.gmra.mrb[0].mxu0 %v573
    %v2100 = vpop.f32.mrb[0].mxu0
    %v2101 = vadd.f32 %v1828, %v2100
    %v2102 = vpop.f32.mrb[0].mxu0
    %v2103 = vadd.f32 %v1830, %v2102
    %v2104 = vpop.f32.mrb[0].mxu0
    %v2105 = vadd.f32 %v1832, %v2104
    %v2106 = vpop.f32.mrb[0].mxu0
    %v2107 = vadd.f32 %v1834, %v2106
    %2108 = vmatprep.mubr.bf16.mxu0 %v706
    %2109 = vmatmul.mubr.bf16.gmra.mrb[0].mxu0 %v575
    %v2110 = vpop.f32.mrb[0].mxu0
    %v2111 = vadd.f32 %v1838, %v2110
    %v2112 = vpop.f32.mrb[0].mxu0
    %v2113 = vadd.f32 %v1840, %v2112
    %v2114 = vpop.f32.mrb[0].mxu0
    %v2115 = vadd.f32 %v1842, %v2114
    %v2116 = vpop.f32.mrb[0].mxu0
    %v2117 = vadd.f32 %v1844, %v2116
    %2118 = vmatprep.mubr.bf16.mxu0 %v713
    %2119 = vmatmul.mubr.bf16.gmra.mrb[0].mxu0 %v578
    %v2120 = vpop.f32.mrb[0].mxu0
    %v2121 = vadd.f32 %v1848, %v2120
    %v2122 = vpop.f32.mrb[0].mxu0
    %v2123 = vadd.f32 %v1850, %v2122
    %v2124 = vpop.f32.mrb[0].mxu0
    %v2125 = vadd.f32 %v1852, %v2124
    %v2126 = vpop.f32.mrb[0].mxu0
    %v2127 = vadd.f32 %v1854, %v2126
    %2128 = vmatprep.mubr.bf16.mxu0 %v717
    %2129 = vmatmul.mubr.bf16.gmra.mrb[0].mxu0 %v580
    %v2130 = vpop.f32.mrb[0].mxu0
    %v2131 = vadd.f32 %v1858, %v2130
    %v2132 = vpop.f32.mrb[0].mxu0
    %v2133 = vadd.f32 %v1860, %v2132
    %v2134 = vpop.f32.mrb[0].mxu0
    %v2135 = vadd.f32 %v1862, %v2134
    %v2136 = vpop.f32.mrb[0].mxu0
    %v2137 = vadd.f32 %v1864, %v2136
    %2138 = vmatprep.mubr.bf16.mxu0 %v723
    %2139 = vmatmul.mubr.bf16.gmra.mrb[0].mxu0 %v582
    %v2140 = vpop.f32.mrb[0].mxu0
    %v2141 = vadd.f32 %v1868, %v2140
    %v2142 = vpop.f32.mrb[0].mxu0
    %v2143 = vadd.f32 %v1870, %v2142
    %v2144 = vpop.f32.mrb[0].mxu0
    %v2145 = vadd.f32 %v1872, %v2144
    %v2146 = vpop.f32.mrb[0].mxu0
    %v2147 = vadd.f32 %v1874, %v2146
    %2148 = vmatprep.mubr.bf16.mxu0 %v730
    %2149 = vmatmul.mubr.bf16.gmra.mrb[0].mxu0 %v585
    %v2150 = vpop.f32.mrb[0].mxu0
    %v2151 = vadd.f32 %v1878, %v2150
    %v2152 = vpop.f32.mrb[0].mxu0
    %v2153 = vadd.f32 %v1880, %v2152
    %v2154 = vpop.f32.mrb[0].mxu0
    %v2155 = vadd.f32 %v1882, %v2154
    %v2156 = vpop.f32.mrb[0].mxu0
    %v2157 = vadd.f32 %v1884, %v2156
    %2158 = vmatprep.mubr.bf16.mxu0 %v734
    %2159 = vmatmul.mubr.bf16.gmra.mrb[0].mxu0 %v587
    %v2160 = vpop.f32.mrb[0].mxu0
    %v2161 = vadd.f32 %v1888, %v2160
    %v2162 = vpop.f32.mrb[0].mxu0
    %v2163 = vadd.f32 %v1890, %v2162
    %v2164 = vpop.f32.mrb[0].mxu0
    %v2165 = vadd.f32 %v1892, %v2164
    %v2166 = vpop.f32.mrb[0].mxu0
    %v2167 = vadd.f32 %v1894, %v2166
    %2168 = vmatprep.mubr.bf16.mxu0 %v740
    %2169 = vmatmul.mubr.bf16.gmra.mrb[0].mxu0 %v589
    %v2170 = vpop.f32.mrb[0].mxu0
    %v2171 = vadd.f32 %v1898, %v2170
    %v2172 = vpop.f32.mrb[0].mxu0
    %v2173 = vadd.f32 %v1900, %v2172
    %v2174 = vpop.f32.mrb[0].mxu0
    %v2175 = vadd.f32 %v1902, %v2174
    %v2176 = vpop.f32.mrb[0].mxu0
    %v2177 = vadd.f32 %v1904, %v2176
    %2178 = vmatprep.mubr.bf16.mxu0 %v747
    %2179 = vmatmul.mubr.bf16.gmra.mrb[0].mxu0 %v592
    %v2180 = vpop.f32.mrb[0].mxu0
    %v2181 = vadd.f32 %v1908, %v2180
    %v2182 = vpop.f32.mrb[0].mxu0
    %v2183 = vadd.f32 %v1910, %v2182
    %v2184 = vpop.f32.mrb[0].mxu0
    %v2185 = vadd.f32 %v1912, %v2184
    %v2186 = vpop.f32.mrb[0].mxu0
    %v2187 = vadd.f32 %v1914, %v2186
    %2188 = vmatprep.mubr.bf16.mxu0 %v751
    %2189 = vmatmul.mubr.bf16.gmra.mrb[0].mxu0 %v594
    %v2190 = vpop.f32.mrb[0].mxu0
    %v2191 = vadd.f32 %v1918, %v2190
    %v2192 = vpop.f32.mrb[0].mxu0
    %v2193 = vadd.f32 %v1920, %v2192
    %v2194 = vpop.f32.mrb[0].mxu0
    %v2195 = vadd.f32 %v1922, %v2194
    %v2196 = vpop.f32.mrb[0].mxu0
    %v2197 = vadd.f32 %v1924, %v2196
    %2198 = vmatprep.mubr.bf16.mxu0 %v757
    %2199 = vmatmul.mubr.bf16.gmra.mrb[0].mxu0 %v596
    %v2200 = vpop.f32.mrb[0].mxu0
    %v2201 = vadd.f32 %v1928, %v2200
    %v2202 = vpop.f32.mrb[0].mxu0
    %v2203 = vadd.f32 %v1930, %v2202
    %v2204 = vpop.f32.mrb[0].mxu0
    %v2205 = vadd.f32 %v1932, %v2204
    %v2206 = vpop.f32.mrb[0].mxu0
    %v2207 = vadd.f32 %v1934, %v2206
    %2208 = vdwg.mxu0
    %2209 = vmatprep.subr.bf16.mxu0 %v1520
    %2210 = vmatpush1.bf16.msra.mxu0 %v1519
    %2211 = vmatprep.subr.bf16.mxu0 %v1523
    %2212 = vmatpush1.bf16.msra.mxu0 %v1522
    %2213 = vmatprep.subr.bf16.mxu0 %v1526
    %2214 = vmatpush1.bf16.msra.mxu0 %v1525
    %2215 = vmatprep.subr.bf16.mxu0 %v1529
    %2216 = vmatpush1.bf16.msra.mxu0 %v1528
    %2217 = vmatprep.subr.bf16.mxu0 %v1532
    %2218 = vmatpush1.bf16.msra.mxu0 %v1531
    %2219 = vmatprep.subr.bf16.mxu0 %v1535
    %2220 = vmatpush1.bf16.msra.mxu0 %v1534
    %2221 = vmatprep.subr.bf16.mxu0 %v1538
    %2222 = vmatpush1.bf16.msra.mxu0 %v1537
    %2223 = vmatprep.subr.bf16.mxu0 %v1541
    %2224 = vmatpush1.bf16.msra.mxu0 %v1540
    %2225 = vmatprep.subr.bf16.mxu0 0
    %2226 = vmatpush1.bf16.msra.mxu0 0
    %2227 = vmatprep.subr.bf16.mxu0 0
    %2228 = vmatpush1.bf16.msra.mxu0 0
    %2229 = vmatprep.subr.bf16.mxu0 0
    %2230 = vmatpush1.bf16.msra.mxu0 0
    %2231 = vmatprep.subr.bf16.mxu0 0
    %2232 = vmatpush1.bf16.msra.mxu0 0
    %2233 = vmatprep.subr.bf16.mxu0 0
    %2234 = vmatpush1.bf16.msra.mxu0 0
    %2235 = vmatprep.subr.bf16.mxu0 0
    %2236 = vmatpush1.bf16.msra.mxu0 0
    %2237 = vmatprep.subr.bf16.mxu0 0
    %2238 = vmatpush1.bf16.msra.mxu0 0
    %2239 = vmatprep.subr.bf16.mxu0 0
    %2240 = vmatpush1.bf16.msra.mxu0 0
    %2241 = vmatprep.mubr.bf16.mxu0 0
    %2242 = vmatmul.mubr.bf16.gmra.mrb[0].mxu0 %v785
    %v2243 = vpop.f32.mrb[0].mxu0
    %v2244 = vadd.f32 %v1971, %v2243
    %v2245 = vpop.f32.mrb[0].mxu0
    %v2246 = vadd.f32 %v1973, %v2245
    %v2247 = vpop.f32.mrb[0].mxu0
    %v2248 = vadd.f32 %v1975, %v2247
    %v2249 = vpop.f32.mrb[0].mxu0
    %v2250 = vadd.f32 %v1977, %v2249
    %2251 = vmatprep.mubr.bf16.mxu0 0
    %2252 = vmatmul.mubr.bf16.gmra.mrb[0].mxu0 %v787
    %v2253 = vpop.f32.mrb[0].mxu0
    %v2254 = vadd.f32 %v1981, %v2253
    %v2255 = vpop.f32.mrb[0].mxu0
    %v2256 = vadd.f32 %v1983, %v2255
    %v2257 = vpop.f32.mrb[0].mxu0
    %v2258 = vadd.f32 %v1985, %v2257
    %v2259 = vpop.f32.mrb[0].mxu0
    %v2260 = vadd.f32 %v1987, %v2259
    %2261 = vmatprep.mubr.bf16.mxu0 0
    %2262 = vmatmul.mubr.bf16.gmra.mrb[0].mxu0 %v789
    %v2263 = vpop.f32.mrb[0].mxu0
    %v2264 = vadd.f32 %v1991, %v2263
    %v2265 = vpop.f32.mrb[0].mxu0
    %v2266 = vadd.f32 %v1993, %v2265
    %v2267 = vpop.f32.mrb[0].mxu0
    %v2268 = vadd.f32 %v1995, %v2267
    %v2269 = vpop.f32.mrb[0].mxu0
    %v2270 = vadd.f32 %v1997, %v2269
    %2271 = vmatprep.mubr.bf16.mxu0 0
    %2272 = vmatmul.mubr.bf16.gmra.mrb[0].mxu0 %v792
    %v2273 = vpop.f32.mrb[0].mxu0
    %v2274 = vadd.f32 %v2001, %v2273
    %v2275 = vpop.f32.mrb[0].mxu0
    %v2276 = vadd.f32 %v2003, %v2275
    %v2277 = vpop.f32.mrb[0].mxu0
    %v2278 = vadd.f32 %v2005, %v2277
    %v2279 = vpop.f32.mrb[0].mxu0
    %v2280 = vadd.f32 %v2007, %v2279
    %2281 = vmatprep.mubr.bf16.mxu0 0
    %2282 = vmatmul.mubr.bf16.gmra.mrb[0].mxu0 %v794
    %v2283 = vpop.f32.mrb[0].mxu0
    %v2284 = vadd.f32 %v2011, %v2283
    %v2285 = vpop.f32.mrb[0].mxu0
    %v2286 = vadd.f32 %v2013, %v2285
    %v2287 = vpop.f32.mrb[0].mxu0
    %v2288 = vadd.f32 %v2015, %v2287
    %v2289 = vpop.f32.mrb[0].mxu0
    %v2290 = vadd.f32 %v2017, %v2289
    %2291 = vmatprep.mubr.bf16.mxu0 0
    %2292 = vmatmul.mubr.bf16.gmra.mrb[0].mxu0 %v796
    %v2293 = vpop.f32.mrb[0].mxu0
    %v2294 = vadd.f32 %v2021, %v2293
    %v2295 = vpop.f32.mrb[0].mxu0
    %v2296 = vadd.f32 %v2023, %v2295
    %v2297 = vpop.f32.mrb[0].mxu0
    %v2298 = vadd.f32 %v2025, %v2297
    %v2299 = vpop.f32.mrb[0].mxu0
    %v2300 = vadd.f32 %v2027, %v2299
    %2301 = vmatprep.mubr.bf16.mxu0 0
    %2302 = vmatmul.mubr.bf16.gmra.mrb[0].mxu0 %v799
    %v2303 = vpop.f32.mrb[0].mxu0
    %v2304 = vadd.f32 %v2031, %v2303
    %v2305 = vpop.f32.mrb[0].mxu0
    %v2306 = vadd.f32 %v2033, %v2305
    %v2307 = vpop.f32.mrb[0].mxu0
    %v2308 = vadd.f32 %v2035, %v2307
    %v2309 = vpop.f32.mrb[0].mxu0
    %v2310 = vadd.f32 %v2037, %v2309
    %2311 = vmatprep.mubr.bf16.mxu0 0
    %2312 = vmatmul.mubr.bf16.gmra.mrb[0].mxu0 %v801
    %v2313 = vpop.f32.mrb[0].mxu0
    %v2314 = vadd.f32 %v2041, %v2313
    %v2315 = vpop.f32.mrb[0].mxu0
    %v2316 = vadd.f32 %v2043, %v2315
    %v2317 = vpop.f32.mrb[0].mxu0
    %v2318 = vadd.f32 %v2045, %v2317
    %v2319 = vpop.f32.mrb[0].mxu0
    %v2320 = vadd.f32 %v2047, %v2319
    %2321 = vmatprep.mubr.bf16.mxu0 0
    %2322 = vmatmul.mubr.bf16.gmra.mrb[0].mxu0 %v803
    %v2323 = vpop.f32.mrb[0].mxu0
    %v2324 = vadd.f32 %v2051, %v2323
    %v2325 = vpop.f32.mrb[0].mxu0
    %v2326 = vadd.f32 %v2053, %v2325
    %v2327 = vpop.f32.mrb[0].mxu0
    %v2328 = vadd.f32 %v2055, %v2327
    %v2329 = vpop.f32.mrb[0].mxu0
    %v2330 = vadd.f32 %v2057, %v2329
    %2331 = vmatprep.mubr.bf16.mxu0 0
    %2332 = vmatmul.mubr.bf16.gmra.mrb[0].mxu0 %v806
    %v2333 = vpop.f32.mrb[0].mxu0
    %v2334 = vadd.f32 %v2061, %v2333
    %v2335 = vpop.f32.mrb[0].mxu0
    %v2336 = vadd.f32 %v2063, %v2335
    %v2337 = vpop.f32.mrb[0].mxu0
    %v2338 = vadd.f32 %v2065, %v2337
    %v2339 = vpop.f32.mrb[0].mxu0
    %v2340 = vadd.f32 %v2067, %v2339
    %2341 = vmatprep.mubr.bf16.mxu0 0
    %2342 = vmatmul.mubr.bf16.gmra.mrb[0].mxu0 %v808
    %v2343 = vpop.f32.mrb[0].mxu0
    %v2344 = vadd.f32 %v2071, %v2343
    %v2345 = vpop.f32.mrb[0].mxu0
    %v2346 = vadd.f32 %v2073, %v2345
    %v2347 = vpop.f32.mrb[0].mxu0
    %v2348 = vadd.f32 %v2075, %v2347
    %v2349 = vpop.f32.mrb[0].mxu0
    %v2350 = vadd.f32 %v2077, %v2349
    %2351 = vmatprep.mubr.bf16.mxu0 0
    %2352 = vmatmul.mubr.bf16.gmra.mrb[0].mxu0 %v810
    %v2353 = vpop.f32.mrb[0].mxu0
    %v2354 = vadd.f32 %v2081, %v2353
    %v2355 = vpop.f32.mrb[0].mxu0
    %v2356 = vadd.f32 %v2083, %v2355
    %v2357 = vpop.f32.mrb[0].mxu0
    %v2358 = vadd.f32 %v2085, %v2357
    %v2359 = vpop.f32.mrb[0].mxu0
    %v2360 = vadd.f32 %v2087, %v2359
    %2361 = vmatprep.mubr.bf16.mxu0 0
    %2362 = vmatmul.mubr.bf16.gmra.mrb[0].mxu0 %v813
    %v2363 = vpop.f32.mrb[0].mxu0
    %v2364 = vadd.f32 %v2091, %v2363
    %v2365 = vpop.f32.mrb[0].mxu0
    %v2366 = vadd.f32 %v2093, %v2365
    %v2367 = vpop.f32.mrb[0].mxu0
    %v2368 = vadd.f32 %v2095, %v2367
    %v2369 = vpop.f32.mrb[0].mxu0
    %v2370 = vadd.f32 %v2097, %v2369
    %2371 = vmatprep.mubr.bf16.mxu0 0
    %2372 = vmatmul.mubr.bf16.gmra.mrb[0].mxu0 %v815
    %v2373 = vpop.f32.mrb[0].mxu0
    %v2374 = vadd.f32 %v2101, %v2373
    %v2375 = vpop.f32.mrb[0].mxu0
    %v2376 = vadd.f32 %v2103, %v2375
    %v2377 = vpop.f32.mrb[0].mxu0
    %v2378 = vadd.f32 %v2105, %v2377
    %v2379 = vpop.f32.mrb[0].mxu0
    %v2380 = vadd.f32 %v2107, %v2379
    %2381 = vmatprep.mubr.bf16.mxu0 0
    %2382 = vmatmul.mubr.bf16.gmra.mrb[0].mxu0 %v817
    %v2383 = vpop.f32.mrb[0].mxu0
    %v2384 = vadd.f32 %v2111, %v2383
    %v2385 = vpop.f32.mrb[0].mxu0
    %v2386 = vadd.f32 %v2113, %v2385
    %v2387 = vpop.f32.mrb[0].mxu0
    %v2388 = vadd.f32 %v2115, %v2387
    %v2389 = vpop.f32.mrb[0].mxu0
    %v2390 = vadd.f32 %v2117, %v2389
    %2391 = vmatprep.mubr.bf16.mxu0 0
    %2392 = vmatmul.mubr.bf16.gmra.mrb[0].mxu0 %v820
    %v2393 = vpop.f32.mrb[0].mxu0
    %v2394 = vadd.f32 %v2121, %v2393
    %v2395 = vpop.f32.mrb[0].mxu0
    %v2396 = vadd.f32 %v2123, %v2395
    %v2397 = vpop.f32.mrb[0].mxu0
    %v2398 = vadd.f32 %v2125, %v2397
    %v2399 = vpop.f32.mrb[0].mxu0
    %v2400 = vadd.f32 %v2127, %v2399
    %2401 = vmatprep.mubr.bf16.mxu0 0
    %2402 = vmatmul.mubr.bf16.gmra.mrb[0].mxu0 %v822
    %v2403 = vpop.f32.mrb[0].mxu0
    %v2404 = vadd.f32 %v2131, %v2403
    %v2405 = vpop.f32.mrb[0].mxu0
    %v2406 = vadd.f32 %v2133, %v2405
    %v2407 = vpop.f32.mrb[0].mxu0
    %v2408 = vadd.f32 %v2135, %v2407
    %v2409 = vpop.f32.mrb[0].mxu0
    %v2410 = vadd.f32 %v2137, %v2409
    %2411 = vmatprep.mubr.bf16.mxu0 0
    %2412 = vmatmul.mubr.bf16.gmra.mrb[0].mxu0 %v824
    %v2413 = vpop.f32.mrb[0].mxu0
    %v2414 = vadd.f32 %v2141, %v2413
    %v2415 = vpop.f32.mrb[0].mxu0
    %v2416 = vadd.f32 %v2143, %v2415
    %v2417 = vpop.f32.mrb[0].mxu0
    %v2418 = vadd.f32 %v2145, %v2417
    %v2419 = vpop.f32.mrb[0].mxu0
    %v2420 = vadd.f32 %v2147, %v2419
    %2421 = vmatprep.mubr.bf16.mxu0 0
    %2422 = vmatmul.mubr.bf16.gmra.mrb[0].mxu0 %v827
    %v2423 = vpop.f32.mrb[0].mxu0
    %v2424 = vadd.f32 %v2151, %v2423
    %v2425 = vpop.f32.mrb[0].mxu0
    %v2426 = vadd.f32 %v2153, %v2425
    %v2427 = vpop.f32.mrb[0].mxu0
    %v2428 = vadd.f32 %v2155, %v2427
    %v2429 = vpop.f32.mrb[0].mxu0
    %v2430 = vadd.f32 %v2157, %v2429
    %2431 = vmatprep.mubr.bf16.mxu0 0
    %2432 = vmatmul.mubr.bf16.gmra.mrb[0].mxu0 %v829
    %v2433 = vpop.f32.mrb[0].mxu0
    %v2434 = vadd.f32 %v2161, %v2433
    %v2435 = vpop.f32.mrb[0].mxu0
    %v2436 = vadd.f32 %v2163, %v2435
    %v2437 = vpop.f32.mrb[0].mxu0
    %v2438 = vadd.f32 %v2165, %v2437
    %v2439 = vpop.f32.mrb[0].mxu0
    %v2440 = vadd.f32 %v2167, %v2439
    %2441 = vmatprep.mubr.bf16.mxu0 0
    %2442 = vmatmul.mubr.bf16.gmra.mrb[0].mxu0 %v831
    %v2443 = vpop.f32.mrb[0].mxu0
    %v2444 = vadd.f32 %v2171, %v2443
    %v2445 = vpop.f32.mrb[0].mxu0
    %v2446 = vadd.f32 %v2173, %v2445
    %v2447 = vpop.f32.mrb[0].mxu0
    %v2448 = vadd.f32 %v2175, %v2447
    %v2449 = vpop.f32.mrb[0].mxu0
    %v2450 = vadd.f32 %v2177, %v2449
    %2451 = vmatprep.mubr.bf16.mxu0 0
    %2452 = vmatmul.mubr.bf16.gmra.mrb[0].mxu0 %v834
    %v2453 = vpop.f32.mrb[0].mxu0
    %v2454 = vadd.f32 %v2181, %v2453
    %v2455 = vpop.f32.mrb[0].mxu0
    %v2456 = vadd.f32 %v2183, %v2455
    %v2457 = vpop.f32.mrb[0].mxu0
    %v2458 = vadd.f32 %v2185, %v2457
    %v2459 = vpop.f32.mrb[0].mxu0
    %v2460 = vadd.f32 %v2187, %v2459
    %2461 = vmatprep.mubr.bf16.mxu0 0
    %2462 = vmatmul.mubr.bf16.gmra.mrb[0].mxu0 %v836
    %v2463 = vpop.f32.mrb[0].mxu0
    %v2464 = vadd.f32 %v2191, %v2463
    %v2465 = vpop.f32.mrb[0].mxu0
    %v2466 = vadd.f32 %v2193, %v2465
    %v2467 = vpop.f32.mrb[0].mxu0
    %v2468 = vadd.f32 %v2195, %v2467
    %v2469 = vpop.f32.mrb[0].mxu0
    %v2470 = vadd.f32 %v2197, %v2469
    %2471 = vmatprep.mubr.bf16.mxu0 0
    %2472 = vmatmul.mubr.bf16.gmra.mrb[0].mxu0 %v838
    %v2473 = vpop.f32.mrb[0].mxu0
    %v2474 = vadd.f32 %v2201, %v2473
    %v2475 = vpop.f32.mrb[0].mxu0
    %v2476 = vadd.f32 %v2203, %v2475
    %v2477 = vpop.f32.mrb[0].mxu0
    %v2478 = vadd.f32 %v2205, %v2477
    %v2479 = vpop.f32.mrb[0].mxu0
    %v2480 = vadd.f32 %v2207, %v2479
    %2481 = vdwg.mxu0
    %2482 = vmatprep.subr.bf16.mxu0 0
    %2483 = vmatpush1.bf16.msra.mxu0 %v1425
    %2484 = vmatprep.subr.bf16.mxu0 0
    %2485 = vmatpush1.bf16.msra.mxu0 %v1428
    %2486 = vmatprep.subr.bf16.mxu0 0
    %2487 = vmatpush1.bf16.msra.mxu0 %v1431
    %2488 = vmatprep.subr.bf16.mxu0 0
    %2489 = vmatpush1.bf16.msra.mxu0 %v1434
    %2490 = vmatprep.subr.bf16.mxu0 0
    %2491 = vmatpush1.bf16.msra.mxu0 %v1437
    %2492 = vmatprep.subr.bf16.mxu0 0
    %2493 = vmatpush1.bf16.msra.mxu0 %v1440
    %2494 = vmatprep.subr.bf16.mxu0 0
    %2495 = vmatpush1.bf16.msra.mxu0 %v1443
    %2496 = vmatprep.subr.bf16.mxu0 0
    %2497 = vmatpush1.bf16.msra.mxu0 %v1446
    %2498 = vmatprep.subr.bf16.mxu0 0
    %2499 = vmatpush1.bf16.msra.mxu0 %v1449
    %2500 = vmatprep.subr.bf16.mxu0 0
    %2501 = vmatpush1.bf16.msra.mxu0 %v1452
    %2502 = vmatprep.subr.bf16.mxu0 0
    %2503 = vmatpush1.bf16.msra.mxu0 %v1455
    %2504 = vmatprep.subr.bf16.mxu0 0
    %2505 = vmatpush1.bf16.msra.mxu0 %v1458
    %2506 = vmatprep.subr.bf16.mxu0 0
    %2507 = vmatpush1.bf16.msra.mxu0 %v1461
    %2508 = vmatprep.subr.bf16.mxu0 0
    %2509 = vmatpush1.bf16.msra.mxu0 %v1464
    %2510 = vmatprep.subr.bf16.mxu0 0
    %2511 = vmatpush1.bf16.msra.mxu0 %v1467
    %2512 = vmatprep.subr.bf16.mxu0 0
    %2513 = vmatpush1.bf16.msra.mxu0 %v1470
    %2514 = vmatprep.mubr.bf16.mxu0 %v303
    %2515 = vmatmul.mubr.bf16.gmra.mrb[0].mxu0 %v219
    %v2516 = vpop.f32.mrb[0].mxu0
    %v2517 = vadd.f32 0.0, %v2516
    %v2518 = vpop.f32.mrb[0].mxu0
    %v2519 = vpop.f32.mrb[0].mxu0
    %v2520 = vadd.f32 0.0, %v2519
    %v2521 = vpop.f32.mrb[0].mxu0
    %2522 = vmatprep.mubr.bf16.mxu0 %v311
    %2523 = vmatmul.mubr.bf16.gmra.mrb[0].mxu0 %v220
    %v2524 = vpop.f32.mrb[0].mxu0
    %v2525 = vadd.f32 0.0, %v2524
    %v2526 = vpop.f32.mrb[0].mxu0
    %v2527 = vpop.f32.mrb[0].mxu0
    %v2528 = vadd.f32 0.0, %v2527
    %v2529 = vpop.f32.mrb[0].mxu0
    %2530 = vmatprep.mubr.bf16.mxu0 %v319
    %2531 = vmatmul.mubr.bf16.gmra.mrb[0].mxu0 %v221
    %v2532 = vpop.f32.mrb[0].mxu0
    %v2533 = vadd.f32 0.0, %v2532
    %v2534 = vpop.f32.mrb[0].mxu0
    %v2535 = vpop.f32.mrb[0].mxu0
    %v2536 = vadd.f32 0.0, %v2535
    %v2537 = vpop.f32.mrb[0].mxu0
    %2538 = vmatprep.mubr.bf16.mxu0 %v331
    %2539 = vmatmul.mubr.bf16.gmra.mrb[0].mxu0 %v222
    %v2540 = vpop.f32.mrb[0].mxu0
    %v2541 = vadd.f32 0.0, %v2540
    %v2542 = vpop.f32.mrb[0].mxu0
    %v2543 = vpop.f32.mrb[0].mxu0
    %v2544 = vadd.f32 0.0, %v2543
    %v2545 = vpop.f32.mrb[0].mxu0
    %2546 = vmatprep.mubr.bf16.mxu0 %v339
    %2547 = vmatmul.mubr.bf16.gmra.mrb[0].mxu0 %v223
    %v2548 = vpop.f32.mrb[0].mxu0
    %v2549 = vadd.f32 0.0, %v2548
    %v2550 = vpop.f32.mrb[0].mxu0
    %v2551 = vpop.f32.mrb[0].mxu0
    %v2552 = vadd.f32 0.0, %v2551
    %v2553 = vpop.f32.mrb[0].mxu0
    %2554 = vmatprep.mubr.bf16.mxu0 %v347
    %2555 = vmatmul.mubr.bf16.gmra.mrb[0].mxu0 %v224
    %v2556 = vpop.f32.mrb[0].mxu0
    %v2557 = vadd.f32 0.0, %v2556
    %v2558 = vpop.f32.mrb[0].mxu0
    %v2559 = vpop.f32.mrb[0].mxu0
    %v2560 = vadd.f32 0.0, %v2559
    %v2561 = vpop.f32.mrb[0].mxu0
    %2562 = vmatprep.mubr.bf16.mxu0 %v359
    %2563 = vmatmul.mubr.bf16.gmra.mrb[0].mxu0 %v225
    %v2564 = vpop.f32.mrb[0].mxu0
    %v2565 = vadd.f32 0.0, %v2564
    %v2566 = vpop.f32.mrb[0].mxu0
    %v2567 = vpop.f32.mrb[0].mxu0
    %v2568 = vadd.f32 0.0, %v2567
    %v2569 = vpop.f32.mrb[0].mxu0
    %2570 = vmatprep.mubr.bf16.mxu0 %v367
    %2571 = vmatmul.mubr.bf16.gmra.mrb[0].mxu0 %v226
    %v2572 = vpop.f32.mrb[0].mxu0
    %v2573 = vadd.f32 0.0, %v2572
    %v2574 = vpop.f32.mrb[0].mxu0
    %v2575 = vpop.f32.mrb[0].mxu0
    %v2576 = vadd.f32 0.0, %v2575
    %v2577 = vpop.f32.mrb[0].mxu0
    %2578 = vmatprep.mubr.bf16.mxu0 %v375
    %2579 = vmatmul.mubr.bf16.gmra.mrb[0].mxu0 %v227
    %v2580 = vpop.f32.mrb[0].mxu0
    %v2581 = vadd.f32 0.0, %v2580
    %v2582 = vpop.f32.mrb[0].mxu0
    %v2583 = vpop.f32.mrb[0].mxu0
    %v2584 = vadd.f32 0.0, %v2583
    %v2585 = vpop.f32.mrb[0].mxu0
    %2586 = vmatprep.mubr.bf16.mxu0 %v387
    %2587 = vmatmul.mubr.bf16.gmra.mrb[0].mxu0 %v228
    %v2588 = vpop.f32.mrb[0].mxu0
    %v2589 = vadd.f32 0.0, %v2588
    %v2590 = vpop.f32.mrb[0].mxu0
    %v2591 = vpop.f32.mrb[0].mxu0
    %v2592 = vadd.f32 0.0, %v2591
    %v2593 = vpop.f32.mrb[0].mxu0
    %2594 = vmatprep.mubr.bf16.mxu0 %v395
    %2595 = vmatmul.mubr.bf16.gmra.mrb[0].mxu0 %v229
    %v2596 = vpop.f32.mrb[0].mxu0
    %v2597 = vadd.f32 0.0, %v2596
    %v2598 = vpop.f32.mrb[0].mxu0
    %v2599 = vpop.f32.mrb[0].mxu0
    %v2600 = vadd.f32 0.0, %v2599
    %v2601 = vpop.f32.mrb[0].mxu0
    %2602 = vmatprep.mubr.bf16.mxu0 %v403
    %2603 = vmatmul.mubr.bf16.gmra.mrb[0].mxu0 %v230
    %v2604 = vpop.f32.mrb[0].mxu0
    %v2605 = vadd.f32 0.0, %v2604
    %v2606 = vpop.f32.mrb[0].mxu0
    %v2607 = vpop.f32.mrb[0].mxu0
    %v2608 = vadd.f32 0.0, %v2607
    %v2609 = vpop.f32.mrb[0].mxu0
    %2610 = vmatprep.mubr.bf16.mxu0 %v415
    %2611 = vmatmul.mubr.bf16.gmra.mrb[0].mxu0 %v231
    %v2612 = vpop.f32.mrb[0].mxu0
    %v2613 = vadd.f32 0.0, %v2612
    %v2614 = vpop.f32.mrb[0].mxu0
    %v2615 = vpop.f32.mrb[0].mxu0
    %v2616 = vadd.f32 0.0, %v2615
    %v2617 = vpop.f32.mrb[0].mxu0
    %2618 = vmatprep.mubr.bf16.mxu0 %v423
    %2619 = vmatmul.mubr.bf16.gmra.mrb[0].mxu0 %v232
    %v2620 = vpop.f32.mrb[0].mxu0
    %v2621 = vadd.f32 0.0, %v2620
    %v2622 = vpop.f32.mrb[0].mxu0
    %v2623 = vpop.f32.mrb[0].mxu0
    %v2624 = vadd.f32 0.0, %v2623
    %v2625 = vpop.f32.mrb[0].mxu0
    %2626 = vmatprep.mubr.bf16.mxu0 %v431
    %2627 = vmatmul.mubr.bf16.gmra.mrb[0].mxu0 %v233
    %v2628 = vpop.f32.mrb[0].mxu0
    %v2629 = vadd.f32 0.0, %v2628
    %v2630 = vpop.f32.mrb[0].mxu0
    %v2631 = vpop.f32.mrb[0].mxu0
    %v2632 = vadd.f32 0.0, %v2631
    %v2633 = vpop.f32.mrb[0].mxu0
    %2634 = vmatprep.mubr.bf16.mxu0 %v443
    %2635 = vmatmul.mubr.bf16.gmra.mrb[0].mxu0 %v234
    %v2636 = vpop.f32.mrb[0].mxu0
    %v2637 = vadd.f32 0.0, %v2636
    %v2638 = vpop.f32.mrb[0].mxu0
    %v2639 = vpop.f32.mrb[0].mxu0
    %v2640 = vadd.f32 0.0, %v2639
    %v2641 = vpop.f32.mrb[0].mxu0
    %2642 = vmatprep.mubr.bf16.mxu0 %v451
    %2643 = vmatmul.mubr.bf16.gmra.mrb[0].mxu0 %v235
    %v2644 = vpop.f32.mrb[0].mxu0
    %v2645 = vadd.f32 0.0, %v2644
    %v2646 = vpop.f32.mrb[0].mxu0
    %v2647 = vpop.f32.mrb[0].mxu0
    %v2648 = vadd.f32 0.0, %v2647
    %v2649 = vpop.f32.mrb[0].mxu0
    %2650 = vmatprep.mubr.bf16.mxu0 %v459
    %2651 = vmatmul.mubr.bf16.gmra.mrb[0].mxu0 %v236
    %v2652 = vpop.f32.mrb[0].mxu0
    %v2653 = vadd.f32 0.0, %v2652
    %v2654 = vpop.f32.mrb[0].mxu0
    %v2655 = vpop.f32.mrb[0].mxu0
    %v2656 = vadd.f32 0.0, %v2655
    %v2657 = vpop.f32.mrb[0].mxu0
    %2658 = vmatprep.mubr.bf16.mxu0 %v471
    %2659 = vmatmul.mubr.bf16.gmra.mrb[0].mxu0 %v237
    %v2660 = vpop.f32.mrb[0].mxu0
    %v2661 = vadd.f32 0.0, %v2660
    %v2662 = vpop.f32.mrb[0].mxu0
    %v2663 = vpop.f32.mrb[0].mxu0
    %v2664 = vadd.f32 0.0, %v2663
    %v2665 = vpop.f32.mrb[0].mxu0
    %2666 = vmatprep.mubr.bf16.mxu0 %v479
    %2667 = vmatmul.mubr.bf16.gmra.mrb[0].mxu0 %v238
    %v2668 = vpop.f32.mrb[0].mxu0
    %v2669 = vadd.f32 0.0, %v2668
    %v2670 = vpop.f32.mrb[0].mxu0
    %v2671 = vpop.f32.mrb[0].mxu0
    %v2672 = vadd.f32 0.0, %v2671
    %v2673 = vpop.f32.mrb[0].mxu0
    %2674 = vmatprep.mubr.bf16.mxu0 %v487
    %2675 = vmatmul.mubr.bf16.gmra.mrb[0].mxu0 %v239
    %v2676 = vpop.f32.mrb[0].mxu0
    %v2677 = vadd.f32 0.0, %v2676
    %v2678 = vpop.f32.mrb[0].mxu0
    %v2679 = vpop.f32.mrb[0].mxu0
    %v2680 = vadd.f32 0.0, %v2679
    %v2681 = vpop.f32.mrb[0].mxu0
    %2682 = vmatprep.mubr.bf16.mxu0 %v499
    %2683 = vmatmul.mubr.bf16.gmra.mrb[0].mxu0 %v240
    %v2684 = vpop.f32.mrb[0].mxu0
    %v2685 = vadd.f32 0.0, %v2684
    %v2686 = vpop.f32.mrb[0].mxu0
    %v2687 = vpop.f32.mrb[0].mxu0
    %v2688 = vadd.f32 0.0, %v2687
    %v2689 = vpop.f32.mrb[0].mxu0
    %2690 = vmatprep.mubr.bf16.mxu0 %v507
    %2691 = vmatmul.mubr.bf16.gmra.mrb[0].mxu0 %v241
    %v2692 = vpop.f32.mrb[0].mxu0
    %v2693 = vadd.f32 0.0, %v2692
    %v2694 = vpop.f32.mrb[0].mxu0
    %v2695 = vpop.f32.mrb[0].mxu0
    %v2696 = vadd.f32 0.0, %v2695
    %v2697 = vpop.f32.mrb[0].mxu0
    %2698 = vmatprep.mubr.bf16.mxu0 %v515
    %2699 = vmatmul.mubr.bf16.gmra.mrb[0].mxu0 %v242
    %v2700 = vpop.f32.mrb[0].mxu0
    %v2701 = vadd.f32 0.0, %v2700
    %v2702 = vpop.f32.mrb[0].mxu0
    %v2703 = vpop.f32.mrb[0].mxu0
    %v2704 = vadd.f32 0.0, %v2703
    %v2705 = vpop.f32.mrb[0].mxu0
    %2706 = vdwg.mxu0
    %2707 = vmatprep.subr.bf16.mxu0 0
    %2708 = vmatpush1.bf16.msra.mxu0 %v1473
    %2709 = vmatprep.subr.bf16.mxu0 0
    %2710 = vmatpush1.bf16.msra.mxu0 %v1476
    %2711 = vmatprep.subr.bf16.mxu0 0
    %2712 = vmatpush1.bf16.msra.mxu0 %v1479
    %2713 = vmatprep.subr.bf16.mxu0 0
    %2714 = vmatpush1.bf16.msra.mxu0 %v1482
    %2715 = vmatprep.subr.bf16.mxu0 0
    %2716 = vmatpush1.bf16.msra.mxu0 %v1485
    %2717 = vmatprep.subr.bf16.mxu0 0
    %2718 = vmatpush1.bf16.msra.mxu0 %v1488
    %2719 = vmatprep.subr.bf16.mxu0 0
    %2720 = vmatpush1.bf16.msra.mxu0 %v1491
    %2721 = vmatprep.subr.bf16.mxu0 0
    %2722 = vmatpush1.bf16.msra.mxu0 %v1494
    %2723 = vmatprep.subr.bf16.mxu0 0
    %2724 = vmatpush1.bf16.msra.mxu0 %v1497
    %2725 = vmatprep.subr.bf16.mxu0 0
    %2726 = vmatpush1.bf16.msra.mxu0 %v1500
    %2727 = vmatprep.subr.bf16.mxu0 0
    %2728 = vmatpush1.bf16.msra.mxu0 %v1503
    %2729 = vmatprep.subr.bf16.mxu0 0
    %2730 = vmatpush1.bf16.msra.mxu0 %v1506
    %2731 = vmatprep.subr.bf16.mxu0 0
    %2732 = vmatpush1.bf16.msra.mxu0 %v1509
    %2733 = vmatprep.subr.bf16.mxu0 0
    %2734 = vmatpush1.bf16.msra.mxu0 %v1512
    %2735 = vmatprep.subr.bf16.mxu0 0
    %2736 = vmatpush1.bf16.msra.mxu0 %v1515
    %2737 = vmatprep.subr.bf16.mxu0 0
    %2738 = vmatpush1.bf16.msra.mxu0 %v1518
    %2739 = vmatprep.mubr.bf16.mxu0 %v628
    %2740 = vmatmul.mubr.bf16.gmra.mrb[0].mxu0 %v543
    %v2741 = vpop.f32.mrb[0].mxu0
    %v2742 = vadd.f32 %v2517, %v2741
    %v2743 = vpop.f32.mrb[0].mxu0
    %v2744 = vpop.f32.mrb[0].mxu0
    %v2745 = vadd.f32 %v2520, %v2744
    %v2746 = vpop.f32.mrb[0].mxu0
    %2747 = vmatprep.mubr.bf16.mxu0 %v632
    %2748 = vmatmul.mubr.bf16.gmra.mrb[0].mxu0 %v545
    %v2749 = vpop.f32.mrb[0].mxu0
    %v2750 = vadd.f32 %v2525, %v2749
    %v2751 = vpop.f32.mrb[0].mxu0
    %v2752 = vpop.f32.mrb[0].mxu0
    %v2753 = vadd.f32 %v2528, %v2752
    %v2754 = vpop.f32.mrb[0].mxu0
    %2755 = vmatprep.mubr.bf16.mxu0 %v638
    %2756 = vmatmul.mubr.bf16.gmra.mrb[0].mxu0 %v547
    %v2757 = vpop.f32.mrb[0].mxu0
    %v2758 = vadd.f32 %v2533, %v2757
    %v2759 = vpop.f32.mrb[0].mxu0
    %v2760 = vpop.f32.mrb[0].mxu0
    %v2761 = vadd.f32 %v2536, %v2760
    %v2762 = vpop.f32.mrb[0].mxu0
    %2763 = vmatprep.mubr.bf16.mxu0 %v645
    %2764 = vmatmul.mubr.bf16.gmra.mrb[0].mxu0 %v550
    %v2765 = vpop.f32.mrb[0].mxu0
    %v2766 = vadd.f32 %v2541, %v2765
    %v2767 = vpop.f32.mrb[0].mxu0
    %v2768 = vpop.f32.mrb[0].mxu0
    %v2769 = vadd.f32 %v2544, %v2768
    %v2770 = vpop.f32.mrb[0].mxu0
    %2771 = vmatprep.mubr.bf16.mxu0 %v649
    %2772 = vmatmul.mubr.bf16.gmra.mrb[0].mxu0 %v552
    %v2773 = vpop.f32.mrb[0].mxu0
    %v2774 = vadd.f32 %v2549, %v2773
    %v2775 = vpop.f32.mrb[0].mxu0
    %v2776 = vpop.f32.mrb[0].mxu0
    %v2777 = vadd.f32 %v2552, %v2776
    %v2778 = vpop.f32.mrb[0].mxu0
    %2779 = vmatprep.mubr.bf16.mxu0 %v655
    %2780 = vmatmul.mubr.bf16.gmra.mrb[0].mxu0 %v554
    %v2781 = vpop.f32.mrb[0].mxu0
    %v2782 = vadd.f32 %v2557, %v2781
    %v2783 = vpop.f32.mrb[0].mxu0
    %v2784 = vpop.f32.mrb[0].mxu0
    %v2785 = vadd.f32 %v2560, %v2784
    %v2786 = vpop.f32.mrb[0].mxu0
    %2787 = vmatprep.mubr.bf16.mxu0 %v662
    %2788 = vmatmul.mubr.bf16.gmra.mrb[0].mxu0 %v557
    %v2789 = vpop.f32.mrb[0].mxu0
    %v2790 = vadd.f32 %v2565, %v2789
    %v2791 = vpop.f32.mrb[0].mxu0
    %v2792 = vpop.f32.mrb[0].mxu0
    %v2793 = vadd.f32 %v2568, %v2792
    %v2794 = vpop.f32.mrb[0].mxu0
    %2795 = vmatprep.mubr.bf16.mxu0 %v666
    %2796 = vmatmul.mubr.bf16.gmra.mrb[0].mxu0 %v559
    %v2797 = vpop.f32.mrb[0].mxu0
    %v2798 = vadd.f32 %v2573, %v2797
    %v2799 = vpop.f32.mrb[0].mxu0
    %v2800 = vpop.f32.mrb[0].mxu0
    %v2801 = vadd.f32 %v2576, %v2800
    %v2802 = vpop.f32.mrb[0].mxu0
    %2803 = vmatprep.mubr.bf16.mxu0 %v672
    %2804 = vmatmul.mubr.bf16.gmra.mrb[0].mxu0 %v561
    %v2805 = vpop.f32.mrb[0].mxu0
    %v2806 = vadd.f32 %v2581, %v2805
    %v2807 = vpop.f32.mrb[0].mxu0
    %v2808 = vpop.f32.mrb[0].mxu0
    %v2809 = vadd.f32 %v2584, %v2808
    %v2810 = vpop.f32.mrb[0].mxu0
    %2811 = vmatprep.mubr.bf16.mxu0 %v679
    %2812 = vmatmul.mubr.bf16.gmra.mrb[0].mxu0 %v564
    %v2813 = vpop.f32.mrb[0].mxu0
    %v2814 = vadd.f32 %v2589, %v2813
    %v2815 = vpop.f32.mrb[0].mxu0
    %v2816 = vpop.f32.mrb[0].mxu0
    %v2817 = vadd.f32 %v2592, %v2816
    %v2818 = vpop.f32.mrb[0].mxu0
    %2819 = vmatprep.mubr.bf16.mxu0 %v683
    %2820 = vmatmul.mubr.bf16.gmra.mrb[0].mxu0 %v566
    %v2821 = vpop.f32.mrb[0].mxu0
    %v2822 = vadd.f32 %v2597, %v2821
    %v2823 = vpop.f32.mrb[0].mxu0
    %v2824 = vpop.f32.mrb[0].mxu0
    %v2825 = vadd.f32 %v2600, %v2824
    %v2826 = vpop.f32.mrb[0].mxu0
    %2827 = vmatprep.mubr.bf16.mxu0 %v689
    %2828 = vmatmul.mubr.bf16.gmra.mrb[0].mxu0 %v568
    %v2829 = vpop.f32.mrb[0].mxu0
    %v2830 = vadd.f32 %v2605, %v2829
    %v2831 = vpop.f32.mrb[0].mxu0
    %v2832 = vpop.f32.mrb[0].mxu0
    %v2833 = vadd.f32 %v2608, %v2832
    %v2834 = vpop.f32.mrb[0].mxu0
    %2835 = vmatprep.mubr.bf16.mxu0 %v696
    %2836 = vmatmul.mubr.bf16.gmra.mrb[0].mxu0 %v571
    %v2837 = vpop.f32.mrb[0].mxu0
    %v2838 = vadd.f32 %v2613, %v2837
    %v2839 = vpop.f32.mrb[0].mxu0
    %v2840 = vpop.f32.mrb[0].mxu0
    %v2841 = vadd.f32 %v2616, %v2840
    %v2842 = vpop.f32.mrb[0].mxu0
    %2843 = vmatprep.mubr.bf16.mxu0 %v700
    %2844 = vmatmul.mubr.bf16.gmra.mrb[0].mxu0 %v573
    %v2845 = vpop.f32.mrb[0].mxu0
    %v2846 = vadd.f32 %v2621, %v2845
    %v2847 = vpop.f32.mrb[0].mxu0
    %v2848 = vpop.f32.mrb[0].mxu0
    %v2849 = vadd.f32 %v2624, %v2848
    %v2850 = vpop.f32.mrb[0].mxu0
    %2851 = vmatprep.mubr.bf16.mxu0 %v706
    %2852 = vmatmul.mubr.bf16.gmra.mrb[0].mxu0 %v575
    %v2853 = vpop.f32.mrb[0].mxu0
    %v2854 = vadd.f32 %v2629, %v2853
    %v2855 = vpop.f32.mrb[0].mxu0
    %v2856 = vpop.f32.mrb[0].mxu0
    %v2857 = vadd.f32 %v2632, %v2856
    %v2858 = vpop.f32.mrb[0].mxu0
    %2859 = vmatprep.mubr.bf16.mxu0 %v713
    %2860 = vmatmul.mubr.bf16.gmra.mrb[0].mxu0 %v578
    %v2861 = vpop.f32.mrb[0].mxu0
    %v2862 = vadd.f32 %v2637, %v2861
    %v2863 = vpop.f32.mrb[0].mxu0
    %v2864 = vpop.f32.mrb[0].mxu0
    %v2865 = vadd.f32 %v2640, %v2864
    %v2866 = vpop.f32.mrb[0].mxu0
    %2867 = vmatprep.mubr.bf16.mxu0 %v717
    %2868 = vmatmul.mubr.bf16.gmra.mrb[0].mxu0 %v580
    %v2869 = vpop.f32.mrb[0].mxu0
    %v2870 = vadd.f32 %v2645, %v2869
    %v2871 = vpop.f32.mrb[0].mxu0
    %v2872 = vpop.f32.mrb[0].mxu0
    %v2873 = vadd.f32 %v2648, %v2872
    %v2874 = vpop.f32.mrb[0].mxu0
    %2875 = vmatprep.mubr.bf16.mxu0 %v723
    %2876 = vmatmul.mubr.bf16.gmra.mrb[0].mxu0 %v582
    %v2877 = vpop.f32.mrb[0].mxu0
    %v2878 = vadd.f32 %v2653, %v2877
    %v2879 = vpop.f32.mrb[0].mxu0
    %v2880 = vpop.f32.mrb[0].mxu0
    %v2881 = vadd.f32 %v2656, %v2880
    %v2882 = vpop.f32.mrb[0].mxu0
    %2883 = vmatprep.mubr.bf16.mxu0 %v730
    %2884 = vmatmul.mubr.bf16.gmra.mrb[0].mxu0 %v585
    %v2885 = vpop.f32.mrb[0].mxu0
    %v2886 = vadd.f32 %v2661, %v2885
    %v2887 = vpop.f32.mrb[0].mxu0
    %v2888 = vpop.f32.mrb[0].mxu0
    %v2889 = vadd.f32 %v2664, %v2888
    %v2890 = vpop.f32.mrb[0].mxu0
    %2891 = vmatprep.mubr.bf16.mxu0 %v734
    %2892 = vmatmul.mubr.bf16.gmra.mrb[0].mxu0 %v587
    %v2893 = vpop.f32.mrb[0].mxu0
    %v2894 = vadd.f32 %v2669, %v2893
    %v2895 = vpop.f32.mrb[0].mxu0
    %v2896 = vpop.f32.mrb[0].mxu0
    %v2897 = vadd.f32 %v2672, %v2896
    %v2898 = vpop.f32.mrb[0].mxu0
    %2899 = vmatprep.mubr.bf16.mxu0 %v740
    %2900 = vmatmul.mubr.bf16.gmra.mrb[0].mxu0 %v589
    %v2901 = vpop.f32.mrb[0].mxu0
    %v2902 = vadd.f32 %v2677, %v2901
    %v2903 = vpop.f32.mrb[0].mxu0
    %v2904 = vpop.f32.mrb[0].mxu0
    %v2905 = vadd.f32 %v2680, %v2904
    %v2906 = vpop.f32.mrb[0].mxu0
    %2907 = vmatprep.mubr.bf16.mxu0 %v747
    %2908 = vmatmul.mubr.bf16.gmra.mrb[0].mxu0 %v592
    %v2909 = vpop.f32.mrb[0].mxu0
    %v2910 = vadd.f32 %v2685, %v2909
    %v2911 = vpop.f32.mrb[0].mxu0
    %v2912 = vpop.f32.mrb[0].mxu0
    %v2913 = vadd.f32 %v2688, %v2912
    %v2914 = vpop.f32.mrb[0].mxu0
    %2915 = vmatprep.mubr.bf16.mxu0 %v751
    %2916 = vmatmul.mubr.bf16.gmra.mrb[0].mxu0 %v594
    %v2917 = vpop.f32.mrb[0].mxu0
    %v2918 = vadd.f32 %v2693, %v2917
    %v2919 = vpop.f32.mrb[0].mxu0
    %v2920 = vpop.f32.mrb[0].mxu0
    %v2921 = vadd.f32 %v2696, %v2920
    %v2922 = vpop.f32.mrb[0].mxu0
    %2923 = vmatprep.mubr.bf16.mxu0 %v757
    %2924 = vmatmul.mubr.bf16.gmra.mrb[0].mxu0 %v596
    %v2925 = vpop.f32.mrb[0].mxu0
    %v2926 = vadd.f32 %v2701, %v2925
    %v2927 = vpop.f32.mrb[0].mxu0
    %v2928 = vpop.f32.mrb[0].mxu0
    %v2929 = vadd.f32 %v2704, %v2928
    %v2930 = vpop.f32.mrb[0].mxu0
    %2931 = vdwg.mxu0
    %2932 = vmatprep.subr.bf16.mxu0 0
    %2933 = vmatpush1.bf16.msra.mxu0 %v1521
    %2934 = vmatprep.subr.bf16.mxu0 0
    %2935 = vmatpush1.bf16.msra.mxu0 %v1524
    %2936 = vmatprep.subr.bf16.mxu0 0
    %2937 = vmatpush1.bf16.msra.mxu0 %v1527
    %2938 = vmatprep.subr.bf16.mxu0 0
    %2939 = vmatpush1.bf16.msra.mxu0 %v1530
    %2940 = vmatprep.subr.bf16.mxu0 0
    %2941 = vmatpush1.bf16.msra.mxu0 %v1533
    %2942 = vmatprep.subr.bf16.mxu0 0
    %2943 = vmatpush1.bf16.msra.mxu0 %v1536
    %2944 = vmatprep.subr.bf16.mxu0 0
    %2945 = vmatpush1.bf16.msra.mxu0 %v1539
    %2946 = vmatprep.subr.bf16.mxu0 0
    %2947 = vmatpush1.bf16.msra.mxu0 %v1542
    %2948 = vmatprep.subr.bf16.mxu0 0
    %2949 = vmatpush1.bf16.msra.mxu0 0
    %2950 = vmatprep.subr.bf16.mxu0 0
    %2951 = vmatpush1.bf16.msra.mxu0 0
    %2952 = vmatprep.subr.bf16.mxu0 0
    %2953 = vmatpush1.bf16.msra.mxu0 0
    %2954 = vmatprep.subr.bf16.mxu0 0
    %2955 = vmatpush1.bf16.msra.mxu0 0
    %2956 = vmatprep.subr.bf16.mxu0 0
    %2957 = vmatpush1.bf16.msra.mxu0 0
    %2958 = vmatprep.subr.bf16.mxu0 0
    %2959 = vmatpush1.bf16.msra.mxu0 0
    %2960 = vmatprep.subr.bf16.mxu0 0
    %2961 = vmatpush1.bf16.msra.mxu0 0
    %2962 = vmatprep.subr.bf16.mxu0 0
    %2963 = vmatpush1.bf16.msra.mxu0 0
    %2964 = vmatprep.mubr.bf16.mxu0 0
    %2965 = vmatmul.mubr.bf16.gmra.mrb[0].mxu0 %v785
    %v2966 = vpop.f32.mrb[0].mxu0
    %v2967 = vadd.f32 %v2742, %v2966
    %v2968 = vpop.f32.mrb[0].mxu0
    %v2969 = vpop.f32.mrb[0].mxu0
    %v2970 = vadd.f32 %v2745, %v2969
    %v2971 = vpop.f32.mrb[0].mxu0
    %2972 = vmatprep.mubr.bf16.mxu0 0
    %2973 = vmatmul.mubr.bf16.gmra.mrb[0].mxu0 %v787
    %v2974 = vpop.f32.mrb[0].mxu0
    %v2975 = vadd.f32 %v2750, %v2974
    %v2976 = vpop.f32.mrb[0].mxu0
    %v2977 = vpop.f32.mrb[0].mxu0
    %v2978 = vadd.f32 %v2753, %v2977
    %v2979 = vpop.f32.mrb[0].mxu0
    %2980 = vmatprep.mubr.bf16.mxu0 0
    %2981 = vmatmul.mubr.bf16.gmra.mrb[0].mxu0 %v789
    %v2982 = vpop.f32.mrb[0].mxu0
    %v2983 = vadd.f32 %v2758, %v2982
    %v2984 = vpop.f32.mrb[0].mxu0
    %v2985 = vpop.f32.mrb[0].mxu0
    %v2986 = vadd.f32 %v2761, %v2985
    %v2987 = vpop.f32.mrb[0].mxu0
    %2988 = vmatprep.mubr.bf16.mxu0 0
    %2989 = vmatmul.mubr.bf16.gmra.mrb[0].mxu0 %v792
    %v2990 = vpop.f32.mrb[0].mxu0
    %v2991 = vadd.f32 %v2766, %v2990
    %v2992 = vpop.f32.mrb[0].mxu0
    %v2993 = vpop.f32.mrb[0].mxu0
    %v2994 = vadd.f32 %v2769, %v2993
    %v2995 = vpop.f32.mrb[0].mxu0
    %2996 = vmatprep.mubr.bf16.mxu0 0
    %2997 = vmatmul.mubr.bf16.gmra.mrb[0].mxu0 %v794
    %v2998 = vpop.f32.mrb[0].mxu0
    %v2999 = vadd.f32 %v2774, %v2998
    %v3000 = vpop.f32.mrb[0].mxu0
    %v3001 = vpop.f32.mrb[0].mxu0
    %v3002 = vadd.f32 %v2777, %v3001
    %v3003 = vpop.f32.mrb[0].mxu0
    %3004 = vmatprep.mubr.bf16.mxu0 0
    %3005 = vmatmul.mubr.bf16.gmra.mrb[0].mxu0 %v796
    %v3006 = vpop.f32.mrb[0].mxu0
    %v3007 = vadd.f32 %v2782, %v3006
    %v3008 = vpop.f32.mrb[0].mxu0
    %v3009 = vpop.f32.mrb[0].mxu0
    %v3010 = vadd.f32 %v2785, %v3009
    %v3011 = vpop.f32.mrb[0].mxu0
    %3012 = vmatprep.mubr.bf16.mxu0 0
    %3013 = vmatmul.mubr.bf16.gmra.mrb[0].mxu0 %v799
    %v3014 = vpop.f32.mrb[0].mxu0
    %v3015 = vadd.f32 %v2790, %v3014
    %v3016 = vpop.f32.mrb[0].mxu0
    %v3017 = vpop.f32.mrb[0].mxu0
    %v3018 = vadd.f32 %v2793, %v3017
    %v3019 = vpop.f32.mrb[0].mxu0
    %3020 = vmatprep.mubr.bf16.mxu0 0
    %3021 = vmatmul.mubr.bf16.gmra.mrb[0].mxu0 %v801
    %v3022 = vpop.f32.mrb[0].mxu0
    %v3023 = vadd.f32 %v2798, %v3022
    %v3024 = vpop.f32.mrb[0].mxu0
    %v3025 = vpop.f32.mrb[0].mxu0
    %v3026 = vadd.f32 %v2801, %v3025
    %v3027 = vpop.f32.mrb[0].mxu0
    %3028 = vmatprep.mubr.bf16.mxu0 0
    %3029 = vmatmul.mubr.bf16.gmra.mrb[0].mxu0 %v803
    %v3030 = vpop.f32.mrb[0].mxu0
    %v3031 = vadd.f32 %v2806, %v3030
    %v3032 = vpop.f32.mrb[0].mxu0
    %v3033 = vpop.f32.mrb[0].mxu0
    %v3034 = vadd.f32 %v2809, %v3033
    %v3035 = vpop.f32.mrb[0].mxu0
    %3036 = vmatprep.mubr.bf16.mxu0 0
    %3037 = vmatmul.mubr.bf16.gmra.mrb[0].mxu0 %v806
    %v3038 = vpop.f32.mrb[0].mxu0
    %v3039 = vadd.f32 %v2814, %v3038
    %v3040 = vpop.f32.mrb[0].mxu0
    %v3041 = vpop.f32.mrb[0].mxu0
    %v3042 = vadd.f32 %v2817, %v3041
    %v3043 = vpop.f32.mrb[0].mxu0
    %3044 = vmatprep.mubr.bf16.mxu0 0
    %3045 = vmatmul.mubr.bf16.gmra.mrb[0].mxu0 %v808
    %v3046 = vpop.f32.mrb[0].mxu0
    %v3047 = vadd.f32 %v2822, %v3046
    %v3048 = vpop.f32.mrb[0].mxu0
    %v3049 = vpop.f32.mrb[0].mxu0
    %v3050 = vadd.f32 %v2825, %v3049
    %v3051 = vpop.f32.mrb[0].mxu0
    %3052 = vmatprep.mubr.bf16.mxu0 0
    %3053 = vmatmul.mubr.bf16.gmra.mrb[0].mxu0 %v810
    %v3054 = vpop.f32.mrb[0].mxu0
    %v3055 = vadd.f32 %v2830, %v3054
    %v3056 = vpop.f32.mrb[0].mxu0
    %v3057 = vpop.f32.mrb[0].mxu0
    %v3058 = vadd.f32 %v2833, %v3057
    %v3059 = vpop.f32.mrb[0].mxu0
    %3060 = vmatprep.mubr.bf16.mxu0 0
    %3061 = vmatmul.mubr.bf16.gmra.mrb[0].mxu0 %v813
    %v3062 = vpop.f32.mrb[0].mxu0
    %v3063 = vadd.f32 %v2838, %v3062
    %v3064 = vpop.f32.mrb[0].mxu0
    %v3065 = vpop.f32.mrb[0].mxu0
    %v3066 = vadd.f32 %v2841, %v3065
    %v3067 = vpop.f32.mrb[0].mxu0
    %3068 = vmatprep.mubr.bf16.mxu0 0
    %3069 = vmatmul.mubr.bf16.gmra.mrb[0].mxu0 %v815
    %v3070 = vpop.f32.mrb[0].mxu0
    %v3071 = vadd.f32 %v2846, %v3070
    %v3072 = vpop.f32.mrb[0].mxu0
    %v3073 = vpop.f32.mrb[0].mxu0
    %v3074 = vadd.f32 %v2849, %v3073
    %v3075 = vpop.f32.mrb[0].mxu0
    %3076 = vmatprep.mubr.bf16.mxu0 0
    %3077 = vmatmul.mubr.bf16.gmra.mrb[0].mxu0 %v817
    %v3078 = vpop.f32.mrb[0].mxu0
    %v3079 = vadd.f32 %v2854, %v3078
    %v3080 = vpop.f32.mrb[0].mxu0
    %v3081 = vpop.f32.mrb[0].mxu0
    %v3082 = vadd.f32 %v2857, %v3081
    %v3083 = vpop.f32.mrb[0].mxu0
    %3084 = vmatprep.mubr.bf16.mxu0 0
    %3085 = vmatmul.mubr.bf16.gmra.mrb[0].mxu0 %v820
    %v3086 = vpop.f32.mrb[0].mxu0
    %v3087 = vadd.f32 %v2862, %v3086
    %v3088 = vpop.f32.mrb[0].mxu0
    %v3089 = vpop.f32.mrb[0].mxu0
    %v3090 = vadd.f32 %v2865, %v3089
    %v3091 = vpop.f32.mrb[0].mxu0
    %3092 = vmatprep.mubr.bf16.mxu0 0
    %3093 = vmatmul.mubr.bf16.gmra.mrb[0].mxu0 %v822
    %v3094 = vpop.f32.mrb[0].mxu0
    %v3095 = vadd.f32 %v2870, %v3094
    %v3096 = vpop.f32.mrb[0].mxu0
    %v3097 = vpop.f32.mrb[0].mxu0
    %v3098 = vadd.f32 %v2873, %v3097
    %v3099 = vpop.f32.mrb[0].mxu0
    %3100 = vmatprep.mubr.bf16.mxu0 0
    %3101 = vmatmul.mubr.bf16.gmra.mrb[0].mxu0 %v824
    %v3102 = vpop.f32.mrb[0].mxu0
    %v3103 = vadd.f32 %v2878, %v3102
    %v3104 = vpop.f32.mrb[0].mxu0
    %v3105 = vpop.f32.mrb[0].mxu0
    %v3106 = vadd.f32 %v2881, %v3105
    %v3107 = vpop.f32.mrb[0].mxu0
    %3108 = vmatprep.mubr.bf16.mxu0 0
    %3109 = vmatmul.mubr.bf16.gmra.mrb[0].mxu0 %v827
    %v3110 = vpop.f32.mrb[0].mxu0
    %v3111 = vadd.f32 %v2886, %v3110
    %v3112 = vpop.f32.mrb[0].mxu0
    %v3113 = vpop.f32.mrb[0].mxu0
    %v3114 = vadd.f32 %v2889, %v3113
    %v3115 = vpop.f32.mrb[0].mxu0
    %3116 = vmatprep.mubr.bf16.mxu0 0
    %3117 = vmatmul.mubr.bf16.gmra.mrb[0].mxu0 %v829
    %v3118 = vpop.f32.mrb[0].mxu0
    %v3119 = vadd.f32 %v2894, %v3118
    %v3120 = vpop.f32.mrb[0].mxu0
    %v3121 = vpop.f32.mrb[0].mxu0
    %v3122 = vadd.f32 %v2897, %v3121
    %v3123 = vpop.f32.mrb[0].mxu0
    %3124 = vmatprep.mubr.bf16.mxu0 0
    %3125 = vmatmul.mubr.bf16.gmra.mrb[0].mxu0 %v831
    %v3126 = vpop.f32.mrb[0].mxu0
    %v3127 = vadd.f32 %v2902, %v3126
    %v3128 = vpop.f32.mrb[0].mxu0
    %v3129 = vpop.f32.mrb[0].mxu0
    %v3130 = vadd.f32 %v2905, %v3129
    %v3131 = vpop.f32.mrb[0].mxu0
    %3132 = vmatprep.mubr.bf16.mxu0 0
    %3133 = vmatmul.mubr.bf16.gmra.mrb[0].mxu0 %v834
    %v3134 = vpop.f32.mrb[0].mxu0
    %v3135 = vadd.f32 %v2910, %v3134
    %v3136 = vpop.f32.mrb[0].mxu0
    %v3137 = vpop.f32.mrb[0].mxu0
    %v3138 = vadd.f32 %v2913, %v3137
    %v3139 = vpop.f32.mrb[0].mxu0
    %3140 = vmatprep.mubr.bf16.mxu0 0
    %3141 = vmatmul.mubr.bf16.gmra.mrb[0].mxu0 %v836
    %v3142 = vpop.f32.mrb[0].mxu0
    %v3143 = vadd.f32 %v2918, %v3142
    %v3144 = vpop.f32.mrb[0].mxu0
    %v3145 = vpop.f32.mrb[0].mxu0
    %v3146 = vadd.f32 %v2921, %v3145
    %v3147 = vpop.f32.mrb[0].mxu0
    %3148 = vmatprep.mubr.bf16.mxu0 0
    %3149 = vmatmul.mubr.bf16.gmra.mrb[0].mxu0 %v838
    %v3150 = vpop.f32.mrb[0].mxu0
    %v3151 = vadd.f32 %v2926, %v3150
    %v3152 = vpop.f32.mrb[0].mxu0
    %v3153 = vpop.f32.mrb[0].mxu0
    %v3154 = vadd.f32 %v2929, %v3153
    %v3155 = vpop.f32.mrb[0].mxu0
    %3156 = vdwg.mxu0
    %vm3301 = vcmask 1046528
    %v3302 = vrot.slane %v2244, 1
    %v3303 = vrot.slane %v2248, 1
    %v3304 = vsel %vm3301, %v3302, %v3303
    %v3305 = vrot.slane %v2246, 1
    %v3306 = vrot.slane %v2250, 1
    %v3307 = vsel %vm3301, %v3305, %v3306
    %v3308 = vrot.slane %v2967, 1
    %v3309 = vrot.slane %v2970, 1
    %v3310 = vsel %vm3301, %v3308, %v3309
    %v3311 = vrot.slane %v2254, 1
    %v3312 = vsel %vm3301, %v3303, %v3311
    %v3313 = vrot.slane %v2256, 1
    %v3314 = vsel %vm3301, %v3306, %v3313
    %v3315 = vrot.slane %v2975, 1
    %v3316 = vsel %vm3301, %v3309, %v3315
    %v3317 = vrot.slane %v2258, 1
    %v3318 = vsel %vm3301, %v3311, %v3317
    %v3319 = vrot.slane %v2260, 1
    %v3320 = vsel %vm3301, %v3313, %v3319
    %v3321 = vrot.slane %v2978, 1
    %v3322 = vsel %vm3301, %v3315, %v3321
    %v3323 = vrot.slane %v2264, 1
    %v3324 = vsel %vm3301, %v3317, %v3323
    %v3325 = vrot.slane %v2266, 1
    %v3326 = vsel %vm3301, %v3319, %v3325
    %v3327 = vrot.slane %v2983, 1
    %v3328 = vsel %vm3301, %v3321, %v3327
    %v3329 = vrot.slane %v2268, 1
    %v3330 = vsel %vm3301, %v3323, %v3329
    %v3331 = vrot.slane %v2270, 1
    %v3332 = vsel %vm3301, %v3325, %v3331
    %v3333 = vrot.slane %v2986, 1
    %v3334 = vsel %vm3301, %v3327, %v3333
    %v3335 = vrot.slane %v2274, 1
    %v3336 = vrot.slane %v2278, 1
    %v3337 = vsel %vm3301, %v3335, %v3336
    %v3338 = vrot.slane %v2276, 1
    %v3339 = vrot.slane %v2280, 1
    %v3340 = vsel %vm3301, %v3338, %v3339
    %v3341 = vrot.slane %v2991, 1
    %v3342 = vrot.slane %v2994, 1
    %v3343 = vsel %vm3301, %v3341, %v3342
    %v3344 = vrot.slane %v2284, 1
    %v3345 = vsel %vm3301, %v3336, %v3344
    %v3346 = vrot.slane %v2286, 1
    %v3347 = vsel %vm3301, %v3339, %v3346
    %v3348 = vrot.slane %v2999, 1
    %v3349 = vsel %vm3301, %v3342, %v3348
    %v3350 = vrot.slane %v2288, 1
    %v3351 = vsel %vm3301, %v3344, %v3350
    %v3352 = vrot.slane %v2290, 1
    %v3353 = vsel %vm3301, %v3346, %v3352
    %v3354 = vrot.slane %v3002, 1
    %v3355 = vsel %vm3301, %v3348, %v3354
    %v3356 = vrot.slane %v2294, 1
    %v3357 = vsel %vm3301, %v3350, %v3356
    %v3358 = vrot.slane %v2296, 1
    %v3359 = vsel %vm3301, %v3352, %v3358
    %v3360 = vrot.slane %v3007, 1
    %v3361 = vsel %vm3301, %v3354, %v3360
    %v3362 = vrot.slane %v2298, 1
    %v3363 = vsel %vm3301, %v3356, %v3362
    %v3364 = vrot.slane %v2300, 1
    %v3365 = vsel %vm3301, %v3358, %v3364
    %v3366 = vrot.slane %v3010, 1
    %v3367 = vsel %vm3301, %v3360, %v3366
    %v3368 = vrot.slane %v2304, 1
    %v3369 = vrot.slane %v2308, 1
    %v3370 = vsel %vm3301, %v3368, %v3369
    %v3371 = vrot.slane %v2306, 1
    %v3372 = vrot.slane %v2310, 1
    %v3373 = vsel %vm3301, %v3371, %v3372
    %v3374 = vrot.slane %v3015, 1
    %v3375 = vrot.slane %v3018, 1
    %v3376 = vsel %vm3301, %v3374, %v3375
    %v3377 = vrot.slane %v2314, 1
    %v3378 = vsel %vm3301, %v3369, %v3377
    %v3379 = vrot.slane %v2316, 1
    %v3380 = vsel %vm3301, %v3372, %v3379
    %v3381 = vrot.slane %v3023, 1
    %v3382 = vsel %vm3301, %v3375, %v3381
    %v3383 = vrot.slane %v2318, 1
    %v3384 = vsel %vm3301, %v3377, %v3383
    %v3385 = vrot.slane %v2320, 1
    %v3386 = vsel %vm3301, %v3379, %v3385
    %v3387 = vrot.slane %v3026, 1
    %v3388 = vsel %vm3301, %v3381, %v3387
    %v3389 = vrot.slane %v2324, 1
    %v3390 = vsel %vm3301, %v3383, %v3389
    %v3391 = vrot.slane %v2326, 1
    %v3392 = vsel %vm3301, %v3385, %v3391
    %v3393 = vrot.slane %v3031, 1
    %v3394 = vsel %vm3301, %v3387, %v3393
    %v3395 = vrot.slane %v2328, 1
    %v3396 = vsel %vm3301, %v3389, %v3395
    %v3397 = vrot.slane %v2330, 1
    %v3398 = vsel %vm3301, %v3391, %v3397
    %v3399 = vrot.slane %v3034, 1
    %v3400 = vsel %vm3301, %v3393, %v3399
    %v3401 = vrot.slane %v2334, 1
    %v3402 = vrot.slane %v2338, 1
    %v3403 = vsel %vm3301, %v3401, %v3402
    %v3404 = vrot.slane %v2336, 1
    %v3405 = vrot.slane %v2340, 1
    %v3406 = vsel %vm3301, %v3404, %v3405
    %v3407 = vrot.slane %v3039, 1
    %v3408 = vrot.slane %v3042, 1
    %v3409 = vsel %vm3301, %v3407, %v3408
    %v3410 = vrot.slane %v2344, 1
    %v3411 = vsel %vm3301, %v3402, %v3410
    %v3412 = vrot.slane %v2346, 1
    %v3413 = vsel %vm3301, %v3405, %v3412
    %v3414 = vrot.slane %v3047, 1
    %v3415 = vsel %vm3301, %v3408, %v3414
    %v3416 = vrot.slane %v2348, 1
    %v3417 = vsel %vm3301, %v3410, %v3416
    %v3418 = vrot.slane %v2350, 1
    %v3419 = vsel %vm3301, %v3412, %v3418
    %v3420 = vrot.slane %v3050, 1
    %v3421 = vsel %vm3301, %v3414, %v3420
    %v3422 = vrot.slane %v2354, 1
    %v3423 = vsel %vm3301, %v3416, %v3422
    %v3424 = vrot.slane %v2356, 1
    %v3425 = vsel %vm3301, %v3418, %v3424
    %v3426 = vrot.slane %v3055, 1
    %v3427 = vsel %vm3301, %v3420, %v3426
    %v3428 = vrot.slane %v2358, 1
    %v3429 = vsel %vm3301, %v3422, %v3428
    %v3430 = vrot.slane %v2360, 1
    %v3431 = vsel %vm3301, %v3424, %v3430
    %v3432 = vrot.slane %v3058, 1
    %v3433 = vsel %vm3301, %v3426, %v3432
    %v3434 = vrot.slane %v2364, 1
    %v3435 = vrot.slane %v2368, 1
    %v3436 = vsel %vm3301, %v3434, %v3435
    %v3437 = vrot.slane %v2366, 1
    %v3438 = vrot.slane %v2370, 1
    %v3439 = vsel %vm3301, %v3437, %v3438
    %v3440 = vrot.slane %v3063, 1
    %v3441 = vrot.slane %v3066, 1
    %v3442 = vsel %vm3301, %v3440, %v3441
    %v3443 = vrot.slane %v2374, 1
    %v3444 = vsel %vm3301, %v3435, %v3443
    %v3445 = vrot.slane %v2376, 1
    %v3446 = vsel %vm3301, %v3438, %v3445
    %v3447 = vrot.slane %v3071, 1
    %v3448 = vsel %vm3301, %v3441, %v3447
    %v3449 = vrot.slane %v2378, 1
    %v3450 = vsel %vm3301, %v3443, %v3449
    %v3451 = vrot.slane %v2380, 1
    %v3452 = vsel %vm3301, %v3445, %v3451
    %v3453 = vrot.slane %v3074, 1
    %v3454 = vsel %vm3301, %v3447, %v3453
    %v3455 = vrot.slane %v2384, 1
    %v3456 = vsel %vm3301, %v3449, %v3455
    %v3457 = vrot.slane %v2386, 1
    %v3458 = vsel %vm3301, %v3451, %v3457
    %v3459 = vrot.slane %v3079, 1
    %v3460 = vsel %vm3301, %v3453, %v3459
    %v3461 = vrot.slane %v2388, 1
    %v3462 = vsel %vm3301, %v3455, %v3461
    %v3463 = vrot.slane %v2390, 1
    %v3464 = vsel %vm3301, %v3457, %v3463
    %v3465 = vrot.slane %v3082, 1
    %v3466 = vsel %vm3301, %v3459, %v3465
    %v3467 = vrot.slane %v2394, 1
    %v3468 = vrot.slane %v2398, 1
    %v3469 = vsel %vm3301, %v3467, %v3468
    %v3470 = vrot.slane %v2396, 1
    %v3471 = vrot.slane %v2400, 1
    %v3472 = vsel %vm3301, %v3470, %v3471
    %v3473 = vrot.slane %v3087, 1
    %v3474 = vrot.slane %v3090, 1
    %v3475 = vsel %vm3301, %v3473, %v3474
    %v3476 = vrot.slane %v2404, 1
    %v3477 = vsel %vm3301, %v3468, %v3476
    %v3478 = vrot.slane %v2406, 1
    %v3479 = vsel %vm3301, %v3471, %v3478
    %v3480 = vrot.slane %v3095, 1
    %v3481 = vsel %vm3301, %v3474, %v3480
    %v3482 = vrot.slane %v2408, 1
    %v3483 = vsel %vm3301, %v3476, %v3482
    %v3484 = vrot.slane %v2410, 1
    %v3485 = vsel %vm3301, %v3478, %v3484
    %v3486 = vrot.slane %v3098, 1
    %v3487 = vsel %vm3301, %v3480, %v3486
    %v3488 = vrot.slane %v2414, 1
    %v3489 = vsel %vm3301, %v3482, %v3488
    %v3490 = vrot.slane %v2416, 1
    %v3491 = vsel %vm3301, %v3484, %v3490
    %v3492 = vrot.slane %v3103, 1
    %v3493 = vsel %vm3301, %v3486, %v3492
    %v3494 = vrot.slane %v2418, 1
    %v3495 = vsel %vm3301, %v3488, %v3494
    %v3496 = vrot.slane %v2420, 1
    %v3497 = vsel %vm3301, %v3490, %v3496
    %v3498 = vrot.slane %v3106, 1
    %v3499 = vsel %vm3301, %v3492, %v3498
    %v3500 = vrot.slane %v2424, 1
    %v3501 = vrot.slane %v2428, 1
    %v3502 = vsel %vm3301, %v3500, %v3501
    %v3503 = vrot.slane %v2426, 1
    %v3504 = vrot.slane %v2430, 1
    %v3505 = vsel %vm3301, %v3503, %v3504
    %v3506 = vrot.slane %v3111, 1
    %v3507 = vrot.slane %v3114, 1
    %v3508 = vsel %vm3301, %v3506, %v3507
    %v3509 = vrot.slane %v2434, 1
    %v3510 = vsel %vm3301, %v3501, %v3509
    %v3511 = vrot.slane %v2436, 1
    %v3512 = vsel %vm3301, %v3504, %v3511
    %v3513 = vrot.slane %v3119, 1
    %v3514 = vsel %vm3301, %v3507, %v3513
    %v3515 = vrot.slane %v2438, 1
    %v3516 = vsel %vm3301, %v3509, %v3515
    %v3517 = vrot.slane %v2440, 1
    %v3518 = vsel %vm3301, %v3511, %v3517
    %v3519 = vrot.slane %v3122, 1
    %v3520 = vsel %vm3301, %v3513, %v3519
    %v3521 = vrot.slane %v2444, 1
    %v3522 = vsel %vm3301, %v3515, %v3521
    %v3523 = vrot.slane %v2446, 1
    %v3524 = vsel %vm3301, %v3517, %v3523
    %v3525 = vrot.slane %v3127, 1
    %v3526 = vsel %vm3301, %v3519, %v3525
    %v3527 = vrot.slane %v2448, 1
    %v3528 = vsel %vm3301, %v3521, %v3527
    %v3529 = vrot.slane %v2450, 1
    %v3530 = vsel %vm3301, %v3523, %v3529
    %v3531 = vrot.slane %v3130, 1
    %v3532 = vsel %vm3301, %v3525, %v3531
    %v3533 = vrot.slane %v2454, 1
    %v3534 = vrot.slane %v2458, 1
    %v3535 = vsel %vm3301, %v3533, %v3534
    %v3536 = vrot.slane %v2456, 1
    %v3537 = vrot.slane %v2460, 1
    %v3538 = vsel %vm3301, %v3536, %v3537
    %v3539 = vrot.slane %v3135, 1
    %v3540 = vrot.slane %v3138, 1
    %v3541 = vsel %vm3301, %v3539, %v3540
    %v3542 = vrot.slane %v2464, 1
    %v3543 = vsel %vm3301, %v3534, %v3542
    %v3544 = vrot.slane %v2466, 1
    %v3545 = vsel %vm3301, %v3537, %v3544
    %v3546 = vrot.slane %v3143, 1
    %v3547 = vsel %vm3301, %v3540, %v3546
    %v3548 = vrot.slane %v2468, 1
    %v3549 = vsel %vm3301, %v3542, %v3548
    %v3550 = vrot.slane %v2470, 1
    %v3551 = vsel %vm3301, %v3544, %v3550
    %v3552 = vrot.slane %v3146, 1
    %v3553 = vsel %vm3301, %v3546, %v3552
    %v3554 = vrot.slane %v2474, 1
    %v3555 = vsel %vm3301, %v3548, %v3554
    %v3556 = vrot.slane %v2476, 1
    %v3557 = vsel %vm3301, %v3550, %v3556
    %v3558 = vrot.slane %v3151, 1
    %v3559 = vsel %vm3301, %v3552, %v3558
    %v3560 = vrot.slane %v2478, 1
    %v3561 = vsel %vm3301, %v3554, %v3560
    %v3562 = vrot.slane %v2480, 1
    %v3563 = vsel %vm3301, %v3556, %v3562
    %v3564 = vrot.slane %v3154, 1
    %v3565 = vsel %vm3301, %v3558, %v3564
    %v3686 = vmax.f32 %v2244, %v3304
    %v3687 = vmax.f32 %v2246, %v3307
    %v3688 = vmax.f32 %v2967, %v3310
    %v3689 = vmax.f32 %v2248, %v3312
    %v3690 = vmax.f32 %v2250, %v3314
    %v3691 = vmax.f32 %v2970, %v3316
    %v3692 = vmax.f32 %v2254, %v3318
    %v3693 = vmax.f32 %v2256, %v3320
    %v3694 = vmax.f32 %v2975, %v3322
    %v3695 = vmax.f32 %v2258, %v3324
    %v3696 = vmax.f32 %v2260, %v3326
    %v3697 = vmax.f32 %v2978, %v3328
    %v3698 = vmax.f32 %v2264, %v3330
    %v3699 = vmax.f32 %v2266, %v3332
    %v3700 = vmax.f32 %v2983, %v3334
    %v3701 = vmax.f32 %v2274, %v3337
    %v3702 = vmax.f32 %v2276, %v3340
    %v3703 = vmax.f32 %v2991, %v3343
    %v3704 = vmax.f32 %v2278, %v3345
    %v3705 = vmax.f32 %v2280, %v3347
    %v3706 = vmax.f32 %v2994, %v3349
    %v3707 = vmax.f32 %v2284, %v3351
    %v3708 = vmax.f32 %v2286, %v3353
    %v3709 = vmax.f32 %v2999, %v3355
    %v3710 = vmax.f32 %v2288, %v3357
    %v3711 = vmax.f32 %v2290, %v3359
    %v3712 = vmax.f32 %v3002, %v3361
    %v3713 = vmax.f32 %v2294, %v3363
    %v3714 = vmax.f32 %v2296, %v3365
    %v3715 = vmax.f32 %v3007, %v3367
    %v3716 = vmax.f32 %v2304, %v3370
    %v3717 = vmax.f32 %v2306, %v3373
    %v3718 = vmax.f32 %v3015, %v3376
    %v3719 = vmax.f32 %v2308, %v3378
    %v3720 = vmax.f32 %v2310, %v3380
    %v3721 = vmax.f32 %v3018, %v3382
    %v3722 = vmax.f32 %v2314, %v3384
    %v3723 = vmax.f32 %v2316, %v3386
    %v3724 = vmax.f32 %v3023, %v3388
    %v3725 = vmax.f32 %v2318, %v3390
    %v3726 = vmax.f32 %v2320, %v3392
    %v3727 = vmax.f32 %v3026, %v3394
    %v3728 = vmax.f32 %v2324, %v3396
    %v3729 = vmax.f32 %v2326, %v3398
    %v3730 = vmax.f32 %v3031, %v3400
    %v3731 = vmax.f32 %v2334, %v3403
    %v3732 = vmax.f32 %v2336, %v3406
    %v3733 = vmax.f32 %v3039, %v3409
    %v3734 = vmax.f32 %v2338, %v3411
    %v3735 = vmax.f32 %v2340, %v3413
    %v3736 = vmax.f32 %v3042, %v3415
    %v3737 = vmax.f32 %v2344, %v3417
    %v3738 = vmax.f32 %v2346, %v3419
    %v3739 = vmax.f32 %v3047, %v3421
    %v3740 = vmax.f32 %v2348, %v3423
    %v3741 = vmax.f32 %v2350, %v3425
    %v3742 = vmax.f32 %v3050, %v3427
    %v3743 = vmax.f32 %v2354, %v3429
    %v3744 = vmax.f32 %v2356, %v3431
    %v3745 = vmax.f32 %v3055, %v3433
    %v3746 = vmax.f32 %v2364, %v3436
    %v3747 = vmax.f32 %v2366, %v3439
    %v3748 = vmax.f32 %v3063, %v3442
    %v3749 = vmax.f32 %v2368, %v3444
    %v3750 = vmax.f32 %v2370, %v3446
    %v3751 = vmax.f32 %v3066, %v3448
    %v3752 = vmax.f32 %v2374, %v3450
    %v3753 = vmax.f32 %v2376, %v3452
    %v3754 = vmax.f32 %v3071, %v3454
    %v3755 = vmax.f32 %v2378, %v3456
    %v3756 = vmax.f32 %v2380, %v3458
    %v3757 = vmax.f32 %v3074, %v3460
    %v3758 = vmax.f32 %v2384, %v3462
    %v3759 = vmax.f32 %v2386, %v3464
    %v3760 = vmax.f32 %v3079, %v3466
    %v3761 = vmax.f32 %v2394, %v3469
    %v3762 = vmax.f32 %v2396, %v3472
    %v3763 = vmax.f32 %v3087, %v3475
    %v3764 = vmax.f32 %v2398, %v3477
    %v3765 = vmax.f32 %v2400, %v3479
    %v3766 = vmax.f32 %v3090, %v3481
    %v3767 = vmax.f32 %v2404, %v3483
    %v3768 = vmax.f32 %v2406, %v3485
    %v3769 = vmax.f32 %v3095, %v3487
    %v3770 = vmax.f32 %v2408, %v3489
    %v3771 = vmax.f32 %v2410, %v3491
    %v3772 = vmax.f32 %v3098, %v3493
    %v3773 = vmax.f32 %v2414, %v3495
    %v3774 = vmax.f32 %v2416, %v3497
    %v3775 = vmax.f32 %v3103, %v3499
    %v3776 = vmax.f32 %v2424, %v3502
    %v3777 = vmax.f32 %v2426, %v3505
    %v3778 = vmax.f32 %v3111, %v3508
    %v3779 = vmax.f32 %v2428, %v3510
    %v3780 = vmax.f32 %v2430, %v3512
    %v3781 = vmax.f32 %v3114, %v3514
    %v3782 = vmax.f32 %v2434, %v3516
    %v3783 = vmax.f32 %v2436, %v3518
    %v3784 = vmax.f32 %v3119, %v3520
    %v3785 = vmax.f32 %v2438, %v3522
    %v3786 = vmax.f32 %v2440, %v3524
    %v3787 = vmax.f32 %v3122, %v3526
    %v3788 = vmax.f32 %v2444, %v3528
    %v3789 = vmax.f32 %v2446, %v3530
    %v3790 = vmax.f32 %v3127, %v3532
    %v3791 = vmax.f32 %v2454, %v3535
    %v3792 = vmax.f32 %v2456, %v3538
    %v3793 = vmax.f32 %v3135, %v3541
    %v3794 = vmax.f32 %v2458, %v3543
    %v3795 = vmax.f32 %v2460, %v3545
    %v3796 = vmax.f32 %v3138, %v3547
    %v3797 = vmax.f32 %v2464, %v3549
    %v3798 = vmax.f32 %v2466, %v3551
    %v3799 = vmax.f32 %v3143, %v3553
    %v3800 = vmax.f32 %v2468, %v3555
    %v3801 = vmax.f32 %v2470, %v3557
    %v3802 = vmax.f32 %v3146, %v3559
    %v3803 = vmax.f32 %v2474, %v3561
    %v3804 = vmax.f32 %v2476, %v3563
    %v3805 = vmax.f32 %v3151, %v3565
    %3926 = vrot.lane.b32.xlu0 %v3686, 120
    %v3927 = vpop.permute.xlu0 %3926
    %3928 = vrot.lane.b32.xlu0 %v3687, 120
    %v3929 = vpop.permute.xlu0 %3928
    %3930 = vrot.lane.b32.xlu0 %v3688, 120
    %v3931 = vpop.permute.xlu0 %3930
    %3932 = vrot.lane.b32.xlu0 %v3689, 120
    %v3933 = vpop.permute.xlu0 %3932
    %3934 = vrot.lane.b32.xlu0 %v3690, 120
    %v3935 = vpop.permute.xlu0 %3934
    %3936 = vrot.lane.b32.xlu0 %v3691, 120
    %v3937 = vpop.permute.xlu0 %3936
    %3938 = vrot.lane.b32.xlu0 %v3692, 120
    %v3939 = vpop.permute.xlu0 %3938
    %3940 = vrot.lane.b32.xlu0 %v3693, 120
    %v3941 = vpop.permute.xlu0 %3940
    %3942 = vrot.lane.b32.xlu0 %v3694, 120
    %v3943 = vpop.permute.xlu0 %3942
    %3944 = vrot.lane.b32.xlu0 %v3695, 120
    %v3945 = vpop.permute.xlu0 %3944
    %3946 = vrot.lane.b32.xlu0 %v3696, 120
    %v3947 = vpop.permute.xlu0 %3946
    %3948 = vrot.lane.b32.xlu0 %v3697, 120
    %v3949 = vpop.permute.xlu0 %3948
    %3950 = vrot.lane.b32.xlu0 %v3698, 120
    %v3951 = vpop.permute.xlu0 %3950
    %3952 = vrot.lane.b32.xlu0 %v3699, 120
    %v3953 = vpop.permute.xlu0 %3952
    %3954 = vrot.lane.b32.xlu0 %v3700, 120
    %v3955 = vpop.permute.xlu0 %3954
    %3956 = vrot.lane.b32.xlu0 %v3701, 120
    %v3957 = vpop.permute.xlu0 %3956
    %3958 = vrot.lane.b32.xlu0 %v3702, 120
    %v3959 = vpop.permute.xlu0 %3958
    %3960 = vrot.lane.b32.xlu0 %v3703, 120
    %v3961 = vpop.permute.xlu0 %3960
    %3962 = vrot.lane.b32.xlu0 %v3704, 120
    %v3963 = vpop.permute.xlu0 %3962
    %3964 = vrot.lane.b32.xlu0 %v3705, 120
    %v3965 = vpop.permute.xlu0 %3964
    %3966 = vrot.lane.b32.xlu0 %v3706, 120
    %v3967 = vpop.permute.xlu0 %3966
    %3968 = vrot.lane.b32.xlu0 %v3707, 120
    %v3969 = vpop.permute.xlu0 %3968
    %3970 = vrot.lane.b32.xlu0 %v3708, 120
    %v3971 = vpop.permute.xlu0 %3970
    %3972 = vrot.lane.b32.xlu0 %v3709, 120
    %v3973 = vpop.permute.xlu0 %3972
    %3974 = vrot.lane.b32.xlu0 %v3710, 120
    %v3975 = vpop.permute.xlu0 %3974
    %3976 = vrot.lane.b32.xlu0 %v3711, 120
    %v3977 = vpop.permute.xlu0 %3976
    %3978 = vrot.lane.b32.xlu0 %v3712, 120
    %v3979 = vpop.permute.xlu0 %3978
    %3980 = vrot.lane.b32.xlu0 %v3713, 120
    %v3981 = vpop.permute.xlu0 %3980
    %3982 = vrot.lane.b32.xlu0 %v3714, 120
    %v3983 = vpop.permute.xlu0 %3982
    %3984 = vrot.lane.b32.xlu0 %v3715, 120
    %v3985 = vpop.permute.xlu0 %3984
    %3986 = vrot.lane.b32.xlu0 %v3716, 120
    %v3987 = vpop.permute.xlu0 %3986
    %3988 = vrot.lane.b32.xlu0 %v3717, 120
    %v3989 = vpop.permute.xlu0 %3988
    %3990 = vrot.lane.b32.xlu0 %v3718, 120
    %v3991 = vpop.permute.xlu0 %3990
    %3992 = vrot.lane.b32.xlu0 %v3719, 120
    %v3993 = vpop.permute.xlu0 %3992
    %3994 = vrot.lane.b32.xlu0 %v3720, 120
    %v3995 = vpop.permute.xlu0 %3994
    %3996 = vrot.lane.b32.xlu0 %v3721, 120
    %v3997 = vpop.permute.xlu0 %3996
    %3998 = vrot.lane.b32.xlu0 %v3722, 120
    %v3999 = vpop.permute.xlu0 %3998
    %4000 = vrot.lane.b32.xlu0 %v3723, 120
    %v4001 = vpop.permute.xlu0 %4000
    %4002 = vrot.lane.b32.xlu0 %v3724, 120
    %v4003 = vpop.permute.xlu0 %4002
    %4004 = vrot.lane.b32.xlu0 %v3725, 120
    %v4005 = vpop.permute.xlu0 %4004
    %4006 = vrot.lane.b32.xlu0 %v3726, 120
    %v4007 = vpop.permute.xlu0 %4006
    %4008 = vrot.lane.b32.xlu0 %v3727, 120
    %v4009 = vpop.permute.xlu0 %4008
    %4010 = vrot.lane.b32.xlu0 %v3728, 120
    %v4011 = vpop.permute.xlu0 %4010
    %4012 = vrot.lane.b32.xlu0 %v3729, 120
    %v4013 = vpop.permute.xlu0 %4012
    %4014 = vrot.lane.b32.xlu0 %v3730, 120
    %v4015 = vpop.permute.xlu0 %4014
    %4016 = vrot.lane.b32.xlu0 %v3731, 120
    %v4017 = vpop.permute.xlu0 %4016
    %4018 = vrot.lane.b32.xlu0 %v3732, 120
    %v4019 = vpop.permute.xlu0 %4018
    %4020 = vrot.lane.b32.xlu0 %v3733, 120
    %v4021 = vpop.permute.xlu0 %4020
    %4022 = vrot.lane.b32.xlu0 %v3734, 120
    %v4023 = vpop.permute.xlu0 %4022
    %4024 = vrot.lane.b32.xlu0 %v3735, 120
    %v4025 = vpop.permute.xlu0 %4024
    %4026 = vrot.lane.b32.xlu0 %v3736, 120
    %v4027 = vpop.permute.xlu0 %4026
    %4028 = vrot.lane.b32.xlu0 %v3737, 120
    %v4029 = vpop.permute.xlu0 %4028
    %4030 = vrot.lane.b32.xlu0 %v3738, 120
    %v4031 = vpop.permute.xlu0 %4030
    %4032 = vrot.lane.b32.xlu0 %v3739, 120
    %v4033 = vpop.permute.xlu0 %4032
    %4034 = vrot.lane.b32.xlu0 %v3740, 120
    %v4035 = vpop.permute.xlu0 %4034
    %4036 = vrot.lane.b32.xlu0 %v3741, 120
    %v4037 = vpop.permute.xlu0 %4036
    %4038 = vrot.lane.b32.xlu0 %v3742, 120
    %v4039 = vpop.permute.xlu0 %4038
    %4040 = vrot.lane.b32.xlu0 %v3743, 120
    %v4041 = vpop.permute.xlu0 %4040
    %4042 = vrot.lane.b32.xlu0 %v3744, 120
    %v4043 = vpop.permute.xlu0 %4042
    %4044 = vrot.lane.b32.xlu0 %v3745, 120
    %v4045 = vpop.permute.xlu0 %4044
    %4046 = vrot.lane.b32.xlu0 %v3746, 120
    %v4047 = vpop.permute.xlu0 %4046
    %4048 = vrot.lane.b32.xlu0 %v3747, 120
    %v4049 = vpop.permute.xlu0 %4048
    %4050 = vrot.lane.b32.xlu0 %v3748, 120
    %v4051 = vpop.permute.xlu0 %4050
    %4052 = vrot.lane.b32.xlu0 %v3749, 120
    %v4053 = vpop.permute.xlu0 %4052
    %4054 = vrot.lane.b32.xlu0 %v3750, 120
    %v4055 = vpop.permute.xlu0 %4054
    %4056 = vrot.lane.b32.xlu0 %v3751, 120
    %v4057 = vpop.permute.xlu0 %4056
    %4058 = vrot.lane.b32.xlu0 %v3752, 120
    %v4059 = vpop.permute.xlu0 %4058
    %4060 = vrot.lane.b32.xlu0 %v3753, 120
    %v4061 = vpop.permute.xlu0 %4060
    %4062 = vrot.lane.b32.xlu0 %v3754, 120
    %v4063 = vpop.permute.xlu0 %4062
    %4064 = vrot.lane.b32.xlu0 %v3755, 120
    %v4065 = vpop.permute.xlu0 %4064
    %4066 = vrot.lane.b32.xlu0 %v3756, 120
    %v4067 = vpop.permute.xlu0 %4066
    %4068 = vrot.lane.b32.xlu0 %v3757, 120
    %v4069 = vpop.permute.xlu0 %4068
    %4070 = vrot.lane.b32.xlu0 %v3758, 120
    %v4071 = vpop.permute.xlu0 %4070
    %4072 = vrot.lane.b32.xlu0 %v3759, 120
    %v4073 = vpop.permute.xlu0 %4072
    %4074 = vrot.lane.b32.xlu0 %v3760, 120
    %v4075 = vpop.permute.xlu0 %4074
    %4076 = vrot.lane.b32.xlu0 %v3761, 120
    %v4077 = vpop.permute.xlu0 %4076
    %4078 = vrot.lane.b32.xlu0 %v3762, 120
    %v4079 = vpop.permute.xlu0 %4078
    %4080 = vrot.lane.b32.xlu0 %v3763, 120
    %v4081 = vpop.permute.xlu0 %4080
    %4082 = vrot.lane.b32.xlu0 %v3764, 120
    %v4083 = vpop.permute.xlu0 %4082
    %4084 = vrot.lane.b32.xlu0 %v3765, 120
    %v4085 = vpop.permute.xlu0 %4084
    %4086 = vrot.lane.b32.xlu0 %v3766, 120
    %v4087 = vpop.permute.xlu0 %4086
    %4088 = vrot.lane.b32.xlu0 %v3767, 120
    %v4089 = vpop.permute.xlu0 %4088
    %4090 = vrot.lane.b32.xlu0 %v3768, 120
    %v4091 = vpop.permute.xlu0 %4090
    %4092 = vrot.lane.b32.xlu0 %v3769, 120
    %v4093 = vpop.permute.xlu0 %4092
    %4094 = vrot.lane.b32.xlu0 %v3770, 120
    %v4095 = vpop.permute.xlu0 %4094
    %4096 = vrot.lane.b32.xlu0 %v3771, 120
    %v4097 = vpop.permute.xlu0 %4096
    %4098 = vrot.lane.b32.xlu0 %v3772, 120
    %v4099 = vpop.permute.xlu0 %4098
    %4100 = vrot.lane.b32.xlu0 %v3773, 120
    %v4101 = vpop.permute.xlu0 %4100
    %4102 = vrot.lane.b32.xlu0 %v3774, 120
    %v4103 = vpop.permute.xlu0 %4102
    %4104 = vrot.lane.b32.xlu0 %v3775, 120
    %v4105 = vpop.permute.xlu0 %4104
    %4106 = vrot.lane.b32.xlu0 %v3776, 120
    %v4107 = vpop.permute.xlu0 %4106
    %4108 = vrot.lane.b32.xlu0 %v3777, 120
    %v4109 = vpop.permute.xlu0 %4108
    %4110 = vrot.lane.b32.xlu0 %v3778, 120
    %v4111 = vpop.permute.xlu0 %4110
    %4112 = vrot.lane.b32.xlu0 %v3779, 120
    %v4113 = vpop.permute.xlu0 %4112
    %4114 = vrot.lane.b32.xlu0 %v3780, 120
    %v4115 = vpop.permute.xlu0 %4114
    %4116 = vrot.lane.b32.xlu0 %v3781, 120
    %v4117 = vpop.permute.xlu0 %4116
    %4118 = vrot.lane.b32.xlu0 %v3782, 120
    %v4119 = vpop.permute.xlu0 %4118
    %4120 = vrot.lane.b32.xlu0 %v3783, 120
    %v4121 = vpop.permute.xlu0 %4120
    %4122 = vrot.lane.b32.xlu0 %v3784, 120
    %v4123 = vpop.permute.xlu0 %4122
    %4124 = vrot.lane.b32.xlu0 %v3785, 120
    %v4125 = vpop.permute.xlu0 %4124
    %4126 = vrot.lane.b32.xlu0 %v3786, 120
    %v4127 = vpop.permute.xlu0 %4126
    %4128 = vrot.lane.b32.xlu0 %v3787, 120
    %v4129 = vpop.permute.xlu0 %4128
    %4130 = vrot.lane.b32.xlu0 %v3788, 120
    %v4131 = vpop.permute.xlu0 %4130
    %4132 = vrot.lane.b32.xlu0 %v3789, 120
    %v4133 = vpop.permute.xlu0 %4132
    %4134 = vrot.lane.b32.xlu0 %v3790, 120
    %v4135 = vpop.permute.xlu0 %4134
    %4136 = vrot.lane.b32.xlu0 %v3791, 120
    %v4137 = vpop.permute.xlu0 %4136
    %4138 = vrot.lane.b32.xlu0 %v3792, 120
    %v4139 = vpop.permute.xlu0 %4138
    %4140 = vrot.lane.b32.xlu0 %v3793, 120
    %v4141 = vpop.permute.xlu0 %4140
    %4142 = vrot.lane.b32.xlu0 %v3794, 120
    %v4143 = vpop.permute.xlu0 %4142
    %4144 = vrot.lane.b32.xlu0 %v3795, 120
    %v4145 = vpop.permute.xlu0 %4144
    %4146 = vrot.lane.b32.xlu0 %v3796, 120
    %v4147 = vpop.permute.xlu0 %4146
    %4148 = vrot.lane.b32.xlu0 %v3797, 120
    %v4149 = vpop.permute.xlu0 %4148
    %4150 = vrot.lane.b32.xlu0 %v3798, 120
    %v4151 = vpop.permute.xlu0 %4150
    %4152 = vrot.lane.b32.xlu0 %v3799, 120
    %v4153 = vpop.permute.xlu0 %4152
    %4154 = vrot.lane.b32.xlu0 %v3800, 120
    %v4155 = vpop.permute.xlu0 %4154
    %4156 = vrot.lane.b32.xlu0 %v3801, 120
    %v4157 = vpop.permute.xlu0 %4156
    %4158 = vrot.lane.b32.xlu0 %v3802, 120
    %v4159 = vpop.permute.xlu0 %4158
    %4160 = vrot.lane.b32.xlu0 %v3803, 120
    %v4161 = vpop.permute.xlu0 %4160
    %4162 = vrot.lane.b32.xlu0 %v3804, 120
    %v4163 = vpop.permute.xlu0 %4162
    %4164 = vrot.lane.b32.xlu0 %v3805, 120
    %v4165 = vpop.permute.xlu0 %4164
    %vm4166 = vcmask 982016
    %v4167 = vsel %vm4166, %v3927, %v3929
    %v4168 = vsel %vm4166, %v3929, %v3931
    %v4169 = vsel %vm4166, %v3933, %v3935
    %v4170 = vsel %vm4166, %v3935, %v3937
    %v4171 = vsel %vm4166, %v3939, %v3941
    %v4172 = vsel %vm4166, %v3941, %v3943
    %v4173 = vsel %vm4166, %v3945, %v3947
    %v4174 = vsel %vm4166, %v3947, %v3949
    %v4175 = vsel %vm4166, %v3951, %v3953
    %v4176 = vsel %vm4166, %v3953, %v3955
    %v4177 = vsel %vm4166, %v3957, %v3959
    %v4178 = vsel %vm4166, %v3959, %v3961
    %v4179 = vsel %vm4166, %v3963, %v3965
    %v4180 = vsel %vm4166, %v3965, %v3967
    %v4181 = vsel %vm4166, %v3969, %v3971
    %v4182 = vsel %vm4166, %v3971, %v3973
    %v4183 = vsel %vm4166, %v3975, %v3977
    %v4184 = vsel %vm4166, %v3977, %v3979
    %v4185 = vsel %vm4166, %v3981, %v3983
    %v4186 = vsel %vm4166, %v3983, %v3985
    %v4187 = vsel %vm4166, %v3987, %v3989
    %v4188 = vsel %vm4166, %v3989, %v3991
    %v4189 = vsel %vm4166, %v3993, %v3995
    %v4190 = vsel %vm4166, %v3995, %v3997
    %v4191 = vsel %vm4166, %v3999, %v4001
    %v4192 = vsel %vm4166, %v4001, %v4003
    %v4193 = vsel %vm4166, %v4005, %v4007
    %v4194 = vsel %vm4166, %v4007, %v4009
    %v4195 = vsel %vm4166, %v4011, %v4013
    %v4196 = vsel %vm4166, %v4013, %v4015
    %v4197 = vsel %vm4166, %v4017, %v4019
    %v4198 = vsel %vm4166, %v4019, %v4021
    %v4199 = vsel %vm4166, %v4023, %v4025
    %v4200 = vsel %vm4166, %v4025, %v4027
    %v4201 = vsel %vm4166, %v4029, %v4031
    %v4202 = vsel %vm4166, %v4031, %v4033
    %v4203 = vsel %vm4166, %v4035, %v4037
    %v4204 = vsel %vm4166, %v4037, %v4039
    %v4205 = vsel %vm4166, %v4041, %v4043
    %v4206 = vsel %vm4166, %v4043, %v4045
    %v4207 = vsel %vm4166, %v4047, %v4049
    %v4208 = vsel %vm4166, %v4049, %v4051
    %v4209 = vsel %vm4166, %v4053, %v4055
    %v4210 = vsel %vm4166, %v4055, %v4057
    %v4211 = vsel %vm4166, %v4059, %v4061
    %v4212 = vsel %vm4166, %v4061, %v4063
    %v4213 = vsel %vm4166, %v4065, %v4067
    %v4214 = vsel %vm4166, %v4067, %v4069
    %v4215 = vsel %vm4166, %v4071, %v4073
    %v4216 = vsel %vm4166, %v4073, %v4075
    %v4217 = vsel %vm4166, %v4077, %v4079
    %v4218 = vsel %vm4166, %v4079, %v4081
    %v4219 = vsel %vm4166, %v4083, %v4085
    %v4220 = vsel %vm4166, %v4085, %v4087
    %v4221 = vsel %vm4166, %v4089, %v4091
    %v4222 = vsel %vm4166, %v4091, %v4093
    %v4223 = vsel %vm4166, %v4095, %v4097
    %v4224 = vsel %vm4166, %v4097, %v4099
    %v4225 = vsel %vm4166, %v4101, %v4103
    %v4226 = vsel %vm4166, %v4103, %v4105
    %v4227 = vsel %vm4166, %v4107, %v4109
    %v4228 = vsel %vm4166, %v4109, %v4111
    %v4229 = vsel %vm4166, %v4113, %v4115
    %v4230 = vsel %vm4166, %v4115, %v4117
    %v4231 = vsel %vm4166, %v4119, %v4121
    %v4232 = vsel %vm4166, %v4121, %v4123
    %v4233 = vsel %vm4166, %v4125, %v4127
    %v4234 = vsel %vm4166, %v4127, %v4129
    %v4235 = vsel %vm4166, %v4131, %v4133
    %v4236 = vsel %vm4166, %v4133, %v4135
    %v4237 = vsel %vm4166, %v4137, %v4139
    %v4238 = vsel %vm4166, %v4139, %v4141
    %v4239 = vsel %vm4166, %v4143, %v4145
    %v4240 = vsel %vm4166, %v4145, %v4147
    %v4241 = vsel %vm4166, %v4149, %v4151
    %v4242 = vsel %vm4166, %v4151, %v4153
    %v4243 = vsel %vm4166, %v4155, %v4157
    %v4244 = vsel %vm4166, %v4157, %v4159
    %v4245 = vsel %vm4166, %v4161, %v4163
    %v4246 = vsel %vm4166, %v4163, %v4165
    %v4327 = vmax.f32 %v3686, %v4167
    %v4328 = vmax.f32 %v3687, %v4168
    %v4329 = vmax.f32 %v3689, %v4169
    %v4330 = vmax.f32 %v3690, %v4170
    %v4331 = vmax.f32 %v3692, %v4171
    %v4332 = vmax.f32 %v3693, %v4172
    %v4333 = vmax.f32 %v3695, %v4173
    %v4334 = vmax.f32 %v3696, %v4174
    %v4335 = vmax.f32 %v3698, %v4175
    %v4336 = vmax.f32 %v3699, %v4176
    %v4337 = vmax.f32 %v3701, %v4177
    %v4338 = vmax.f32 %v3702, %v4178
    %v4339 = vmax.f32 %v3704, %v4179
    %v4340 = vmax.f32 %v3705, %v4180
    %v4341 = vmax.f32 %v3707, %v4181
    %v4342 = vmax.f32 %v3708, %v4182
    %v4343 = vmax.f32 %v3710, %v4183
    %v4344 = vmax.f32 %v3711, %v4184
    %v4345 = vmax.f32 %v3713, %v4185
    %v4346 = vmax.f32 %v3714, %v4186
    %v4347 = vmax.f32 %v3716, %v4187
    %v4348 = vmax.f32 %v3717, %v4188
    %v4349 = vmax.f32 %v3719, %v4189
    %v4350 = vmax.f32 %v3720, %v4190
    %v4351 = vmax.f32 %v3722, %v4191
    %v4352 = vmax.f32 %v3723, %v4192
    %v4353 = vmax.f32 %v3725, %v4193
    %v4354 = vmax.f32 %v3726, %v4194
    %v4355 = vmax.f32 %v3728, %v4195
    %v4356 = vmax.f32 %v3729, %v4196
    %v4357 = vmax.f32 %v3731, %v4197
    %v4358 = vmax.f32 %v3732, %v4198
    %v4359 = vmax.f32 %v3734, %v4199
    %v4360 = vmax.f32 %v3735, %v4200
    %v4361 = vmax.f32 %v3737, %v4201
    %v4362 = vmax.f32 %v3738, %v4202
    %v4363 = vmax.f32 %v3740, %v4203
    %v4364 = vmax.f32 %v3741, %v4204
    %v4365 = vmax.f32 %v3743, %v4205
    %v4366 = vmax.f32 %v3744, %v4206
    %v4367 = vmax.f32 %v3746, %v4207
    %v4368 = vmax.f32 %v3747, %v4208
    %v4369 = vmax.f32 %v3749, %v4209
    %v4370 = vmax.f32 %v3750, %v4210
    %v4371 = vmax.f32 %v3752, %v4211
    %v4372 = vmax.f32 %v3753, %v4212
    %v4373 = vmax.f32 %v3755, %v4213
    %v4374 = vmax.f32 %v3756, %v4214
    %v4375 = vmax.f32 %v3758, %v4215
    %v4376 = vmax.f32 %v3759, %v4216
    %v4377 = vmax.f32 %v3761, %v4217
    %v4378 = vmax.f32 %v3762, %v4218
    %v4379 = vmax.f32 %v3764, %v4219
    %v4380 = vmax.f32 %v3765, %v4220
    %v4381 = vmax.f32 %v3767, %v4221
    %v4382 = vmax.f32 %v3768, %v4222
    %v4383 = vmax.f32 %v3770, %v4223
    %v4384 = vmax.f32 %v3771, %v4224
    %v4385 = vmax.f32 %v3773, %v4225
    %v4386 = vmax.f32 %v3774, %v4226
    %v4387 = vmax.f32 %v3776, %v4227
    %v4388 = vmax.f32 %v3777, %v4228
    %v4389 = vmax.f32 %v3779, %v4229
    %v4390 = vmax.f32 %v3780, %v4230
    %v4391 = vmax.f32 %v3782, %v4231
    %v4392 = vmax.f32 %v3783, %v4232
    %v4393 = vmax.f32 %v3785, %v4233
    %v4394 = vmax.f32 %v3786, %v4234
    %v4395 = vmax.f32 %v3788, %v4235
    %v4396 = vmax.f32 %v3789, %v4236
    %v4397 = vmax.f32 %v3791, %v4237
    %v4398 = vmax.f32 %v3792, %v4238
    %v4399 = vmax.f32 %v3794, %v4239
    %v4400 = vmax.f32 %v3795, %v4240
    %v4401 = vmax.f32 %v3797, %v4241
    %v4402 = vmax.f32 %v3798, %v4242
    %v4403 = vmax.f32 %v3800, %v4243
    %v4404 = vmax.f32 %v3801, %v4244
    %v4405 = vmax.f32 %v3803, %v4245
    %v4406 = vmax.f32 %v3804, %v4246
    %v4407 = vld [vmem:[%s2] sm:$0x3]
    %v4409 = vlaneseq
    %v4410 = vshrl.u32 %v4409, 7
    %v4411 = vsub.s32 0, %v4410
    %v4412 = vrot.slane %v4407, %v4411
    %v4413 = vlaneseq
    %v4414 = vshrl.u32 %v4413, 7
    %v4415 = vsub.s32 1, %v4414
    %v4416 = vrot.slane %v4407, %v4415
    %v4419 = vadd.f32 %v4327, %v4412
    %v4420 = vadd.f32 %v4328, %v4416
    %v4421 = vadd.f32 %v4329, %v4412
    %v4422 = vadd.f32 %v4330, %v4416
    %v4423 = vadd.f32 %v4331, %v4412
    %v4424 = vadd.f32 %v4332, %v4416
    %v4425 = vadd.f32 %v4333, %v4412
    %v4426 = vadd.f32 %v4334, %v4416
    %v4427 = vadd.f32 %v4335, %v4412
    %v4428 = vadd.f32 %v4336, %v4416
    %v4429 = vadd.f32 %v4337, %v4412
    %v4430 = vadd.f32 %v4338, %v4416
    %v4431 = vadd.f32 %v4339, %v4412
    %v4432 = vadd.f32 %v4340, %v4416
    %v4433 = vadd.f32 %v4341, %v4412
    %v4434 = vadd.f32 %v4342, %v4416
    %v4435 = vadd.f32 %v4343, %v4412
    %v4436 = vadd.f32 %v4344, %v4416
    %v4437 = vadd.f32 %v4345, %v4412
    %v4438 = vadd.f32 %v4346, %v4416
    %v4439 = vadd.f32 %v4347, %v4412
    %v4440 = vadd.f32 %v4348, %v4416
    %v4441 = vadd.f32 %v4349, %v4412
    %v4442 = vadd.f32 %v4350, %v4416
    %v4443 = vadd.f32 %v4351, %v4412
    %v4444 = vadd.f32 %v4352, %v4416
    %v4445 = vadd.f32 %v4353, %v4412
    %v4446 = vadd.f32 %v4354, %v4416
    %v4447 = vadd.f32 %v4355, %v4412
    %v4448 = vadd.f32 %v4356, %v4416
    %v4449 = vadd.f32 %v4357, %v4412
    %v4450 = vadd.f32 %v4358, %v4416
    %v4451 = vadd.f32 %v4359, %v4412
    %v4452 = vadd.f32 %v4360, %v4416
    %v4453 = vadd.f32 %v4361, %v4412
    %v4454 = vadd.f32 %v4362, %v4416
    %v4455 = vadd.f32 %v4363, %v4412
    %v4456 = vadd.f32 %v4364, %v4416
    %v4457 = vadd.f32 %v4365, %v4412
    %v4458 = vadd.f32 %v4366, %v4416
    %v4459 = vadd.f32 %v4367, %v4412
    %v4460 = vadd.f32 %v4368, %v4416
    %v4461 = vadd.f32 %v4369, %v4412
    %v4462 = vadd.f32 %v4370, %v4416
    %v4463 = vadd.f32 %v4371, %v4412
    %v4464 = vadd.f32 %v4372, %v4416
    %v4465 = vadd.f32 %v4373, %v4412
    %v4466 = vadd.f32 %v4374, %v4416
    %v4467 = vadd.f32 %v4375, %v4412
    %v4468 = vadd.f32 %v4376, %v4416
    %v4469 = vadd.f32 %v4377, %v4412
    %v4470 = vadd.f32 %v4378, %v4416
    %v4471 = vadd.f32 %v4379, %v4412
    %v4472 = vadd.f32 %v4380, %v4416
    %v4473 = vadd.f32 %v4381, %v4412
    %v4474 = vadd.f32 %v4382, %v4416
    %v4475 = vadd.f32 %v4383, %v4412
    %v4476 = vadd.f32 %v4384, %v4416
    %v4477 = vadd.f32 %v4385, %v4412
    %v4478 = vadd.f32 %v4386, %v4416
    %v4479 = vadd.f32 %v4387, %v4412
    %v4480 = vadd.f32 %v4388, %v4416
    %v4481 = vadd.f32 %v4389, %v4412
    %v4482 = vadd.f32 %v4390, %v4416
    %v4483 = vadd.f32 %v4391, %v4412
    %v4484 = vadd.f32 %v4392, %v4416
    %v4485 = vadd.f32 %v4393, %v4412
    %v4486 = vadd.f32 %v4394, %v4416
    %v4487 = vadd.f32 %v4395, %v4412
    %v4488 = vadd.f32 %v4396, %v4416
    %v4489 = vadd.f32 %v4397, %v4412
    %v4490 = vadd.f32 %v4398, %v4416
    %v4491 = vadd.f32 %v4399, %v4412
    %v4492 = vadd.f32 %v4400, %v4416
    %v4493 = vadd.f32 %v4401, %v4412
    %v4494 = vadd.f32 %v4402, %v4416
    %v4495 = vadd.f32 %v4403, %v4412
    %v4496 = vadd.f32 %v4404, %v4416
    %v4497 = vadd.f32 %v4405, %v4412
    %v4498 = vadd.f32 %v4406, %v4416
    %v4499 = vmax.f32 %v4419, 0.0
    %v4500 = vmax.f32 %v4420, 0.0
    %v4501 = vmax.f32 %v4421, 0.0
    %v4502 = vmax.f32 %v4422, 0.0
    %v4503 = vmax.f32 %v4423, 0.0
    %v4504 = vmax.f32 %v4424, 0.0
    %v4505 = vmax.f32 %v4425, 0.0
    %v4506 = vmax.f32 %v4426, 0.0
    %v4507 = vmax.f32 %v4427, 0.0
    %v4508 = vmax.f32 %v4428, 0.0
    %v4509 = vmax.f32 %v4429, 0.0
    %v4510 = vmax.f32 %v4430, 0.0
    %v4511 = vmax.f32 %v4431, 0.0
    %v4512 = vmax.f32 %v4432, 0.0
    %v4513 = vmax.f32 %v4433, 0.0
    %v4514 = vmax.f32 %v4434, 0.0
    %v4515 = vmax.f32 %v4435, 0.0
    %v4516 = vmax.f32 %v4436, 0.0
    %v4517 = vmax.f32 %v4437, 0.0
    %v4518 = vmax.f32 %v4438, 0.0
    %v4519 = vmax.f32 %v4439, 0.0
    %v4520 = vmax.f32 %v4440, 0.0
    %v4521 = vmax.f32 %v4441, 0.0
    %v4522 = vmax.f32 %v4442, 0.0
    %v4523 = vmax.f32 %v4443, 0.0
    %v4524 = vmax.f32 %v4444, 0.0
    %v4525 = vmax.f32 %v4445, 0.0
    %v4526 = vmax.f32 %v4446, 0.0
    %v4527 = vmax.f32 %v4447, 0.0
    %v4528 = vmax.f32 %v4448, 0.0
    %v4529 = vmax.f32 %v4449, 0.0
    %v4530 = vmax.f32 %v4450, 0.0
    %v4531 = vmax.f32 %v4451, 0.0
    %v4532 = vmax.f32 %v4452, 0.0
    %v4533 = vmax.f32 %v4453, 0.0
    %v4534 = vmax.f32 %v4454, 0.0
    %v4535 = vmax.f32 %v4455, 0.0
    %v4536 = vmax.f32 %v4456, 0.0
    %v4537 = vmax.f32 %v4457, 0.0
    %v4538 = vmax.f32 %v4458, 0.0
    %v4539 = vmax.f32 %v4459, 0.0
    %v4540 = vmax.f32 %v4460, 0.0
    %v4541 = vmax.f32 %v4461, 0.0
    %v4542 = vmax.f32 %v4462, 0.0
    %v4543 = vmax.f32 %v4463, 0.0
    %v4544 = vmax.f32 %v4464, 0.0
    %v4545 = vmax.f32 %v4465, 0.0
    %v4546 = vmax.f32 %v4466, 0.0
    %v4547 = vmax.f32 %v4467, 0.0
    %v4548 = vmax.f32 %v4468, 0.0
    %v4549 = vmax.f32 %v4469, 0.0
    %v4550 = vmax.f32 %v4470, 0.0
    %v4551 = vmax.f32 %v4471, 0.0
    %v4552 = vmax.f32 %v4472, 0.0
    %v4553 = vmax.f32 %v4473, 0.0
    %v4554 = vmax.f32 %v4474, 0.0
    %v4555 = vmax.f32 %v4475, 0.0
    %v4556 = vmax.f32 %v4476, 0.0
    %v4557 = vmax.f32 %v4477, 0.0
    %v4558 = vmax.f32 %v4478, 0.0
    %v4559 = vmax.f32 %v4479, 0.0
    %v4560 = vmax.f32 %v4480, 0.0
    %v4561 = vmax.f32 %v4481, 0.0
    %v4562 = vmax.f32 %v4482, 0.0
    %v4563 = vmax.f32 %v4483, 0.0
    %v4564 = vmax.f32 %v4484, 0.0
    %v4565 = vmax.f32 %v4485, 0.0
    %v4566 = vmax.f32 %v4486, 0.0
    %v4567 = vmax.f32 %v4487, 0.0
    %v4568 = vmax.f32 %v4488, 0.0
    %v4569 = vmax.f32 %v4489, 0.0
    %v4570 = vmax.f32 %v4490, 0.0
    %v4571 = vmax.f32 %v4491, 0.0
    %v4572 = vmax.f32 %v4492, 0.0
    %v4573 = vmax.f32 %v4493, 0.0
    %v4574 = vmax.f32 %v4494, 0.0
    %v4575 = vmax.f32 %v4495, 0.0
    %v4576 = vmax.f32 %v4496, 0.0
    %v4577 = vmax.f32 %v4497, 0.0
    %v4578 = vmax.f32 %v4498, 0.0
    %v4579 = vpack.c.bf16 %v4501, %v4499
    %v4580 = vpack.c.bf16 %v4502, %v4500
    %v4581 = vpack.c.bf16 %v4505, %v4503
    %v4582 = vpack.c.bf16 %v4506, %v4504
    %v4583 = vpack.c.bf16 %v4507, %v4507
    %v4584 = vpack.c.bf16 %v4508, %v4508
    %v4585 = vpack.c.bf16 %v4511, %v4509
    %v4586 = vpack.c.bf16 %v4512, %v4510
    %v4587 = vpack.c.bf16 %v4515, %v4513
    %v4588 = vpack.c.bf16 %v4516, %v4514
    %v4589 = vpack.c.bf16 %v4517, %v4517
    %v4590 = vpack.c.bf16 %v4518, %v4518
    %v4591 = vpack.c.bf16 %v4521, %v4519
    %v4592 = vpack.c.bf16 %v4522, %v4520
    %v4593 = vpack.c.bf16 %v4525, %v4523
    %v4594 = vpack.c.bf16 %v4526, %v4524
    %v4595 = vpack.c.bf16 %v4527, %v4527
    %v4596 = vpack.c.bf16 %v4528, %v4528
    %v4597 = vpack.c.bf16 %v4531, %v4529
    %v4598 = vpack.c.bf16 %v4532, %v4530
    %v4599 = vpack.c.bf16 %v4535, %v4533
    %v4600 = vpack.c.bf16 %v4536, %v4534
    %v4601 = vpack.c.bf16 %v4537, %v4537
    %v4602 = vpack.c.bf16 %v4538, %v4538
    %v4603 = vpack.c.bf16 %v4541, %v4539
    %v4604 = vpack.c.bf16 %v4542, %v4540
    %v4605 = vpack.c.bf16 %v4545, %v4543
    %v4606 = vpack.c.bf16 %v4546, %v4544
    %v4607 = vpack.c.bf16 %v4547, %v4547
    %v4608 = vpack.c.bf16 %v4548, %v4548
    %v4609 = vpack.c.bf16 %v4551, %v4549
    %v4610 = vpack.c.bf16 %v4552, %v4550
    %v4611 = vpack.c.bf16 %v4555, %v4553
    %v4612 = vpack.c.bf16 %v4556, %v4554
    %v4613 = vpack.c.bf16 %v4557, %v4557
    %v4614 = vpack.c.bf16 %v4558, %v4558
    %v4615 = vpack.c.bf16 %v4561, %v4559
    %v4616 = vpack.c.bf16 %v4562, %v4560
    %v4617 = vpack.c.bf16 %v4565, %v4563
    %v4618 = vpack.c.bf16 %v4566, %v4564
    %v4619 = vpack.c.bf16 %v4567, %v4567
    %v4620 = vpack.c.bf16 %v4568, %v4568
    %v4621 = vpack.c.bf16 %v4571, %v4569
    %v4622 = vpack.c.bf16 %v4572, %v4570
    %v4623 = vpack.c.bf16 %v4575, %v4573
    %v4624 = vpack.c.bf16 %v4576, %v4574
    %v4625 = vpack.c.bf16 %v4577, %v4577
    %v4626 = vpack.c.bf16 %v4578, %v4578
    %v4675 = vrot.slane %v4579, 1
    %v4676 = vrot.slane %v4581, 1
    %v4677 = vsel %vm540, %v4675, %v4676
    %v4678 = vrot.slane %v4580, 1
    %v4679 = vrot.slane %v4582, 1
    %v4680 = vsel %vm540, %v4678, %v4679
    %v4681 = vrot.slane %v4583, 1
    %v4682 = vsel %vm540, %v4676, %v4681
    %v4683 = vrot.slane %v4584, 1
    %v4684 = vsel %vm540, %v4679, %v4683
    %v4685 = vrot.slane %v4585, 1
    %v4686 = vrot.slane %v4587, 1
    %v4687 = vsel %vm540, %v4685, %v4686
    %v4688 = vrot.slane %v4586, 1
    %v4689 = vrot.slane %v4588, 1
    %v4690 = vsel %vm540, %v4688, %v4689
    %v4691 = vrot.slane %v4589, 1
    %v4692 = vsel %vm540, %v4686, %v4691
    %v4693 = vrot.slane %v4590, 1
    %v4694 = vsel %vm540, %v4689, %v4693
    %v4695 = vrot.slane %v4591, 1
    %v4696 = vrot.slane %v4593, 1
    %v4697 = vsel %vm540, %v4695, %v4696
    %v4698 = vrot.slane %v4592, 1
    %v4699 = vrot.slane %v4594, 1
    %v4700 = vsel %vm540, %v4698, %v4699
    %v4701 = vrot.slane %v4595, 1
    %v4702 = vsel %vm540, %v4696, %v4701
    %v4703 = vrot.slane %v4596, 1
    %v4704 = vsel %vm540, %v4699, %v4703
    %v4705 = vrot.slane %v4597, 1
    %v4706 = vrot.slane %v4599, 1
    %v4707 = vsel %vm540, %v4705, %v4706
    %v4708 = vrot.slane %v4598, 1
    %v4709 = vrot.slane %v4600, 1
    %v4710 = vsel %vm540, %v4708, %v4709
    %v4711 = vrot.slane %v4601, 1
    %v4712 = vsel %vm540, %v4706, %v4711
    %v4713 = vrot.slane %v4602, 1
    %v4714 = vsel %vm540, %v4709, %v4713
    %v4715 = vrot.slane %v4603, 1
    %v4716 = vrot.slane %v4605, 1
    %v4717 = vsel %vm540, %v4715, %v4716
    %v4718 = vrot.slane %v4604, 1
    %v4719 = vrot.slane %v4606, 1
    %v4720 = vsel %vm540, %v4718, %v4719
    %v4721 = vrot.slane %v4607, 1
    %v4722 = vsel %vm540, %v4716, %v4721
    %v4723 = vrot.slane %v4608, 1
    %v4724 = vsel %vm540, %v4719, %v4723
    %v4725 = vrot.slane %v4609, 1
    %v4726 = vrot.slane %v4611, 1
    %v4727 = vsel %vm540, %v4725, %v4726
    %v4728 = vrot.slane %v4610, 1
    %v4729 = vrot.slane %v4612, 1
    %v4730 = vsel %vm540, %v4728, %v4729
    %v4731 = vrot.slane %v4613, 1
    %v4732 = vsel %vm540, %v4726, %v4731
    %v4733 = vrot.slane %v4614, 1
    %v4734 = vsel %vm540, %v4729, %v4733
    %v4735 = vrot.slane %v4615, 1
    %v4736 = vrot.slane %v4617, 1
    %v4737 = vsel %vm540, %v4735, %v4736
    %v4738 = vrot.slane %v4616, 1
    %v4739 = vrot.slane %v4618, 1
    %v4740 = vsel %vm540, %v4738, %v4739
    %v4741 = vrot.slane %v4619, 1
    %v4742 = vsel %vm540, %v4736, %v4741
    %v4743 = vrot.slane %v4620, 1
    %v4744 = vsel %vm540, %v4739, %v4743
    %v4745 = vrot.slane %v4621, 1
    %v4746 = vrot.slane %v4623, 1
    %v4747 = vsel %vm540, %v4745, %v4746
    %v4748 = vrot.slane %v4622, 1
    %v4749 = vrot.slane %v4624, 1
    %v4750 = vsel %vm540, %v4748, %v4749
    %v4751 = vrot.slane %v4625, 1
    %v4752 = vsel %vm540, %v4746, %v4751
    %v4753 = vrot.slane %v4626, 1
    %v4754 = vsel %vm540, %v4749, %v4753
    %v4787 = vrot.slane %v4579, 2
    %v4788 = vrot.slane %v4581, 2
    %v4789 = vsel %vm782, %v4787, %v4788
    %v4790 = vrot.slane %v4580, 2
    %v4791 = vrot.slane %v4582, 2
    %v4792 = vsel %vm782, %v4790, %v4791
    %v4793 = vrot.slane %v4583, 2
    %v4794 = vsel %vm782, %v4788, %v4793
    %v4795 = vrot.slane %v4584, 2
    %v4796 = vsel %vm782, %v4791, %v4795
    %v4797 = vrot.slane %v4585, 2
    %v4798 = vrot.slane %v4587, 2
    %v4799 = vsel %vm782, %v4797, %v4798
    %v4800 = vrot.slane %v4586, 2
    %v4801 = vrot.slane %v4588, 2
    %v4802 = vsel %vm782, %v4800, %v4801
    %v4803 = vrot.slane %v4589, 2
    %v4804 = vsel %vm782, %v4798, %v4803
    %v4805 = vrot.slane %v4590, 2
    %v4806 = vsel %vm782, %v4801, %v4805
    %v4807 = vrot.slane %v4591, 2
    %v4808 = vrot.slane %v4593, 2
    %v4809 = vsel %vm782, %v4807, %v4808
    %v4810 = vrot.slane %v4592, 2
    %v4811 = vrot.slane %v4594, 2
    %v4812 = vsel %vm782, %v4810, %v4811
    %v4813 = vrot.slane %v4595, 2
    %v4814 = vsel %vm782, %v4808, %v4813
    %v4815 = vrot.slane %v4596, 2
    %v4816 = vsel %vm782, %v4811, %v4815
    %v4817 = vrot.slane %v4597, 2
    %v4818 = vrot.slane %v4599, 2
    %v4819 = vsel %vm782, %v4817, %v4818
    %v4820 = vrot.slane %v4598, 2
    %v4821 = vrot.slane %v4600, 2
    %v4822 = vsel %vm782, %v4820, %v4821
    %v4823 = vrot.slane %v4601, 2
    %v4824 = vsel %vm782, %v4818, %v4823
    %v4825 = vrot.slane %v4602, 2
    %v4826 = vsel %vm782, %v4821, %v4825
    %v4827 = vrot.slane %v4603, 2
    %v4828 = vrot.slane %v4605, 2
    %v4829 = vsel %vm782, %v4827, %v4828
    %v4830 = vrot.slane %v4604, 2
    %v4831 = vrot.slane %v4606, 2
    %v4832 = vsel %vm782, %v4830, %v4831
    %v4833 = vrot.slane %v4607, 2
    %v4834 = vsel %vm782, %v4828, %v4833
    %v4835 = vrot.slane %v4608, 2
    %v4836 = vsel %vm782, %v4831, %v4835
    %v4837 = vrot.slane %v4609, 2
    %v4838 = vrot.slane %v4611, 2
    %v4839 = vsel %vm782, %v4837, %v4838
    %v4840 = vrot.slane %v4610, 2
    %v4841 = vrot.slane %v4612, 2
    %v4842 = vsel %vm782, %v4840, %v4841
    %v4843 = vrot.slane %v4613, 2
    %v4844 = vsel %vm782, %v4838, %v4843
    %v4845 = vrot.slane %v4614, 2
    %v4846 = vsel %vm782, %v4841, %v4845
    %v4847 = vrot.slane %v4615, 2
    %v4848 = vrot.slane %v4617, 2
    %v4849 = vsel %vm782, %v4847, %v4848
    %v4850 = vrot.slane %v4616, 2
    %v4851 = vrot.slane %v4618, 2
    %v4852 = vsel %vm782, %v4850, %v4851
    %v4853 = vrot.slane %v4619, 2
    %v4854 = vsel %vm782, %v4848, %v4853
    %v4855 = vrot.slane %v4620, 2
    %v4856 = vsel %vm782, %v4851, %v4855
    %v4857 = vrot.slane %v4621, 2
    %v4858 = vrot.slane %v4623, 2
    %v4859 = vsel %vm782, %v4857, %v4858
    %v4860 = vrot.slane %v4622, 2
    %v4861 = vrot.slane %v4624, 2
    %v4862 = vsel %vm782, %v4860, %v4861
    %v4863 = vrot.slane %v4625, 2
    %v4864 = vsel %vm782, %v4858, %v4863
    %v4865 = vrot.slane %v4626, 2
    %v4866 = vsel %vm782, %v4861, %v4865
    %vm4899 = vcmask 1044480
    %v4900 = vrot.slane %v4579, 3
    %v4901 = vrot.slane %v4581, 3
    %v4902 = vsel %vm4899, %v4900, %v4901
    %v4903 = vrot.slane %v4580, 3
    %v4904 = vrot.slane %v4582, 3
    %v4905 = vsel %vm4899, %v4903, %v4904
    %v4906 = vrot.slane %v4583, 3
    %v4907 = vsel %vm4899, %v4901, %v4906
    %v4908 = vrot.slane %v4584, 3
    %v4909 = vsel %vm4899, %v4904, %v4908
    %v4910 = vrot.slane %v4585, 3
    %v4911 = vrot.slane %v4587, 3
    %v4912 = vsel %vm4899, %v4910, %v4911
    %v4913 = vrot.slane %v4586, 3
    %v4914 = vrot.slane %v4588, 3
    %v4915 = vsel %vm4899, %v4913, %v4914
    %v4916 = vrot.slane %v4589, 3
    %v4917 = vsel %vm4899, %v4911, %v4916
    %v4918 = vrot.slane %v4590, 3
    %v4919 = vsel %vm4899, %v4914, %v4918
    %v4920 = vrot.slane %v4591, 3
    %v4921 = vrot.slane %v4593, 3
    %v4922 = vsel %vm4899, %v4920, %v4921
    %v4923 = vrot.slane %v4592, 3
    %v4924 = vrot.slane %v4594, 3
    %v4925 = vsel %vm4899, %v4923, %v4924
    %v4926 = vrot.slane %v4595, 3
    %v4927 = vsel %vm4899, %v4921, %v4926
    %v4928 = vrot.slane %v4596, 3
    %v4929 = vsel %vm4899, %v4924, %v4928
    %v4930 = vrot.slane %v4597, 3
    %v4931 = vrot.slane %v4599, 3
    %v4932 = vsel %vm4899, %v4930, %v4931
    %v4933 = vrot.slane %v4598, 3
    %v4934 = vrot.slane %v4600, 3
    %v4935 = vsel %vm4899, %v4933, %v4934
    %v4936 = vrot.slane %v4601, 3
    %v4937 = vsel %vm4899, %v4931, %v4936
    %v4938 = vrot.slane %v4602, 3
    %v4939 = vsel %vm4899, %v4934, %v4938
    %v4940 = vrot.slane %v4603, 3
    %v4941 = vrot.slane %v4605, 3
    %v4942 = vsel %vm4899, %v4940, %v4941
    %v4943 = vrot.slane %v4604, 3
    %v4944 = vrot.slane %v4606, 3
    %v4945 = vsel %vm4899, %v4943, %v4944
    %v4946 = vrot.slane %v4607, 3
    %v4947 = vsel %vm4899, %v4941, %v4946
    %v4948 = vrot.slane %v4608, 3
    %v4949 = vsel %vm4899, %v4944, %v4948
    %v4950 = vrot.slane %v4609, 3
    %v4951 = vrot.slane %v4611, 3
    %v4952 = vsel %vm4899, %v4950, %v4951
    %v4953 = vrot.slane %v4610, 3
    %v4954 = vrot.slane %v4612, 3
    %v4955 = vsel %vm4899, %v4953, %v4954
    %v4956 = vrot.slane %v4613, 3
    %v4957 = vsel %vm4899, %v4951, %v4956
    %v4958 = vrot.slane %v4614, 3
    %v4959 = vsel %vm4899, %v4954, %v4958
    %v4960 = vrot.slane %v4615, 3
    %v4961 = vrot.slane %v4617, 3
    %v4962 = vsel %vm4899, %v4960, %v4961
    %v4963 = vrot.slane %v4616, 3
    %v4964 = vrot.slane %v4618, 3
    %v4965 = vsel %vm4899, %v4963, %v4964
    %v4966 = vrot.slane %v4619, 3
    %v4967 = vsel %vm4899, %v4961, %v4966
    %v4968 = vrot.slane %v4620, 3
    %v4969 = vsel %vm4899, %v4964, %v4968
    %v4970 = vrot.slane %v4621, 3
    %v4971 = vrot.slane %v4623, 3
    %v4972 = vsel %vm4899, %v4970, %v4971
    %v4973 = vrot.slane %v4622, 3
    %v4974 = vrot.slane %v4624, 3
    %v4975 = vsel %vm4899, %v4973, %v4974
    %v4976 = vrot.slane %v4625, 3
    %v4977 = vsel %vm4899, %v4971, %v4976
    %v4978 = vrot.slane %v4626, 3
    %v4979 = vsel %vm4899, %v4974, %v4978
    %vm5012 = vcmask 1043456
    %v5013 = vrot.slane %v4579, 4
    %v5014 = vrot.slane %v4581, 4
    %v5015 = vsel %vm5012, %v5013, %v5014
    %v5016 = vrot.slane %v4580, 4
    %v5017 = vrot.slane %v4582, 4
    %v5018 = vsel %vm5012, %v5016, %v5017
    %v5019 = vrot.slane %v4583, 4
    %v5020 = vsel %vm5012, %v5014, %v5019
    %v5021 = vrot.slane %v4584, 4
    %v5022 = vsel %vm5012, %v5017, %v5021
    %v5023 = vrot.slane %v4585, 4
    %v5024 = vrot.slane %v4587, 4
    %v5025 = vsel %vm5012, %v5023, %v5024
    %v5026 = vrot.slane %v4586, 4
    %v5027 = vrot.slane %v4588, 4
    %v5028 = vsel %vm5012, %v5026, %v5027
    %v5029 = vrot.slane %v4589, 4
    %v5030 = vsel %vm5012, %v5024, %v5029
    %v5031 = vrot.slane %v4590, 4
    %v5032 = vsel %vm5012, %v5027, %v5031
    %v5033 = vrot.slane %v4591, 4
    %v5034 = vrot.slane %v4593, 4
    %v5035 = vsel %vm5012, %v5033, %v5034
    %v5036 = vrot.slane %v4592, 4
    %v5037 = vrot.slane %v4594, 4
    %v5038 = vsel %vm5012, %v5036, %v5037
    %v5039 = vrot.slane %v4595, 4
    %v5040 = vsel %vm5012, %v5034, %v5039
    %v5041 = vrot.slane %v4596, 4
    %v5042 = vsel %vm5012, %v5037, %v5041
    %v5043 = vrot.slane %v4597, 4
    %v5044 = vrot.slane %v4599, 4
    %v5045 = vsel %vm5012, %v5043, %v5044
    %v5046 = vrot.slane %v4598, 4
    %v5047 = vrot.slane %v4600, 4
    %v5048 = vsel %vm5012, %v5046, %v5047
    %v5049 = vrot.slane %v4601, 4
    %v5050 = vsel %vm5012, %v5044, %v5049
    %v5051 = vrot.slane %v4602, 4
    %v5052 = vsel %vm5012, %v5047, %v5051
    %v5053 = vrot.slane %v4603, 4
    %v5054 = vrot.slane %v4605, 4
    %v5055 = vsel %vm5012, %v5053, %v5054
    %v5056 = vrot.slane %v4604, 4
    %v5057 = vrot.slane %v4606, 4
    %v5058 = vsel %vm5012, %v5056, %v5057
    %v5059 = vrot.slane %v4607, 4
    %v5060 = vsel %vm5012, %v5054, %v5059
    %v5061 = vrot.slane %v4608, 4
    %v5062 = vsel %vm5012, %v5057, %v5061
    %v5063 = vrot.slane %v4609, 4
    %v5064 = vrot.slane %v4611, 4
    %v5065 = vsel %vm5012, %v5063, %v5064
    %v5066 = vrot.slane %v4610, 4
    %v5067 = vrot.slane %v4612, 4
    %v5068 = vsel %vm5012, %v5066, %v5067
    %v5069 = vrot.slane %v4613, 4
    %v5070 = vsel %vm5012, %v5064, %v5069
    %v5071 = vrot.slane %v4614, 4
    %v5072 = vsel %vm5012, %v5067, %v5071
    %v5073 = vrot.slane %v4615, 4
    %v5074 = vrot.slane %v4617, 4
    %v5075 = vsel %vm5012, %v5073, %v5074
    %v5076 = vrot.slane %v4616, 4
    %v5077 = vrot.slane %v4618, 4
    %v5078 = vsel %vm5012, %v5076, %v5077
    %v5079 = vrot.slane %v4619, 4
    %v5080 = vsel %vm5012, %v5074, %v5079
    %v5081 = vrot.slane %v4620, 4
    %v5082 = vsel %vm5012, %v5077, %v5081
    %v5083 = vrot.slane %v4621, 4
    %v5084 = vrot.slane %v4623, 4
    %v5085 = vsel %vm5012, %v5083, %v5084
    %v5086 = vrot.slane %v4622, 4
    %v5087 = vrot.slane %v4624, 4
    %v5088 = vsel %vm5012, %v5086, %v5087
    %v5089 = vrot.slane %v4625, 4
    %v5090 = vsel %vm5012, %v5084, %v5089
    %v5091 = vrot.slane %v4626, 4
    %v5092 = vsel %vm5012, %v5087, %v5091
    %v5125 = vld [vmem:[#allocation4] sm:$0xff]
    %v5126 = vld [vmem:[#allocation4 + $0x8] sm:$0xff]
    %v5127 = vld [vmem:[#allocation4 + $0x10] sm:$0xff]
    %v5128 = vld [vmem:[#allocation4 + $0x18] sm:$0xff]
    %v5129 = vld [vmem:[#allocation4 + $0x20] sm:$0xff]
    %v5130 = vld [vmem:[#allocation4 + $0x28] sm:$0xff]
    %v5131 = vld [vmem:[#allocation4 + $0x30] sm:$0xff]
    %v5132 = vld [vmem:[#allocation4 + $0x38] sm:$0xff]
    %v5133 = vld [vmem:[#allocation4 + $0x40] sm:$0xff]
    %v5134 = vld [vmem:[#allocation4 + $0x48] sm:$0xff]
    %v5135 = vld [vmem:[#allocation4 + $0x50] sm:$0xff]
    %v5136 = vld [vmem:[#allocation4 + $0x58] sm:$0xff]
    %v5137 = vld [vmem:[#allocation4 + $0x60] sm:$0xff]
    %v5138 = vld [vmem:[#allocation4 + $0x68] sm:$0xff]
    %v5139 = vld [vmem:[#allocation4 + $0x70] sm:$0xff]
    %v5140 = vld [vmem:[#allocation4 + $0x78] sm:$0xff]
    %v5141 = vld [vmem:[#allocation4 + $0x80] sm:$0xff]
    %v5142 = vld [vmem:[#allocation4 + $0x88] sm:$0xff]
    %v5143 = vld [vmem:[#allocation4 + $0x90] sm:$0xff]
    %v5144 = vld [vmem:[#allocation4 + $0x98] sm:$0xff]
    %v5145 = vld [vmem:[#allocation4 + $0xa0] sm:$0xff]
    %v5146 = vld [vmem:[#allocation4 + $0xa8] sm:$0xff]
    %v5147 = vld [vmem:[#allocation4 + $0xb0] sm:$0xff]
    %v5148 = vld [vmem:[#allocation4 + $0xb8] sm:$0xff]
    %v5149 = vld [vmem:[#allocation4 + $0xc0] sm:$0xff]
    %v5150 = vld [vmem:[#allocation4 + $0xc8] sm:$0xff]
    %v5151 = vld [vmem:[#allocation4 + $0xd0] sm:$0xff]
    %v5152 = vld [vmem:[#allocation4 + $0xd8] sm:$0xff]
    %v5153 = vld [vmem:[#allocation4 + $0xe0] sm:$0xff]
    %v5154 = vld [vmem:[#allocation4 + $0xe8] sm:$0xff]
    %v5155 = vld [vmem:[#allocation4 + $0xf0] sm:$0xff]
    %v5156 = vld [vmem:[#allocation4 + $0xf8] sm:$0xff]
    %v5157 = vld [vmem:[#allocation4 + $0x100] sm:$0xff]
    %v5158 = vld [vmem:[#allocation4 + $0x108] sm:$0xff]
    %v5159 = vld [vmem:[#allocation4 + $0x110] sm:$0xff]
    %v5160 = vld [vmem:[#allocation4 + $0x118] sm:$0xff]
    %v5161 = vld [vmem:[#allocation4 + $0x120] sm:$0xff]
    %v5162 = vld [vmem:[#allocation4 + $0x128] sm:$0xff]
    %v5163 = vld [vmem:[#allocation4 + $0x130] sm:$0xff]
    %v5164 = vld [vmem:[#allocation4 + $0x138] sm:$0xff]
    %v5165 = vld [vmem:[#allocation4 + $0x140] sm:$0xff]
    %v5166 = vld [vmem:[#allocation4 + $0x148] sm:$0xff]
    %v5167 = vld [vmem:[#allocation4 + $0x150] sm:$0xff]
    %v5168 = vld [vmem:[#allocation4 + $0x158] sm:$0xff]
    %v5169 = vld [vmem:[#allocation4 + $0x160] sm:$0xff]
    %v5170 = vld [vmem:[#allocation4 + $0x168] sm:$0xff]
    %v5171 = vld [vmem:[#allocation4 + $0x170] sm:$0xff]
    %v5172 = vld [vmem:[#allocation4 + $0x178] sm:$0xff]
    %v5173 = vld [vmem:[#allocation4 + $0x180] sm:$0xff]
    %v5174 = vld [vmem:[#allocation4 + $0x188] sm:$0xff]
    %v5175 = vld [vmem:[#allocation4 + $0x190] sm:$0xff]
    %v5176 = vld [vmem:[#allocation4 + $0x198] sm:$0xff]
    %v5177 = vld [vmem:[#allocation4 + $0x1a0] sm:$0xff]
    %v5178 = vld [vmem:[#allocation4 + $0x1a8] sm:$0xff]
    %v5179 = vld [vmem:[#allocation4 + $0x1b0] sm:$0xff]
    %v5180 = vld [vmem:[#allocation4 + $0x1b8] sm:$0xff]
    %v5181 = vld [vmem:[#allocation4 + $0x1c0] sm:$0xff]
    %v5182 = vld [vmem:[#allocation4 + $0x1c8] sm:$0xff]
    %v5183 = vld [vmem:[#allocation4 + $0x1d0] sm:$0xff]
    %v5184 = vld [vmem:[#allocation4 + $0x1d8] sm:$0xff]
    %v5185 = vld [vmem:[#allocation4 + $0x1e0] sm:$0xff]
    %v5186 = vld [vmem:[#allocation4 + $0x1e8] sm:$0xff]
    %v5187 = vld [vmem:[#allocation4 + $0x1f0] sm:$0xff]
    %v5188 = vld [vmem:[#allocation4 + $0x1f8] sm:$0xff]
    %v5189 = vld [vmem:[#allocation4 + $0x200] sm:$0xff]
    %v5190 = vld [vmem:[#allocation4 + $0x208] sm:$0xff]
    %v5191 = vld [vmem:[#allocation4 + $0x210] sm:$0xff]
    %v5192 = vld [vmem:[#allocation4 + $0x218] sm:$0xff]
    %v5193 = vld [vmem:[#allocation4 + $0x220] sm:$0xff]
    %v5194 = vld [vmem:[#allocation4 + $0x228] sm:$0xff]
    %v5195 = vld [vmem:[#allocation4 + $0x230] sm:$0xff]
    %v5196 = vld [vmem:[#allocation4 + $0x238] sm:$0xff]
    %v5197 = vld [vmem:[#allocation4 + $0x240] sm:$0xff]
    %v5198 = vld [vmem:[#allocation4 + $0x248] sm:$0xff]
    %v5199 = vld [vmem:[#allocation4 + $0x250] sm:$0xff]
    %v5200 = vld [vmem:[#allocation4 + $0x258] sm:$0xff]
    %v5201 = vld [vmem:[#allocation4 + $0x260] sm:$0xff]
    %v5202 = vld [vmem:[#allocation4 + $0x268] sm:$0xff]
    %v5203 = vld [vmem:[#allocation4 + $0x270] sm:$0xff]
    %v5204 = vld [vmem:[#allocation4 + $0x278] sm:$0xff]
    %v5205 = vld [vmem:[#allocation4 + $0x280] sm:$0xff]
    %v5206 = vld [vmem:[#allocation4 + $0x288] sm:$0xff]
    %v5207 = vld [vmem:[#allocation4 + $0x290] sm:$0xff]
    %v5208 = vld [vmem:[#allocation4 + $0x298] sm:$0xff]
    %v5209 = vld [vmem:[#allocation4 + $0x2a0] sm:$0xff]
    %v5210 = vld [vmem:[#allocation4 + $0x2a8] sm:$0xff]
    %v5211 = vld [vmem:[#allocation4 + $0x2b0] sm:$0xff]
    %v5212 = vld [vmem:[#allocation4 + $0x2b8] sm:$0xff]
    %v5213 = vld [vmem:[#allocation4 + $0x2c0] sm:$0xff]
    %v5214 = vld [vmem:[#allocation4 + $0x2c8] sm:$0xff]
    %v5215 = vld [vmem:[#allocation4 + $0x2d0] sm:$0xff]
    %v5216 = vld [vmem:[#allocation4 + $0x2d8] sm:$0xff]
    %v5217 = vld [vmem:[#allocation4 + $0x2e0] sm:$0xff]
    %v5218 = vld [vmem:[#allocation4 + $0x2e8] sm:$0xff]
    %v5219 = vld [vmem:[#allocation4 + $0x2f0] sm:$0xff]
    %v5220 = vld [vmem:[#allocation4 + $0x2f8] sm:$0xff]
    %v5221 = vld [vmem:[#allocation4 + $0x300] sm:$0xff]
    %v5222 = vld [vmem:[#allocation4 + $0x308] sm:$0xff]
    %v5223 = vld [vmem:[#allocation4 + $0x310] sm:$0xff]
    %v5224 = vld [vmem:[#allocation4 + $0x318] sm:$0xff]
    %v5225 = vld [vmem:[#allocation4 + $0x320] sm:$0xff]
    %v5226 = vld [vmem:[#allocation4 + $0x328] sm:$0xff]
    %v5227 = vld [vmem:[#allocation4 + $0x330] sm:$0xff]
    %v5228 = vld [vmem:[#allocation4 + $0x338] sm:$0xff]
    %v5229 = vld [vmem:[#allocation4 + $0x340] sm:$0xff]
    %v5230 = vld [vmem:[#allocation4 + $0x348] sm:$0xff]
    %v5231 = vld [vmem:[#allocation4 + $0x350] sm:$0xff]
    %v5232 = vld [vmem:[#allocation4 + $0x358] sm:$0xff]
    %v5233 = vld [vmem:[#allocation4 + $0x360] sm:$0xff]
    %v5234 = vld [vmem:[#allocation4 + $0x368] sm:$0xff]
    %v5235 = vld [vmem:[#allocation4 + $0x370] sm:$0xff]
    %v5236 = vld [vmem:[#allocation4 + $0x378] sm:$0xff]
    %v5237 = vld [vmem:[#allocation4 + $0x380] sm:$0xff]
    %v5238 = vld [vmem:[#allocation4 + $0x388] sm:$0xff]
    %v5239 = vld [vmem:[#allocation4 + $0x390] sm:$0xff]
    %v5240 = vld [vmem:[#allocation4 + $0x398] sm:$0xff]
    %v5241 = vld [vmem:[#allocation4 + $0x3a0] sm:$0xff]
    %v5242 = vld [vmem:[#allocation4 + $0x3a8] sm:$0xff]
    %v5243 = vld [vmem:[#allocation4 + $0x3b0] sm:$0xff]
    %v5244 = vld [vmem:[#allocation4 + $0x3b8] sm:$0xff]
    %v5245 = vld [vmem:[#allocation4 + $0x3c0] sm:$0xff]
    %v5246 = vld [vmem:[#allocation4 + $0x3c8] sm:$0xff]
    %v5247 = vld [vmem:[#allocation4 + $0x3d0] sm:$0xff]
    %v5248 = vld [vmem:[#allocation4 + $0x3d8] sm:$0xff]
    %v5249 = vld [vmem:[#allocation4 + $0x3e0] sm:$0xff]
    %v5250 = vld [vmem:[#allocation4 + $0x3e8] sm:$0xff]
    %v5251 = vld [vmem:[#allocation4 + $0x3f0] sm:$0xff]
    %v5252 = vld [vmem:[#allocation4 + $0x3f8] sm:$0xff]
    %v5253 = vld [vmem:[#allocation4 + $0x400] sm:$0xff]
    %v5254 = vld [vmem:[#allocation4 + $0x408] sm:$0xff]
    %v5255 = vld [vmem:[#allocation4 + $0x410] sm:$0xff]
    %v5256 = vld [vmem:[#allocation4 + $0x418] sm:$0xff]
    %v5257 = vld [vmem:[#allocation4 + $0x420] sm:$0xff]
    %v5258 = vld [vmem:[#allocation4 + $0x428] sm:$0xff]
    %v5259 = vld [vmem:[#allocation4 + $0x430] sm:$0xff]
    %v5260 = vld [vmem:[#allocation4 + $0x438] sm:$0xff]
    %v5261 = vld [vmem:[#allocation4 + $0x440] sm:$0xff]
    %v5262 = vld [vmem:[#allocation4 + $0x448] sm:$0xff]
    %v5263 = vld [vmem:[#allocation4 + $0x450] sm:$0xff]
    %v5264 = vld [vmem:[#allocation4 + $0x458] sm:$0xff]
    %v5265 = vld [vmem:[#allocation4 + $0x460] sm:$0xff]
    %v5266 = vld [vmem:[#allocation4 + $0x468] sm:$0xff]
    %v5267 = vld [vmem:[#allocation4 + $0x470] sm:$0xff]
    %v5268 = vld [vmem:[#allocation4 + $0x478] sm:$0xff]
    %v5269 = vld [vmem:[#allocation4 + $0x480] sm:$0xff]
    %v5270 = vld [vmem:[#allocation4 + $0x488] sm:$0xff]
    %v5271 = vld [vmem:[#allocation4 + $0x490] sm:$0xff]
    %v5272 = vld [vmem:[#allocation4 + $0x498] sm:$0xff]
    %v5273 = vld [vmem:[#allocation4 + $0x4a0] sm:$0xff]
    %v5274 = vld [vmem:[#allocation4 + $0x4a8] sm:$0xff]
    %v5275 = vld [vmem:[#allocation4 + $0x4b0] sm:$0xff]
    %v5276 = vld [vmem:[#allocation4 + $0x4b8] sm:$0xff]
    %v5277 = vld [vmem:[#allocation4 + $0x4c0] sm:$0xff]
    %v5278 = vld [vmem:[#allocation4 + $0x4c8] sm:$0xff]
    %v5279 = vld [vmem:[#allocation4 + $0x4d0] sm:$0xff]
    %v5280 = vld [vmem:[#allocation4 + $0x4d8] sm:$0xff]
    %v5281 = vld [vmem:[#allocation4 + $0x4e0] sm:$0xff]
    %v5282 = vld [vmem:[#allocation4 + $0x4e8] sm:$0xff]
    %v5283 = vld [vmem:[#allocation4 + $0x4f0] sm:$0xff]
    %v5284 = vld [vmem:[#allocation4 + $0x4f8] sm:$0xff]
    %v5445 = vunpack.c.l.b16 %v5125
    %v5446 = vunpack.c.h.b16 %v5125
    %v5447 = vunpack.c.l.b16 %v5126
    %v5448 = vunpack.c.h.b16 %v5126
    %v5449 = vunpack.c.l.b16 %v5127
    %v5450 = vunpack.c.h.b16 %v5127
    %v5451 = vunpack.c.l.b16 %v5128
    %v5452 = vunpack.c.h.b16 %v5128
    %v5453 = vunpack.c.l.b16 %v5129
    %v5454 = vunpack.c.h.b16 %v5129
    %v5455 = vunpack.c.l.b16 %v5130
    %v5456 = vunpack.c.h.b16 %v5130
    %v5457 = vunpack.c.l.b16 %v5131
    %v5458 = vunpack.c.h.b16 %v5131
    %v5459 = vunpack.c.l.b16 %v5132
    %v5460 = vunpack.c.h.b16 %v5132
    %v5461 = vunpack.c.l.b16 %v5133
    %v5462 = vunpack.c.h.b16 %v5133
    %v5463 = vunpack.c.l.b16 %v5134
    %v5464 = vunpack.c.h.b16 %v5134
    %v5465 = vunpack.c.l.b16 %v5135
    %v5466 = vunpack.c.h.b16 %v5135
    %v5467 = vunpack.c.l.b16 %v5136
    %v5468 = vunpack.c.h.b16 %v5136
    %v5469 = vunpack.c.l.b16 %v5137
    %v5470 = vunpack.c.h.b16 %v5137
    %v5471 = vunpack.c.l.b16 %v5138
    %v5472 = vunpack.c.h.b16 %v5138
    %v5473 = vunpack.c.l.b16 %v5139
    %v5474 = vunpack.c.h.b16 %v5139
    %v5475 = vunpack.c.l.b16 %v5140
    %v5476 = vunpack.c.h.b16 %v5140
    %v5477 = vunpack.c.l.b16 %v5141
    %v5478 = vunpack.c.h.b16 %v5141
    %v5479 = vunpack.c.l.b16 %v5142
    %v5480 = vunpack.c.h.b16 %v5142
    %v5481 = vunpack.c.l.b16 %v5143
    %v5482 = vunpack.c.h.b16 %v5143
    %v5483 = vunpack.c.l.b16 %v5144
    %v5484 = vunpack.c.h.b16 %v5144
    %v5485 = vunpack.c.l.b16 %v5145
    %v5486 = vunpack.c.h.b16 %v5145
    %v5487 = vunpack.c.l.b16 %v5146
    %v5488 = vunpack.c.h.b16 %v5146
    %v5489 = vunpack.c.l.b16 %v5147
    %v5490 = vunpack.c.h.b16 %v5147
    %v5491 = vunpack.c.l.b16 %v5148
    %v5492 = vunpack.c.h.b16 %v5148
    %v5493 = vunpack.c.l.b16 %v5149
    %v5494 = vunpack.c.h.b16 %v5149
    %v5495 = vunpack.c.l.b16 %v5150
    %v5496 = vunpack.c.h.b16 %v5150
    %v5497 = vunpack.c.l.b16 %v5151
    %v5498 = vunpack.c.h.b16 %v5151
    %v5499 = vunpack.c.l.b16 %v5152
    %v5500 = vunpack.c.h.b16 %v5152
    %v5501 = vunpack.c.l.b16 %v5153
    %v5502 = vunpack.c.h.b16 %v5153
    %v5503 = vunpack.c.l.b16 %v5154
    %v5504 = vunpack.c.h.b16 %v5154
    %v5505 = vunpack.c.l.b16 %v5155
    %v5506 = vunpack.c.h.b16 %v5155
    %v5507 = vunpack.c.l.b16 %v5156
    %v5508 = vunpack.c.h.b16 %v5156
    %v5509 = vunpack.c.l.b16 %v5157
    %v5510 = vunpack.c.h.b16 %v5157
    %v5511 = vunpack.c.l.b16 %v5158
    %v5512 = vunpack.c.h.b16 %v5158
    %v5513 = vunpack.c.l.b16 %v5159
    %v5514 = vunpack.c.h.b16 %v5159
    %v5515 = vunpack.c.l.b16 %v5160
    %v5516 = vunpack.c.h.b16 %v5160
    %v5517 = vunpack.c.l.b16 %v5161
    %v5518 = vunpack.c.h.b16 %v5161
    %v5519 = vunpack.c.l.b16 %v5162
    %v5520 = vunpack.c.h.b16 %v5162
    %v5521 = vunpack.c.l.b16 %v5163
    %v5522 = vunpack.c.h.b16 %v5163
    %v5523 = vunpack.c.l.b16 %v5164
    %v5524 = vunpack.c.h.b16 %v5164
    %v5525 = vunpack.c.l.b16 %v5165
    %v5526 = vunpack.c.h.b16 %v5165
    %v5527 = vunpack.c.l.b16 %v5166
    %v5528 = vunpack.c.h.b16 %v5166
    %v5529 = vunpack.c.l.b16 %v5167
    %v5530 = vunpack.c.h.b16 %v5167
    %v5531 = vunpack.c.l.b16 %v5168
    %v5532 = vunpack.c.h.b16 %v5168
    %v5533 = vunpack.c.l.b16 %v5169
    %v5534 = vunpack.c.h.b16 %v5169
    %v5535 = vunpack.c.l.b16 %v5170
    %v5536 = vunpack.c.h.b16 %v5170
    %v5537 = vunpack.c.l.b16 %v5171
    %v5538 = vunpack.c.h.b16 %v5171
    %v5539 = vunpack.c.l.b16 %v5172
    %v5540 = vunpack.c.h.b16 %v5172
    %v5541 = vunpack.c.l.b16 %v5173
    %v5542 = vunpack.c.h.b16 %v5173
    %v5543 = vunpack.c.l.b16 %v5174
    %v5544 = vunpack.c.h.b16 %v5174
    %v5545 = vunpack.c.l.b16 %v5175
    %v5546 = vunpack.c.h.b16 %v5175
    %v5547 = vunpack.c.l.b16 %v5176
    %v5548 = vunpack.c.h.b16 %v5176
    %v5549 = vunpack.c.l.b16 %v5177
    %v5550 = vunpack.c.h.b16 %v5177
    %v5551 = vunpack.c.l.b16 %v5178
    %v5552 = vunpack.c.h.b16 %v5178
    %v5553 = vunpack.c.l.b16 %v5179
    %v5554 = vunpack.c.h.b16 %v5179
    %v5555 = vunpack.c.l.b16 %v5180
    %v5556 = vunpack.c.h.b16 %v5180
    %v5557 = vunpack.c.l.b16 %v5181
    %v5558 = vunpack.c.h.b16 %v5181
    %v5559 = vunpack.c.l.b16 %v5182
    %v5560 = vunpack.c.h.b16 %v5182
    %v5561 = vunpack.c.l.b16 %v5183
    %v5562 = vunpack.c.h.b16 %v5183
    %v5563 = vunpack.c.l.b16 %v5184
    %v5564 = vunpack.c.h.b16 %v5184
    %v5565 = vunpack.c.l.b16 %v5185
    %v5566 = vunpack.c.h.b16 %v5185
    %v5567 = vunpack.c.l.b16 %v5186
    %v5568 = vunpack.c.h.b16 %v5186
    %v5569 = vunpack.c.l.b16 %v5187
    %v5570 = vunpack.c.h.b16 %v5187
    %v5571 = vunpack.c.l.b16 %v5188
    %v5572 = vunpack.c.h.b16 %v5188
    %v5573 = vunpack.c.l.b16 %v5189
    %v5574 = vunpack.c.h.b16 %v5189
    %v5575 = vunpack.c.l.b16 %v5190
    %v5576 = vunpack.c.h.b16 %v5190
    %v5577 = vunpack.c.l.b16 %v5191
    %v5578 = vunpack.c.h.b16 %v5191
    %v5579 = vunpack.c.l.b16 %v5192
    %v5580 = vunpack.c.h.b16 %v5192
    %v5581 = vunpack.c.l.b16 %v5193
    %v5582 = vunpack.c.h.b16 %v5193
    %v5583 = vunpack.c.l.b16 %v5194
    %v5584 = vunpack.c.h.b16 %v5194
    %v5585 = vunpack.c.l.b16 %v5195
    %v5586 = vunpack.c.h.b16 %v5195
    %v5587 = vunpack.c.l.b16 %v5196
    %v5588 = vunpack.c.h.b16 %v5196
    %v5589 = vunpack.c.l.b16 %v5197
    %v5590 = vunpack.c.h.b16 %v5197
    %v5591 = vunpack.c.l.b16 %v5198
    %v5592 = vunpack.c.h.b16 %v5198
    %v5593 = vunpack.c.l.b16 %v5199
    %v5594 = vunpack.c.h.b16 %v5199
    %v5595 = vunpack.c.l.b16 %v5200
    %v5596 = vunpack.c.h.b16 %v5200
    %v5597 = vunpack.c.l.b16 %v5201
    %v5598 = vunpack.c.h.b16 %v5201
    %v5599 = vunpack.c.l.b16 %v5202
    %v5600 = vunpack.c.h.b16 %v5202
    %v5601 = vunpack.c.l.b16 %v5203
    %v5602 = vunpack.c.h.b16 %v5203
    %v5603 = vunpack.c.l.b16 %v5204
    %v5604 = vunpack.c.h.b16 %v5204
    %v5605 = vunpack.c.l.b16 %v5205
    %v5606 = vunpack.c.h.b16 %v5205
    %v5607 = vunpack.c.l.b16 %v5206
    %v5608 = vunpack.c.h.b16 %v5206
    %v5609 = vunpack.c.l.b16 %v5207
    %v5610 = vunpack.c.h.b16 %v5207
    %v5611 = vunpack.c.l.b16 %v5208
    %v5612 = vunpack.c.h.b16 %v5208
    %v5613 = vunpack.c.l.b16 %v5209
    %v5614 = vunpack.c.h.b16 %v5209
    %v5615 = vunpack.c.l.b16 %v5210
    %v5616 = vunpack.c.h.b16 %v5210
    %v5617 = vunpack.c.l.b16 %v5211
    %v5618 = vunpack.c.h.b16 %v5211
    %v5619 = vunpack.c.l.b16 %v5212
    %v5620 = vunpack.c.h.b16 %v5212
    %v5621 = vunpack.c.l.b16 %v5213
    %v5622 = vunpack.c.h.b16 %v5213
    %v5623 = vunpack.c.l.b16 %v5214
    %v5624 = vunpack.c.h.b16 %v5214
    %v5625 = vunpack.c.l.b16 %v5215
    %v5626 = vunpack.c.h.b16 %v5215
    %v5627 = vunpack.c.l.b16 %v5216
    %v5628 = vunpack.c.h.b16 %v5216
    %v5629 = vunpack.c.l.b16 %v5217
    %v5630 = vunpack.c.h.b16 %v5217
    %v5631 = vunpack.c.l.b16 %v5218
    %v5632 = vunpack.c.h.b16 %v5218
    %v5633 = vunpack.c.l.b16 %v5219
    %v5634 = vunpack.c.h.b16 %v5219
    %v5635 = vunpack.c.l.b16 %v5220
    %v5636 = vunpack.c.h.b16 %v5220
    %v5637 = vunpack.c.l.b16 %v5221
    %v5638 = vunpack.c.h.b16 %v5221
    %v5639 = vunpack.c.l.b16 %v5222
    %v5640 = vunpack.c.h.b16 %v5222
    %v5641 = vunpack.c.l.b16 %v5223
    %v5642 = vunpack.c.h.b16 %v5223
    %v5643 = vunpack.c.l.b16 %v5224
    %v5644 = vunpack.c.h.b16 %v5224
    %v5645 = vunpack.c.l.b16 %v5225
    %v5646 = vunpack.c.h.b16 %v5225
    %v5647 = vunpack.c.l.b16 %v5226
    %v5648 = vunpack.c.h.b16 %v5226
    %v5649 = vunpack.c.l.b16 %v5227
    %v5650 = vunpack.c.h.b16 %v5227
    %v5651 = vunpack.c.l.b16 %v5228
    %v5652 = vunpack.c.h.b16 %v5228
    %v5653 = vunpack.c.l.b16 %v5229
    %v5654 = vunpack.c.h.b16 %v5229
    %v5655 = vunpack.c.l.b16 %v5230
    %v5656 = vunpack.c.h.b16 %v5230
    %v5657 = vunpack.c.l.b16 %v5231
    %v5658 = vunpack.c.h.b16 %v5231
    %v5659 = vunpack.c.l.b16 %v5232
    %v5660 = vunpack.c.h.b16 %v5232
    %v5661 = vunpack.c.l.b16 %v5233
    %v5662 = vunpack.c.h.b16 %v5233
    %v5663 = vunpack.c.l.b16 %v5234
    %v5664 = vunpack.c.h.b16 %v5234
    %v5665 = vunpack.c.l.b16 %v5235
    %v5666 = vunpack.c.h.b16 %v5235
    %v5667 = vunpack.c.l.b16 %v5236
    %v5668 = vunpack.c.h.b16 %v5236
    %v5669 = vunpack.c.l.b16 %v5237
    %v5670 = vunpack.c.h.b16 %v5237
    %v5671 = vunpack.c.l.b16 %v5238
    %v5672 = vunpack.c.h.b16 %v5238
    %v5673 = vunpack.c.l.b16 %v5239
    %v5674 = vunpack.c.h.b16 %v5239
    %v5675 = vunpack.c.l.b16 %v5240
    %v5676 = vunpack.c.h.b16 %v5240
    %v5677 = vunpack.c.l.b16 %v5241
    %v5678 = vunpack.c.h.b16 %v5241
    %v5679 = vunpack.c.l.b16 %v5242
    %v5680 = vunpack.c.h.b16 %v5242
    %v5681 = vunpack.c.l.b16 %v5243
    %v5682 = vunpack.c.h.b16 %v5243
    %v5683 = vunpack.c.l.b16 %v5244
    %v5684 = vunpack.c.h.b16 %v5244
    %v5685 = vunpack.c.l.b16 %v5245
    %v5686 = vunpack.c.h.b16 %v5245
    %v5687 = vunpack.c.l.b16 %v5246
    %v5688 = vunpack.c.h.b16 %v5246
    %v5689 = vunpack.c.l.b16 %v5247
    %v5690 = vunpack.c.h.b16 %v5247
    %v5691 = vunpack.c.l.b16 %v5248
    %v5692 = vunpack.c.h.b16 %v5248
    %v5693 = vunpack.c.l.b16 %v5249
    %v5694 = vunpack.c.h.b16 %v5249
    %v5695 = vunpack.c.l.b16 %v5250
    %v5696 = vunpack.c.h.b16 %v5250
    %v5697 = vunpack.c.l.b16 %v5251
    %v5698 = vunpack.c.h.b16 %v5251
    %v5699 = vunpack.c.l.b16 %v5252
    %v5700 = vunpack.c.h.b16 %v5252
    %v5701 = vunpack.c.l.b16 %v5253
    %v5702 = vunpack.c.h.b16 %v5253
    %v5703 = vunpack.c.l.b16 %v5254
    %v5704 = vunpack.c.h.b16 %v5254
    %v5705 = vunpack.c.l.b16 %v5255
    %v5706 = vunpack.c.h.b16 %v5255
    %v5707 = vunpack.c.l.b16 %v5256
    %v5708 = vunpack.c.h.b16 %v5256
    %v5709 = vunpack.c.l.b16 %v5257
    %v5710 = vunpack.c.h.b16 %v5257
    %v5711 = vunpack.c.l.b16 %v5258
    %v5712 = vunpack.c.h.b16 %v5258
    %v5713 = vunpack.c.l.b16 %v5259
    %v5714 = vunpack.c.h.b16 %v5259
    %v5715 = vunpack.c.l.b16 %v5260
    %v5716 = vunpack.c.h.b16 %v5260
    %v5717 = vunpack.c.l.b16 %v5261
    %v5718 = vunpack.c.h.b16 %v5261
    %v5719 = vunpack.c.l.b16 %v5262
    %v5720 = vunpack.c.h.b16 %v5262
    %v5721 = vunpack.c.l.b16 %v5263
    %v5722 = vunpack.c.h.b16 %v5263
    %v5723 = vunpack.c.l.b16 %v5264
    %v5724 = vunpack.c.h.b16 %v5264
    %v5725 = vunpack.c.l.b16 %v5265
    %v5726 = vunpack.c.h.b16 %v5265
    %v5727 = vunpack.c.l.b16 %v5266
    %v5728 = vunpack.c.h.b16 %v5266
    %v5729 = vunpack.c.l.b16 %v5267
    %v5730 = vunpack.c.h.b16 %v5267
    %v5731 = vunpack.c.l.b16 %v5268
    %v5732 = vunpack.c.h.b16 %v5268
    %v5733 = vunpack.c.l.b16 %v5269
    %v5734 = vunpack.c.h.b16 %v5269
    %v5735 = vunpack.c.l.b16 %v5270
    %v5736 = vunpack.c.h.b16 %v5270
    %v5737 = vunpack.c.l.b16 %v5271
    %v5738 = vunpack.c.h.b16 %v5271
    %v5739 = vunpack.c.l.b16 %v5272
    %v5740 = vunpack.c.h.b16 %v5272
    %v5741 = vunpack.c.l.b16 %v5273
    %v5742 = vunpack.c.h.b16 %v5273
    %v5743 = vunpack.c.l.b16 %v5274
    %v5744 = vunpack.c.h.b16 %v5274
    %v5745 = vunpack.c.l.b16 %v5275
    %v5746 = vunpack.c.h.b16 %v5275
    %v5747 = vunpack.c.l.b16 %v5276
    %v5748 = vunpack.c.h.b16 %v5276
    %v5749 = vunpack.c.l.b16 %v5277
    %v5750 = vunpack.c.h.b16 %v5277
    %v5751 = vunpack.c.l.b16 %v5278
    %v5752 = vunpack.c.h.b16 %v5278
    %v5753 = vunpack.c.l.b16 %v5279
    %v5754 = vunpack.c.h.b16 %v5279
    %v5755 = vunpack.c.l.b16 %v5280
    %v5756 = vunpack.c.h.b16 %v5280
    %v5757 = vunpack.c.l.b16 %v5281
    %v5758 = vunpack.c.h.b16 %v5281
    %v5759 = vunpack.c.l.b16 %v5282
    %v5760 = vunpack.c.h.b16 %v5282
    %v5761 = vunpack.c.l.b16 %v5283
    %v5762 = vunpack.c.h.b16 %v5283
    %v5763 = vunpack.c.l.b16 %v5284
    %v5764 = vunpack.c.h.b16 %v5284
    %v5765 = vpack.c.b16 %v5447, %v5445
    %v5766 = vpack.c.b16 %v5448, %v5446
    %v5767 = vpack.c.b16 %v5451, %v5449
    %v5768 = vpack.c.b16 %v5452, %v5450
    %v5769 = vpack.c.b16 %v5455, %v5453
    %v5770 = vpack.c.b16 %v5456, %v5454
    %v5771 = vpack.c.b16 %v5459, %v5457
    %v5772 = vpack.c.b16 %v5460, %v5458
    %v5773 = vpack.c.b16 %v5463, %v5461
    %v5774 = vpack.c.b16 %v5464, %v5462
    %v5775 = vpack.c.b16 %v5467, %v5465
    %v5776 = vpack.c.b16 %v5468, %v5466
    %v5777 = vpack.c.b16 %v5471, %v5469
    %v5778 = vpack.c.b16 %v5472, %v5470
    %v5779 = vpack.c.b16 %v5475, %v5473
    %v5780 = vpack.c.b16 %v5476, %v5474
    %v5781 = vpack.c.b16 %v5479, %v5477
    %v5782 = vpack.c.b16 %v5480, %v5478
    %v5783 = vpack.c.b16 %v5483, %v5481
    %v5784 = vpack.c.b16 %v5484, %v5482
    %v5785 = vpack.c.b16 %v5487, %v5485
    %v5786 = vpack.c.b16 %v5488, %v5486
    %v5787 = vpack.c.b16 %v5491, %v5489
    %v5788 = vpack.c.b16 %v5492, %v5490
    %v5789 = vpack.c.b16 %v5495, %v5493
    %v5790 = vpack.c.b16 %v5496, %v5494
    %v5791 = vpack.c.b16 %v5499, %v5497
    %v5792 = vpack.c.b16 %v5500, %v5498
    %v5793 = vpack.c.b16 %v5503, %v5501
    %v5794 = vpack.c.b16 %v5504, %v5502
    %v5795 = vpack.c.b16 %v5507, %v5505
    %v5796 = vpack.c.b16 %v5508, %v5506
    %v5797 = vpack.c.b16 %v5511, %v5509
    %v5798 = vpack.c.b16 %v5512, %v5510
    %v5799 = vpack.c.b16 %v5515, %v5513
    %v5800 = vpack.c.b16 %v5516, %v5514
    %v5801 = vpack.c.b16 %v5519, %v5517
    %v5802 = vpack.c.b16 %v5520, %v5518
    %v5803 = vpack.c.b16 %v5523, %v5521
    %v5804 = vpack.c.b16 %v5524, %v5522
    %v5805 = vpack.c.b16 %v5527, %v5525
    %v5806 = vpack.c.b16 %v5528, %v5526
    %v5807 = vpack.c.b16 %v5531, %v5529
    %v5808 = vpack.c.b16 %v5532, %v5530
    %v5809 = vpack.c.b16 %v5535, %v5533
    %v5810 = vpack.c.b16 %v5536, %v5534
    %v5811 = vpack.c.b16 %v5539, %v5537
    %v5812 = vpack.c.b16 %v5540, %v5538
    %v5813 = vpack.c.b16 %v5543, %v5541
    %v5814 = vpack.c.b16 %v5544, %v5542
    %v5815 = vpack.c.b16 %v5547, %v5545
    %v5816 = vpack.c.b16 %v5548, %v5546
    %v5817 = vpack.c.b16 %v5551, %v5549
    %v5818 = vpack.c.b16 %v5552, %v5550
    %v5819 = vpack.c.b16 %v5555, %v5553
    %v5820 = vpack.c.b16 %v5556, %v5554
    %v5821 = vpack.c.b16 %v5559, %v5557
    %v5822 = vpack.c.b16 %v5560, %v5558
    %v5823 = vpack.c.b16 %v5563, %v5561
    %v5824 = vpack.c.b16 %v5564, %v5562
    %v5825 = vpack.c.b16 %v5567, %v5565
    %v5826 = vpack.c.b16 %v5568, %v5566
    %v5827 = vpack.c.b16 %v5571, %v5569
    %v5828 = vpack.c.b16 %v5572, %v5570
    %v5829 = vpack.c.b16 %v5575, %v5573
    %v5830 = vpack.c.b16 %v5576, %v5574
    %v5831 = vpack.c.b16 %v5579, %v5577
    %v5832 = vpack.c.b16 %v5580, %v5578
    %v5833 = vpack.c.b16 %v5583, %v5581
    %v5834 = vpack.c.b16 %v5584, %v5582
    %v5835 = vpack.c.b16 %v5587, %v5585
    %v5836 = vpack.c.b16 %v5588, %v5586
    %v5837 = vpack.c.b16 %v5591, %v5589
    %v5838 = vpack.c.b16 %v5592, %v5590
    %v5839 = vpack.c.b16 %v5595, %v5593
    %v5840 = vpack.c.b16 %v5596, %v5594
    %v5841 = vpack.c.b16 %v5599, %v5597
    %v5842 = vpack.c.b16 %v5600, %v5598
    %v5843 = vpack.c.b16 %v5603, %v5601
    %v5844 = vpack.c.b16 %v5604, %v5602
    %v5845 = vpack.c.b16 %v5607, %v5605
    %v5846 = vpack.c.b16 %v5608, %v5606
    %v5847 = vpack.c.b16 %v5611, %v5609
    %v5848 = vpack.c.b16 %v5612, %v5610
    %v5849 = vpack.c.b16 %v5615, %v5613
    %v5850 = vpack.c.b16 %v5616, %v5614
    %v5851 = vpack.c.b16 %v5619, %v5617
    %v5852 = vpack.c.b16 %v5620, %v5618
    %v5853 = vpack.c.b16 %v5623, %v5621
    %v5854 = vpack.c.b16 %v5624, %v5622
    %v5855 = vpack.c.b16 %v5627, %v5625
    %v5856 = vpack.c.b16 %v5628, %v5626
    %v5857 = vpack.c.b16 %v5631, %v5629
    %v5858 = vpack.c.b16 %v5632, %v5630
    %v5859 = vpack.c.b16 %v5635, %v5633
    %v5860 = vpack.c.b16 %v5636, %v5634
    %v5861 = vpack.c.b16 %v5639, %v5637
    %v5862 = vpack.c.b16 %v5640, %v5638
    %v5863 = vpack.c.b16 %v5643, %v5641
    %v5864 = vpack.c.b16 %v5644, %v5642
    %v5865 = vpack.c.b16 %v5647, %v5645
    %v5866 = vpack.c.b16 %v5648, %v5646
    %v5867 = vpack.c.b16 %v5651, %v5649
    %v5868 = vpack.c.b16 %v5652, %v5650
    %v5869 = vpack.c.b16 %v5655, %v5653
    %v5870 = vpack.c.b16 %v5656, %v5654
    %v5871 = vpack.c.b16 %v5659, %v5657
    %v5872 = vpack.c.b16 %v5660, %v5658
    %v5873 = vpack.c.b16 %v5663, %v5661
    %v5874 = vpack.c.b16 %v5664, %v5662
    %v5875 = vpack.c.b16 %v5667, %v5665
    %v5876 = vpack.c.b16 %v5668, %v5666
    %v5877 = vpack.c.b16 %v5671, %v5669
    %v5878 = vpack.c.b16 %v5672, %v5670
    %v5879 = vpack.c.b16 %v5675, %v5673
    %v5880 = vpack.c.b16 %v5676, %v5674
    %v5881 = vpack.c.b16 %v5679, %v5677
    %v5882 = vpack.c.b16 %v5680, %v5678
    %v5883 = vpack.c.b16 %v5683, %v5681
    %v5884 = vpack.c.b16 %v5684, %v5682
    %v5885 = vpack.c.b16 %v5687, %v5685
    %v5886 = vpack.c.b16 %v5688, %v5686
    %v5887 = vpack.c.b16 %v5691, %v5689
    %v5888 = vpack.c.b16 %v5692, %v5690
    %v5889 = vpack.c.b16 %v5695, %v5693
    %v5890 = vpack.c.b16 %v5696, %v5694
    %v5891 = vpack.c.b16 %v5699, %v5697
    %v5892 = vpack.c.b16 %v5700, %v5698
    %v5893 = vpack.c.b16 %v5703, %v5701
    %v5894 = vpack.c.b16 %v5704, %v5702
    %v5895 = vpack.c.b16 %v5707, %v5705
    %v5896 = vpack.c.b16 %v5708, %v5706
    %v5897 = vpack.c.b16 %v5711, %v5709
    %v5898 = vpack.c.b16 %v5712, %v5710
    %v5899 = vpack.c.b16 %v5715, %v5713
    %v5900 = vpack.c.b16 %v5716, %v5714
    %v5901 = vpack.c.b16 %v5719, %v5717
    %v5902 = vpack.c.b16 %v5720, %v5718
    %v5903 = vpack.c.b16 %v5723, %v5721
    %v5904 = vpack.c.b16 %v5724, %v5722
    %v5905 = vpack.c.b16 %v5727, %v5725
    %v5906 = vpack.c.b16 %v5728, %v5726
    %v5907 = vpack.c.b16 %v5731, %v5729
    %v5908 = vpack.c.b16 %v5732, %v5730
    %v5909 = vpack.c.b16 %v5735, %v5733
    %v5910 = vpack.c.b16 %v5736, %v5734
    %v5911 = vpack.c.b16 %v5739, %v5737
    %v5912 = vpack.c.b16 %v5740, %v5738
    %v5913 = vpack.c.b16 %v5743, %v5741
    %v5914 = vpack.c.b16 %v5744, %v5742
    %v5915 = vpack.c.b16 %v5747, %v5745
    %v5916 = vpack.c.b16 %v5748, %v5746
    %v5917 = vpack.c.b16 %v5751, %v5749
    %v5918 = vpack.c.b16 %v5752, %v5750
    %v5919 = vpack.c.b16 %v5755, %v5753
    %v5920 = vpack.c.b16 %v5756, %v5754
    %v5921 = vpack.c.b16 %v5759, %v5757
    %v5922 = vpack.c.b16 %v5760, %v5758
    %v5923 = vpack.c.b16 %v5763, %v5761
    %v5924 = vpack.c.b16 %v5764, %v5762
    %6085 = vmatprep.subr.bf16.mxu0 %v5766
    %6086 = vmatpush1.bf16.msra.mxu0 %v5765
    %6087 = vmatprep.subr.bf16.mxu0 %v5768
    %6088 = vmatpush1.bf16.msra.mxu0 %v5767
    %6089 = vmatprep.subr.bf16.mxu0 %v5770
    %6090 = vmatpush1.bf16.msra.mxu0 %v5769
    %6091 = vmatprep.subr.bf16.mxu0 %v5772
    %6092 = vmatpush1.bf16.msra.mxu0 %v5771
    %6093 = vmatprep.subr.bf16.mxu0 %v5774
    %6094 = vmatpush1.bf16.msra.mxu0 %v5773
    %6095 = vmatprep.subr.bf16.mxu0 %v5776
    %6096 = vmatpush1.bf16.msra.mxu0 %v5775
    %6097 = vmatprep.subr.bf16.mxu0 %v5778
    %6098 = vmatpush1.bf16.msra.mxu0 %v5777
    %6099 = vmatprep.subr.bf16.mxu0 %v5780
    %6100 = vmatpush1.bf16.msra.mxu0 %v5779
    %6101 = vmatprep.subr.bf16.mxu0 %v5782
    %6102 = vmatpush1.bf16.msra.mxu0 %v5781
    %6103 = vmatprep.subr.bf16.mxu0 %v5784
    %6104 = vmatpush1.bf16.msra.mxu0 %v5783
    %6105 = vmatprep.subr.bf16.mxu0 %v5786
    %6106 = vmatpush1.bf16.msra.mxu0 %v5785
    %6107 = vmatprep.subr.bf16.mxu0 %v5788
    %6108 = vmatpush1.bf16.msra.mxu0 %v5787
    %6109 = vmatprep.subr.bf16.mxu0 %v5790
    %6110 = vmatpush1.bf16.msra.mxu0 %v5789
    %6111 = vmatprep.subr.bf16.mxu0 %v5792
    %6112 = vmatpush1.bf16.msra.mxu0 %v5791
    %6113 = vmatprep.subr.bf16.mxu0 %v5794
    %6114 = vmatpush1.bf16.msra.mxu0 %v5793
    %6115 = vmatprep.subr.bf16.mxu0 %v5796
    %6116 = vmatpush1.bf16.msra.mxu0 %v5795
    %6117 = vmatprep.mubr.bf16.mxu0 %v4580
    %6118 = vmatmul.mubr.bf16.gmra.mrb[0].mxu0 %v4579
    %v6119 = vpop.f32.mrb[0].mxu0
    %v6120 = vadd.f32 0.0, %v6119
    %v6121 = vpop.f32.mrb[0].mxu0
    %v6122 = vadd.f32 0.0, %v6121
    %v6123 = vpop.f32.mrb[0].mxu0
    %v6124 = vadd.f32 0.0, %v6123
    %v6125 = vpop.f32.mrb[0].mxu0
    %v6126 = vadd.f32 0.0, %v6125
    %6127 = vmatprep.mubr.bf16.mxu0 %v4582
    %6128 = vmatmul.mubr.bf16.gmra.mrb[0].mxu0 %v4581
    %v6129 = vpop.f32.mrb[0].mxu0
    %v6130 = vadd.f32 0.0, %v6129
    %v6131 = vpop.f32.mrb[0].mxu0
    %v6132 = vadd.f32 0.0, %v6131
    %v6133 = vpop.f32.mrb[0].mxu0
    %v6134 = vadd.f32 0.0, %v6133
    %v6135 = vpop.f32.mrb[0].mxu0
    %v6136 = vadd.f32 0.0, %v6135
    %6137 = vmatprep.mubr.bf16.mxu0 %v4586
    %6138 = vmatmul.mubr.bf16.gmra.mrb[0].mxu0 %v4585
    %v6139 = vpop.f32.mrb[0].mxu0
    %v6140 = vadd.f32 0.0, %v6139
    %v6141 = vpop.f32.mrb[0].mxu0
    %v6142 = vadd.f32 0.0, %v6141
    %v6143 = vpop.f32.mrb[0].mxu0
    %v6144 = vadd.f32 0.0, %v6143
    %v6145 = vpop.f32.mrb[0].mxu0
    %v6146 = vadd.f32 0.0, %v6145
    %6147 = vmatprep.mubr.bf16.mxu0 %v4588
    %6148 = vmatmul.mubr.bf16.gmra.mrb[0].mxu0 %v4587
    %v6149 = vpop.f32.mrb[0].mxu0
    %v6150 = vadd.f32 0.0, %v6149
    %v6151 = vpop.f32.mrb[0].mxu0
    %v6152 = vadd.f32 0.0, %v6151
    %v6153 = vpop.f32.mrb[0].mxu0
    %v6154 = vadd.f32 0.0, %v6153
    %v6155 = vpop.f32.mrb[0].mxu0
    %v6156 = vadd.f32 0.0, %v6155
    %6157 = vmatprep.mubr.bf16.mxu0 %v4592
    %6158 = vmatmul.mubr.bf16.gmra.mrb[0].mxu0 %v4591
    %v6159 = vpop.f32.mrb[0].mxu0
    %v6160 = vadd.f32 0.0, %v6159
    %v6161 = vpop.f32.mrb[0].mxu0
    %v6162 = vadd.f32 0.0, %v6161
    %v6163 = vpop.f32.mrb[0].mxu0
    %v6164 = vadd.f32 0.0, %v6163
    %v6165 = vpop.f32.mrb[0].mxu0
    %v6166 = vadd.f32 0.0, %v6165
    %6167 = vmatprep.mubr.bf16.mxu0 %v4594
    %6168 = vmatmul.mubr.bf16.gmra.mrb[0].mxu0 %v4593
    %v6169 = vpop.f32.mrb[0].mxu0
    %v6170 = vadd.f32 0.0, %v6169
    %v6171 = vpop.f32.mrb[0].mxu0
    %v6172 = vadd.f32 0.0, %v6171
    %v6173 = vpop.f32.mrb[0].mxu0
    %v6174 = vadd.f32 0.0, %v6173
    %v6175 = vpop.f32.mrb[0].mxu0
    %v6176 = vadd.f32 0.0, %v6175
    %6177 = vmatprep.mubr.bf16.mxu0 %v4598
    %6178 = vmatmul.mubr.bf16.gmra.mrb[0].mxu0 %v4597
    %v6179 = vpop.f32.mrb[0].mxu0
    %v6180 = vadd.f32 0.0, %v6179
    %v6181 = vpop.f32.mrb[0].mxu0
    %v6182 = vadd.f32 0.0, %v6181
    %v6183 = vpop.f32.mrb[0].mxu0
    %v6184 = vadd.f32 0.0, %v6183
    %v6185 = vpop.f32.mrb[0].mxu0
    %v6186 = vadd.f32 0.0, %v6185
    %6187 = vmatprep.mubr.bf16.mxu0 %v4600
    %6188 = vmatmul.mubr.bf16.gmra.mrb[0].mxu0 %v4599
    %v6189 = vpop.f32.mrb[0].mxu0
    %v6190 = vadd.f32 0.0, %v6189
    %v6191 = vpop.f32.mrb[0].mxu0
    %v6192 = vadd.f32 0.0, %v6191
    %v6193 = vpop.f32.mrb[0].mxu0
    %v6194 = vadd.f32 0.0, %v6193
    %v6195 = vpop.f32.mrb[0].mxu0
    %v6196 = vadd.f32 0.0, %v6195
    %6197 = vmatprep.mubr.bf16.mxu0 %v4604
    %6198 = vmatmul.mubr.bf16.gmra.mrb[0].mxu0 %v4603
    %v6199 = vpop.f32.mrb[0].mxu0
    %v6200 = vadd.f32 0.0, %v6199
    %v6201 = vpop.f32.mrb[0].mxu0
    %v6202 = vadd.f32 0.0, %v6201
    %v6203 = vpop.f32.mrb[0].mxu0
    %v6204 = vadd.f32 0.0, %v6203
    %v6205 = vpop.f32.mrb[0].mxu0
    %v6206 = vadd.f32 0.0, %v6205
    %6207 = vmatprep.mubr.bf16.mxu0 %v4606
    %6208 = vmatmul.mubr.bf16.gmra.mrb[0].mxu0 %v4605
    %v6209 = vpop.f32.mrb[0].mxu0
    %v6210 = vadd.f32 0.0, %v6209
    %v6211 = vpop.f32.mrb[0].mxu0
    %v6212 = vadd.f32 0.0, %v6211
    %v6213 = vpop.f32.mrb[0].mxu0
    %v6214 = vadd.f32 0.0, %v6213
    %v6215 = vpop.f32.mrb[0].mxu0
    %v6216 = vadd.f32 0.0, %v6215
    %6217 = vmatprep.mubr.bf16.mxu0 %v4610
    %6218 = vmatmul.mubr.bf16.gmra.mrb[0].mxu0 %v4609
    %v6219 = vpop.f32.mrb[0].mxu0
    %v6220 = vadd.f32 0.0, %v6219
    %v6221 = vpop.f32.mrb[0].mxu0
    %v6222 = vadd.f32 0.0, %v6221
    %v6223 = vpop.f32.mrb[0].mxu0
    %v6224 = vadd.f32 0.0, %v6223
    %v6225 = vpop.f32.mrb[0].mxu0
    %v6226 = vadd.f32 0.0, %v6225
    %6227 = vmatprep.mubr.bf16.mxu0 %v4612
    %6228 = vmatmul.mubr.bf16.gmra.mrb[0].mxu0 %v4611
    %v6229 = vpop.f32.mrb[0].mxu0
    %v6230 = vadd.f32 0.0, %v6229
    %v6231 = vpop.f32.mrb[0].mxu0
    %v6232 = vadd.f32 0.0, %v6231
    %v6233 = vpop.f32.mrb[0].mxu0
    %v6234 = vadd.f32 0.0, %v6233
    %v6235 = vpop.f32.mrb[0].mxu0
    %v6236 = vadd.f32 0.0, %v6235
    %6237 = vmatprep.mubr.bf16.mxu0 %v4616
    %6238 = vmatmul.mubr.bf16.gmra.mrb[0].mxu0 %v4615
    %v6239 = vpop.f32.mrb[0].mxu0
    %v6240 = vadd.f32 0.0, %v6239
    %v6241 = vpop.f32.mrb[0].mxu0
    %v6242 = vadd.f32 0.0, %v6241
    %v6243 = vpop.f32.mrb[0].mxu0
    %v6244 = vadd.f32 0.0, %v6243
    %v6245 = vpop.f32.mrb[0].mxu0
    %v6246 = vadd.f32 0.0, %v6245
    %6247 = vmatprep.mubr.bf16.mxu0 %v4618
    %6248 = vmatmul.mubr.bf16.gmra.mrb[0].mxu0 %v4617
    %v6249 = vpop.f32.mrb[0].mxu0
    %v6250 = vadd.f32 0.0, %v6249
    %v6251 = vpop.f32.mrb[0].mxu0
    %v6252 = vadd.f32 0.0, %v6251
    %v6253 = vpop.f32.mrb[0].mxu0
    %v6254 = vadd.f32 0.0, %v6253
    %v6255 = vpop.f32.mrb[0].mxu0
    %v6256 = vadd.f32 0.0, %v6255
    %6257 = vmatprep.mubr.bf16.mxu0 %v4622
    %6258 = vmatmul.mubr.bf16.gmra.mrb[0].mxu0 %v4621
    %v6259 = vpop.f32.mrb[0].mxu0
    %v6260 = vadd.f32 0.0, %v6259
    %v6261 = vpop.f32.mrb[0].mxu0
    %v6262 = vadd.f32 0.0, %v6261
    %v6263 = vpop.f32.mrb[0].mxu0
    %v6264 = vadd.f32 0.0, %v6263
    %v6265 = vpop.f32.mrb[0].mxu0
    %v6266 = vadd.f32 0.0, %v6265
    %6267 = vmatprep.mubr.bf16.mxu0 %v4624
    %6268 = vmatmul.mubr.bf16.gmra.mrb[0].mxu0 %v4623
    %v6269 = vpop.f32.mrb[0].mxu0
    %v6270 = vadd.f32 0.0, %v6269
    %v6271 = vpop.f32.mrb[0].mxu0
    %v6272 = vadd.f32 0.0, %v6271
    %v6273 = vpop.f32.mrb[0].mxu0
    %v6274 = vadd.f32 0.0, %v6273
    %v6275 = vpop.f32.mrb[0].mxu0
    %v6276 = vadd.f32 0.0, %v6275
    %6277 = vdwg.mxu0
    %6278 = vmatprep.subr.bf16.mxu0 %v5798
    %6279 = vmatpush1.bf16.msra.mxu0 %v5797
    %6280 = vmatprep.subr.bf16.mxu0 %v5800
    %6281 = vmatpush1.bf16.msra.mxu0 %v5799
    %6282 = vmatprep.subr.bf16.mxu0 %v5802
    %6283 = vmatpush1.bf16.msra.mxu0 %v5801
    %6284 = vmatprep.subr.bf16.mxu0 %v5804
    %6285 = vmatpush1.bf16.msra.mxu0 %v5803
    %6286 = vmatprep.subr.bf16.mxu0 %v5806
    %6287 = vmatpush1.bf16.msra.mxu0 %v5805
    %6288 = vmatprep.subr.bf16.mxu0 %v5808
    %6289 = vmatpush1.bf16.msra.mxu0 %v5807
    %6290 = vmatprep.subr.bf16.mxu0 %v5810
    %6291 = vmatpush1.bf16.msra.mxu0 %v5809
    %6292 = vmatprep.subr.bf16.mxu0 %v5812
    %6293 = vmatpush1.bf16.msra.mxu0 %v5811
    %6294 = vmatprep.subr.bf16.mxu0 %v5814
    %6295 = vmatpush1.bf16.msra.mxu0 %v5813
    %6296 = vmatprep.subr.bf16.mxu0 %v5816
    %6297 = vmatpush1.bf16.msra.mxu0 %v5815
    %6298 = vmatprep.subr.bf16.mxu0 %v5818
    %6299 = vmatpush1.bf16.msra.mxu0 %v5817
    %6300 = vmatprep.subr.bf16.mxu0 %v5820
    %6301 = vmatpush1.bf16.msra.mxu0 %v5819
    %6302 = vmatprep.subr.bf16.mxu0 %v5822
    %6303 = vmatpush1.bf16.msra.mxu0 %v5821
    %6304 = vmatprep.subr.bf16.mxu0 %v5824
    %6305 = vmatpush1.bf16.msra.mxu0 %v5823
    %6306 = vmatprep.subr.bf16.mxu0 %v5826
    %6307 = vmatpush1.bf16.msra.mxu0 %v5825
    %6308 = vmatprep.subr.bf16.mxu0 %v5828
    %6309 = vmatpush1.bf16.msra.mxu0 %v5827
    %6310 = vmatprep.mubr.bf16.mxu0 %v4680
    %6311 = vmatmul.mubr.bf16.gmra.mrb[0].mxu0 %v4677
    %v6312 = vpop.f32.mrb[0].mxu0
    %v6313 = vadd.f32 %v6120, %v6312
    %v6314 = vpop.f32.mrb[0].mxu0
    %v6315 = vadd.f32 %v6122, %v6314
    %v6316 = vpop.f32.mrb[0].mxu0
    %v6317 = vadd.f32 %v6124, %v6316
    %v6318 = vpop.f32.mrb[0].mxu0
    %v6319 = vadd.f32 %v6126, %v6318
    %6320 = vmatprep.mubr.bf16.mxu0 %v4684
    %6321 = vmatmul.mubr.bf16.gmra.mrb[0].mxu0 %v4682
    %v6322 = vpop.f32.mrb[0].mxu0
    %v6323 = vadd.f32 %v6130, %v6322
    %v6324 = vpop.f32.mrb[0].mxu0
    %v6325 = vadd.f32 %v6132, %v6324
    %v6326 = vpop.f32.mrb[0].mxu0
    %v6327 = vadd.f32 %v6134, %v6326
    %v6328 = vpop.f32.mrb[0].mxu0
    %v6329 = vadd.f32 %v6136, %v6328
    %6330 = vmatprep.mubr.bf16.mxu0 %v4690
    %6331 = vmatmul.mubr.bf16.gmra.mrb[0].mxu0 %v4687
    %v6332 = vpop.f32.mrb[0].mxu0
    %v6333 = vadd.f32 %v6140, %v6332
    %v6334 = vpop.f32.mrb[0].mxu0
    %v6335 = vadd.f32 %v6142, %v6334
    %v6336 = vpop.f32.mrb[0].mxu0
    %v6337 = vadd.f32 %v6144, %v6336
    %v6338 = vpop.f32.mrb[0].mxu0
    %v6339 = vadd.f32 %v6146, %v6338
    %6340 = vmatprep.mubr.bf16.mxu0 %v4694
    %6341 = vmatmul.mubr.bf16.gmra.mrb[0].mxu0 %v4692
    %v6342 = vpop.f32.mrb[0].mxu0
    %v6343 = vadd.f32 %v6150, %v6342
    %v6344 = vpop.f32.mrb[0].mxu0
    %v6345 = vadd.f32 %v6152, %v6344
    %v6346 = vpop.f32.mrb[0].mxu0
    %v6347 = vadd.f32 %v6154, %v6346
    %v6348 = vpop.f32.mrb[0].mxu0
    %v6349 = vadd.f32 %v6156, %v6348
    %6350 = vmatprep.mubr.bf16.mxu0 %v4700
    %6351 = vmatmul.mubr.bf16.gmra.mrb[0].mxu0 %v4697
    %v6352 = vpop.f32.mrb[0].mxu0
    %v6353 = vadd.f32 %v6160, %v6352
    %v6354 = vpop.f32.mrb[0].mxu0
    %v6355 = vadd.f32 %v6162, %v6354
    %v6356 = vpop.f32.mrb[0].mxu0
    %v6357 = vadd.f32 %v6164, %v6356
    %v6358 = vpop.f32.mrb[0].mxu0
    %v6359 = vadd.f32 %v6166, %v6358
    %6360 = vmatprep.mubr.bf16.mxu0 %v4704
    %6361 = vmatmul.mubr.bf16.gmra.mrb[0].mxu0 %v4702
    %v6362 = vpop.f32.mrb[0].mxu0
    %v6363 = vadd.f32 %v6170, %v6362
    %v6364 = vpop.f32.mrb[0].mxu0
    %v6365 = vadd.f32 %v6172, %v6364
    %v6366 = vpop.f32.mrb[0].mxu0
    %v6367 = vadd.f32 %v6174, %v6366
    %v6368 = vpop.f32.mrb[0].mxu0
    %v6369 = vadd.f32 %v6176, %v6368
    %6370 = vmatprep.mubr.bf16.mxu0 %v4710
    %6371 = vmatmul.mubr.bf16.gmra.mrb[0].mxu0 %v4707
    %v6372 = vpop.f32.mrb[0].mxu0
    %v6373 = vadd.f32 %v6180, %v6372
    %v6374 = vpop.f32.mrb[0].mxu0
    %v6375 = vadd.f32 %v6182, %v6374
    %v6376 = vpop.f32.mrb[0].mxu0
    %v6377 = vadd.f32 %v6184, %v6376
    %v6378 = vpop.f32.mrb[0].mxu0
    %v6379 = vadd.f32 %v6186, %v6378
    %6380 = vmatprep.mubr.bf16.mxu0 %v4714
    %6381 = vmatmul.mubr.bf16.gmra.mrb[0].mxu0 %v4712
    %v6382 = vpop.f32.mrb[0].mxu0
    %v6383 = vadd.f32 %v6190, %v6382
    %v6384 = vpop.f32.mrb[0].mxu0
    %v6385 = vadd.f32 %v6192, %v6384
    %v6386 = vpop.f32.mrb[0].mxu0
    %v6387 = vadd.f32 %v6194, %v6386
    %v6388 = vpop.f32.mrb[0].mxu0
    %v6389 = vadd.f32 %v6196, %v6388
    %6390 = vmatprep.mubr.bf16.mxu0 %v4720
    %6391 = vmatmul.mubr.bf16.gmra.mrb[0].mxu0 %v4717
    %v6392 = vpop.f32.mrb[0].mxu0
    %v6393 = vadd.f32 %v6200, %v6392
    %v6394 = vpop.f32.mrb[0].mxu0
    %v6395 = vadd.f32 %v6202, %v6394
    %v6396 = vpop.f32.mrb[0].mxu0
    %v6397 = vadd.f32 %v6204, %v6396
    %v6398 = vpop.f32.mrb[0].mxu0
    %v6399 = vadd.f32 %v6206, %v6398
    %6400 = vmatprep.mubr.bf16.mxu0 %v4724
    %6401 = vmatmul.mubr.bf16.gmra.mrb[0].mxu0 %v4722
    %v6402 = vpop.f32.mrb[0].mxu0
    %v6403 = vadd.f32 %v6210, %v6402
    %v6404 = vpop.f32.mrb[0].mxu0
    %v6405 = vadd.f32 %v6212, %v6404
    %v6406 = vpop.f32.mrb[0].mxu0
    %v6407 = vadd.f32 %v6214, %v6406
    %v6408 = vpop.f32.mrb[0].mxu0
    %v6409 = vadd.f32 %v6216, %v6408
    %6410 = vmatprep.mubr.bf16.mxu0 %v4730
    %6411 = vmatmul.mubr.bf16.gmra.mrb[0].mxu0 %v4727
    %v6412 = vpop.f32.mrb[0].mxu0
    %v6413 = vadd.f32 %v6220, %v6412
    %v6414 = vpop.f32.mrb[0].mxu0
    %v6415 = vadd.f32 %v6222, %v6414
    %v6416 = vpop.f32.mrb[0].mxu0
    %v6417 = vadd.f32 %v6224, %v6416
    %v6418 = vpop.f32.mrb[0].mxu0
    %v6419 = vadd.f32 %v6226, %v6418
    %6420 = vmatprep.mubr.bf16.mxu0 %v4734
    %6421 = vmatmul.mubr.bf16.gmra.mrb[0].mxu0 %v4732
    %v6422 = vpop.f32.mrb[0].mxu0
    %v6423 = vadd.f32 %v6230, %v6422
    %v6424 = vpop.f32.mrb[0].mxu0
    %v6425 = vadd.f32 %v6232, %v6424
    %v6426 = vpop.f32.mrb[0].mxu0
    %v6427 = vadd.f32 %v6234, %v6426
    %v6428 = vpop.f32.mrb[0].mxu0
    %v6429 = vadd.f32 %v6236, %v6428
    %6430 = vmatprep.mubr.bf16.mxu0 %v4740
    %6431 = vmatmul.mubr.bf16.gmra.mrb[0].mxu0 %v4737
    %v6432 = vpop.f32.mrb[0].mxu0
    %v6433 = vadd.f32 %v6240, %v6432
    %v6434 = vpop.f32.mrb[0].mxu0
    %v6435 = vadd.f32 %v6242, %v6434
    %v6436 = vpop.f32.mrb[0].mxu0
    %v6437 = vadd.f32 %v6244, %v6436
    %v6438 = vpop.f32.mrb[0].mxu0
    %v6439 = vadd.f32 %v6246, %v6438
    %6440 = vmatprep.mubr.bf16.mxu0 %v4744
    %6441 = vmatmul.mubr.bf16.gmra.mrb[0].mxu0 %v4742
    %v6442 = vpop.f32.mrb[0].mxu0
    %v6443 = vadd.f32 %v6250, %v6442
    %v6444 = vpop.f32.mrb[0].mxu0
    %v6445 = vadd.f32 %v6252, %v6444
    %v6446 = vpop.f32.mrb[0].mxu0
    %v6447 = vadd.f32 %v6254, %v6446
    %v6448 = vpop.f32.mrb[0].mxu0
    %v6449 = vadd.f32 %v6256, %v6448
    %6450 = vmatprep.mubr.bf16.mxu0 %v4750
    %6451 = vmatmul.mubr.bf16.gmra.mrb[0].mxu0 %v4747
    %v6452 = vpop.f32.mrb[0].mxu0
    %v6453 = vadd.f32 %v6260, %v6452
    %v6454 = vpop.f32.mrb[0].mxu0
    %v6455 = vadd.f32 %v6262, %v6454
    %v6456 = vpop.f32.mrb[0].mxu0
    %v6457 = vadd.f32 %v6264, %v6456
    %v6458 = vpop.f32.mrb[0].mxu0
    %v6459 = vadd.f32 %v6266, %v6458
    %6460 = vmatprep.mubr.bf16.mxu0 %v4754
    %6461 = vmatmul.mubr.bf16.gmra.mrb[0].mxu0 %v4752
    %v6462 = vpop.f32.mrb[0].mxu0
    %v6463 = vadd.f32 %v6270, %v6462
    %v6464 = vpop.f32.mrb[0].mxu0
    %v6465 = vadd.f32 %v6272, %v6464
    %v6466 = vpop.f32.mrb[0].mxu0
    %v6467 = vadd.f32 %v6274, %v6466
    %v6468 = vpop.f32.mrb[0].mxu0
    %v6469 = vadd.f32 %v6276, %v6468
    %6470 = vdwg.mxu0
    %6471 = vmatprep.subr.bf16.mxu0 %v5830
    %6472 = vmatpush1.bf16.msra.mxu0 %v5829
    %6473 = vmatprep.subr.bf16.mxu0 %v5832
    %6474 = vmatpush1.bf16.msra.mxu0 %v5831
    %6475 = vmatprep.subr.bf16.mxu0 %v5834
    %6476 = vmatpush1.bf16.msra.mxu0 %v5833
    %6477 = vmatprep.subr.bf16.mxu0 %v5836
    %6478 = vmatpush1.bf16.msra.mxu0 %v5835
    %6479 = vmatprep.subr.bf16.mxu0 %v5838
    %6480 = vmatpush1.bf16.msra.mxu0 %v5837
    %6481 = vmatprep.subr.bf16.mxu0 %v5840
    %6482 = vmatpush1.bf16.msra.mxu0 %v5839
    %6483 = vmatprep.subr.bf16.mxu0 %v5842
    %6484 = vmatpush1.bf16.msra.mxu0 %v5841
    %6485 = vmatprep.subr.bf16.mxu0 %v5844
    %6486 = vmatpush1.bf16.msra.mxu0 %v5843
    %6487 = vmatprep.subr.bf16.mxu0 %v5846
    %6488 = vmatpush1.bf16.msra.mxu0 %v5845
    %6489 = vmatprep.subr.bf16.mxu0 %v5848
    %6490 = vmatpush1.bf16.msra.mxu0 %v5847
    %6491 = vmatprep.subr.bf16.mxu0 %v5850
    %6492 = vmatpush1.bf16.msra.mxu0 %v5849
    %6493 = vmatprep.subr.bf16.mxu0 %v5852
    %6494 = vmatpush1.bf16.msra.mxu0 %v5851
    %6495 = vmatprep.subr.bf16.mxu0 %v5854
    %6496 = vmatpush1.bf16.msra.mxu0 %v5853
    %6497 = vmatprep.subr.bf16.mxu0 %v5856
    %6498 = vmatpush1.bf16.msra.mxu0 %v5855
    %6499 = vmatprep.subr.bf16.mxu0 %v5858
    %6500 = vmatpush1.bf16.msra.mxu0 %v5857
    %6501 = vmatprep.subr.bf16.mxu0 %v5860
    %6502 = vmatpush1.bf16.msra.mxu0 %v5859
    %6503 = vmatprep.mubr.bf16.mxu0 %v4792
    %6504 = vmatmul.mubr.bf16.gmra.mrb[0].mxu0 %v4789
    %v6505 = vpop.f32.mrb[0].mxu0
    %v6506 = vadd.f32 %v6313, %v6505
    %v6507 = vpop.f32.mrb[0].mxu0
    %v6508 = vadd.f32 %v6315, %v6507
    %v6509 = vpop.f32.mrb[0].mxu0
    %v6510 = vadd.f32 %v6317, %v6509
    %v6511 = vpop.f32.mrb[0].mxu0
    %v6512 = vadd.f32 %v6319, %v6511
    %6513 = vmatprep.mubr.bf16.mxu0 %v4796
    %6514 = vmatmul.mubr.bf16.gmra.mrb[0].mxu0 %v4794
    %v6515 = vpop.f32.mrb[0].mxu0
    %v6516 = vadd.f32 %v6323, %v6515
    %v6517 = vpop.f32.mrb[0].mxu0
    %v6518 = vadd.f32 %v6325, %v6517
    %v6519 = vpop.f32.mrb[0].mxu0
    %v6520 = vadd.f32 %v6327, %v6519
    %v6521 = vpop.f32.mrb[0].mxu0
    %v6522 = vadd.f32 %v6329, %v6521
    %6523 = vmatprep.mubr.bf16.mxu0 %v4802
    %6524 = vmatmul.mubr.bf16.gmra.mrb[0].mxu0 %v4799
    %v6525 = vpop.f32.mrb[0].mxu0
    %v6526 = vadd.f32 %v6333, %v6525
    %v6527 = vpop.f32.mrb[0].mxu0
    %v6528 = vadd.f32 %v6335, %v6527
    %v6529 = vpop.f32.mrb[0].mxu0
    %v6530 = vadd.f32 %v6337, %v6529
    %v6531 = vpop.f32.mrb[0].mxu0
    %v6532 = vadd.f32 %v6339, %v6531
    %6533 = vmatprep.mubr.bf16.mxu0 %v4806
    %6534 = vmatmul.mubr.bf16.gmra.mrb[0].mxu0 %v4804
    %v6535 = vpop.f32.mrb[0].mxu0
    %v6536 = vadd.f32 %v6343, %v6535
    %v6537 = vpop.f32.mrb[0].mxu0
    %v6538 = vadd.f32 %v6345, %v6537
    %v6539 = vpop.f32.mrb[0].mxu0
    %v6540 = vadd.f32 %v6347, %v6539
    %v6541 = vpop.f32.mrb[0].mxu0
    %v6542 = vadd.f32 %v6349, %v6541
    %6543 = vmatprep.mubr.bf16.mxu0 %v4812
    %6544 = vmatmul.mubr.bf16.gmra.mrb[0].mxu0 %v4809
    %v6545 = vpop.f32.mrb[0].mxu0
    %v6546 = vadd.f32 %v6353, %v6545
    %v6547 = vpop.f32.mrb[0].mxu0
    %v6548 = vadd.f32 %v6355, %v6547
    %v6549 = vpop.f32.mrb[0].mxu0
    %v6550 = vadd.f32 %v6357, %v6549
    %v6551 = vpop.f32.mrb[0].mxu0
    %v6552 = vadd.f32 %v6359, %v6551
    %6553 = vmatprep.mubr.bf16.mxu0 %v4816
    %6554 = vmatmul.mubr.bf16.gmra.mrb[0].mxu0 %v4814
    %v6555 = vpop.f32.mrb[0].mxu0
    %v6556 = vadd.f32 %v6363, %v6555
    %v6557 = vpop.f32.mrb[0].mxu0
    %v6558 = vadd.f32 %v6365, %v6557
    %v6559 = vpop.f32.mrb[0].mxu0
    %v6560 = vadd.f32 %v6367, %v6559
    %v6561 = vpop.f32.mrb[0].mxu0
    %v6562 = vadd.f32 %v6369, %v6561
    %6563 = vmatprep.mubr.bf16.mxu0 %v4822
    %6564 = vmatmul.mubr.bf16.gmra.mrb[0].mxu0 %v4819
    %v6565 = vpop.f32.mrb[0].mxu0
    %v6566 = vadd.f32 %v6373, %v6565
    %v6567 = vpop.f32.mrb[0].mxu0
    %v6568 = vadd.f32 %v6375, %v6567
    %v6569 = vpop.f32.mrb[0].mxu0
    %v6570 = vadd.f32 %v6377, %v6569
    %v6571 = vpop.f32.mrb[0].mxu0
    %v6572 = vadd.f32 %v6379, %v6571
    %6573 = vmatprep.mubr.bf16.mxu0 %v4826
    %6574 = vmatmul.mubr.bf16.gmra.mrb[0].mxu0 %v4824
    %v6575 = vpop.f32.mrb[0].mxu0
    %v6576 = vadd.f32 %v6383, %v6575
    %v6577 = vpop.f32.mrb[0].mxu0
    %v6578 = vadd.f32 %v6385, %v6577
    %v6579 = vpop.f32.mrb[0].mxu0
    %v6580 = vadd.f32 %v6387, %v6579
    %v6581 = vpop.f32.mrb[0].mxu0
    %v6582 = vadd.f32 %v6389, %v6581
    %6583 = vmatprep.mubr.bf16.mxu0 %v4832
    %6584 = vmatmul.mubr.bf16.gmra.mrb[0].mxu0 %v4829
    %v6585 = vpop.f32.mrb[0].mxu0
    %v6586 = vadd.f32 %v6393, %v6585
    %v6587 = vpop.f32.mrb[0].mxu0
    %v6588 = vadd.f32 %v6395, %v6587
    %v6589 = vpop.f32.mrb[0].mxu0
    %v6590 = vadd.f32 %v6397, %v6589
    %v6591 = vpop.f32.mrb[0].mxu0
    %v6592 = vadd.f32 %v6399, %v6591
    %6593 = vmatprep.mubr.bf16.mxu0 %v4836
    %6594 = vmatmul.mubr.bf16.gmra.mrb[0].mxu0 %v4834
    %v6595 = vpop.f32.mrb[0].mxu0
    %v6596 = vadd.f32 %v6403, %v6595
    %v6597 = vpop.f32.mrb[0].mxu0
    %v6598 = vadd.f32 %v6405, %v6597
    %v6599 = vpop.f32.mrb[0].mxu0
    %v6600 = vadd.f32 %v6407, %v6599
    %v6601 = vpop.f32.mrb[0].mxu0
    %v6602 = vadd.f32 %v6409, %v6601
    %6603 = vmatprep.mubr.bf16.mxu0 %v4842
    %6604 = vmatmul.mubr.bf16.gmra.mrb[0].mxu0 %v4839
    %v6605 = vpop.f32.mrb[0].mxu0
    %v6606 = vadd.f32 %v6413, %v6605
    %v6607 = vpop.f32.mrb[0].mxu0
    %v6608 = vadd.f32 %v6415, %v6607
    %v6609 = vpop.f32.mrb[0].mxu0
    %v6610 = vadd.f32 %v6417, %v6609
    %v6611 = vpop.f32.mrb[0].mxu0
    %v6612 = vadd.f32 %v6419, %v6611
    %6613 = vmatprep.mubr.bf16.mxu0 %v4846
    %6614 = vmatmul.mubr.bf16.gmra.mrb[0].mxu0 %v4844
    %v6615 = vpop.f32.mrb[0].mxu0
    %v6616 = vadd.f32 %v6423, %v6615
    %v6617 = vpop.f32.mrb[0].mxu0
    %v6618 = vadd.f32 %v6425, %v6617
    %v6619 = vpop.f32.mrb[0].mxu0
    %v6620 = vadd.f32 %v6427, %v6619
    %v6621 = vpop.f32.mrb[0].mxu0
    %v6622 = vadd.f32 %v6429, %v6621
    %6623 = vmatprep.mubr.bf16.mxu0 %v4852
    %6624 = vmatmul.mubr.bf16.gmra.mrb[0].mxu0 %v4849
    %v6625 = vpop.f32.mrb[0].mxu0
    %v6626 = vadd.f32 %v6433, %v6625
    %v6627 = vpop.f32.mrb[0].mxu0
    %v6628 = vadd.f32 %v6435, %v6627
    %v6629 = vpop.f32.mrb[0].mxu0
    %v6630 = vadd.f32 %v6437, %v6629
    %v6631 = vpop.f32.mrb[0].mxu0
    %v6632 = vadd.f32 %v6439, %v6631
    %6633 = vmatprep.mubr.bf16.mxu0 %v4856
    %6634 = vmatmul.mubr.bf16.gmra.mrb[0].mxu0 %v4854
    %v6635 = vpop.f32.mrb[0].mxu0
    %v6636 = vadd.f32 %v6443, %v6635
    %v6637 = vpop.f32.mrb[0].mxu0
    %v6638 = vadd.f32 %v6445, %v6637
    %v6639 = vpop.f32.mrb[0].mxu0
    %v6640 = vadd.f32 %v6447, %v6639
    %v6641 = vpop.f32.mrb[0].mxu0
    %v6642 = vadd.f32 %v6449, %v6641
    %6643 = vmatprep.mubr.bf16.mxu0 %v4862
    %6644 = vmatmul.mubr.bf16.gmra.mrb[0].mxu0 %v4859
    %v6645 = vpop.f32.mrb[0].mxu0
    %v6646 = vadd.f32 %v6453, %v6645
    %v6647 = vpop.f32.mrb[0].mxu0
    %v6648 = vadd.f32 %v6455, %v6647
    %v6649 = vpop.f32.mrb[0].mxu0
    %v6650 = vadd.f32 %v6457, %v6649
    %v6651 = vpop.f32.mrb[0].mxu0
    %v6652 = vadd.f32 %v6459, %v6651
    %6653 = vmatprep.mubr.bf16.mxu0 %v4866
    %6654 = vmatmul.mubr.bf16.gmra.mrb[0].mxu0 %v4864
    %v6655 = vpop.f32.mrb[0].mxu0
    %v6656 = vadd.f32 %v6463, %v6655
    %v6657 = vpop.f32.mrb[0].mxu0
    %v6658 = vadd.f32 %v6465, %v6657
    %v6659 = vpop.f32.mrb[0].mxu0
    %v6660 = vadd.f32 %v6467, %v6659
    %v6661 = vpop.f32.mrb[0].mxu0
    %v6662 = vadd.f32 %v6469, %v6661
    %6663 = vdwg.mxu0
    %6664 = vmatprep.subr.bf16.mxu0 %v5862
    %6665 = vmatpush1.bf16.msra.mxu0 %v5861
    %6666 = vmatprep.subr.bf16.mxu0 %v5864
    %6667 = vmatpush1.bf16.msra.mxu0 %v5863
    %6668 = vmatprep.subr.bf16.mxu0 %v5866
    %6669 = vmatpush1.bf16.msra.mxu0 %v5865
    %6670 = vmatprep.subr.bf16.mxu0 %v5868
    %6671 = vmatpush1.bf16.msra.mxu0 %v5867
    %6672 = vmatprep.subr.bf16.mxu0 %v5870
    %6673 = vmatpush1.bf16.msra.mxu0 %v5869
    %6674 = vmatprep.subr.bf16.mxu0 %v5872
    %6675 = vmatpush1.bf16.msra.mxu0 %v5871
    %6676 = vmatprep.subr.bf16.mxu0 %v5874
    %6677 = vmatpush1.bf16.msra.mxu0 %v5873
    %6678 = vmatprep.subr.bf16.mxu0 %v5876
    %6679 = vmatpush1.bf16.msra.mxu0 %v5875
    %6680 = vmatprep.subr.bf16.mxu0 %v5878
    %6681 = vmatpush1.bf16.msra.mxu0 %v5877
    %6682 = vmatprep.subr.bf16.mxu0 %v5880
    %6683 = vmatpush1.bf16.msra.mxu0 %v5879
    %6684 = vmatprep.subr.bf16.mxu0 %v5882
    %6685 = vmatpush1.bf16.msra.mxu0 %v5881
    %6686 = vmatprep.subr.bf16.mxu0 %v5884
    %6687 = vmatpush1.bf16.msra.mxu0 %v5883
    %6688 = vmatprep.subr.bf16.mxu0 %v5886
    %6689 = vmatpush1.bf16.msra.mxu0 %v5885
    %6690 = vmatprep.subr.bf16.mxu0 %v5888
    %6691 = vmatpush1.bf16.msra.mxu0 %v5887
    %6692 = vmatprep.subr.bf16.mxu0 %v5890
    %6693 = vmatpush1.bf16.msra.mxu0 %v5889
    %6694 = vmatprep.subr.bf16.mxu0 %v5892
    %6695 = vmatpush1.bf16.msra.mxu0 %v5891
    %6696 = vmatprep.mubr.bf16.mxu0 %v4905
    %6697 = vmatmul.mubr.bf16.gmra.mrb[0].mxu0 %v4902
    %v6698 = vpop.f32.mrb[0].mxu0
    %v6699 = vadd.f32 %v6506, %v6698
    %v6700 = vpop.f32.mrb[0].mxu0
    %v6701 = vadd.f32 %v6508, %v6700
    %v6702 = vpop.f32.mrb[0].mxu0
    %v6703 = vadd.f32 %v6510, %v6702
    %v6704 = vpop.f32.mrb[0].mxu0
    %v6705 = vadd.f32 %v6512, %v6704
    %6706 = vmatprep.mubr.bf16.mxu0 %v4909
    %6707 = vmatmul.mubr.bf16.gmra.mrb[0].mxu0 %v4907
    %v6708 = vpop.f32.mrb[0].mxu0
    %v6709 = vadd.f32 %v6516, %v6708
    %v6710 = vpop.f32.mrb[0].mxu0
    %v6711 = vadd.f32 %v6518, %v6710
    %v6712 = vpop.f32.mrb[0].mxu0
    %v6713 = vadd.f32 %v6520, %v6712
    %v6714 = vpop.f32.mrb[0].mxu0
    %v6715 = vadd.f32 %v6522, %v6714
    %6716 = vmatprep.mubr.bf16.mxu0 %v4915
    %6717 = vmatmul.mubr.bf16.gmra.mrb[0].mxu0 %v4912
    %v6718 = vpop.f32.mrb[0].mxu0
    %v6719 = vadd.f32 %v6526, %v6718
    %v6720 = vpop.f32.mrb[0].mxu0
    %v6721 = vadd.f32 %v6528, %v6720
    %v6722 = vpop.f32.mrb[0].mxu0
    %v6723 = vadd.f32 %v6530, %v6722
    %v6724 = vpop.f32.mrb[0].mxu0
    %v6725 = vadd.f32 %v6532, %v6724
    %6726 = vmatprep.mubr.bf16.mxu0 %v4919
    %6727 = vmatmul.mubr.bf16.gmra.mrb[0].mxu0 %v4917
    %v6728 = vpop.f32.mrb[0].mxu0
    %v6729 = vadd.f32 %v6536, %v6728
    %v6730 = vpop.f32.mrb[0].mxu0
    %v6731 = vadd.f32 %v6538, %v6730
    %v6732 = vpop.f32.mrb[0].mxu0
    %v6733 = vadd.f32 %v6540, %v6732
    %v6734 = vpop.f32.mrb[0].mxu0
    %v6735 = vadd.f32 %v6542, %v6734
    %6736 = vmatprep.mubr.bf16.mxu0 %v4925
    %6737 = vmatmul.mubr.bf16.gmra.mrb[0].mxu0 %v4922
    %v6738 = vpop.f32.mrb[0].mxu0
    %v6739 = vadd.f32 %v6546, %v6738
    %v6740 = vpop.f32.mrb[0].mxu0
    %v6741 = vadd.f32 %v6548, %v6740
    %v6742 = vpop.f32.mrb[0].mxu0
    %v6743 = vadd.f32 %v6550, %v6742
    %v6744 = vpop.f32.mrb[0].mxu0
    %v6745 = vadd.f32 %v6552, %v6744
    %6746 = vmatprep.mubr.bf16.mxu0 %v4929
    %6747 = vmatmul.mubr.bf16.gmra.mrb[0].mxu0 %v4927
    %v6748 = vpop.f32.mrb[0].mxu0
    %v6749 = vadd.f32 %v6556, %v6748
    %v6750 = vpop.f32.mrb[0].mxu0
    %v6751 = vadd.f32 %v6558, %v6750
    %v6752 = vpop.f32.mrb[0].mxu0
    %v6753 = vadd.f32 %v6560, %v6752
    %v6754 = vpop.f32.mrb[0].mxu0
    %v6755 = vadd.f32 %v6562, %v6754
    %6756 = vmatprep.mubr.bf16.mxu0 %v4935
    %6757 = vmatmul.mubr.bf16.gmra.mrb[0].mxu0 %v4932
    %v6758 = vpop.f32.mrb[0].mxu0
    %v6759 = vadd.f32 %v6566, %v6758
    %v6760 = vpop.f32.mrb[0].mxu0
    %v6761 = vadd.f32 %v6568, %v6760
    %v6762 = vpop.f32.mrb[0].mxu0
    %v6763 = vadd.f32 %v6570, %v6762
    %v6764 = vpop.f32.mrb[0].mxu0
    %v6765 = vadd.f32 %v6572, %v6764
    %6766 = vmatprep.mubr.bf16.mxu0 %v4939
    %6767 = vmatmul.mubr.bf16.gmra.mrb[0].mxu0 %v4937
    %v6768 = vpop.f32.mrb[0].mxu0
    %v6769 = vadd.f32 %v6576, %v6768
    %v6770 = vpop.f32.mrb[0].mxu0
    %v6771 = vadd.f32 %v6578, %v6770
    %v6772 = vpop.f32.mrb[0].mxu0
    %v6773 = vadd.f32 %v6580, %v6772
    %v6774 = vpop.f32.mrb[0].mxu0
    %v6775 = vadd.f32 %v6582, %v6774
    %6776 = vmatprep.mubr.bf16.mxu0 %v4945
    %6777 = vmatmul.mubr.bf16.gmra.mrb[0].mxu0 %v4942
    %v6778 = vpop.f32.mrb[0].mxu0
    %v6779 = vadd.f32 %v6586, %v6778
    %v6780 = vpop.f32.mrb[0].mxu0
    %v6781 = vadd.f32 %v6588, %v6780
    %v6782 = vpop.f32.mrb[0].mxu0
    %v6783 = vadd.f32 %v6590, %v6782
    %v6784 = vpop.f32.mrb[0].mxu0
    %v6785 = vadd.f32 %v6592, %v6784
    %6786 = vmatprep.mubr.bf16.mxu0 %v4949
    %6787 = vmatmul.mubr.bf16.gmra.mrb[0].mxu0 %v4947
    %v6788 = vpop.f32.mrb[0].mxu0
    %v6789 = vadd.f32 %v6596, %v6788
    %v6790 = vpop.f32.mrb[0].mxu0
    %v6791 = vadd.f32 %v6598, %v6790
    %v6792 = vpop.f32.mrb[0].mxu0
    %v6793 = vadd.f32 %v6600, %v6792
    %v6794 = vpop.f32.mrb[0].mxu0
    %v6795 = vadd.f32 %v6602, %v6794
    %6796 = vmatprep.mubr.bf16.mxu0 %v4955
    %6797 = vmatmul.mubr.bf16.gmra.mrb[0].mxu0 %v4952
    %v6798 = vpop.f32.mrb[0].mxu0
    %v6799 = vadd.f32 %v6606, %v6798
    %v6800 = vpop.f32.mrb[0].mxu0
    %v6801 = vadd.f32 %v6608, %v6800
    %v6802 = vpop.f32.mrb[0].mxu0
    %v6803 = vadd.f32 %v6610, %v6802
    %v6804 = vpop.f32.mrb[0].mxu0
    %v6805 = vadd.f32 %v6612, %v6804
    %6806 = vmatprep.mubr.bf16.mxu0 %v4959
    %6807 = vmatmul.mubr.bf16.gmra.mrb[0].mxu0 %v4957
    %v6808 = vpop.f32.mrb[0].mxu0
    %v6809 = vadd.f32 %v6616, %v6808
    %v6810 = vpop.f32.mrb[0].mxu0
    %v6811 = vadd.f32 %v6618, %v6810
    %v6812 = vpop.f32.mrb[0].mxu0
    %v6813 = vadd.f32 %v6620, %v6812
    %v6814 = vpop.f32.mrb[0].mxu0
    %v6815 = vadd.f32 %v6622, %v6814
    %6816 = vmatprep.mubr.bf16.mxu0 %v4965
    %6817 = vmatmul.mubr.bf16.gmra.mrb[0].mxu0 %v4962
    %v6818 = vpop.f32.mrb[0].mxu0
    %v6819 = vadd.f32 %v6626, %v6818
    %v6820 = vpop.f32.mrb[0].mxu0
    %v6821 = vadd.f32 %v6628, %v6820
    %v6822 = vpop.f32.mrb[0].mxu0
    %v6823 = vadd.f32 %v6630, %v6822
    %v6824 = vpop.f32.mrb[0].mxu0
    %v6825 = vadd.f32 %v6632, %v6824
    %6826 = vmatprep.mubr.bf16.mxu0 %v4969
    %6827 = vmatmul.mubr.bf16.gmra.mrb[0].mxu0 %v4967
    %v6828 = vpop.f32.mrb[0].mxu0
    %v6829 = vadd.f32 %v6636, %v6828
    %v6830 = vpop.f32.mrb[0].mxu0
    %v6831 = vadd.f32 %v6638, %v6830
    %v6832 = vpop.f32.mrb[0].mxu0
    %v6833 = vadd.f32 %v6640, %v6832
    %v6834 = vpop.f32.mrb[0].mxu0
    %v6835 = vadd.f32 %v6642, %v6834
    %6836 = vmatprep.mubr.bf16.mxu0 %v4975
    %6837 = vmatmul.mubr.bf16.gmra.mrb[0].mxu0 %v4972
    %v6838 = vpop.f32.mrb[0].mxu0
    %v6839 = vadd.f32 %v6646, %v6838
    %v6840 = vpop.f32.mrb[0].mxu0
    %v6841 = vadd.f32 %v6648, %v6840
    %v6842 = vpop.f32.mrb[0].mxu0
    %v6843 = vadd.f32 %v6650, %v6842
    %v6844 = vpop.f32.mrb[0].mxu0
    %v6845 = vadd.f32 %v6652, %v6844
    %6846 = vmatprep.mubr.bf16.mxu0 %v4979
    %6847 = vmatmul.mubr.bf16.gmra.mrb[0].mxu0 %v4977
    %v6848 = vpop.f32.mrb[0].mxu0
    %v6849 = vadd.f32 %v6656, %v6848
    %v6850 = vpop.f32.mrb[0].mxu0
    %v6851 = vadd.f32 %v6658, %v6850
    %v6852 = vpop.f32.mrb[0].mxu0
    %v6853 = vadd.f32 %v6660, %v6852
    %v6854 = vpop.f32.mrb[0].mxu0
    %v6855 = vadd.f32 %v6662, %v6854
    %6856 = vdwg.mxu0
    %6857 = vmatprep.subr.bf16.mxu0 %v5894
    %6858 = vmatpush1.bf16.msra.mxu0 %v5893
    %6859 = vmatprep.subr.bf16.mxu0 %v5896
    %6860 = vmatpush1.bf16.msra.mxu0 %v5895
    %6861 = vmatprep.subr.bf16.mxu0 %v5898
    %6862 = vmatpush1.bf16.msra.mxu0 %v5897
    %6863 = vmatprep.subr.bf16.mxu0 %v5900
    %6864 = vmatpush1.bf16.msra.mxu0 %v5899
    %6865 = vmatprep.subr.bf16.mxu0 %v5902
    %6866 = vmatpush1.bf16.msra.mxu0 %v5901
    %6867 = vmatprep.subr.bf16.mxu0 %v5904
    %6868 = vmatpush1.bf16.msra.mxu0 %v5903
    %6869 = vmatprep.subr.bf16.mxu0 %v5906
    %6870 = vmatpush1.bf16.msra.mxu0 %v5905
    %6871 = vmatprep.subr.bf16.mxu0 %v5908
    %6872 = vmatpush1.bf16.msra.mxu0 %v5907
    %6873 = vmatprep.subr.bf16.mxu0 %v5910
    %6874 = vmatpush1.bf16.msra.mxu0 %v5909
    %6875 = vmatprep.subr.bf16.mxu0 %v5912
    %6876 = vmatpush1.bf16.msra.mxu0 %v5911
    %6877 = vmatprep.subr.bf16.mxu0 %v5914
    %6878 = vmatpush1.bf16.msra.mxu0 %v5913
    %6879 = vmatprep.subr.bf16.mxu0 %v5916
    %6880 = vmatpush1.bf16.msra.mxu0 %v5915
    %6881 = vmatprep.subr.bf16.mxu0 %v5918
    %6882 = vmatpush1.bf16.msra.mxu0 %v5917
    %6883 = vmatprep.subr.bf16.mxu0 %v5920
    %6884 = vmatpush1.bf16.msra.mxu0 %v5919
    %6885 = vmatprep.subr.bf16.mxu0 %v5922
    %6886 = vmatpush1.bf16.msra.mxu0 %v5921
    %6887 = vmatprep.subr.bf16.mxu0 %v5924
    %6888 = vmatpush1.bf16.msra.mxu0 %v5923
    %6889 = vmatprep.mubr.bf16.mxu0 %v5018
    %6890 = vmatmul.mubr.bf16.gmra.mrb[0].mxu0 %v5015
    %v6891 = vpop.f32.mrb[0].mxu0
    %v6892 = vadd.f32 %v6699, %v6891
    %v6893 = vpop.f32.mrb[0].mxu0
    %v6894 = vadd.f32 %v6701, %v6893
    %v6895 = vpop.f32.mrb[0].mxu0
    %v6896 = vadd.f32 %v6703, %v6895
    %v6897 = vpop.f32.mrb[0].mxu0
    %v6898 = vadd.f32 %v6705, %v6897
    %6899 = vmatprep.mubr.bf16.mxu0 %v5022
    %6900 = vmatmul.mubr.bf16.gmra.mrb[0].mxu0 %v5020
    %v6901 = vpop.f32.mrb[0].mxu0
    %v6902 = vadd.f32 %v6709, %v6901
    %v6903 = vpop.f32.mrb[0].mxu0
    %v6904 = vadd.f32 %v6711, %v6903
    %v6905 = vpop.f32.mrb[0].mxu0
    %v6906 = vadd.f32 %v6713, %v6905
    %v6907 = vpop.f32.mrb[0].mxu0
    %v6908 = vadd.f32 %v6715, %v6907
    %6909 = vmatprep.mubr.bf16.mxu0 %v5028
    %6910 = vmatmul.mubr.bf16.gmra.mrb[0].mxu0 %v5025
    %v6911 = vpop.f32.mrb[0].mxu0
    %v6912 = vadd.f32 %v6719, %v6911
    %v6913 = vpop.f32.mrb[0].mxu0
    %v6914 = vadd.f32 %v6721, %v6913
    %v6915 = vpop.f32.mrb[0].mxu0
    %v6916 = vadd.f32 %v6723, %v6915
    %v6917 = vpop.f32.mrb[0].mxu0
    %v6918 = vadd.f32 %v6725, %v6917
    %6919 = vmatprep.mubr.bf16.mxu0 %v5032
    %6920 = vmatmul.mubr.bf16.gmra.mrb[0].mxu0 %v5030
    %v6921 = vpop.f32.mrb[0].mxu0
    %v6922 = vadd.f32 %v6729, %v6921
    %v6923 = vpop.f32.mrb[0].mxu0
    %v6924 = vadd.f32 %v6731, %v6923
    %v6925 = vpop.f32.mrb[0].mxu0
    %v6926 = vadd.f32 %v6733, %v6925
    %v6927 = vpop.f32.mrb[0].mxu0
    %v6928 = vadd.f32 %v6735, %v6927
    %6929 = vmatprep.mubr.bf16.mxu0 %v5038
    %6930 = vmatmul.mubr.bf16.gmra.mrb[0].mxu0 %v5035
    %v6931 = vpop.f32.mrb[0].mxu0
    %v6932 = vadd.f32 %v6739, %v6931
    %v6933 = vpop.f32.mrb[0].mxu0
    %v6934 = vadd.f32 %v6741, %v6933
    %v6935 = vpop.f32.mrb[0].mxu0
    %v6936 = vadd.f32 %v6743, %v6935
    %v6937 = vpop.f32.mrb[0].mxu0
    %v6938 = vadd.f32 %v6745, %v6937
    %6939 = vmatprep.mubr.bf16.mxu0 %v5042
    %6940 = vmatmul.mubr.bf16.gmra.mrb[0].mxu0 %v5040
    %v6941 = vpop.f32.mrb[0].mxu0
    %v6942 = vadd.f32 %v6749, %v6941
    %v6943 = vpop.f32.mrb[0].mxu0
    %v6944 = vadd.f32 %v6751, %v6943
    %v6945 = vpop.f32.mrb[0].mxu0
    %v6946 = vadd.f32 %v6753, %v6945
    %v6947 = vpop.f32.mrb[0].mxu0
    %v6948 = vadd.f32 %v6755, %v6947
    %6949 = vmatprep.mubr.bf16.mxu0 %v5048
    %6950 = vmatmul.mubr.bf16.gmra.mrb[0].mxu0 %v5045
    %v6951 = vpop.f32.mrb[0].mxu0
    %v6952 = vadd.f32 %v6759, %v6951
    %v6953 = vpop.f32.mrb[0].mxu0
    %v6954 = vadd.f32 %v6761, %v6953
    %v6955 = vpop.f32.mrb[0].mxu0
    %v6956 = vadd.f32 %v6763, %v6955
    %v6957 = vpop.f32.mrb[0].mxu0
    %v6958 = vadd.f32 %v6765, %v6957
    %6959 = vmatprep.mubr.bf16.mxu0 %v5052
    %6960 = vmatmul.mubr.bf16.gmra.mrb[0].mxu0 %v5050
    %v6961 = vpop.f32.mrb[0].mxu0
    %v6962 = vadd.f32 %v6769, %v6961
    %v6963 = vpop.f32.mrb[0].mxu0
    %v6964 = vadd.f32 %v6771, %v6963
    %v6965 = vpop.f32.mrb[0].mxu0
    %v6966 = vadd.f32 %v6773, %v6965
    %v6967 = vpop.f32.mrb[0].mxu0
    %v6968 = vadd.f32 %v6775, %v6967
    %6969 = vmatprep.mubr.bf16.mxu0 %v5058
    %6970 = vmatmul.mubr.bf16.gmra.mrb[0].mxu0 %v5055
    %v6971 = vpop.f32.mrb[0].mxu0
    %v6972 = vadd.f32 %v6779, %v6971
    %v6973 = vpop.f32.mrb[0].mxu0
    %v6974 = vadd.f32 %v6781, %v6973
    %v6975 = vpop.f32.mrb[0].mxu0
    %v6976 = vadd.f32 %v6783, %v6975
    %v6977 = vpop.f32.mrb[0].mxu0
    %v6978 = vadd.f32 %v6785, %v6977
    %6979 = vmatprep.mubr.bf16.mxu0 %v5062
    %6980 = vmatmul.mubr.bf16.gmra.mrb[0].mxu0 %v5060
    %v6981 = vpop.f32.mrb[0].mxu0
    %v6982 = vadd.f32 %v6789, %v6981
    %v6983 = vpop.f32.mrb[0].mxu0
    %v6984 = vadd.f32 %v6791, %v6983
    %v6985 = vpop.f32.mrb[0].mxu0
    %v6986 = vadd.f32 %v6793, %v6985
    %v6987 = vpop.f32.mrb[0].mxu0
    %v6988 = vadd.f32 %v6795, %v6987
    %6989 = vmatprep.mubr.bf16.mxu0 %v5068
    %6990 = vmatmul.mubr.bf16.gmra.mrb[0].mxu0 %v5065
    %v6991 = vpop.f32.mrb[0].mxu0
    %v6992 = vadd.f32 %v6799, %v6991
    %v6993 = vpop.f32.mrb[0].mxu0
    %v6994 = vadd.f32 %v6801, %v6993
    %v6995 = vpop.f32.mrb[0].mxu0
    %v6996 = vadd.f32 %v6803, %v6995
    %v6997 = vpop.f32.mrb[0].mxu0
    %v6998 = vadd.f32 %v6805, %v6997
    %6999 = vmatprep.mubr.bf16.mxu0 %v5072
    %7000 = vmatmul.mubr.bf16.gmra.mrb[0].mxu0 %v5070
    %v7001 = vpop.f32.mrb[0].mxu0
    %v7002 = vadd.f32 %v6809, %v7001
    %v7003 = vpop.f32.mrb[0].mxu0
    %v7004 = vadd.f32 %v6811, %v7003
    %v7005 = vpop.f32.mrb[0].mxu0
    %v7006 = vadd.f32 %v6813, %v7005
    %v7007 = vpop.f32.mrb[0].mxu0
    %v7008 = vadd.f32 %v6815, %v7007
    %7009 = vmatprep.mubr.bf16.mxu0 %v5078
    %7010 = vmatmul.mubr.bf16.gmra.mrb[0].mxu0 %v5075
    %v7011 = vpop.f32.mrb[0].mxu0
    %v7012 = vadd.f32 %v6819, %v7011
    %v7013 = vpop.f32.mrb[0].mxu0
    %v7014 = vadd.f32 %v6821, %v7013
    %v7015 = vpop.f32.mrb[0].mxu0
    %v7016 = vadd.f32 %v6823, %v7015
    %v7017 = vpop.f32.mrb[0].mxu0
    %v7018 = vadd.f32 %v6825, %v7017
    %7019 = vmatprep.mubr.bf16.mxu0 %v5082
    %7020 = vmatmul.mubr.bf16.gmra.mrb[0].mxu0 %v5080
    %v7021 = vpop.f32.mrb[0].mxu0
    %v7022 = vadd.f32 %v6829, %v7021
    %v7023 = vpop.f32.mrb[0].mxu0
    %v7024 = vadd.f32 %v6831, %v7023
    %v7025 = vpop.f32.mrb[0].mxu0
    %v7026 = vadd.f32 %v6833, %v7025
    %v7027 = vpop.f32.mrb[0].mxu0
    %v7028 = vadd.f32 %v6835, %v7027
    %7029 = vmatprep.mubr.bf16.mxu0 %v5088
    %7030 = vmatmul.mubr.bf16.gmra.mrb[0].mxu0 %v5085
    %v7031 = vpop.f32.mrb[0].mxu0
    %v7032 = vadd.f32 %v6839, %v7031
    %v7033 = vpop.f32.mrb[0].mxu0
    %v7034 = vadd.f32 %v6841, %v7033
    %v7035 = vpop.f32.mrb[0].mxu0
    %v7036 = vadd.f32 %v6843, %v7035
    %v7037 = vpop.f32.mrb[0].mxu0
    %v7038 = vadd.f32 %v6845, %v7037
    %7039 = vmatprep.mubr.bf16.mxu0 %v5092
    %7040 = vmatmul.mubr.bf16.gmra.mrb[0].mxu0 %v5090
    %v7041 = vpop.f32.mrb[0].mxu0
    %v7042 = vadd.f32 %v6849, %v7041
    %v7043 = vpop.f32.mrb[0].mxu0
    %v7044 = vadd.f32 %v6851, %v7043
    %v7045 = vpop.f32.mrb[0].mxu0
    %v7046 = vadd.f32 %v6853, %v7045
    %v7047 = vpop.f32.mrb[0].mxu0
    %v7048 = vadd.f32 %v6855, %v7047
    %7049 = vdwg.mxu0
    %vm7114 = vcmask 1045504
    %v7115 = vrot.slane %v6892, 2
    %v7116 = vrot.slane %v6896, 2
    %v7117 = vsel %vm7114, %v7115, %v7116
    %v7118 = vrot.slane %v6894, 2
    %v7119 = vrot.slane %v6898, 2
    %v7120 = vsel %vm7114, %v7118, %v7119
    %v7121 = vrot.slane %v6902, 2
    %v7122 = vsel %vm7114, %v7116, %v7121
    %v7123 = vrot.slane %v6904, 2
    %v7124 = vsel %vm7114, %v7119, %v7123
    %v7125 = vrot.slane %v6906, 2
    %v7126 = vsel %vm7114, %v7121, %v7125
    %v7127 = vrot.slane %v6908, 2
    %v7128 = vsel %vm7114, %v7123, %v7127
    %v7129 = vrot.slane %v6912, 2
    %v7130 = vrot.slane %v6916, 2
    %v7131 = vsel %vm7114, %v7129, %v7130
    %v7132 = vrot.slane %v6914, 2
    %v7133 = vrot.slane %v6918, 2
    %v7134 = vsel %vm7114, %v7132, %v7133
    %v7135 = vrot.slane %v6922, 2
    %v7136 = vsel %vm7114, %v7130, %v7135
    %v7137 = vrot.slane %v6924, 2
    %v7138 = vsel %vm7114, %v7133, %v7137
    %v7139 = vrot.slane %v6926, 2
    %v7140 = vsel %vm7114, %v7135, %v7139
    %v7141 = vrot.slane %v6928, 2
    %v7142 = vsel %vm7114, %v7137, %v7141
    %v7143 = vrot.slane %v6932, 2
    %v7144 = vrot.slane %v6936, 2
    %v7145 = vsel %vm7114, %v7143, %v7144
    %v7146 = vrot.slane %v6934, 2
    %v7147 = vrot.slane %v6938, 2
    %v7148 = vsel %vm7114, %v7146, %v7147
    %v7149 = vrot.slane %v6942, 2
    %v7150 = vsel %vm7114, %v7144, %v7149
    %v7151 = vrot.slane %v6944, 2
    %v7152 = vsel %vm7114, %v7147, %v7151
    %v7153 = vrot.slane %v6946, 2
    %v7154 = vsel %vm7114, %v7149, %v7153
    %v7155 = vrot.slane %v6948, 2
    %v7156 = vsel %vm7114, %v7151, %v7155
    %v7157 = vrot.slane %v6952, 2
    %v7158 = vrot.slane %v6956, 2
    %v7159 = vsel %vm7114, %v7157, %v7158
    %v7160 = vrot.slane %v6954, 2
    %v7161 = vrot.slane %v6958, 2
    %v7162 = vsel %vm7114, %v7160, %v7161
    %v7163 = vrot.slane %v6962, 2
    %v7164 = vsel %vm7114, %v7158, %v7163
    %v7165 = vrot.slane %v6964, 2
    %v7166 = vsel %vm7114, %v7161, %v7165
    %v7167 = vrot.slane %v6966, 2
    %v7168 = vsel %vm7114, %v7163, %v7167
    %v7169 = vrot.slane %v6968, 2
    %v7170 = vsel %vm7114, %v7165, %v7169
    %v7171 = vrot.slane %v6972, 2
    %v7172 = vrot.slane %v6976, 2
    %v7173 = vsel %vm7114, %v7171, %v7172
    %v7174 = vrot.slane %v6974, 2
    %v7175 = vrot.slane %v6978, 2
    %v7176 = vsel %vm7114, %v7174, %v7175
    %v7177 = vrot.slane %v6982, 2
    %v7178 = vsel %vm7114, %v7172, %v7177
    %v7179 = vrot.slane %v6984, 2
    %v7180 = vsel %vm7114, %v7175, %v7179
    %v7181 = vrot.slane %v6986, 2
    %v7182 = vsel %vm7114, %v7177, %v7181
    %v7183 = vrot.slane %v6988, 2
    %v7184 = vsel %vm7114, %v7179, %v7183
    %v7185 = vrot.slane %v6992, 2
    %v7186 = vrot.slane %v6996, 2
    %v7187 = vsel %vm7114, %v7185, %v7186
    %v7188 = vrot.slane %v6994, 2
    %v7189 = vrot.slane %v6998, 2
    %v7190 = vsel %vm7114, %v7188, %v7189
    %v7191 = vrot.slane %v7002, 2
    %v7192 = vsel %vm7114, %v7186, %v7191
    %v7193 = vrot.slane %v7004, 2
    %v7194 = vsel %vm7114, %v7189, %v7193
    %v7195 = vrot.slane %v7006, 2
    %v7196 = vsel %vm7114, %v7191, %v7195
    %v7197 = vrot.slane %v7008, 2
    %v7198 = vsel %vm7114, %v7193, %v7197
    %v7199 = vrot.slane %v7012, 2
    %v7200 = vrot.slane %v7016, 2
    %v7201 = vsel %vm7114, %v7199, %v7200
    %v7202 = vrot.slane %v7014, 2
    %v7203 = vrot.slane %v7018, 2
    %v7204 = vsel %vm7114, %v7202, %v7203
    %v7205 = vrot.slane %v7022, 2
    %v7206 = vsel %vm7114, %v7200, %v7205
    %v7207 = vrot.slane %v7024, 2
    %v7208 = vsel %vm7114, %v7203, %v7207
    %v7209 = vrot.slane %v7026, 2
    %v7210 = vsel %vm7114, %v7205, %v7209
    %v7211 = vrot.slane %v7028, 2
    %v7212 = vsel %vm7114, %v7207, %v7211
    %v7213 = vrot.slane %v7032, 2
    %v7214 = vrot.slane %v7036, 2
    %v7215 = vsel %vm7114, %v7213, %v7214
    %v7216 = vrot.slane %v7034, 2
    %v7217 = vrot.slane %v7038, 2
    %v7218 = vsel %vm7114, %v7216, %v7217
    %v7219 = vrot.slane %v7042, 2
    %v7220 = vsel %vm7114, %v7214, %v7219
    %v7221 = vrot.slane %v7044, 2
    %v7222 = vsel %vm7114, %v7217, %v7221
    %v7223 = vrot.slane %v7046, 2
    %v7224 = vsel %vm7114, %v7219, %v7223
    %v7225 = vrot.slane %v7048, 2
    %v7226 = vsel %vm7114, %v7221, %v7225
    %v7291 = vmax.f32 %v6892, %v7117
    %v7292 = vmax.f32 %v6894, %v7120
    %v7293 = vmax.f32 %v6896, %v7122
    %v7294 = vmax.f32 %v6898, %v7124
    %v7295 = vmax.f32 %v6902, %v7126
    %v7296 = vmax.f32 %v6904, %v7128
    %v7297 = vmax.f32 %v6906, %v7125
    %v7298 = vmax.f32 %v6908, %v7127
    %v7299 = vmax.f32 %v6912, %v7131
    %v7300 = vmax.f32 %v6914, %v7134
    %v7301 = vmax.f32 %v6916, %v7136
    %v7302 = vmax.f32 %v6918, %v7138
    %v7303 = vmax.f32 %v6922, %v7140
    %v7304 = vmax.f32 %v6924, %v7142
    %v7305 = vmax.f32 %v6926, %v7139
    %v7306 = vmax.f32 %v6928, %v7141
    %v7307 = vmax.f32 %v6932, %v7145
    %v7308 = vmax.f32 %v6934, %v7148
    %v7309 = vmax.f32 %v6936, %v7150
    %v7310 = vmax.f32 %v6938, %v7152
    %v7311 = vmax.f32 %v6942, %v7154
    %v7312 = vmax.f32 %v6944, %v7156
    %v7313 = vmax.f32 %v6946, %v7153
    %v7314 = vmax.f32 %v6948, %v7155
    %v7315 = vmax.f32 %v6952, %v7159
    %v7316 = vmax.f32 %v6954, %v7162
    %v7317 = vmax.f32 %v6956, %v7164
    %v7318 = vmax.f32 %v6958, %v7166
    %v7319 = vmax.f32 %v6962, %v7168
    %v7320 = vmax.f32 %v6964, %v7170
    %v7321 = vmax.f32 %v6966, %v7167
    %v7322 = vmax.f32 %v6968, %v7169
    %v7323 = vmax.f32 %v6972, %v7173
    %v7324 = vmax.f32 %v6974, %v7176
    %v7325 = vmax.f32 %v6976, %v7178
    %v7326 = vmax.f32 %v6978, %v7180
    %v7327 = vmax.f32 %v6982, %v7182
    %v7328 = vmax.f32 %v6984, %v7184
    %v7329 = vmax.f32 %v6986, %v7181
    %v7330 = vmax.f32 %v6988, %v7183
    %v7331 = vmax.f32 %v6992, %v7187
    %v7332 = vmax.f32 %v6994, %v7190
    %v7333 = vmax.f32 %v6996, %v7192
    %v7334 = vmax.f32 %v6998, %v7194
    %v7335 = vmax.f32 %v7002, %v7196
    %v7336 = vmax.f32 %v7004, %v7198
    %v7337 = vmax.f32 %v7006, %v7195
    %v7338 = vmax.f32 %v7008, %v7197
    %v7339 = vmax.f32 %v7012, %v7201
    %v7340 = vmax.f32 %v7014, %v7204
    %v7341 = vmax.f32 %v7016, %v7206
    %v7342 = vmax.f32 %v7018, %v7208
    %v7343 = vmax.f32 %v7022, %v7210
    %v7344 = vmax.f32 %v7024, %v7212
    %v7345 = vmax.f32 %v7026, %v7209
    %v7346 = vmax.f32 %v7028, %v7211
    %v7347 = vmax.f32 %v7032, %v7215
    %v7348 = vmax.f32 %v7034, %v7218
    %v7349 = vmax.f32 %v7036, %v7220
    %v7350 = vmax.f32 %v7038, %v7222
    %v7351 = vmax.f32 %v7042, %v7224
    %v7352 = vmax.f32 %v7044, %v7226
    %v7353 = vmax.f32 %v7046, %v7223
    %v7354 = vmax.f32 %v7048, %v7225
    %7419 = vrot.lane.b32.xlu0 %v7291, 112
    %v7420 = vpop.permute.xlu0 %7419
    %7421 = vrot.lane.b32.xlu0 %v7292, 112
    %v7422 = vpop.permute.xlu0 %7421
    %7423 = vrot.lane.b32.xlu0 %v7293, 112
    %v7424 = vpop.permute.xlu0 %7423
    %7425 = vrot.lane.b32.xlu0 %v7294, 112
    %v7426 = vpop.permute.xlu0 %7425
    %7427 = vrot.lane.b32.xlu0 %v7295, 112
    %v7428 = vpop.permute.xlu0 %7427
    %7429 = vrot.lane.b32.xlu0 %v7296, 112
    %v7430 = vpop.permute.xlu0 %7429
    %7431 = vrot.lane.b32.xlu0 %v7297, 112
    %v7432 = vpop.permute.xlu0 %7431
    %7433 = vrot.lane.b32.xlu0 %v7298, 112
    %v7434 = vpop.permute.xlu0 %7433
    %7435 = vrot.lane.b32.xlu0 %v7299, 112
    %v7436 = vpop.permute.xlu0 %7435
    %7437 = vrot.lane.b32.xlu0 %v7300, 112
    %v7438 = vpop.permute.xlu0 %7437
    %7439 = vrot.lane.b32.xlu0 %v7301, 112
    %v7440 = vpop.permute.xlu0 %7439
    %7441 = vrot.lane.b32.xlu0 %v7302, 112
    %v7442 = vpop.permute.xlu0 %7441
    %7443 = vrot.lane.b32.xlu0 %v7303, 112
    %v7444 = vpop.permute.xlu0 %7443
    %7445 = vrot.lane.b32.xlu0 %v7304, 112
    %v7446 = vpop.permute.xlu0 %7445
    %7447 = vrot.lane.b32.xlu0 %v7305, 112
    %v7448 = vpop.permute.xlu0 %7447
    %7449 = vrot.lane.b32.xlu0 %v7306, 112
    %v7450 = vpop.permute.xlu0 %7449
    %7451 = vrot.lane.b32.xlu0 %v7307, 112
    %v7452 = vpop.permute.xlu0 %7451
    %7453 = vrot.lane.b32.xlu0 %v7308, 112
    %v7454 = vpop.permute.xlu0 %7453
    %7455 = vrot.lane.b32.xlu0 %v7309, 112
    %v7456 = vpop.permute.xlu0 %7455
    %7457 = vrot.lane.b32.xlu0 %v7310, 112
    %v7458 = vpop.permute.xlu0 %7457
    %7459 = vrot.lane.b32.xlu0 %v7311, 112
    %v7460 = vpop.permute.xlu0 %7459
    %7461 = vrot.lane.b32.xlu0 %v7312, 112
    %v7462 = vpop.permute.xlu0 %7461
    %7463 = vrot.lane.b32.xlu0 %v7313, 112
    %v7464 = vpop.permute.xlu0 %7463
    %7465 = vrot.lane.b32.xlu0 %v7314, 112
    %v7466 = vpop.permute.xlu0 %7465
    %7467 = vrot.lane.b32.xlu0 %v7315, 112
    %v7468 = vpop.permute.xlu0 %7467
    %7469 = vrot.lane.b32.xlu0 %v7316, 112
    %v7470 = vpop.permute.xlu0 %7469
    %7471 = vrot.lane.b32.xlu0 %v7317, 112
    %v7472 = vpop.permute.xlu0 %7471
    %7473 = vrot.lane.b32.xlu0 %v7318, 112
    %v7474 = vpop.permute.xlu0 %7473
    %7475 = vrot.lane.b32.xlu0 %v7319, 112
    %v7476 = vpop.permute.xlu0 %7475
    %7477 = vrot.lane.b32.xlu0 %v7320, 112
    %v7478 = vpop.permute.xlu0 %7477
    %7479 = vrot.lane.b32.xlu0 %v7321, 112
    %v7480 = vpop.permute.xlu0 %7479
    %7481 = vrot.lane.b32.xlu0 %v7322, 112
    %v7482 = vpop.permute.xlu0 %7481
    %7483 = vrot.lane.b32.xlu0 %v7323, 112
    %v7484 = vpop.permute.xlu0 %7483
    %7485 = vrot.lane.b32.xlu0 %v7324, 112
    %v7486 = vpop.permute.xlu0 %7485
    %7487 = vrot.lane.b32.xlu0 %v7325, 112
    %v7488 = vpop.permute.xlu0 %7487
    %7489 = vrot.lane.b32.xlu0 %v7326, 112
    %v7490 = vpop.permute.xlu0 %7489
    %7491 = vrot.lane.b32.xlu0 %v7327, 112
    %v7492 = vpop.permute.xlu0 %7491
    %7493 = vrot.lane.b32.xlu0 %v7328, 112
    %v7494 = vpop.permute.xlu0 %7493
    %7495 = vrot.lane.b32.xlu0 %v7329, 112
    %v7496 = vpop.permute.xlu0 %7495
    %7497 = vrot.lane.b32.xlu0 %v7330, 112
    %v7498 = vpop.permute.xlu0 %7497
    %7499 = vrot.lane.b32.xlu0 %v7331, 112
    %v7500 = vpop.permute.xlu0 %7499
    %7501 = vrot.lane.b32.xlu0 %v7332, 112
    %v7502 = vpop.permute.xlu0 %7501
    %7503 = vrot.lane.b32.xlu0 %v7333, 112
    %v7504 = vpop.permute.xlu0 %7503
    %7505 = vrot.lane.b32.xlu0 %v7334, 112
    %v7506 = vpop.permute.xlu0 %7505
    %7507 = vrot.lane.b32.xlu0 %v7335, 112
    %v7508 = vpop.permute.xlu0 %7507
    %7509 = vrot.lane.b32.xlu0 %v7336, 112
    %v7510 = vpop.permute.xlu0 %7509
    %7511 = vrot.lane.b32.xlu0 %v7337, 112
    %v7512 = vpop.permute.xlu0 %7511
    %7513 = vrot.lane.b32.xlu0 %v7338, 112
    %v7514 = vpop.permute.xlu0 %7513
    %7515 = vrot.lane.b32.xlu0 %v7339, 112
    %v7516 = vpop.permute.xlu0 %7515
    %7517 = vrot.lane.b32.xlu0 %v7340, 112
    %v7518 = vpop.permute.xlu0 %7517
    %7519 = vrot.lane.b32.xlu0 %v7341, 112
    %v7520 = vpop.permute.xlu0 %7519
    %7521 = vrot.lane.b32.xlu0 %v7342, 112
    %v7522 = vpop.permute.xlu0 %7521
    %7523 = vrot.lane.b32.xlu0 %v7343, 112
    %v7524 = vpop.permute.xlu0 %7523
    %7525 = vrot.lane.b32.xlu0 %v7344, 112
    %v7526 = vpop.permute.xlu0 %7525
    %7527 = vrot.lane.b32.xlu0 %v7345, 112
    %v7528 = vpop.permute.xlu0 %7527
    %7529 = vrot.lane.b32.xlu0 %v7346, 112
    %v7530 = vpop.permute.xlu0 %7529
    %7531 = vrot.lane.b32.xlu0 %v7347, 112
    %v7532 = vpop.permute.xlu0 %7531
    %7533 = vrot.lane.b32.xlu0 %v7348, 112
    %v7534 = vpop.permute.xlu0 %7533
    %7535 = vrot.lane.b32.xlu0 %v7349, 112
    %v7536 = vpop.permute.xlu0 %7535
    %7537 = vrot.lane.b32.xlu0 %v7350, 112
    %v7538 = vpop.permute.xlu0 %7537
    %7539 = vrot.lane.b32.xlu0 %v7351, 112
    %v7540 = vpop.permute.xlu0 %7539
    %7541 = vrot.lane.b32.xlu0 %v7352, 112
    %v7542 = vpop.permute.xlu0 %7541
    %7543 = vrot.lane.b32.xlu0 %v7353, 112
    %v7544 = vpop.permute.xlu0 %7543
    %7545 = vrot.lane.b32.xlu0 %v7354, 112
    %v7546 = vpop.permute.xlu0 %7545
    %vm7547 = vcmask 916480
    %v7548 = vsel %vm7547, %v7420, %v7422
    %v7549 = vsel %vm7547, %v7424, %v7426
    %v7550 = vsel %vm7547, %v7428, %v7430
    %v7551 = vsel %vm7547, %v7432, %v7434
    %v7552 = vsel %vm7547, %v7436, %v7438
    %v7553 = vsel %vm7547, %v7440, %v7442
    %v7554 = vsel %vm7547, %v7444, %v7446
    %v7555 = vsel %vm7547, %v7448, %v7450
    %v7556 = vsel %vm7547, %v7452, %v7454
    %v7557 = vsel %vm7547, %v7456, %v7458
    %v7558 = vsel %vm7547, %v7460, %v7462
    %v7559 = vsel %vm7547, %v7464, %v7466
    %v7560 = vsel %vm7547, %v7468, %v7470
    %v7561 = vsel %vm7547, %v7472, %v7474
    %v7562 = vsel %vm7547, %v7476, %v7478
    %v7563 = vsel %vm7547, %v7480, %v7482
    %v7564 = vsel %vm7547, %v7484, %v7486
    %v7565 = vsel %vm7547, %v7488, %v7490
    %v7566 = vsel %vm7547, %v7492, %v7494
    %v7567 = vsel %vm7547, %v7496, %v7498
    %v7568 = vsel %vm7547, %v7500, %v7502
    %v7569 = vsel %vm7547, %v7504, %v7506
    %v7570 = vsel %vm7547, %v7508, %v7510
    %v7571 = vsel %vm7547, %v7512, %v7514
    %v7572 = vsel %vm7547, %v7516, %v7518
    %v7573 = vsel %vm7547, %v7520, %v7522
    %v7574 = vsel %vm7547, %v7524, %v7526
    %v7575 = vsel %vm7547, %v7528, %v7530
    %v7576 = vsel %vm7547, %v7532, %v7534
    %v7577 = vsel %vm7547, %v7536, %v7538
    %v7578 = vsel %vm7547, %v7540, %v7542
    %v7579 = vsel %vm7547, %v7544, %v7546
    %v7676 = vsel %vm7547, %v7422, %v7420
    %v7677 = vsel %vm7547, %v7426, %v7424
    %v7678 = vsel %vm7547, %v7430, %v7428
    %v7679 = vsel %vm7547, %v7434, %v7432
    %v7680 = vsel %vm7547, %v7438, %v7436
    %v7681 = vsel %vm7547, %v7442, %v7440
    %v7682 = vsel %vm7547, %v7446, %v7444
    %v7683 = vsel %vm7547, %v7450, %v7448
    %v7684 = vsel %vm7547, %v7454, %v7452
    %v7685 = vsel %vm7547, %v7458, %v7456
    %v7686 = vsel %vm7547, %v7462, %v7460
    %v7687 = vsel %vm7547, %v7466, %v7464
    %v7688 = vsel %vm7547, %v7470, %v7468
    %v7689 = vsel %vm7547, %v7474, %v7472
    %v7690 = vsel %vm7547, %v7478, %v7476
    %v7691 = vsel %vm7547, %v7482, %v7480
    %v7692 = vsel %vm7547, %v7486, %v7484
    %v7693 = vsel %vm7547, %v7490, %v7488
    %v7694 = vsel %vm7547, %v7494, %v7492
    %v7695 = vsel %vm7547, %v7498, %v7496
    %v7696 = vsel %vm7547, %v7502, %v7500
    %v7697 = vsel %vm7547, %v7506, %v7504
    %v7698 = vsel %vm7547, %v7510, %v7508
    %v7699 = vsel %vm7547, %v7514, %v7512
    %v7700 = vsel %vm7547, %v7518, %v7516
    %v7701 = vsel %vm7547, %v7522, %v7520
    %v7702 = vsel %vm7547, %v7526, %v7524
    %v7703 = vsel %vm7547, %v7530, %v7528
    %v7704 = vsel %vm7547, %v7534, %v7532
    %v7705 = vsel %vm7547, %v7538, %v7536
    %v7706 = vsel %vm7547, %v7542, %v7540
    %v7707 = vsel %vm7547, %v7546, %v7544
    %v7708 = vmax.f32 %v7291, %v7548
    %v7709 = vmax.f32 %v7292, %v7676
    %v7710 = vmax.f32 %v7293, %v7549
    %v7711 = vmax.f32 %v7294, %v7677
    %v7712 = vmax.f32 %v7295, %v7550
    %v7713 = vmax.f32 %v7296, %v7678
    %v7714 = vmax.f32 %v7297, %v7551
    %v7715 = vmax.f32 %v7298, %v7679
    %v7716 = vmax.f32 %v7299, %v7552
    %v7717 = vmax.f32 %v7300, %v7680
    %v7718 = vmax.f32 %v7301, %v7553
    %v7719 = vmax.f32 %v7302, %v7681
    %v7720 = vmax.f32 %v7303, %v7554
    %v7721 = vmax.f32 %v7304, %v7682
    %v7722 = vmax.f32 %v7305, %v7555
    %v7723 = vmax.f32 %v7306, %v7683
    %v7724 = vmax.f32 %v7307, %v7556
    %v7725 = vmax.f32 %v7308, %v7684
    %v7726 = vmax.f32 %v7309, %v7557
    %v7727 = vmax.f32 %v7310, %v7685
    %v7728 = vmax.f32 %v7311, %v7558
    %v7729 = vmax.f32 %v7312, %v7686
    %v7730 = vmax.f32 %v7313, %v7559
    %v7731 = vmax.f32 %v7314, %v7687
    %v7732 = vmax.f32 %v7315, %v7560
    %v7733 = vmax.f32 %v7316, %v7688
    %v7734 = vmax.f32 %v7317, %v7561
    %v7735 = vmax.f32 %v7318, %v7689
    %v7736 = vmax.f32 %v7319, %v7562
    %v7737 = vmax.f32 %v7320, %v7690
    %v7738 = vmax.f32 %v7321, %v7563
    %v7739 = vmax.f32 %v7322, %v7691
    %v7740 = vmax.f32 %v7323, %v7564
    %v7741 = vmax.f32 %v7324, %v7692
    %v7742 = vmax.f32 %v7325, %v7565
    %v7743 = vmax.f32 %v7326, %v7693
    %v7744 = vmax.f32 %v7327, %v7566
    %v7745 = vmax.f32 %v7328, %v7694
    %v7746 = vmax.f32 %v7329, %v7567
    %v7747 = vmax.f32 %v7330, %v7695
    %v7748 = vmax.f32 %v7331, %v7568
    %v7749 = vmax.f32 %v7332, %v7696
    %v7750 = vmax.f32 %v7333, %v7569
    %v7751 = vmax.f32 %v7334, %v7697
    %v7752 = vmax.f32 %v7335, %v7570
    %v7753 = vmax.f32 %v7336, %v7698
    %v7754 = vmax.f32 %v7337, %v7571
    %v7755 = vmax.f32 %v7338, %v7699
    %v7756 = vmax.f32 %v7339, %v7572
    %v7757 = vmax.f32 %v7340, %v7700
    %v7758 = vmax.f32 %v7341, %v7573
    %v7759 = vmax.f32 %v7342, %v7701
    %v7760 = vmax.f32 %v7343, %v7574
    %v7761 = vmax.f32 %v7344, %v7702
    %v7762 = vmax.f32 %v7345, %v7575
    %v7763 = vmax.f32 %v7346, %v7703
    %v7764 = vmax.f32 %v7347, %v7576
    %v7765 = vmax.f32 %v7348, %v7704
    %v7766 = vmax.f32 %v7349, %v7577
    %v7767 = vmax.f32 %v7350, %v7705
    %v7768 = vmax.f32 %v7351, %v7578
    %v7769 = vmax.f32 %v7352, %v7706
    %v7770 = vmax.f32 %v7353, %v7579
    %v7771 = vmax.f32 %v7354, %v7707
    %v7772 = vld [vmem:[%s4] sm:$0x3]
    %v7774 = vlaneseq
    %v7775 = vshrl.u32 %v7774, 7
    %v7776 = vsub.s32 0, %v7775
    %v7777 = vrot.slane %v7772, %v7776
    %v7778 = vlaneseq
    %v7779 = vshrl.u32 %v7778, 7
    %v7780 = vsub.s32 1, %v7779
    %v7781 = vrot.slane %v7772, %v7780
    %v7784 = vadd.f32 %v7708, %v7777
    %v7785 = vadd.f32 %v7709, %v7781
    %v7786 = vadd.f32 %v7710, %v7777
    %v7787 = vadd.f32 %v7711, %v7781
    %v7788 = vadd.f32 %v7712, %v7777
    %v7789 = vadd.f32 %v7713, %v7781
    %v7790 = vadd.f32 %v7714, %v7777
    %v7791 = vadd.f32 %v7715, %v7781
    %v7792 = vadd.f32 %v7716, %v7777
    %v7793 = vadd.f32 %v7717, %v7781
    %v7794 = vadd.f32 %v7718, %v7777
    %v7795 = vadd.f32 %v7719, %v7781
    %v7796 = vadd.f32 %v7720, %v7777
    %v7797 = vadd.f32 %v7721, %v7781
    %v7798 = vadd.f32 %v7722, %v7777
    %v7799 = vadd.f32 %v7723, %v7781
    %v7800 = vadd.f32 %v7724, %v7777
    %v7801 = vadd.f32 %v7725, %v7781
    %v7802 = vadd.f32 %v7726, %v7777
    %v7803 = vadd.f32 %v7727, %v7781
    %v7804 = vadd.f32 %v7728, %v7777
    %v7805 = vadd.f32 %v7729, %v7781
    %v7806 = vadd.f32 %v7730, %v7777
    %v7807 = vadd.f32 %v7731, %v7781
    %v7808 = vadd.f32 %v7732, %v7777
    %v7809 = vadd.f32 %v7733, %v7781
    %v7810 = vadd.f32 %v7734, %v7777
    %v7811 = vadd.f32 %v7735, %v7781
    %v7812 = vadd.f32 %v7736, %v7777
    %v7813 = vadd.f32 %v7737, %v7781
    %v7814 = vadd.f32 %v7738, %v7777
    %v7815 = vadd.f32 %v7739, %v7781
    %v7816 = vadd.f32 %v7740, %v7777
    %v7817 = vadd.f32 %v7741, %v7781
    %v7818 = vadd.f32 %v7742, %v7777
    %v7819 = vadd.f32 %v7743, %v7781
    %v7820 = vadd.f32 %v7744, %v7777
    %v7821 = vadd.f32 %v7745, %v7781
    %v7822 = vadd.f32 %v7746, %v7777
    %v7823 = vadd.f32 %v7747, %v7781
    %v7824 = vadd.f32 %v7748, %v7777
    %v7825 = vadd.f32 %v7749, %v7781
    %v7826 = vadd.f32 %v7750, %v7777
    %v7827 = vadd.f32 %v7751, %v7781
    %v7828 = vadd.f32 %v7752, %v7777
    %v7829 = vadd.f32 %v7753, %v7781
    %v7830 = vadd.f32 %v7754, %v7777
    %v7831 = vadd.f32 %v7755, %v7781
    %v7832 = vadd.f32 %v7756, %v7777
    %v7833 = vadd.f32 %v7757, %v7781
    %v7834 = vadd.f32 %v7758, %v7777
    %v7835 = vadd.f32 %v7759, %v7781
    %v7836 = vadd.f32 %v7760, %v7777
    %v7837 = vadd.f32 %v7761, %v7781
    %v7838 = vadd.f32 %v7762, %v7777
    %v7839 = vadd.f32 %v7763, %v7781
    %v7840 = vadd.f32 %v7764, %v7777
    %v7841 = vadd.f32 %v7765, %v7781
    %v7842 = vadd.f32 %v7766, %v7777
    %v7843 = vadd.f32 %v7767, %v7781
    %v7844 = vadd.f32 %v7768, %v7777
    %v7845 = vadd.f32 %v7769, %v7781
    %v7846 = vadd.f32 %v7770, %v7777
    %v7847 = vadd.f32 %v7771, %v7781
    %v7848 = vmax.f32 %v7784, 0.0
    %v7849 = vmax.f32 %v7785, 0.0
    %v7850 = vmax.f32 %v7786, 0.0
    %v7851 = vmax.f32 %v7787, 0.0
    %v7852 = vmax.f32 %v7788, 0.0
    %v7853 = vmax.f32 %v7789, 0.0
    %v7854 = vmax.f32 %v7790, 0.0
    %v7855 = vmax.f32 %v7791, 0.0
    %v7856 = vmax.f32 %v7792, 0.0
    %v7857 = vmax.f32 %v7793, 0.0
    %v7858 = vmax.f32 %v7794, 0.0
    %v7859 = vmax.f32 %v7795, 0.0
    %v7860 = vmax.f32 %v7796, 0.0
    %v7861 = vmax.f32 %v7797, 0.0
    %v7862 = vmax.f32 %v7798, 0.0
    %v7863 = vmax.f32 %v7799, 0.0
    %v7864 = vmax.f32 %v7800, 0.0
    %v7865 = vmax.f32 %v7801, 0.0
    %v7866 = vmax.f32 %v7802, 0.0
    %v7867 = vmax.f32 %v7803, 0.0
    %v7868 = vmax.f32 %v7804, 0.0
    %v7869 = vmax.f32 %v7805, 0.0
    %v7870 = vmax.f32 %v7806, 0.0
    %v7871 = vmax.f32 %v7807, 0.0
    %v7872 = vmax.f32 %v7808, 0.0
    %v7873 = vmax.f32 %v7809, 0.0
    %v7874 = vmax.f32 %v7810, 0.0
    %v7875 = vmax.f32 %v7811, 0.0
    %v7876 = vmax.f32 %v7812, 0.0
    %v7877 = vmax.f32 %v7813, 0.0
    %v7878 = vmax.f32 %v7814, 0.0
    %v7879 = vmax.f32 %v7815, 0.0
    %v7880 = vmax.f32 %v7816, 0.0
    %v7881 = vmax.f32 %v7817, 0.0
    %v7882 = vmax.f32 %v7818, 0.0
    %v7883 = vmax.f32 %v7819, 0.0
    %v7884 = vmax.f32 %v7820, 0.0
    %v7885 = vmax.f32 %v7821, 0.0
    %v7886 = vmax.f32 %v7822, 0.0
    %v7887 = vmax.f32 %v7823, 0.0
    %v7888 = vmax.f32 %v7824, 0.0
    %v7889 = vmax.f32 %v7825, 0.0
    %v7890 = vmax.f32 %v7826, 0.0
    %v7891 = vmax.f32 %v7827, 0.0
    %v7892 = vmax.f32 %v7828, 0.0
    %v7893 = vmax.f32 %v7829, 0.0
    %v7894 = vmax.f32 %v7830, 0.0
    %v7895 = vmax.f32 %v7831, 0.0
    %v7896 = vmax.f32 %v7832, 0.0
    %v7897 = vmax.f32 %v7833, 0.0
    %v7898 = vmax.f32 %v7834, 0.0
    %v7899 = vmax.f32 %v7835, 0.0
    %v7900 = vmax.f32 %v7836, 0.0
    %v7901 = vmax.f32 %v7837, 0.0
    %v7902 = vmax.f32 %v7838, 0.0
    %v7903 = vmax.f32 %v7839, 0.0
    %v7904 = vmax.f32 %v7840, 0.0
    %v7905 = vmax.f32 %v7841, 0.0
    %v7906 = vmax.f32 %v7842, 0.0
    %v7907 = vmax.f32 %v7843, 0.0
    %v7908 = vmax.f32 %v7844, 0.0
    %v7909 = vmax.f32 %v7845, 0.0
    %v7910 = vmax.f32 %v7846, 0.0
    %v7911 = vmax.f32 %v7847, 0.0
    %v7912 = vpack.c.bf16 %v7850, %v7848
    %v7913 = vpack.c.bf16 %v7851, %v7849
    %v7914 = vpack.c.bf16 %v7854, %v7852
    %v7915 = vpack.c.bf16 %v7855, %v7853
    %v7916 = vpack.c.bf16 %v7858, %v7856
    %v7917 = vpack.c.bf16 %v7859, %v7857
    %v7918 = vpack.c.bf16 %v7862, %v7860
    %v7919 = vpack.c.bf16 %v7863, %v7861
    %v7920 = vpack.c.bf16 %v7866, %v7864
    %v7921 = vpack.c.bf16 %v7867, %v7865
    %v7922 = vpack.c.bf16 %v7870, %v7868
    %v7923 = vpack.c.bf16 %v7871, %v7869
    %v7924 = vpack.c.bf16 %v7874, %v7872
    %v7925 = vpack.c.bf16 %v7875, %v7873
    %v7926 = vpack.c.bf16 %v7878, %v7876
    %v7927 = vpack.c.bf16 %v7879, %v7877
    %v7928 = vpack.c.bf16 %v7882, %v7880
    %v7929 = vpack.c.bf16 %v7883, %v7881
    %v7930 = vpack.c.bf16 %v7886, %v7884
    %v7931 = vpack.c.bf16 %v7887, %v7885
    %v7932 = vpack.c.bf16 %v7890, %v7888
    %v7933 = vpack.c.bf16 %v7891, %v7889
    %v7934 = vpack.c.bf16 %v7894, %v7892
    %v7935 = vpack.c.bf16 %v7895, %v7893
    %v7936 = vpack.c.bf16 %v7898, %v7896
    %v7937 = vpack.c.bf16 %v7899, %v7897
    %v7938 = vpack.c.bf16 %v7902, %v7900
    %v7939 = vpack.c.bf16 %v7903, %v7901
    %v7940 = vpack.c.bf16 %v7906, %v7904
    %v7941 = vpack.c.bf16 %v7907, %v7905
    %v7942 = vpack.c.bf16 %v7910, %v7908
    %v7943 = vpack.c.bf16 %v7911, %v7909
    %v7960 = vrot.slane %v7912, 2
    %v7961 = vrot.slane %v7913, 2
    %v7962 = vrot.slane %v7916, 2
    %v7963 = vrot.slane %v7917, 2
    %v7964 = vrot.slane %v7920, 2
    %v7965 = vrot.slane %v7921, 2
    %v7966 = vrot.slane %v7924, 2
    %v7967 = vrot.slane %v7925, 2
    %v7968 = vrot.slane %v7928, 2
    %v7969 = vrot.slane %v7929, 2
    %v7970 = vrot.slane %v7932, 2
    %v7971 = vrot.slane %v7933, 2
    %v7972 = vrot.slane %v7936, 2
    %v7973 = vrot.slane %v7937, 2
    %v7974 = vrot.slane %v7940, 2
    %v7975 = vrot.slane %v7941, 2
    %v7976 = vrot.slane %v7912, 4
    %v7977 = vrot.slane %v7913, 4
    %v7978 = vrot.slane %v7916, 4
    %v7979 = vrot.slane %v7917, 4
    %v7980 = vrot.slane %v7920, 4
    %v7981 = vrot.slane %v7921, 4
    %v7982 = vrot.slane %v7924, 4
    %v7983 = vrot.slane %v7925, 4
    %v7984 = vrot.slane %v7928, 4
    %v7985 = vrot.slane %v7929, 4
    %v7986 = vrot.slane %v7932, 4
    %v7987 = vrot.slane %v7933, 4
    %v7988 = vrot.slane %v7936, 4
    %v7989 = vrot.slane %v7937, 4
    %v7990 = vrot.slane %v7940, 4
    %v7991 = vrot.slane %v7941, 4
    %vm8008 = vcmask 1041408
    %v8009 = vrot.slane %v7912, 6
    %v8010 = vrot.slane %v7914, 6
    %v8011 = vsel %vm8008, %v8009, %v8010
    %v8012 = vrot.slane %v7913, 6
    %v8013 = vrot.slane %v7915, 6
    %v8014 = vsel %vm8008, %v8012, %v8013
    %v8015 = vrot.slane %v7916, 6
    %v8016 = vrot.slane %v7918, 6
    %v8017 = vsel %vm8008, %v8015, %v8016
    %v8018 = vrot.slane %v7917, 6
    %v8019 = vrot.slane %v7919, 6
    %v8020 = vsel %vm8008, %v8018, %v8019
    %v8021 = vrot.slane %v7920, 6
    %v8022 = vrot.slane %v7922, 6
    %v8023 = vsel %vm8008, %v8021, %v8022
    %v8024 = vrot.slane %v7921, 6
    %v8025 = vrot.slane %v7923, 6
    %v8026 = vsel %vm8008, %v8024, %v8025
    %v8027 = vrot.slane %v7924, 6
    %v8028 = vrot.slane %v7926, 6
    %v8029 = vsel %vm8008, %v8027, %v8028
    %v8030 = vrot.slane %v7925, 6
    %v8031 = vrot.slane %v7927, 6
    %v8032 = vsel %vm8008, %v8030, %v8031
    %v8033 = vrot.slane %v7928, 6
    %v8034 = vrot.slane %v7930, 6
    %v8035 = vsel %vm8008, %v8033, %v8034
    %v8036 = vrot.slane %v7929, 6
    %v8037 = vrot.slane %v7931, 6
    %v8038 = vsel %vm8008, %v8036, %v8037
    %v8039 = vrot.slane %v7932, 6
    %v8040 = vrot.slane %v7934, 6
    %v8041 = vsel %vm8008, %v8039, %v8040
    %v8042 = vrot.slane %v7933, 6
    %v8043 = vrot.slane %v7935, 6
    %v8044 = vsel %vm8008, %v8042, %v8043
    %v8045 = vrot.slane %v7936, 6
    %v8046 = vrot.slane %v7938, 6
    %v8047 = vsel %vm8008, %v8045, %v8046
    %v8048 = vrot.slane %v7937, 6
    %v8049 = vrot.slane %v7939, 6
    %v8050 = vsel %vm8008, %v8048, %v8049
    %v8051 = vrot.slane %v7940, 6
    %v8052 = vrot.slane %v7942, 6
    %v8053 = vsel %vm8008, %v8051, %v8052
    %v8054 = vrot.slane %v7941, 6
    %v8055 = vrot.slane %v7943, 6
    %v8056 = vsel %vm8008, %v8054, %v8055
    %v8057 = vunpack.c.l.b16 %v7912
    %v8058 = vunpack.c.l.b16 %v7913
    %v8059 = vunpack.c.l.b16 %v7960
    %v8060 = vunpack.c.l.b16 %v7961
    %v8061 = vunpack.c.l.b16 %v7976
    %v8062 = vunpack.c.l.b16 %v7977
    %v8063 = vunpack.c.l.b16 %v8011
    %v8064 = vunpack.c.l.b16 %v8014
    %v8065 = vunpack.c.l.b16 %v7914
    %v8066 = vunpack.c.l.b16 %v7915
    %v8067 = vunpack.c.l.b16 %v7916
    %v8068 = vunpack.c.l.b16 %v7917
    %v8069 = vunpack.c.l.b16 %v7962
    %v8070 = vunpack.c.l.b16 %v7963
    %v8071 = vunpack.c.l.b16 %v7978
    %v8072 = vunpack.c.l.b16 %v7979
    %v8073 = vunpack.c.l.b16 %v8017
    %v8074 = vunpack.c.l.b16 %v8020
    %v8075 = vunpack.c.l.b16 %v7918
    %v8076 = vunpack.c.l.b16 %v7919
    %v8077 = vunpack.c.l.b16 %v7920
    %v8078 = vunpack.c.l.b16 %v7921
    %v8079 = vunpack.c.l.b16 %v7964
    %v8080 = vunpack.c.l.b16 %v7965
    %v8081 = vunpack.c.l.b16 %v7980
    %v8082 = vunpack.c.l.b16 %v7981
    %v8083 = vunpack.c.l.b16 %v8023
    %v8084 = vunpack.c.l.b16 %v8026
    %v8085 = vunpack.c.l.b16 %v7922
    %v8086 = vunpack.c.l.b16 %v7923
    %v8087 = vunpack.c.l.b16 %v7924
    %v8088 = vunpack.c.l.b16 %v7925
    %v8089 = vunpack.c.l.b16 %v7966
    %v8090 = vunpack.c.l.b16 %v7967
    %v8091 = vunpack.c.l.b16 %v7982
    %v8092 = vunpack.c.l.b16 %v7983
    %v8093 = vunpack.c.l.b16 %v8029
    %v8094 = vunpack.c.l.b16 %v8032
    %v8095 = vunpack.c.l.b16 %v7926
    %v8096 = vunpack.c.l.b16 %v7927
    %v8097 = vunpack.c.l.b16 %v7928
    %v8098 = vunpack.c.l.b16 %v7929
    %v8099 = vunpack.c.l.b16 %v7968
    %v8100 = vunpack.c.l.b16 %v7969
    %v8101 = vunpack.c.l.b16 %v7984
    %v8102 = vunpack.c.l.b16 %v7985
    %v8103 = vunpack.c.l.b16 %v8035
    %v8104 = vunpack.c.l.b16 %v8038
    %v8105 = vunpack.c.l.b16 %v7930
    %v8106 = vunpack.c.l.b16 %v7931
    %v8107 = vunpack.c.l.b16 %v7932
    %v8108 = vunpack.c.l.b16 %v7933
    %v8109 = vunpack.c.l.b16 %v7970
    %v8110 = vunpack.c.l.b16 %v7971
    %v8111 = vunpack.c.l.b16 %v7986
    %v8112 = vunpack.c.l.b16 %v7987
    %v8113 = vunpack.c.l.b16 %v8041
    %v8114 = vunpack.c.l.b16 %v8044
    %v8115 = vunpack.c.l.b16 %v7934
    %v8116 = vunpack.c.l.b16 %v7935
    %v8117 = vunpack.c.l.b16 %v7936
    %v8118 = vunpack.c.l.b16 %v7937
    %v8119 = vunpack.c.l.b16 %v7972
    %v8120 = vunpack.c.l.b16 %v7973
    %v8121 = vunpack.c.l.b16 %v7988
    %v8122 = vunpack.c.l.b16 %v7989
    %v8123 = vunpack.c.l.b16 %v8047
    %v8124 = vunpack.c.l.b16 %v8050
    %v8125 = vunpack.c.l.b16 %v7938
    %v8126 = vunpack.c.l.b16 %v7939
    %v8127 = vunpack.c.l.b16 %v7940
    %v8128 = vunpack.c.l.b16 %v7941
    %v8129 = vunpack.c.l.b16 %v7974
    %v8130 = vunpack.c.l.b16 %v7975
    %v8131 = vunpack.c.l.b16 %v7990
    %v8132 = vunpack.c.l.b16 %v7991
    %v8133 = vunpack.c.l.b16 %v8053
    %v8134 = vunpack.c.l.b16 %v8056
    %v8135 = vunpack.c.l.b16 %v7942
    %v8136 = vunpack.c.l.b16 %v7943
    %v8137 = vld [vmem:[%s5] sm:$0xf]
    %v8138 = vld [vmem:[%s5 + $0x4] sm:$0xf]
    %v8139 = vld [vmem:[%s5 + $0x8] sm:$0xf]
    %v8140 = vld [vmem:[%s5 + $0xc] sm:$0xf]
    %v8141 = vld [vmem:[%s5 + $0x10] sm:$0xf]
    %v8142 = vld [vmem:[%s5 + $0x14] sm:$0xf]
    %v8143 = vld [vmem:[%s5 + $0x18] sm:$0xf]
    %v8144 = vld [vmem:[%s5 + $0x1c] sm:$0xf]
    %v8145 = vld [vmem:[%s5 + $0x20] sm:$0xf]
    %v8146 = vld [vmem:[%s5 + $0x24] sm:$0xf]
    %v8147 = vld [vmem:[%s5 + $0x28] sm:$0xf]
    %v8148 = vld [vmem:[%s5 + $0x2c] sm:$0xf]
    %v8149 = vld [vmem:[%s5 + $0x30] sm:$0xf]
    %v8150 = vld [vmem:[%s5 + $0x34] sm:$0xf]
    %v8151 = vld [vmem:[%s5 + $0x38] sm:$0xf]
    %v8152 = vld [vmem:[%s5 + $0x3c] sm:$0xf]
    %v8153 = vld [vmem:[%s5 + $0x40] sm:$0xf]
    %v8154 = vld [vmem:[%s5 + $0x44] sm:$0xf]
    %v8155 = vld [vmem:[%s5 + $0x48] sm:$0xf]
    %v8156 = vld [vmem:[%s5 + $0x4c] sm:$0xf]
    %v8157 = vld [vmem:[%s5 + $0x50] sm:$0xf]
    %v8158 = vld [vmem:[%s5 + $0x54] sm:$0xf]
    %v8159 = vld [vmem:[%s5 + $0x58] sm:$0xf]
    %v8160 = vld [vmem:[%s5 + $0x5c] sm:$0xf]
    %v8161 = vld [vmem:[%s5 + $0x60] sm:$0xf]
    %v8162 = vld [vmem:[%s5 + $0x64] sm:$0xf]
    %v8163 = vld [vmem:[%s5 + $0x68] sm:$0xf]
    %v8164 = vld [vmem:[%s5 + $0x6c] sm:$0xf]
    %v8165 = vld [vmem:[%s5 + $0x70] sm:$0xf]
    %v8166 = vld [vmem:[%s5 + $0x74] sm:$0xf]
    %v8167 = vld [vmem:[%s5 + $0x78] sm:$0xf]
    %v8168 = vld [vmem:[%s5 + $0x7c] sm:$0xf]
    %v8169 = vld [vmem:[%s5 + $0x80] sm:$0xf]
    %v8170 = vld [vmem:[%s5 + $0x84] sm:$0xf]
    %v8171 = vld [vmem:[%s5 + $0x88] sm:$0xf]
    %v8172 = vld [vmem:[%s5 + $0x8c] sm:$0xf]
    %v8173 = vld [vmem:[%s5 + $0x90] sm:$0xf]
    %v8174 = vld [vmem:[%s5 + $0x94] sm:$0xf]
    %v8175 = vld [vmem:[%s5 + $0x98] sm:$0xf]
    %v8176 = vld [vmem:[%s5 + $0x9c] sm:$0xf]
    %v8177 = vld [vmem:[%s5 + $0xa0] sm:$0xf]
    %v8178 = vld [vmem:[%s5 + $0xa4] sm:$0xf]
    %v8179 = vld [vmem:[%s5 + $0xa8] sm:$0xf]
    %v8180 = vld [vmem:[%s5 + $0xac] sm:$0xf]
    %v8181 = vld [vmem:[%s5 + $0xb0] sm:$0xf]
    %v8182 = vld [vmem:[%s5 + $0xb4] sm:$0xf]
    %v8183 = vld [vmem:[%s5 + $0xb8] sm:$0xf]
    %v8184 = vld [vmem:[%s5 + $0xbc] sm:$0xf]
    %v8185 = vld [vmem:[%s5 + $0xc0] sm:$0xf]
    %v8186 = vld [vmem:[%s5 + $0xc4] sm:$0xf]
    %v8187 = vld [vmem:[%s5 + $0xc8] sm:$0xf]
    %v8188 = vld [vmem:[%s5 + $0xcc] sm:$0xf]
    %v8189 = vld [vmem:[%s5 + $0xd0] sm:$0xf]
    %v8190 = vld [vmem:[%s5 + $0xd4] sm:$0xf]
    %v8191 = vld [vmem:[%s5 + $0xd8] sm:$0xf]
    %v8192 = vld [vmem:[%s5 + $0xdc] sm:$0xf]
    %v8193 = vld [vmem:[%s5 + $0xe0] sm:$0xf]
    %v8194 = vld [vmem:[%s5 + $0xe4] sm:$0xf]
    %v8195 = vld [vmem:[%s5 + $0xe8] sm:$0xf]
    %v8196 = vld [vmem:[%s5 + $0xec] sm:$0xf]
    %v8197 = vld [vmem:[%s5 + $0xf0] sm:$0xf]
    %v8198 = vld [vmem:[%s5 + $0xf4] sm:$0xf]
    %v8199 = vld [vmem:[%s5 + $0xf8] sm:$0xf]
    %v8200 = vld [vmem:[%s5 + $0xfc] sm:$0xf]
    %v8201 = vld [vmem:[%s5 + $0x100] sm:$0xf]
    %v8202 = vld [vmem:[%s5 + $0x104] sm:$0xf]
    %v8203 = vld [vmem:[%s5 + $0x108] sm:$0xf]
    %v8204 = vld [vmem:[%s5 + $0x10c] sm:$0xf]
    %v8205 = vld [vmem:[%s5 + $0x110] sm:$0xf]
    %v8206 = vld [vmem:[%s5 + $0x114] sm:$0xf]
    %v8207 = vld [vmem:[%s5 + $0x118] sm:$0xf]
    %v8208 = vld [vmem:[%s5 + $0x11c] sm:$0xf]
    %v8209 = vld [vmem:[%s5 + $0x120] sm:$0xf]
    %v8210 = vld [vmem:[%s5 + $0x124] sm:$0xf]
    %v8211 = vld [vmem:[%s5 + $0x128] sm:$0xf]
    %v8212 = vld [vmem:[%s5 + $0x12c] sm:$0xf]
    %v8213 = vld [vmem:[%s5 + $0x130] sm:$0xf]
    %v8214 = vld [vmem:[%s5 + $0x134] sm:$0xf]
    %v8215 = vld [vmem:[%s5 + $0x138] sm:$0xf]
    %v8216 = vld [vmem:[%s5 + $0x13c] sm:$0xf]
    %v8217 = vld [vmem:[%s5 + $0x140] sm:$0xf]
    %v8218 = vld [vmem:[%s5 + $0x144] sm:$0xf]
    %v8219 = vld [vmem:[%s5 + $0x148] sm:$0xf]
    %v8220 = vld [vmem:[%s5 + $0x14c] sm:$0xf]
    %v8221 = vld [vmem:[%s5 + $0x150] sm:$0xf]
    %v8222 = vld [vmem:[%s5 + $0x154] sm:$0xf]
    %v8223 = vld [vmem:[%s5 + $0x158] sm:$0xf]
    %v8224 = vld [vmem:[%s5 + $0x15c] sm:$0xf]
    %v8225 = vld [vmem:[%s5 + $0x160] sm:$0xf]
    %v8226 = vld [vmem:[%s5 + $0x164] sm:$0xf]
    %v8227 = vld [vmem:[%s5 + $0x168] sm:$0xf]
    %v8228 = vld [vmem:[%s5 + $0x16c] sm:$0xf]
    %v8229 = vld [vmem:[%s5 + $0x170] sm:$0xf]
    %v8230 = vld [vmem:[%s5 + $0x174] sm:$0xf]
    %v8231 = vld [vmem:[%s5 + $0x178] sm:$0xf]
    %v8232 = vld [vmem:[%s5 + $0x17c] sm:$0xf]
    %v8233 = vld [vmem:[%s5 + $0x180] sm:$0xf]
    %v8234 = vld [vmem:[%s5 + $0x184] sm:$0xf]
    %v8235 = vld [vmem:[%s5 + $0x188] sm:$0xf]
    %v8236 = vld [vmem:[%s5 + $0x18c] sm:$0xf]
    %v8237 = vld [vmem:[%s5 + $0x190] sm:$0xf]
    %v8238 = vld [vmem:[%s5 + $0x194] sm:$0xf]
    %v8239 = vld [vmem:[%s5 + $0x198] sm:$0xf]
    %v8240 = vld [vmem:[%s5 + $0x19c] sm:$0xf]
    %v8241 = vld [vmem:[%s5 + $0x1a0] sm:$0xf]
    %v8242 = vld [vmem:[%s5 + $0x1a4] sm:$0xf]
    %v8243 = vld [vmem:[%s5 + $0x1a8] sm:$0xf]
    %v8244 = vld [vmem:[%s5 + $0x1ac] sm:$0xf]
    %v8245 = vld [vmem:[%s5 + $0x1b0] sm:$0xf]
    %v8246 = vld [vmem:[%s5 + $0x1b4] sm:$0xf]
    %v8247 = vld [vmem:[%s5 + $0x1b8] sm:$0xf]
    %v8248 = vld [vmem:[%s5 + $0x1bc] sm:$0xf]
    %v8249 = vld [vmem:[%s5 + $0x1c0] sm:$0xf]
    %v8250 = vld [vmem:[%s5 + $0x1c4] sm:$0xf]
    %v8251 = vld [vmem:[%s5 + $0x1c8] sm:$0xf]
    %v8252 = vld [vmem:[%s5 + $0x1cc] sm:$0xf]
    %v8253 = vld [vmem:[%s5 + $0x1d0] sm:$0xf]
    %v8254 = vld [vmem:[%s5 + $0x1d4] sm:$0xf]
    %v8255 = vld [vmem:[%s5 + $0x1d8] sm:$0xf]
    %v8256 = vld [vmem:[%s5 + $0x1dc] sm:$0xf]
    %v8257 = vld [vmem:[%s5 + $0x1e0] sm:$0xf]
    %v8258 = vld [vmem:[%s5 + $0x1e4] sm:$0xf]
    %v8259 = vld [vmem:[%s5 + $0x1e8] sm:$0xf]
    %v8260 = vld [vmem:[%s5 + $0x1ec] sm:$0xf]
    %v8261 = vld [vmem:[%s5 + $0x1f0] sm:$0xf]
    %v8262 = vld [vmem:[%s5 + $0x1f4] sm:$0xf]
    %v8263 = vld [vmem:[%s5 + $0x1f8] sm:$0xf]
    %v8264 = vld [vmem:[%s5 + $0x1fc] sm:$0xf]
    %v8265 = vld [vmem:[%s5 + $0x200] sm:$0xf]
    %v8266 = vld [vmem:[%s5 + $0x204] sm:$0xf]
    %v8267 = vld [vmem:[%s5 + $0x208] sm:$0xf]
    %v8268 = vld [vmem:[%s5 + $0x20c] sm:$0xf]
    %v8269 = vld [vmem:[%s5 + $0x210] sm:$0xf]
    %v8270 = vld [vmem:[%s5 + $0x214] sm:$0xf]
    %v8271 = vld [vmem:[%s5 + $0x218] sm:$0xf]
    %v8272 = vld [vmem:[%s5 + $0x21c] sm:$0xf]
    %v8273 = vld [vmem:[%s5 + $0x220] sm:$0xf]
    %v8274 = vld [vmem:[%s5 + $0x224] sm:$0xf]
    %v8275 = vld [vmem:[%s5 + $0x228] sm:$0xf]
    %v8276 = vld [vmem:[%s5 + $0x22c] sm:$0xf]
    %v8277 = vld [vmem:[%s5 + $0x230] sm:$0xf]
    %v8278 = vld [vmem:[%s5 + $0x234] sm:$0xf]
    %v8279 = vld [vmem:[%s5 + $0x238] sm:$0xf]
    %v8280 = vld [vmem:[%s5 + $0x23c] sm:$0xf]
    %v8281 = vld [vmem:[%s5 + $0x240] sm:$0xf]
    %v8282 = vld [vmem:[%s5 + $0x244] sm:$0xf]
    %v8283 = vld [vmem:[%s5 + $0x248] sm:$0xf]
    %v8284 = vld [vmem:[%s5 + $0x24c] sm:$0xf]
    %v8285 = vld [vmem:[%s5 + $0x250] sm:$0xf]
    %v8286 = vld [vmem:[%s5 + $0x254] sm:$0xf]
    %v8287 = vld [vmem:[%s5 + $0x258] sm:$0xf]
    %v8288 = vld [vmem:[%s5 + $0x25c] sm:$0xf]
    %v8289 = vld [vmem:[%s5 + $0x260] sm:$0xf]
    %v8290 = vld [vmem:[%s5 + $0x264] sm:$0xf]
    %v8291 = vld [vmem:[%s5 + $0x268] sm:$0xf]
    %v8292 = vld [vmem:[%s5 + $0x26c] sm:$0xf]
    %v8293 = vld [vmem:[%s5 + $0x270] sm:$0xf]
    %v8294 = vld [vmem:[%s5 + $0x274] sm:$0xf]
    %v8295 = vld [vmem:[%s5 + $0x278] sm:$0xf]
    %v8296 = vld [vmem:[%s5 + $0x27c] sm:$0xf]
    %v8297 = vld [vmem:[%s6] sm:$0x1]
    %v8299 = vlaneseq
    %v8300 = vshrl.u32 %v8299, 7
    %v8301 = vsub.s32 0, %v8300
    %v8302 = vrot.slane %v8297, %v8301
    %v8304 = vpack.c.b16 %v8067, %v8057
    %v8305 = vpack.c.b16 %v8068, %v8058
    %v8306 = vpack.c.b16 %v8069, %v8059
    %v8307 = vpack.c.b16 %v8070, %v8060
    %v8308 = vpack.c.b16 %v8071, %v8061
    %v8309 = vpack.c.b16 %v8072, %v8062
    %v8310 = vpack.c.b16 %v8073, %v8063
    %v8311 = vpack.c.b16 %v8074, %v8064
    %v8312 = vpack.c.b16 %v8075, %v8065
    %v8313 = vpack.c.b16 %v8076, %v8066
    %v8314 = vpack.c.b16 %v8087, %v8077
    %v8315 = vpack.c.b16 %v8088, %v8078
    %v8316 = vpack.c.b16 %v8089, %v8079
    %v8317 = vpack.c.b16 %v8090, %v8080
    %v8318 = vpack.c.b16 %v8091, %v8081
    %v8319 = vpack.c.b16 %v8092, %v8082
    %v8320 = vpack.c.b16 %v8093, %v8083
    %v8321 = vpack.c.b16 %v8094, %v8084
    %v8322 = vpack.c.b16 %v8095, %v8085
    %v8323 = vpack.c.b16 %v8096, %v8086
    %v8324 = vpack.c.b16 %v8107, %v8097
    %v8325 = vpack.c.b16 %v8108, %v8098
    %v8326 = vpack.c.b16 %v8109, %v8099
    %v8327 = vpack.c.b16 %v8110, %v8100
    %v8328 = vpack.c.b16 %v8111, %v8101
    %v8329 = vpack.c.b16 %v8112, %v8102
    %v8330 = vpack.c.b16 %v8113, %v8103
    %v8331 = vpack.c.b16 %v8114, %v8104
    %v8332 = vpack.c.b16 %v8115, %v8105
    %v8333 = vpack.c.b16 %v8116, %v8106
    %v8334 = vpack.c.b16 %v8127, %v8117
    %v8335 = vpack.c.b16 %v8128, %v8118
    %v8336 = vpack.c.b16 %v8129, %v8119
    %v8337 = vpack.c.b16 %v8130, %v8120
    %v8338 = vpack.c.b16 %v8131, %v8121
    %v8339 = vpack.c.b16 %v8132, %v8122
    %v8340 = vpack.c.b16 %v8133, %v8123
    %v8341 = vpack.c.b16 %v8134, %v8124
    %v8342 = vpack.c.b16 %v8135, %v8125
    %v8343 = vpack.c.b16 %v8136, %v8126
    %v8544 = vunpack.c.l.b16 %v8137
    %v8545 = vunpack.c.l.b16 %v8138
    %v8546 = vunpack.c.l.b16 %v8139
    %v8547 = vunpack.c.l.b16 %v8140
    %v8548 = vunpack.c.l.b16 %v8141
    %v8549 = vunpack.c.l.b16 %v8142
    %v8550 = vunpack.c.l.b16 %v8143
    %v8551 = vunpack.c.l.b16 %v8144
    %v8552 = vunpack.c.l.b16 %v8145
    %v8553 = vunpack.c.l.b16 %v8146
    %v8554 = vunpack.c.l.b16 %v8147
    %v8555 = vunpack.c.l.b16 %v8148
    %v8556 = vunpack.c.l.b16 %v8149
    %v8557 = vunpack.c.l.b16 %v8150
    %v8558 = vunpack.c.l.b16 %v8151
    %v8559 = vunpack.c.l.b16 %v8152
    %v8560 = vunpack.c.l.b16 %v8153
    %v8561 = vunpack.c.l.b16 %v8154
    %v8562 = vunpack.c.l.b16 %v8155
    %v8563 = vunpack.c.l.b16 %v8156
    %v8564 = vunpack.c.l.b16 %v8157
    %v8565 = vunpack.c.l.b16 %v8158
    %v8566 = vunpack.c.l.b16 %v8159
    %v8567 = vunpack.c.l.b16 %v8160
    %v8568 = vunpack.c.l.b16 %v8161
    %v8569 = vunpack.c.l.b16 %v8162
    %v8570 = vunpack.c.l.b16 %v8163
    %v8571 = vunpack.c.l.b16 %v8164
    %v8572 = vunpack.c.l.b16 %v8165
    %v8573 = vunpack.c.l.b16 %v8166
    %v8574 = vunpack.c.l.b16 %v8167
    %v8575 = vunpack.c.l.b16 %v8168
    %v8576 = vunpack.c.l.b16 %v8169
    %v8577 = vunpack.c.l.b16 %v8170
    %v8578 = vunpack.c.l.b16 %v8171
    %v8579 = vunpack.c.l.b16 %v8172
    %v8580 = vunpack.c.l.b16 %v8173
    %v8581 = vunpack.c.l.b16 %v8174
    %v8582 = vunpack.c.l.b16 %v8175
    %v8583 = vunpack.c.l.b16 %v8176
    %v8584 = vunpack.c.l.b16 %v8177
    %v8585 = vunpack.c.l.b16 %v8178
    %v8586 = vunpack.c.l.b16 %v8179
    %v8587 = vunpack.c.l.b16 %v8180
    %v8588 = vunpack.c.l.b16 %v8181
    %v8589 = vunpack.c.l.b16 %v8182
    %v8590 = vunpack.c.l.b16 %v8183
    %v8591 = vunpack.c.l.b16 %v8184
    %v8592 = vunpack.c.l.b16 %v8185
    %v8593 = vunpack.c.l.b16 %v8186
    %v8594 = vunpack.c.l.b16 %v8187
    %v8595 = vunpack.c.l.b16 %v8188
    %v8596 = vunpack.c.l.b16 %v8189
    %v8597 = vunpack.c.l.b16 %v8190
    %v8598 = vunpack.c.l.b16 %v8191
    %v8599 = vunpack.c.l.b16 %v8192
    %v8600 = vunpack.c.l.b16 %v8193
    %v8601 = vunpack.c.l.b16 %v8194
    %v8602 = vunpack.c.l.b16 %v8195
    %v8603 = vunpack.c.l.b16 %v8196
    %v8604 = vunpack.c.l.b16 %v8197
    %v8605 = vunpack.c.l.b16 %v8198
    %v8606 = vunpack.c.l.b16 %v8199
    %v8607 = vunpack.c.l.b16 %v8200
    %v8608 = vunpack.c.l.b16 %v8201
    %v8609 = vunpack.c.l.b16 %v8202
    %v8610 = vunpack.c.l.b16 %v8203
    %v8611 = vunpack.c.l.b16 %v8204
    %v8612 = vunpack.c.l.b16 %v8205
    %v8613 = vunpack.c.l.b16 %v8206
    %v8614 = vunpack.c.l.b16 %v8207
    %v8615 = vunpack.c.l.b16 %v8208
    %v8616 = vunpack.c.l.b16 %v8209
    %v8617 = vunpack.c.l.b16 %v8210
    %v8618 = vunpack.c.l.b16 %v8211
    %v8619 = vunpack.c.l.b16 %v8212
    %v8620 = vunpack.c.l.b16 %v8213
    %v8621 = vunpack.c.l.b16 %v8214
    %v8622 = vunpack.c.l.b16 %v8215
    %v8623 = vunpack.c.l.b16 %v8216
    %v8624 = vunpack.c.l.b16 %v8217
    %v8625 = vunpack.c.l.b16 %v8218
    %v8626 = vunpack.c.l.b16 %v8219
    %v8627 = vunpack.c.l.b16 %v8220
    %v8628 = vunpack.c.l.b16 %v8221
    %v8629 = vunpack.c.l.b16 %v8222
    %v8630 = vunpack.c.l.b16 %v8223
    %v8631 = vunpack.c.l.b16 %v8224
    %v8632 = vunpack.c.l.b16 %v8225
    %v8633 = vunpack.c.l.b16 %v8226
    %v8634 = vunpack.c.l.b16 %v8227
    %v8635 = vunpack.c.l.b16 %v8228
    %v8636 = vunpack.c.l.b16 %v8229
    %v8637 = vunpack.c.l.b16 %v8230
    %v8638 = vunpack.c.l.b16 %v8231
    %v8639 = vunpack.c.l.b16 %v8232
    %v8640 = vunpack.c.l.b16 %v8233
    %v8641 = vunpack.c.l.b16 %v8234
    %v8642 = vunpack.c.l.b16 %v8235
    %v8643 = vunpack.c.l.b16 %v8236
    %v8644 = vunpack.c.l.b16 %v8237
    %v8645 = vunpack.c.l.b16 %v8238
    %v8646 = vunpack.c.l.b16 %v8239
    %v8647 = vunpack.c.l.b16 %v8240
    %v8648 = vunpack.c.l.b16 %v8241
    %v8649 = vunpack.c.l.b16 %v8242
    %v8650 = vunpack.c.l.b16 %v8243
    %v8651 = vunpack.c.l.b16 %v8244
    %v8652 = vunpack.c.l.b16 %v8245
    %v8653 = vunpack.c.l.b16 %v8246
    %v8654 = vunpack.c.l.b16 %v8247
    %v8655 = vunpack.c.l.b16 %v8248
    %v8656 = vunpack.c.l.b16 %v8249
    %v8657 = vunpack.c.l.b16 %v8250
    %v8658 = vunpack.c.l.b16 %v8251
    %v8659 = vunpack.c.l.b16 %v8252
    %v8660 = vunpack.c.l.b16 %v8253
    %v8661 = vunpack.c.l.b16 %v8254
    %v8662 = vunpack.c.l.b16 %v8255
    %v8663 = vunpack.c.l.b16 %v8256
    %v8664 = vunpack.c.l.b16 %v8257
    %v8665 = vunpack.c.l.b16 %v8258
    %v8666 = vunpack.c.l.b16 %v8259
    %v8667 = vunpack.c.l.b16 %v8260
    %v8668 = vunpack.c.l.b16 %v8261
    %v8669 = vunpack.c.l.b16 %v8262
    %v8670 = vunpack.c.l.b16 %v8263
    %v8671 = vunpack.c.l.b16 %v8264
    %v8672 = vunpack.c.l.b16 %v8265
    %v8673 = vunpack.c.l.b16 %v8266
    %v8674 = vunpack.c.l.b16 %v8267
    %v8675 = vunpack.c.l.b16 %v8268
    %v8676 = vunpack.c.l.b16 %v8269
    %v8677 = vunpack.c.l.b16 %v8270
    %v8678 = vunpack.c.l.b16 %v8271
    %v8679 = vunpack.c.l.b16 %v8272
    %v8680 = vunpack.c.l.b16 %v8273
    %v8681 = vunpack.c.l.b16 %v8274
    %v8682 = vunpack.c.l.b16 %v8275
    %v8683 = vunpack.c.l.b16 %v8276
    %v8684 = vunpack.c.l.b16 %v8277
    %v8685 = vunpack.c.l.b16 %v8278
    %v8686 = vunpack.c.l.b16 %v8279
    %v8687 = vunpack.c.l.b16 %v8280
    %v8688 = vunpack.c.l.b16 %v8281
    %v8689 = vunpack.c.l.b16 %v8282
    %v8690 = vunpack.c.l.b16 %v8283
    %v8691 = vunpack.c.l.b16 %v8284
    %v8692 = vunpack.c.l.b16 %v8285
    %v8693 = vunpack.c.l.b16 %v8286
    %v8694 = vunpack.c.l.b16 %v8287
    %v8695 = vunpack.c.l.b16 %v8288
    %v8696 = vunpack.c.l.b16 %v8289
    %v8697 = vunpack.c.l.b16 %v8290
    %v8698 = vunpack.c.l.b16 %v8291
    %v8699 = vunpack.c.l.b16 %v8292
    %v8700 = vunpack.c.l.b16 %v8293
    %v8701 = vunpack.c.l.b16 %v8294
    %v8702 = vunpack.c.l.b16 %v8295
    %v8703 = vunpack.c.l.b16 %v8296
    %v8704 = vpack.c.b16 %v8545, %v8544
    %v8705 = vpack.c.b16 %v8547, %v8546
    %v8706 = vpack.c.b16 %v8549, %v8548
    %v8707 = vpack.c.b16 %v8551, %v8550
    %v8708 = vpack.c.b16 %v8553, %v8552
    %v8709 = vpack.c.b16 %v8555, %v8554
    %v8710 = vpack.c.b16 %v8557, %v8556
    %v8711 = vpack.c.b16 %v8559, %v8558
    %v8712 = vpack.c.b16 %v8561, %v8560
    %v8713 = vpack.c.b16 %v8563, %v8562
    %v8714 = vpack.c.b16 %v8565, %v8564
    %v8715 = vpack.c.b16 %v8567, %v8566
    %v8716 = vpack.c.b16 %v8569, %v8568
    %v8717 = vpack.c.b16 %v8571, %v8570
    %v8718 = vpack.c.b16 %v8573, %v8572
    %v8719 = vpack.c.b16 %v8575, %v8574
    %v8720 = vpack.c.b16 %v8577, %v8576
    %v8721 = vpack.c.b16 %v8579, %v8578
    %v8722 = vpack.c.b16 %v8581, %v8580
    %v8723 = vpack.c.b16 %v8583, %v8582
    %v8724 = vpack.c.b16 %v8585, %v8584
    %v8725 = vpack.c.b16 %v8587, %v8586
    %v8726 = vpack.c.b16 %v8589, %v8588
    %v8727 = vpack.c.b16 %v8591, %v8590
    %v8728 = vpack.c.b16 %v8593, %v8592
    %v8729 = vpack.c.b16 %v8595, %v8594
    %v8730 = vpack.c.b16 %v8597, %v8596
    %v8731 = vpack.c.b16 %v8599, %v8598
    %v8732 = vpack.c.b16 %v8601, %v8600
    %v8733 = vpack.c.b16 %v8603, %v8602
    %v8734 = vpack.c.b16 %v8605, %v8604
    %v8735 = vpack.c.b16 %v8607, %v8606
    %v8736 = vpack.c.b16 %v8609, %v8608
    %v8737 = vpack.c.b16 %v8611, %v8610
    %v8738 = vpack.c.b16 %v8613, %v8612
    %v8739 = vpack.c.b16 %v8615, %v8614
    %v8740 = vpack.c.b16 %v8617, %v8616
    %v8741 = vpack.c.b16 %v8619, %v8618
    %v8742 = vpack.c.b16 %v8621, %v8620
    %v8743 = vpack.c.b16 %v8623, %v8622
    %v8744 = vpack.c.b16 %v8625, %v8624
    %v8745 = vpack.c.b16 %v8627, %v8626
    %v8746 = vpack.c.b16 %v8629, %v8628
    %v8747 = vpack.c.b16 %v8631, %v8630
    %v8748 = vpack.c.b16 %v8633, %v8632
    %v8749 = vpack.c.b16 %v8635, %v8634
    %v8750 = vpack.c.b16 %v8637, %v8636
    %v8751 = vpack.c.b16 %v8639, %v8638
    %v8752 = vpack.c.b16 %v8641, %v8640
    %v8753 = vpack.c.b16 %v8643, %v8642
    %v8754 = vpack.c.b16 %v8645, %v8644
    %v8755 = vpack.c.b16 %v8647, %v8646
    %v8756 = vpack.c.b16 %v8649, %v8648
    %v8757 = vpack.c.b16 %v8651, %v8650
    %v8758 = vpack.c.b16 %v8653, %v8652
    %v8759 = vpack.c.b16 %v8655, %v8654
    %v8760 = vpack.c.b16 %v8657, %v8656
    %v8761 = vpack.c.b16 %v8659, %v8658
    %v8762 = vpack.c.b16 %v8661, %v8660
    %v8763 = vpack.c.b16 %v8663, %v8662
    %v8764 = vpack.c.b16 %v8665, %v8664
    %v8765 = vpack.c.b16 %v8667, %v8666
    %v8766 = vpack.c.b16 %v8669, %v8668
    %v8767 = vpack.c.b16 %v8671, %v8670
    %v8768 = vpack.c.b16 %v8673, %v8672
    %v8769 = vpack.c.b16 %v8675, %v8674
    %v8770 = vpack.c.b16 %v8677, %v8676
    %v8771 = vpack.c.b16 %v8679, %v8678
    %v8772 = vpack.c.b16 %v8681, %v8680
    %v8773 = vpack.c.b16 %v8683, %v8682
    %v8774 = vpack.c.b16 %v8685, %v8684
    %v8775 = vpack.c.b16 %v8687, %v8686
    %v8776 = vpack.c.b16 %v8689, %v8688
    %v8777 = vpack.c.b16 %v8691, %v8690
    %v8778 = vpack.c.b16 %v8693, %v8692
    %v8779 = vpack.c.b16 %v8695, %v8694
    %v8780 = vpack.c.b16 %v8697, %v8696
    %v8781 = vpack.c.b16 %v8699, %v8698
    %v8782 = vpack.c.b16 %v8701, %v8700
    %v8783 = vpack.c.b16 %v8703, %v8702
    %8864 = vmatprep.subr.bf16.mxu0 0
    %8865 = vmatpush1.bf16.msra.mxu0 %v8704
    %8866 = vmatprep.subr.bf16.mxu0 0
    %8867 = vmatpush1.bf16.msra.mxu0 %v8705
    %8868 = vmatprep.subr.bf16.mxu0 0
    %8869 = vmatpush1.bf16.msra.mxu0 %v8706
    %8870 = vmatprep.subr.bf16.mxu0 0
    %8871 = vmatpush1.bf16.msra.mxu0 %v8707
    %8872 = vmatprep.subr.bf16.mxu0 0
    %8873 = vmatpush1.bf16.msra.mxu0 %v8708
    %8874 = vmatprep.subr.bf16.mxu0 0
    %8875 = vmatpush1.bf16.msra.mxu0 %v8709
    %8876 = vmatprep.subr.bf16.mxu0 0
    %8877 = vmatpush1.bf16.msra.mxu0 %v8710
    %8878 = vmatprep.subr.bf16.mxu0 0
    %8879 = vmatpush1.bf16.msra.mxu0 %v8711
    %8880 = vmatprep.subr.bf16.mxu0 0
    %8881 = vmatpush1.bf16.msra.mxu0 %v8712
    %8882 = vmatprep.subr.bf16.mxu0 0
    %8883 = vmatpush1.bf16.msra.mxu0 %v8713
    %8884 = vmatprep.subr.bf16.mxu0 0
    %8885 = vmatpush1.bf16.msra.mxu0 %v8714
    %8886 = vmatprep.subr.bf16.mxu0 0
    %8887 = vmatpush1.bf16.msra.mxu0 %v8715
    %8888 = vmatprep.subr.bf16.mxu0 0
    %8889 = vmatpush1.bf16.msra.mxu0 %v8716
    %8890 = vmatprep.subr.bf16.mxu0 0
    %8891 = vmatpush1.bf16.msra.mxu0 %v8717
    %8892 = vmatprep.subr.bf16.mxu0 0
    %8893 = vmatpush1.bf16.msra.mxu0 %v8718
    %8894 = vmatprep.subr.bf16.mxu0 0
    %8895 = vmatpush1.bf16.msra.mxu0 %v8719
    %8896 = vmatprep.mubr.bf16.mxu0 %v8305
    %8897 = vmatmul.mubr.bf16.gmra.mrb[0].mxu0 %v8304
    %v8898 = vpop.f32.mrb[0].mxu0
    %v8899 = vadd.f32 %v8302, %v8898
    %v8900 = vpop.f32.mrb[0].mxu0
    %v8901 = vpop.f32.mrb[0].mxu0
    %v8902 = vadd.f32 %v8302, %v8901
    %v8903 = vpop.f32.mrb[0].mxu0
    %8904 = vmatprep.mubr.bf16.mxu0 %v8315
    %8905 = vmatmul.mubr.bf16.gmra.mrb[0].mxu0 %v8314
    %v8906 = vpop.f32.mrb[0].mxu0
    %v8907 = vadd.f32 %v8302, %v8906
    %v8908 = vpop.f32.mrb[0].mxu0
    %v8909 = vpop.f32.mrb[0].mxu0
    %v8910 = vadd.f32 %v8302, %v8909
    %v8911 = vpop.f32.mrb[0].mxu0
    %8912 = vmatprep.mubr.bf16.mxu0 %v8325
    %8913 = vmatmul.mubr.bf16.gmra.mrb[0].mxu0 %v8324
    %v8914 = vpop.f32.mrb[0].mxu0
    %v8915 = vadd.f32 %v8302, %v8914
    %v8916 = vpop.f32.mrb[0].mxu0
    %v8917 = vpop.f32.mrb[0].mxu0
    %v8918 = vadd.f32 %v8302, %v8917
    %v8919 = vpop.f32.mrb[0].mxu0
    %8920 = vmatprep.mubr.bf16.mxu0 %v8335
    %8921 = vmatmul.mubr.bf16.gmra.mrb[0].mxu0 %v8334
    %v8922 = vpop.f32.mrb[0].mxu0
    %v8923 = vadd.f32 %v8302, %v8922
    %v8924 = vpop.f32.mrb[0].mxu0
    %v8925 = vpop.f32.mrb[0].mxu0
    %v8926 = vadd.f32 %v8302, %v8925
    %v8927 = vpop.f32.mrb[0].mxu0
    %8928 = vdwg.mxu0
    %8929 = vmatprep.subr.bf16.mxu0 0
    %8930 = vmatpush1.bf16.msra.mxu0 %v8720
    %8931 = vmatprep.subr.bf16.mxu0 0
    %8932 = vmatpush1.bf16.msra.mxu0 %v8721
    %8933 = vmatprep.subr.bf16.mxu0 0
    %8934 = vmatpush1.bf16.msra.mxu0 %v8722
    %8935 = vmatprep.subr.bf16.mxu0 0
    %8936 = vmatpush1.bf16.msra.mxu0 %v8723
    %8937 = vmatprep.subr.bf16.mxu0 0
    %8938 = vmatpush1.bf16.msra.mxu0 %v8724
    %8939 = vmatprep.subr.bf16.mxu0 0
    %8940 = vmatpush1.bf16.msra.mxu0 %v8725
    %8941 = vmatprep.subr.bf16.mxu0 0
    %8942 = vmatpush1.bf16.msra.mxu0 %v8726
    %8943 = vmatprep.subr.bf16.mxu0 0
    %8944 = vmatpush1.bf16.msra.mxu0 %v8727
    %8945 = vmatprep.subr.bf16.mxu0 0
    %8946 = vmatpush1.bf16.msra.mxu0 %v8728
    %8947 = vmatprep.subr.bf16.mxu0 0
    %8948 = vmatpush1.bf16.msra.mxu0 %v8729
    %8949 = vmatprep.subr.bf16.mxu0 0
    %8950 = vmatpush1.bf16.msra.mxu0 %v8730
    %8951 = vmatprep.subr.bf16.mxu0 0
    %8952 = vmatpush1.bf16.msra.mxu0 %v8731
    %8953 = vmatprep.subr.bf16.mxu0 0
    %8954 = vmatpush1.bf16.msra.mxu0 %v8732
    %8955 = vmatprep.subr.bf16.mxu0 0
    %8956 = vmatpush1.bf16.msra.mxu0 %v8733
    %8957 = vmatprep.subr.bf16.mxu0 0
    %8958 = vmatpush1.bf16.msra.mxu0 %v8734
    %8959 = vmatprep.subr.bf16.mxu0 0
    %8960 = vmatpush1.bf16.msra.mxu0 %v8735
    %8961 = vmatprep.mubr.bf16.mxu0 %v8307
    %8962 = vmatmul.mubr.bf16.gmra.mrb[0].mxu0 %v8306
    %v8963 = vpop.f32.mrb[0].mxu0
    %v8964 = vadd.f32 %v8899, %v8963
    %v8965 = vpop.f32.mrb[0].mxu0
    %v8966 = vpop.f32.mrb[0].mxu0
    %v8967 = vadd.f32 %v8902, %v8966
    %v8968 = vpop.f32.mrb[0].mxu0
    %8969 = vmatprep.mubr.bf16.mxu0 %v8317
    %8970 = vmatmul.mubr.bf16.gmra.mrb[0].mxu0 %v8316
    %v8971 = vpop.f32.mrb[0].mxu0
    %v8972 = vadd.f32 %v8907, %v8971
    %v8973 = vpop.f32.mrb[0].mxu0
    %v8974 = vpop.f32.mrb[0].mxu0
    %v8975 = vadd.f32 %v8910, %v8974
    %v8976 = vpop.f32.mrb[0].mxu0
    %8977 = vmatprep.mubr.bf16.mxu0 %v8327
    %8978 = vmatmul.mubr.bf16.gmra.mrb[0].mxu0 %v8326
    %v8979 = vpop.f32.mrb[0].mxu0
    %v8980 = vadd.f32 %v8915, %v8979
    %v8981 = vpop.f32.mrb[0].mxu0
    %v8982 = vpop.f32.mrb[0].mxu0
    %v8983 = vadd.f32 %v8918, %v8982
    %v8984 = vpop.f32.mrb[0].mxu0
    %8985 = vmatprep.mubr.bf16.mxu0 %v8337
    %8986 = vmatmul.mubr.bf16.gmra.mrb[0].mxu0 %v8336
    %v8987 = vpop.f32.mrb[0].mxu0
    %v8988 = vadd.f32 %v8923, %v8987
    %v8989 = vpop.f32.mrb[0].mxu0
    %v8990 = vpop.f32.mrb[0].mxu0
    %v8991 = vadd.f32 %v8926, %v8990
    %v8992 = vpop.f32.mrb[0].mxu0
    %8993 = vdwg.mxu0
    %8994 = vmatprep.subr.bf16.mxu0 0
    %8995 = vmatpush1.bf16.msra.mxu0 %v8736
    %8996 = vmatprep.subr.bf16.mxu0 0
    %8997 = vmatpush1.bf16.msra.mxu0 %v8737
    %8998 = vmatprep.subr.bf16.mxu0 0
    %8999 = vmatpush1.bf16.msra.mxu0 %v8738
    %9000 = vmatprep.subr.bf16.mxu0 0
    %9001 = vmatpush1.bf16.msra.mxu0 %v8739
    %9002 = vmatprep.subr.bf16.mxu0 0
    %9003 = vmatpush1.bf16.msra.mxu0 %v8740
    %9004 = vmatprep.subr.bf16.mxu0 0
    %9005 = vmatpush1.bf16.msra.mxu0 %v8741
    %9006 = vmatprep.subr.bf16.mxu0 0
    %9007 = vmatpush1.bf16.msra.mxu0 %v8742
    %9008 = vmatprep.subr.bf16.mxu0 0
    %9009 = vmatpush1.bf16.msra.mxu0 %v8743
    %9010 = vmatprep.subr.bf16.mxu0 0
    %9011 = vmatpush1.bf16.msra.mxu0 %v8744
    %9012 = vmatprep.subr.bf16.mxu0 0
    %9013 = vmatpush1.bf16.msra.mxu0 %v8745
    %9014 = vmatprep.subr.bf16.mxu0 0
    %9015 = vmatpush1.bf16.msra.mxu0 %v8746
    %9016 = vmatprep.subr.bf16.mxu0 0
    %9017 = vmatpush1.bf16.msra.mxu0 %v8747
    %9018 = vmatprep.subr.bf16.mxu0 0
    %9019 = vmatpush1.bf16.msra.mxu0 %v8748
    %9020 = vmatprep.subr.bf16.mxu0 0
    %9021 = vmatpush1.bf16.msra.mxu0 %v8749
    %9022 = vmatprep.subr.bf16.mxu0 0
    %9023 = vmatpush1.bf16.msra.mxu0 %v8750
    %9024 = vmatprep.subr.bf16.mxu0 0
    %9025 = vmatpush1.bf16.msra.mxu0 %v8751
    %9026 = vmatprep.mubr.bf16.mxu0 %v8309
    %9027 = vmatmul.mubr.bf16.gmra.mrb[0].mxu0 %v8308
    %v9028 = vpop.f32.mrb[0].mxu0
    %v9029 = vadd.f32 %v8964, %v9028
    %v9030 = vpop.f32.mrb[0].mxu0
    %v9031 = vpop.f32.mrb[0].mxu0
    %v9032 = vadd.f32 %v8967, %v9031
    %v9033 = vpop.f32.mrb[0].mxu0
    %9034 = vmatprep.mubr.bf16.mxu0 %v8319
    %9035 = vmatmul.mubr.bf16.gmra.mrb[0].mxu0 %v8318
    %v9036 = vpop.f32.mrb[0].mxu0
    %v9037 = vadd.f32 %v8972, %v9036
    %v9038 = vpop.f32.mrb[0].mxu0
    %v9039 = vpop.f32.mrb[0].mxu0
    %v9040 = vadd.f32 %v8975, %v9039
    %v9041 = vpop.f32.mrb[0].mxu0
    %9042 = vmatprep.mubr.bf16.mxu0 %v8329
    %9043 = vmatmul.mubr.bf16.gmra.mrb[0].mxu0 %v8328
    %v9044 = vpop.f32.mrb[0].mxu0
    %v9045 = vadd.f32 %v8980, %v9044
    %v9046 = vpop.f32.mrb[0].mxu0
    %v9047 = vpop.f32.mrb[0].mxu0
    %v9048 = vadd.f32 %v8983, %v9047
    %v9049 = vpop.f32.mrb[0].mxu0
    %9050 = vmatprep.mubr.bf16.mxu0 %v8339
    %9051 = vmatmul.mubr.bf16.gmra.mrb[0].mxu0 %v8338
    %v9052 = vpop.f32.mrb[0].mxu0
    %v9053 = vadd.f32 %v8988, %v9052
    %v9054 = vpop.f32.mrb[0].mxu0
    %v9055 = vpop.f32.mrb[0].mxu0
    %v9056 = vadd.f32 %v8991, %v9055
    %v9057 = vpop.f32.mrb[0].mxu0
    %9058 = vdwg.mxu0
    %9059 = vmatprep.subr.bf16.mxu0 0
    %9060 = vmatpush1.bf16.msra.mxu0 %v8752
    %9061 = vmatprep.subr.bf16.mxu0 0
    %9062 = vmatpush1.bf16.msra.mxu0 %v8753
    %9063 = vmatprep.subr.bf16.mxu0 0
    %9064 = vmatpush1.bf16.msra.mxu0 %v8754
    %9065 = vmatprep.subr.bf16.mxu0 0
    %9066 = vmatpush1.bf16.msra.mxu0 %v8755
    %9067 = vmatprep.subr.bf16.mxu0 0
    %9068 = vmatpush1.bf16.msra.mxu0 %v8756
    %9069 = vmatprep.subr.bf16.mxu0 0
    %9070 = vmatpush1.bf16.msra.mxu0 %v8757
    %9071 = vmatprep.subr.bf16.mxu0 0
    %9072 = vmatpush1.bf16.msra.mxu0 %v8758
    %9073 = vmatprep.subr.bf16.mxu0 0
    %9074 = vmatpush1.bf16.msra.mxu0 %v8759
    %9075 = vmatprep.subr.bf16.mxu0 0
    %9076 = vmatpush1.bf16.msra.mxu0 %v8760
    %9077 = vmatprep.subr.bf16.mxu0 0
    %9078 = vmatpush1.bf16.msra.mxu0 %v8761
    %9079 = vmatprep.subr.bf16.mxu0 0
    %9080 = vmatpush1.bf16.msra.mxu0 %v8762
    %9081 = vmatprep.subr.bf16.mxu0 0
    %9082 = vmatpush1.bf16.msra.mxu0 %v8763
    %9083 = vmatprep.subr.bf16.mxu0 0
    %9084 = vmatpush1.bf16.msra.mxu0 %v8764
    %9085 = vmatprep.subr.bf16.mxu0 0
    %9086 = vmatpush1.bf16.msra.mxu0 %v8765
    %9087 = vmatprep.subr.bf16.mxu0 0
    %9088 = vmatpush1.bf16.msra.mxu0 %v8766
    %9089 = vmatprep.subr.bf16.mxu0 0
    %9090 = vmatpush1.bf16.msra.mxu0 %v8767
    %9091 = vmatprep.mubr.bf16.mxu0 %v8311
    %9092 = vmatmul.mubr.bf16.gmra.mrb[0].mxu0 %v8310
    %v9093 = vpop.f32.mrb[0].mxu0
    %v9094 = vadd.f32 %v9029, %v9093
    %v9095 = vpop.f32.mrb[0].mxu0
    %v9096 = vpop.f32.mrb[0].mxu0
    %v9097 = vadd.f32 %v9032, %v9096
    %v9098 = vpop.f32.mrb[0].mxu0
    %9099 = vmatprep.mubr.bf16.mxu0 %v8321
    %9100 = vmatmul.mubr.bf16.gmra.mrb[0].mxu0 %v8320
    %v9101 = vpop.f32.mrb[0].mxu0
    %v9102 = vadd.f32 %v9037, %v9101
    %v9103 = vpop.f32.mrb[0].mxu0
    %v9104 = vpop.f32.mrb[0].mxu0
    %v9105 = vadd.f32 %v9040, %v9104
    %v9106 = vpop.f32.mrb[0].mxu0
    %9107 = vmatprep.mubr.bf16.mxu0 %v8331
    %9108 = vmatmul.mubr.bf16.gmra.mrb[0].mxu0 %v8330
    %v9109 = vpop.f32.mrb[0].mxu0
    %v9110 = vadd.f32 %v9045, %v9109
    %v9111 = vpop.f32.mrb[0].mxu0
    %v9112 = vpop.f32.mrb[0].mxu0
    %v9113 = vadd.f32 %v9048, %v9112
    %v9114 = vpop.f32.mrb[0].mxu0
    %9115 = vmatprep.mubr.bf16.mxu0 %v8341
    %9116 = vmatmul.mubr.bf16.gmra.mrb[0].mxu0 %v8340
    %v9117 = vpop.f32.mrb[0].mxu0
    %v9118 = vadd.f32 %v9053, %v9117
    %v9119 = vpop.f32.mrb[0].mxu0
    %v9120 = vpop.f32.mrb[0].mxu0
    %v9121 = vadd.f32 %v9056, %v9120
    %v9122 = vpop.f32.mrb[0].mxu0
    %9123 = vdwg.mxu0
    %9124 = vmatprep.subr.bf16.mxu0 0
    %9125 = vmatpush1.bf16.msra.mxu0 %v8768
    %9126 = vmatprep.subr.bf16.mxu0 0
    %9127 = vmatpush1.bf16.msra.mxu0 %v8769
    %9128 = vmatprep.subr.bf16.mxu0 0
    %9129 = vmatpush1.bf16.msra.mxu0 %v8770
    %9130 = vmatprep.subr.bf16.mxu0 0
    %9131 = vmatpush1.bf16.msra.mxu0 %v8771
    %9132 = vmatprep.subr.bf16.mxu0 0
    %9133 = vmatpush1.bf16.msra.mxu0 %v8772
    %9134 = vmatprep.subr.bf16.mxu0 0
    %9135 = vmatpush1.bf16.msra.mxu0 %v8773
    %9136 = vmatprep.subr.bf16.mxu0 0
    %9137 = vmatpush1.bf16.msra.mxu0 %v8774
    %9138 = vmatprep.subr.bf16.mxu0 0
    %9139 = vmatpush1.bf16.msra.mxu0 %v8775
    %9140 = vmatprep.subr.bf16.mxu0 0
    %9141 = vmatpush1.bf16.msra.mxu0 %v8776
    %9142 = vmatprep.subr.bf16.mxu0 0
    %9143 = vmatpush1.bf16.msra.mxu0 %v8777
    %9144 = vmatprep.subr.bf16.mxu0 0
    %9145 = vmatpush1.bf16.msra.mxu0 %v8778
    %9146 = vmatprep.subr.bf16.mxu0 0
    %9147 = vmatpush1.bf16.msra.mxu0 %v8779
    %9148 = vmatprep.subr.bf16.mxu0 0
    %9149 = vmatpush1.bf16.msra.mxu0 %v8780
    %9150 = vmatprep.subr.bf16.mxu0 0
    %9151 = vmatpush1.bf16.msra.mxu0 %v8781
    %9152 = vmatprep.subr.bf16.mxu0 0
    %9153 = vmatpush1.bf16.msra.mxu0 %v8782
    %9154 = vmatprep.subr.bf16.mxu0 0
    %9155 = vmatpush1.bf16.msra.mxu0 %v8783
    %9156 = vmatprep.mubr.bf16.mxu0 %v8313
    %9157 = vmatmul.mubr.bf16.gmra.mrb[0].mxu0 %v8312
    %v9158 = vpop.f32.mrb[0].mxu0
    %v9159 = vadd.f32 %v9094, %v9158
    %v9160 = vpop.f32.mrb[0].mxu0
    %v9161 = vpop.f32.mrb[0].mxu0
    %v9162 = vadd.f32 %v9097, %v9161
    %v9163 = vpop.f32.mrb[0].mxu0
    %9164 = vmatprep.mubr.bf16.mxu0 %v8323
    %9165 = vmatmul.mubr.bf16.gmra.mrb[0].mxu0 %v8322
    %v9166 = vpop.f32.mrb[0].mxu0
    %v9167 = vadd.f32 %v9102, %v9166
    %v9168 = vpop.f32.mrb[0].mxu0
    %v9169 = vpop.f32.mrb[0].mxu0
    %v9170 = vadd.f32 %v9105, %v9169
    %v9171 = vpop.f32.mrb[0].mxu0
    %9172 = vmatprep.mubr.bf16.mxu0 %v8333
    %9173 = vmatmul.mubr.bf16.gmra.mrb[0].mxu0 %v8332
    %v9174 = vpop.f32.mrb[0].mxu0
    %v9175 = vadd.f32 %v9110, %v9174
    %v9176 = vpop.f32.mrb[0].mxu0
    %v9177 = vpop.f32.mrb[0].mxu0
    %v9178 = vadd.f32 %v9113, %v9177
    %v9179 = vpop.f32.mrb[0].mxu0
    %9180 = vmatprep.mubr.bf16.mxu0 %v8343
    %9181 = vmatmul.mubr.bf16.gmra.mrb[0].mxu0 %v8342
    %v9182 = vpop.f32.mrb[0].mxu0
    %v9183 = vadd.f32 %v9118, %v9182
    %v9184 = vpop.f32.mrb[0].mxu0
    %v9185 = vpop.f32.mrb[0].mxu0
    %v9186 = vadd.f32 %v9121, %v9185
    %v9187 = vpop.f32.mrb[0].mxu0
    %9188 = vdwg.mxu0
    %v9189 = vmax.f32 %v9159, 0.0
    %v9190 = vmax.f32 %v9162, 0.0
    %v9191 = vmax.f32 %v9167, 0.0
    %v9192 = vmax.f32 %v9170, 0.0
    %v9193 = vmax.f32 %v9175, 0.0
    %v9194 = vmax.f32 %v9178, 0.0
    %v9195 = vmax.f32 %v9183, 0.0
    %v9196 = vmax.f32 %v9186, 0.0
    %v9197 = vpack.c.bf16 %v9190, %v9189
    %v9198 = vpack.c.bf16 %v9192, %v9191
    %v9199 = vpack.c.bf16 %v9194, %v9193
    %v9200 = vpack.c.bf16 %v9196, %v9195
    %v9201 = vld [vmem:[%s7] sm:$0xf]
    %v9202 = vld [vmem:[%s7 + $0x4] sm:$0xf]
    %v9203 = vld [vmem:[%s7 + $0x8] sm:$0xf]
    %v9204 = vld [vmem:[%s7 + $0xc] sm:$0xf]
    %v9205 = vld [vmem:[%s7 + $0x10] sm:$0xf]
    %v9206 = vld [vmem:[%s7 + $0x14] sm:$0xf]
    %v9207 = vld [vmem:[%s7 + $0x18] sm:$0xf]
    %v9208 = vld [vmem:[%s7 + $0x1c] sm:$0xf]
    %v9209 = vld [vmem:[%s7 + $0x20] sm:$0xf]
    %v9210 = vld [vmem:[%s7 + $0x24] sm:$0xf]
    %v9211 = vld [vmem:[%s7 + $0x28] sm:$0xf]
    %v9212 = vld [vmem:[%s7 + $0x2c] sm:$0xf]
    %v9213 = vld [vmem:[%s7 + $0x30] sm:$0xf]
    %v9214 = vld [vmem:[%s7 + $0x34] sm:$0xf]
    %v9215 = vld [vmem:[%s7 + $0x38] sm:$0xf]
    %v9216 = vld [vmem:[%s7 + $0x3c] sm:$0xf]
    %v9217 = vld [vmem:[%s8] sm:$0x1]
    %v9219 = vlaneseq
    %v9220 = vshrl.u32 %v9219, 7
    %v9221 = vsub.s32 0, %v9220
    %v9222 = vrot.slane %v9217, %v9221
    %v9240 = vunpack.c.l.b16 %v9201
    %v9241 = vunpack.c.l.b16 %v9202
    %v9242 = vunpack.c.l.b16 %v9203
    %v9243 = vunpack.c.l.b16 %v9204
    %v9244 = vunpack.c.l.b16 %v9205
    %v9245 = vunpack.c.l.b16 %v9206
    %v9246 = vunpack.c.l.b16 %v9207
    %v9247 = vunpack.c.l.b16 %v9208
    %v9248 = vunpack.c.l.b16 %v9209
    %v9249 = vunpack.c.l.b16 %v9210
    %v9250 = vunpack.c.l.b16 %v9211
    %v9251 = vunpack.c.l.b16 %v9212
    %v9252 = vunpack.c.l.b16 %v9213
    %v9253 = vunpack.c.l.b16 %v9214
    %v9254 = vunpack.c.l.b16 %v9215
    %v9255 = vunpack.c.l.b16 %v9216
    %v9256 = vpack.c.b16 %v9241, %v9240
    %v9257 = vpack.c.b16 %v9243, %v9242
    %v9258 = vpack.c.b16 %v9245, %v9244
    %v9259 = vpack.c.b16 %v9247, %v9246
    %v9260 = vpack.c.b16 %v9249, %v9248
    %v9261 = vpack.c.b16 %v9251, %v9250
    %v9262 = vpack.c.b16 %v9253, %v9252
    %v9263 = vpack.c.b16 %v9255, %v9254
    %9272 = vmatprep.subr.bf16.mxu0 0
    %9273 = vmatpush1.bf16.msra.mxu0 %v9256
    %9274 = vmatprep.subr.bf16.mxu0 0
    %9275 = vmatpush1.bf16.msra.mxu0 %v9257
    %9276 = vmatprep.subr.bf16.mxu0 0
    %9277 = vmatpush1.bf16.msra.mxu0 %v9258
    %9278 = vmatprep.subr.bf16.mxu0 0
    %9279 = vmatpush1.bf16.msra.mxu0 %v9259
    %9280 = vmatprep.subr.bf16.mxu0 0
    %9281 = vmatpush1.bf16.msra.mxu0 %v9260
    %9282 = vmatprep.subr.bf16.mxu0 0
    %9283 = vmatpush1.bf16.msra.mxu0 %v9261
    %9284 = vmatprep.subr.bf16.mxu0 0
    %9285 = vmatpush1.bf16.msra.mxu0 %v9262
    %9286 = vmatprep.subr.bf16.mxu0 0
    %9287 = vmatpush1.bf16.msra.mxu0 %v9263
    %9288 = vmatprep.subr.bf16.mxu0 0
    %9289 = vmatpush1.bf16.msra.mxu0 0
    %9290 = vmatprep.subr.bf16.mxu0 0
    %9291 = vmatpush1.bf16.msra.mxu0 0
    %9292 = vmatprep.subr.bf16.mxu0 0
    %9293 = vmatpush1.bf16.msra.mxu0 0
    %9294 = vmatprep.subr.bf16.mxu0 0
    %9295 = vmatpush1.bf16.msra.mxu0 0
    %9296 = vmatprep.subr.bf16.mxu0 0
    %9297 = vmatpush1.bf16.msra.mxu0 0
    %9298 = vmatprep.subr.bf16.mxu0 0
    %9299 = vmatpush1.bf16.msra.mxu0 0
    %9300 = vmatprep.subr.bf16.mxu0 0
    %9301 = vmatpush1.bf16.msra.mxu0 0
    %9302 = vmatprep.subr.bf16.mxu0 0
    %9303 = vmatpush1.bf16.msra.mxu0 0
    %9304 = vmatprep.mubr.bf16.mxu0 0
    %9305 = vmatmul.mubr.bf16.gmra.mrb[0].mxu0 %v9197
    %v9306 = vpop.f32.mrb[0].mxu0
    %v9307 = vadd.f32 %v9222, %v9306
    %v9308 = vpop.f32.mrb[0].mxu0
    %v9309 = vpop.f32.mrb[0].mxu0
    %v9310 = vadd.f32 %v9222, %v9309
    %v9311 = vpop.f32.mrb[0].mxu0
    %9312 = vmatprep.mubr.bf16.mxu0 0
    %9313 = vmatmul.mubr.bf16.gmra.mrb[0].mxu0 %v9198
    %v9314 = vpop.f32.mrb[0].mxu0
    %v9315 = vadd.f32 %v9222, %v9314
    %v9316 = vpop.f32.mrb[0].mxu0
    %v9317 = vpop.f32.mrb[0].mxu0
    %v9318 = vadd.f32 %v9222, %v9317
    %v9319 = vpop.f32.mrb[0].mxu0
    %9320 = vmatprep.mubr.bf16.mxu0 0
    %9321 = vmatmul.mubr.bf16.gmra.mrb[0].mxu0 %v9199
    %v9322 = vpop.f32.mrb[0].mxu0
    %v9323 = vadd.f32 %v9222, %v9322
    %v9324 = vpop.f32.mrb[0].mxu0
    %v9325 = vpop.f32.mrb[0].mxu0
    %v9326 = vadd.f32 %v9222, %v9325
    %v9327 = vpop.f32.mrb[0].mxu0
    %9328 = vmatprep.mubr.bf16.mxu0 0
    %9329 = vmatmul.mubr.bf16.gmra.mrb[0].mxu0 %v9200
    %v9330 = vpop.f32.mrb[0].mxu0
    %v9331 = vadd.f32 %v9222, %v9330
    %v9332 = vpop.f32.mrb[0].mxu0
    %v9333 = vpop.f32.mrb[0].mxu0
    %v9334 = vadd.f32 %v9222, %v9333
    %v9335 = vpop.f32.mrb[0].mxu0
    %9336 = vdwg.mxu0
    %v9337 = vmax.f32 %v9307, 0.0
    %v9338 = vmax.f32 %v9310, 0.0
    %v9339 = vmax.f32 %v9315, 0.0
    %v9340 = vmax.f32 %v9318, 0.0
    %v9341 = vmax.f32 %v9323, 0.0
    %v9342 = vmax.f32 %v9326, 0.0
    %v9343 = vmax.f32 %v9331, 0.0
    %v9344 = vmax.f32 %v9334, 0.0
    %v9345 = vpack.c.bf16 %v9338, %v9337
    %v9346 = vpack.c.bf16 %v9340, %v9339
    %v9347 = vpack.c.bf16 %v9342, %v9341
    %v9348 = vpack.c.bf16 %v9344, %v9343
    %v9349 = vld [vmem:[%s9] sm:$0xf]
    %v9350 = vld [vmem:[%s9 + $0x4] sm:$0xf]
    %v9351 = vld [vmem:[%s9 + $0x8] sm:$0xf]
    %v9352 = vld [vmem:[%s9 + $0xc] sm:$0xf]
    %v9353 = vld [vmem:[%s9 + $0x10] sm:$0xf]
    %v9354 = vld [vmem:[%s9 + $0x14] sm:$0xf]
    %v9355 = vld [vmem:[%s9 + $0x18] sm:$0xf]
    %v9356 = vld [vmem:[%s9 + $0x1c] sm:$0xf]
    %v9357 = vld [vmem:[%s9 + $0x20] sm:$0xf]
    %v9358 = vld [vmem:[%s9 + $0x24] sm:$0xf]
    %v9359 = vld [vmem:[%s9 + $0x28] sm:$0xf]
    %v9360 = vld [vmem:[%s9 + $0x2c] sm:$0xf]
    %v9361 = vld [vmem:[%s9 + $0x30] sm:$0xf]
    %v9362 = vld [vmem:[%s9 + $0x34] sm:$0xf]
    %v9363 = vld [vmem:[%s9 + $0x38] sm:$0xf]
    %v9364 = vld [vmem:[%s9 + $0x3c] sm:$0xf]
    %v9365 = vld [vmem:[%s10] sm:$0x1]
    %v9367 = vlaneseq
    %v9368 = vshrl.u32 %v9367, 7
    %v9369 = vsub.s32 0, %v9368
    %v9370 = vrot.slane %v9365, %v9369
    %v9388 = vunpack.c.l.b16 %v9349
    %v9389 = vunpack.c.l.b16 %v9350
    %v9390 = vunpack.c.l.b16 %v9351
    %v9391 = vunpack.c.l.b16 %v9352
    %v9392 = vunpack.c.l.b16 %v9353
    %v9393 = vunpack.c.l.b16 %v9354
    %v9394 = vunpack.c.l.b16 %v9355
    %v9395 = vunpack.c.l.b16 %v9356
    %v9396 = vunpack.c.l.b16 %v9357
    %v9397 = vunpack.c.l.b16 %v9358
    %v9398 = vunpack.c.l.b16 %v9359
    %v9399 = vunpack.c.l.b16 %v9360
    %v9400 = vunpack.c.l.b16 %v9361
    %v9401 = vunpack.c.l.b16 %v9362
    %v9402 = vunpack.c.l.b16 %v9363
    %v9403 = vunpack.c.l.b16 %v9364
    %v9404 = vpack.c.b16 %v9389, %v9388
    %v9405 = vpack.c.b16 %v9391, %v9390
    %v9406 = vpack.c.b16 %v9393, %v9392
    %v9407 = vpack.c.b16 %v9395, %v9394
    %v9408 = vpack.c.b16 %v9397, %v9396
    %v9409 = vpack.c.b16 %v9399, %v9398
    %v9410 = vpack.c.b16 %v9401, %v9400
    %v9411 = vpack.c.b16 %v9403, %v9402
    %9420 = vmatprep.subr.bf16.mxu0 0
    %9421 = vmatpush1.bf16.msra.mxu0 %v9404
    %9422 = vmatprep.subr.bf16.mxu0 0
    %9423 = vmatpush1.bf16.msra.mxu0 %v9405
    %9424 = vmatprep.subr.bf16.mxu0 0
    %9425 = vmatpush1.bf16.msra.mxu0 %v9406
    %9426 = vmatprep.subr.bf16.mxu0 0
    %9427 = vmatpush1.bf16.msra.mxu0 %v9407
    %9428 = vmatprep.subr.bf16.mxu0 0
    %9429 = vmatpush1.bf16.msra.mxu0 %v9408
    %9430 = vmatprep.subr.bf16.mxu0 0
    %9431 = vmatpush1.bf16.msra.mxu0 %v9409
    %9432 = vmatprep.subr.bf16.mxu0 0
    %9433 = vmatpush1.bf16.msra.mxu0 %v9410
    %9434 = vmatprep.subr.bf16.mxu0 0
    %9435 = vmatpush1.bf16.msra.mxu0 %v9411
    %9436 = vmatprep.subr.bf16.mxu0 0
    %9437 = vmatpush1.bf16.msra.mxu0 0
    %9438 = vmatprep.subr.bf16.mxu0 0
    %9439 = vmatpush1.bf16.msra.mxu0 0
    %9440 = vmatprep.subr.bf16.mxu0 0
    %9441 = vmatpush1.bf16.msra.mxu0 0
    %9442 = vmatprep.subr.bf16.mxu0 0
    %9443 = vmatpush1.bf16.msra.mxu0 0
    %9444 = vmatprep.subr.bf16.mxu0 0
    %9445 = vmatpush1.bf16.msra.mxu0 0
    %9446 = vmatprep.subr.bf16.mxu0 0
    %9447 = vmatpush1.bf16.msra.mxu0 0
    %9448 = vmatprep.subr.bf16.mxu0 0
    %9449 = vmatpush1.bf16.msra.mxu0 0
    %9450 = vmatprep.subr.bf16.mxu0 0
    %9451 = vmatpush1.bf16.msra.mxu0 0
    %9452 = vmatprep.mubr.bf16.mxu0 0
    %9453 = vmatmul.mubr.bf16.gmra.mrb[0].mxu0 %v9345
    %v9454 = vpop.f32.mrb[0].mxu0
    %v9455 = vadd.f32 %v9370, %v9454
    %v9456 = vpop.f32.mrb[0].mxu0
    %v9457 = vpop.f32.mrb[0].mxu0
    %v9458 = vadd.f32 %v9370, %v9457
    %v9459 = vpop.f32.mrb[0].mxu0
    %9460 = vmatprep.mubr.bf16.mxu0 0
    %9461 = vmatmul.mubr.bf16.gmra.mrb[0].mxu0 %v9346
    %v9462 = vpop.f32.mrb[0].mxu0
    %v9463 = vadd.f32 %v9370, %v9462
    %v9464 = vpop.f32.mrb[0].mxu0
    %v9465 = vpop.f32.mrb[0].mxu0
    %v9466 = vadd.f32 %v9370, %v9465
    %v9467 = vpop.f32.mrb[0].mxu0
    %9468 = vmatprep.mubr.bf16.mxu0 0
    %9469 = vmatmul.mubr.bf16.gmra.mrb[0].mxu0 %v9347
    %v9470 = vpop.f32.mrb[0].mxu0
    %v9471 = vadd.f32 %v9370, %v9470
    %v9472 = vpop.f32.mrb[0].mxu0
    %v9473 = vpop.f32.mrb[0].mxu0
    %v9474 = vadd.f32 %v9370, %v9473
    %v9475 = vpop.f32.mrb[0].mxu0
    %9476 = vmatprep.mubr.bf16.mxu0 0
    %9477 = vmatmul.mubr.bf16.gmra.mrb[0].mxu0 %v9348
    %v9478 = vpop.f32.mrb[0].mxu0
    %v9479 = vadd.f32 %v9370, %v9478
    %v9480 = vpop.f32.mrb[0].mxu0
    %v9481 = vpop.f32.mrb[0].mxu0
    %v9482 = vadd.f32 %v9370, %v9481
    %v9483 = vpop.f32.mrb[0].mxu0
    %9484 = vdwg.mxu0
    %9485 = vst [vmem:[%s11] sm:$0xff] %v9455
    %9486 = vst [vmem:[%s11 + $0x8] sm:$0xff] %v9458
    %9487 = vst [vmem:[%s11 + $0x10] sm:$0xff] %v9463
    %9488 = vst [vmem:[%s11 + $0x18] sm:$0xff] %v9466
    %9489 = vst [vmem:[%s11 + $0x20] sm:$0xff] %v9471
    %9490 = vst [vmem:[%s11 + $0x28] sm:$0xff] %v9474
    %9491 = vst [vmem:[%s11 + $0x30] sm:$0xff] %v9479
    %9492 = vst [vmem:[%s11 + $0x38] sm:$0xff] %v9482
    // Predicated region
    $region54: #{net_forward.1} parent=1 // pred_check
      _
    $region55: #{net_forward.1} parent=1 // pred_check_branch
      %9494 = sbr.rel (0) target = $region57
    $region56: #{net_forward.1} parent=1 // pred_region
      _
    $region57: #{net_forward.1} parent=1 // pred_fallthru
      _
    // Predicated region
    $region58: #{net_forward.1} parent=1 // pred_check
      _
    $region59: #{net_forward.1} parent=1 // pred_check_branch
      %9496 = sbr.rel (0) target = $region61
    $region60: #{net_forward.1} parent=1 // pred_region
      _
    $region61: #{net_forward.1} parent=1 // pred_fallthru
      _
    %9497 = vsyncpa [#allocation3], 1
    %9498 = vsyncpa [#allocation5], 1

</llo_original>
